<compile_context>
chip_gen: v6e
topology: v6e:2x2x1
jax: 0.10.0
libtpu: 0.0.40
codegen_flags: <defaults>
</compile_context>

<pallas_src>
import jax
import jax.numpy as jnp
from jax.experimental import pallas as pl
from jax.experimental.pallas import tpu as pltpu


# ---------------------------------------------------------------------------
# Tiling helpers
# ---------------------------------------------------------------------------

def _choose_k_tiling(k, max_tile=3072):
    """Return (k_pad, tk): padded reduction length and a K tile dividing it.

    Prefers the largest multiple of 128 <= max_tile that divides the
    128-padded K.  If the best divisor is degenerate (< 1024, which would
    explode the grid-step count at ~0.35 us/step), it instead fixes
    tk = max_tile and zero-pads K up to a multiple of it (zero padding keeps
    the reduction exact).
    """
    k128 = ((k + 127) // 128) * 128
    best = 0
    t = 128
    while t <= min(k128, max_tile):
        if k128 % t == 0:
            best = t
        t += 128
    if best == k128 or best >= 1024:
        return k128, best
    tk = max_tile - (max_tile % 128)
    k_pad = ((k128 + tk - 1) // tk) * tk
    return k_pad, tk


def _tensorcores_per_device():
    """Best-effort megacore detection.

    v5e / v6e expose one TensorCore per JAX device; v4 / v5p / v7x expose two.
    Unknown kinds default to 1 (always correct, merely forgoes the split).
    """
    try:
        kind = jax.devices()[0].device_kind.lower()
    except Exception:
        return 1
    if "v7" in kind or "7x" in kind:
        return 2
    if "v4" in kind or "v5p" in kind:
        return 2
    return 1


# ---------------------------------------------------------------------------
# Kernels
# ---------------------------------------------------------------------------

def _layer1_kernel(x_ref, w1_ref, b1_ref, h1_ref, acc_ref):
    """Layer 1: h1 = LeakyReLU(x @ W1 + b1).

    Grid = (n_split, k_steps):
      axis 0 ("parallel"): N-column half of W1 (one per TensorCore on
                           dual-TC chips),
      axis 1 ("arbitrary"): walk of the K (reduction) axis.
    W1 is streamed from HBM as bf16; accumulation is f32 on the MXU.
    """
    k = pl.program_id(1)

    @pl.when(k == 0)
    def _():
        acc_ref[...] = jnp.zeros_like(acc_ref)

    acc_ref[...] += jnp.dot(
        x_ref[...].astype(jnp.bfloat16),   # bf16 MXU path; x itself is tiny
        w1_ref[...],                       # already bf16 in HBM
        preferred_element_type=jnp.float32,
    )

    @pl.when(k == pl.num_programs(1) - 1)
    def _():
        h = acc_ref[...] + b1_ref[...]
        h1_ref[...] = jnp.where(h >= 0, h, 0.2 * h).astype(h1_ref.dtype)


def _tail_kernel(h1_ref, w2_ref, b2_ref, w3_ref, b3_ref, w4_ref, b4_ref,
                 o_ref):
    """Layers 2-4 (+ sigmoid), all weights resident in VMEM (single grid step)."""
    h = jnp.dot(h1_ref[...], w2_ref[...],
                preferred_element_type=jnp.float32) + b2_ref[...]
    h = jnp.where(h >= 0, h, 0.2 * h)
    h = jnp.dot(h, w3_ref[...],
                preferred_element_type=jnp.float32) + b3_ref[...]
    h = jnp.where(h >= 0, h, 0.2 * h)
    h = jnp.dot(h, w4_ref[...],
                preferred_element_type=jnp.float32) + b4_ref[...]
    o_ref[...] = (1.0 / (1.0 + jnp.exp(-h))).astype(o_ref.dtype)


# ---------------------------------------------------------------------------
# Wrappers
# ---------------------------------------------------------------------------

def prepare_discriminator_params(params, max_k_tile=3072):
    """One-time weight prep: pad W1 along K, cast the W1 stream to bf16.

    Do this ONCE outside the training loop so the 36 MB f32 -> 18 MB bf16
    conversion is not re-paid on every forward call.
    """
    (w1, b1), (w2, b2), (w3, b3), (w4, b4) = params
    k = w1.shape[0]
    k_pad, tk = _choose_k_tiling(k, max_k_tile)
    w1_p = jnp.pad(w1, ((0, k_pad - k), (0, 0))).astype(jnp.bfloat16)
    return dict(w1=w1_p, b1=b1, w2=w2, b2=b2, w3=w3, b3=b3, w4=w4, b4=b4,
                k=k, k_pad=k_pad, tk=tk)


def discriminator_forward(x, prepped):
    """Full Discriminator forward.

    Throughput note: the kernel is W1-bandwidth bound and flat in batch up to
    ~128 rows, so concatenate real+fake batches into a single call.
    """
    B, K = x.shape
    assert K == prepped["k"], (K, prepped["k"])
    k_pad, tk = prepped["k_pad"], prepped["tk"]
    w1, b1 = prepped["w1"], prepped["b1"]
    N1 = w1.shape[1]

    # Megacore split of W1's output columns (only on dual-TC chips).
    n_split = _tensorcores_per_device()
    if N1 % (n_split * 128) != 0:
        n_split = 1
    tn1 = N1 // n_split

    # Pad batch to full sublane granules; zero-pad K (exact for the reduction).
    B_pad = max(8, ((B + 7) // 8) * 8)
    x_p = jnp.pad(x, ((0, B_pad - B), (0, k_pad - K)))

    # ---- Kernel 1: layer 1 (the big, bandwidth-bound matmul) --------------
    h1 = pl.pallas_call(
        _layer1_kernel,
        out_shape=jax.ShapeDtypeStruct((B_pad, N1), jnp.float32),
        grid_spec=pltpu.PrefetchScalarGridSpec(
            num_scalar_prefetch=0,
            grid=(n_split, k_pad // tk),
            in_specs=[
                pl.BlockSpec((B_pad, tk), lambda j, k: (0, k)),   # x K-tile
                pl.BlockSpec((tk, tn1), lambda j, k: (k, j)),     # W1 (bf16)
                pl.BlockSpec((1, tn1), lambda j, k: (0, j)),      # b1 half
            ],
            out_specs=pl.BlockSpec((B_pad, tn1), lambda j, k: (0, j)),
            scratch_shapes=[pltpu.VMEM((B_pad, tn1), jnp.float32)],
        ),
        compiler_params=pltpu.CompilerParams(
            # axis 0: independent column halves -> parallel (megacore);
            # axis 1: reduction with shared accumulator -> arbitrary.
            dimension_semantics=("parallel", "arbitrary"),
            # bf16 W1 tiles: 2 x (tk x tn1 x 2B) <= ~12 MB per core at
            # tk=2944 -> 32 MiB is comfortable on v5e/v6e/v7x.
            vmem_limit_bytes=32 * 1024 * 1024,
        ),
    )(x_p, w1, b1)

    # ---- Kernel 2: tiny tail (layers 2-4 + sigmoid), weights resident -----
    out = pl.pallas_call(
        _tail_kernel,
        out_shape=jax.ShapeDtypeStruct((B_pad, 1), x.dtype),
        grid_spec=pltpu.PrefetchScalarGridSpec(
            num_scalar_prefetch=0,
            grid=(1,),
            in_specs=[
                pl.BlockSpec((B_pad, N1), lambda i: (0, 0)),
                pl.BlockSpec(prepped["w2"].shape, lambda i: (0, 0)),
                pl.BlockSpec(prepped["b2"].shape, lambda i: (0, 0)),
                pl.BlockSpec(prepped["w3"].shape, lambda i: (0, 0)),
                pl.BlockSpec(prepped["b3"].shape, lambda i: (0, 0)),
                pl.BlockSpec(prepped["w4"].shape, lambda i: (0, 0)),
                pl.BlockSpec(prepped["b4"].shape, lambda i: (0, 0)),
            ],
            out_specs=pl.BlockSpec((B_pad, 1), lambda i: (0, 0)),
        ),
        compiler_params=pltpu.CompilerParams(
            dimension_semantics=("arbitrary",),
        ),
    )(h1, prepped["w2"], prepped["b2"], prepped["w3"], prepped["b3"],
      prepped["w4"], prepped["b4"])

    return out[:B]


# ---------------------------------------------------------------------------
# Reference + init
# ---------------------------------------------------------------------------

def init_discriminator_params(key):
    """Deterministic init matching torch.nn.Linear shapes (stored transposed)."""
    dims = [8748, 1024, 512, 256, 1]
    params = []
    for i in range(len(dims) - 1):
        fan_in, fan_out = dims[i], dims[i + 1]
        key, kw, kb = jax.random.split(key, 3)
        bound = 1.0 / (fan_in ** 0.5)
        w = jax.random.uniform(kw, (fan_in, fan_out), jnp.float32, -bound, bound)
        b = jax.random.uniform(kb, (1, fan_out), jnp.float32, -bound, bound)
        params.append((w, b))
    return params


def discriminator_reference(x, params, w1_bf16=False):
    """Pure-JAX reference; optionally replicates the bf16 W1 stream."""
    (w1, b1) = params[0]
    if w1_bf16:
        h = jnp.dot(x.astype(jnp.bfloat16), w1.astype(jnp.bfloat16),
                    preferred_element_type=jnp.float32) + b1
    else:
        h = jnp.dot(x, w1, preferred_element_type=jnp.float32) + b1
    h = jnp.where(h >= 0, h, 0.2 * h)
    for i, (w, b) in enumerate(params[1:]):
        h = jnp.dot(h, w, preferred_element_type=jnp.float32) + b
        if i < 2:
            h = jnp.where(h >= 0, h, 0.2 * h)
        else:
            h = 1.0 / (1.0 + jnp.exp(-h))
    return h


if __name__ == "__main__":
    key = jax.random.PRNGKey(0)
    key, kx = jax.random.split(key)

    B = 4
    x = jax.random.normal(kx, (B, 8748), jnp.float32)
    params = init_discriminator_params(key)

    prepped = prepare_discriminator_params(params)   # one-time bf16 cast + pad
    out = jax.block_until_ready(discriminator_forward(x, prepped))
    assert out.shape == (B, 1), out.shape

    # Tight check: reference that uses the same bf16 W1 stream.
    ref_bf16 = discriminator_reference(x, params, w1_bf16=True)
    assert jnp.allclose(out, ref_bf16, atol=2e-3, rtol=2e-3), (out, ref_bf16)

    # Loose sanity check against the full-f32 (PyTorch-equivalent) reference;
    # post-sigmoid deviation from the bf16 W1 stream is tiny at these scales.
    ref_f32 = discriminator_reference(x, params, w1_bf16=False)
    assert jnp.allclose(out, ref_f32, atol=2e-2, rtol=2e-2), (out, ref_f32)

    print("KERNEL_OK")
</pallas_src>

<mosaic_0001>
module attributes {stable_mosaic.version = 11 : i64} {
  func.func @_layer1_kernel(%arg0: i32, %arg1: i32, %arg2: memref<8x2944xf32, #tpu.memory_space<vmem>>, %arg3: memref<2944x1024xbf16, #tpu.memory_space<vmem>>, %arg4: memref<1x1024xf32, #tpu.memory_space<vmem>>, %arg5: memref<8x1024xf32, #tpu.memory_space<vmem>>, %arg6: memref<8x1024xf32, #tpu.memory_space<vmem>>) attributes {dimension_semantics = [#tpu.dimension_semantics<parallel>, #tpu.dimension_semantics<arbitrary>], iteration_bounds = array<i64: 1, 3>, scalar_prefetch = 0 : i64, scratch_operands = 1 : i64, tpu.core_type = #tpu.core_type<tc>, window_params = [{transform_indices = @transform_0, window_bounds = array<i64: 8, 2944>}, {transform_indices = @transform_1, window_bounds = array<i64: 2944, 1024>}, {transform_indices = @transform_2, window_bounds = array<i64: 1, 1024>}, {transform_indices = @transform_3, window_bounds = array<i64: 8, 1024>}]} {
    %c0_i32 = arith.constant 0 : i32
    %0 = arith.cmpi eq, %arg1, %c0_i32 : i32
    %1 = arith.extui %0 : i1 to i32
    %c0_i32_0 = arith.constant 0 : i32
    %2 = arith.cmpi ne, %1, %c0_i32_0 : i32
    scf.if %2 {
      %cst_9 = arith.constant 0.000000e+00 : f32
      %13 = vector.broadcast %cst_9 : f32 to vector<8x1024xf32>
      %c0_10 = arith.constant 0 : index
      %c0_11 = arith.constant 0 : index
      %14 = vector.load %arg6[%c0_10, %c0_11] : memref<8x1024xf32, #tpu.memory_space<vmem>>, vector<8x1024xf32>
      tpu.vector_store %arg6[%c0_10, %c0_11], %13 {strides = array<i32>} : memref<8x1024xf32, #tpu.memory_space<vmem>>, vector<8x1024xf32>,
    } else {
    }
    %c0 = arith.constant 0 : index
    %c0_1 = arith.constant 0 : index
    %3 = vector.load %arg6[%c0, %c0_1] : memref<8x1024xf32, #tpu.memory_space<vmem>>, vector<8x1024xf32>
    %c0_2 = arith.constant 0 : index
    %c0_3 = arith.constant 0 : index
    %4 = vector.load %arg2[%c0_2, %c0_3] : memref<8x2944xf32, #tpu.memory_space<vmem>>, vector<8x2944xf32>
    %5 = arith.truncf %4 : vector<8x2944xf32> to vector<8x2944xbf16>
    %c0_4 = arith.constant 0 : index
    %c0_5 = arith.constant 0 : index
    %6 = vector.load %arg3[%c0_4, %c0_5] : memref<2944x1024xbf16, #tpu.memory_space<vmem>>, vector<2944x1024xbf16>
    %cst = arith.constant dense<0.000000e+00> : vector<8x1024xf32>
    %7 = tpu.matmul %5, %6, %cst {dimension_numbers = #tpu.dot_dimension_numbers<[1], [0], [0], [1], [0, 0, 1, 1], [], []>} : vector<8x2944xbf16>, vector<2944x1024xbf16>, vector<8x1024xf32> -> vector<8x1024xf32>
    %8 = arith.addf %3, %7 : vector<8x1024xf32>
    %c0_6 = arith.constant 0 : index
    %c0_7 = arith.constant 0 : index
    %9 = vector.load %arg6[%c0_6, %c0_7] : memref<8x1024xf32, #tpu.memory_space<vmem>>, vector<8x1024xf32>
    tpu.vector_store %arg6[%c0_6, %c0_7], %8 {strides = array<i32>} : memref<8x1024xf32, #tpu.memory_space<vmem>>, vector<8x1024xf32>,
    %c2_i32 = arith.constant 2 : i32
    %10 = arith.cmpi eq, %arg1, %c2_i32 : i32
    %11 = arith.extui %10 : i1 to i32
    %c0_i32_8 = arith.constant 0 : i32
    %12 = arith.cmpi ne, %11, %c0_i32_8 : i32
    scf.if %12 {
      %c0_9 = arith.constant 0 : index
      %c0_10 = arith.constant 0 : index
      %13 = vector.load %arg6[%c0_9, %c0_10] : memref<8x1024xf32, #tpu.memory_space<vmem>>, vector<8x1024xf32>
      %c0_11 = arith.constant 0 : index
      %c0_12 = arith.constant 0 : index
      %14 = vector.load %arg4[%c0_11, %c0_12] : memref<1x1024xf32, #tpu.memory_space<vmem>>, vector<1x1024xf32>
      %15 = vector.broadcast %14 : vector<1x1024xf32> to vector<8x1024xf32>
      %16 = arith.addf %13, %15 : vector<8x1024xf32>
      %cst_13 = arith.constant 0.000000e+00 : f32
      %17 = vector.broadcast %cst_13 : f32 to vector<8x1024xf32>
      %18 = arith.cmpf oge, %16, %17 : vector<8x1024xf32>
      %cst_14 = arith.constant 2.000000e-01 : f32
      %19 = vector.broadcast %cst_14 : f32 to vector<8x1024xf32>
      %20 = arith.mulf %19, %16 : vector<8x1024xf32>
      %21 = arith.select %18, %16, %20 : vector<8x1024xi1>, vector<8x1024xf32>
      %c0_15 = arith.constant 0 : index
      %c0_16 = arith.constant 0 : index
      %22 = vector.load %arg5[%c0_15, %c0_16] : memref<8x1024xf32, #tpu.memory_space<vmem>>, vector<8x1024xf32>
      tpu.vector_store %arg5[%c0_15, %c0_16], %21 {strides = array<i32>} : memref<8x1024xf32, #tpu.memory_space<vmem>>, vector<8x1024xf32>,
    } else {
    }
    return
  }
  func.func @transform_0(%arg0: i32, %arg1: i32) -> (i32, i32) {
    %c0_i32 = arith.constant 0 : i32
    %c0_i32_0 = arith.constant 0 : i32
    return %c0_i32, %arg1 : i32, i32
  }
  func.func @transform_1(%arg0: i32, %arg1: i32) -> (i32, i32) {
    %c0_i32 = arith.constant 0 : i32
    return %arg1, %arg0 : i32, i32
  }
  func.func @transform_2(%arg0: i32, %arg1: i32) -> (i32, i32) {
    %c0_i32 = arith.constant 0 : i32
    %c0_i32_0 = arith.constant 0 : i32
    return %c0_i32, %arg0 : i32, i32
  }
  func.func @transform_3(%arg0: i32, %arg1: i32) -> (i32, i32) {
    %c0_i32 = arith.constant 0 : i32
    %c0_i32_0 = arith.constant 0 : i32
    return %c0_i32, %arg0 : i32, i32
  }
}

</mosaic_0001>

<llo_original>
// kernel: tpu_custom_call.1
$region0: #{tpu_custom_call.1}
  #allocation0 [shape = 'u32[]', space=smem, size = 0x4, offset = 0x4, fixed_abs, tag = 'smem constant byte address 0x4 - core index']
  #allocation1 [shape = 'u32[144,128]{1,0:T(1,128)}', space=vmem, size = 0x12000, scoped, tag = 'internal scratch']
  #allocation2 [shape = 'f32[8,1024]{1,0:T(8,128)}', space=vmem, size = 0x8000, scoped, tag = 'scratch operand']
  %s0 = inlined_call_operand.hbm [shape: f32[8,8832], index: 0, kind: input, shape index: {}]
  %s1 = inlined_call_operand.hbm [shape: bf16[8832,1024], index: 1, kind: input, shape index: {}]
  %s2 = inlined_call_operand.hbm [shape: f32[1,1024], index: 2, kind: input, shape index: {}]
  %s3 = inlined_call_operand.hbm [shape: f32[8,1024], index: 3, kind: output, shape index: {}]
  %s4 = sld [smem:[#allocation0]]
  $region65: #{tpu_custom_call.1} parent=0
    _
  %s6 = ssub.s32 1, %s4
  %s7 = scalar_select 0, %s6, %s4
  $region1: #{tpu_custom_call.1} parent=0
    #allocation3 [shape = 'u8[188416]{0}', space=vmem, size = 0x2e000, scoped, tag = 'input window, operand 0']
    #allocation4 [shape = 's32[2]{0}', space=sflag, size = 0x8, scoped, tag = 'scoped memory for tpu_custom_call.1']
    #allocation5 [shape = 's32[2]{0}', space=sflag, size = 0x8, scoped, tag = 'scoped memory for tpu_custom_call.1']
    #allocation6 [shape = 'u8[12058624]{0}', space=vmem, size = 0xb80000, scoped, tag = 'input window, operand 1']
    #allocation7 [shape = 's32[2]{0}', space=sflag, size = 0x8, scoped, tag = 'scoped memory for tpu_custom_call.1']
    #allocation8 [shape = 'u8[4096]{0}', space=vmem, size = 0x1000, scoped, tag = 'input window, operand 2, single buffered']
    #allocation9 [shape = 'u8[32768]{0}', space=vmem, size = 0x8000, scoped, tag = 'output window, operand 0, single buffered']
    %8 = vsyncpa [#allocation4], 0
    %s9 = scalar_lea.sflag [#allocation4], 1
    %10 = vsyncpa %s9, 0
    %11 = vsyncpa [#allocation7], 0
    %s12 = scalar_lea.sflag [#allocation7], 1
    %13 = vsyncpa %s12, 0
    %14 = vsyncpa [#allocation5], 0
    loop: start=0, step=1, limit=5
    $region2: #{tpu_custom_call.1} parent=1 // loop_pre_header
      _
    $region3: #{tpu_custom_call.1} parent=1 // loop_header
      %s16 = sphi 0, %s20
      %p17 = scmp.ge.s32.totalorder %s16, 5
      %s23 = sphi 0, %s35
      %s24 = sphi 0, %s31
      %s25 = sphi 0, %s23
      %s26 = sphi 0, %s24
      %s27 = sphi 0, %s25
      %s28 = sphi 0, %s26
      %s38 = sphi 0, %s40
      %s41 = sphi 0, %s38
      %s42 = sphi 0, %s41
      %s58 = sphi 0, %s42
      %s66 = sphi 0, %s68
      %s69 = sphi 0, %s66
      %s70 = sphi 0, %s69
      %s86 = sphi 0, %s70
      %s92 = sphi 0, %s94
      %s95 = sphi 0, %s92
      %s96 = sphi 0, %s95
      %s112 = sphi 0, %s96
      %s118 = sphi 0, %s120
      %s121 = sphi 0, %s118
      %s122 = sphi 0, %s121
      %s138 = sphi 0, %s122
    $region4: #{tpu_custom_call.1} parent=1 // loop_header_branch
      %19 = sbr.rel (%p17) target = $region8
    $region5: #{tpu_custom_call.1} parent=1 // loop_body
      %s21 = ssub.s32 %s16, 1
      %s22 = ssub.s32 %s16, 2
      %s29 = sadd.s32 1, %s24
      %p30 = scmp.ge.s32.totalorder %s29, 3
      %s31 = scalar_select %p30, 0, %s29
      %s32 = sadd.s32 1, %s23
      %s33 = scalar_select %p30, %s32, %s23
      %p34 = scmp.ge.s32.totalorder %s33, 1
      %s35 = scalar_select %p34, 0, %s33
      %s36 = ssub.s32 %s24, %s31
      %p37 = scmp.eq.s32.totalorder %s36, 0
      %s39 = sadd.s32 %s38, 1
      %s40 = scalar_select %p37, %s38, %s39
      %p43 = pneg %p37
      %p44 = scmp.eq.s32.totalorder %s16, 2
      %p45 = por %p43, %p44
      %p46 = scmp.ne.s32.totalorder %s38, %s41
      %p47 = scmp.eq.s32.totalorder %s16, 0
      %p48 = por %p46, %p47
      %p49 = scmp.ne.s32.totalorder %s38, %s41
      %p50 = scmp.eq.s32.totalorder %s21, 2
      %p51 = por %p49, %p50
      %p52 = scmp.ne.s32.totalorder %s41, %s42
      %p53 = scmp.eq.s32.totalorder %s21, 0
      %p54 = por %p52, %p53
      %p55 = scmp.ne.s32.totalorder %s41, %s42
      %p56 = scmp.eq.s32.totalorder %s22, 2
      %p57 = por %p55, %p56
      %p59 = scmp.ne.s32.totalorder %s42, %s58
      %p60 = scmp.eq.s32.totalorder %s22, 0
      %p61 = por %p59, %p60
      %s62 = ssub.s32 %s24, %s31
      %s63 = ssub.s32 %s23, %s35
      %s64 = sor.u32 %s62, %s63
      %p65 = scmp.eq.s32.totalorder %s64, 0
      %s67 = sadd.s32 %s66, 1
      %s68 = scalar_select %p65, %s66, %s67
      %p71 = pneg %p65
      %p72 = scmp.eq.s32.totalorder %s16, 2
      %p73 = por %p71, %p72
      %p74 = scmp.ne.s32.totalorder %s66, %s69
      %p75 = scmp.eq.s32.totalorder %s16, 0
      %p76 = por %p74, %p75
      %p77 = scmp.ne.s32.totalorder %s66, %s69
      %p78 = scmp.eq.s32.totalorder %s21, 2
      %p79 = por %p77, %p78
      %p80 = scmp.ne.s32.totalorder %s69, %s70
      %p81 = scmp.eq.s32.totalorder %s21, 0
      %p82 = por %p80, %p81
      %p83 = scmp.ne.s32.totalorder %s69, %s70
      %p84 = scmp.eq.s32.totalorder %s22, 2
      %p85 = por %p83, %p84
      %p87 = scmp.ne.s32.totalorder %s70, %s86
      %p88 = scmp.eq.s32.totalorder %s22, 0
      %p89 = por %p87, %p88
      %s90 = ssub.s32 %s23, %s35
      %p91 = scmp.eq.s32.totalorder %s90, 0
      %s93 = sadd.s32 %s92, 1
      %s94 = scalar_select %p91, %s92, %s93
      %p97 = pneg %p91
      %p98 = scmp.eq.s32.totalorder %s16, 2
      %p99 = por %p97, %p98
      %p100 = scmp.ne.s32.totalorder %s92, %s95
      %p101 = scmp.eq.s32.totalorder %s16, 0
      %p102 = por %p100, %p101
      %p103 = scmp.ne.s32.totalorder %s92, %s95
      %p104 = scmp.eq.s32.totalorder %s21, 2
      %p105 = por %p103, %p104
      %p106 = scmp.ne.s32.totalorder %s95, %s96
      %p107 = scmp.eq.s32.totalorder %s21, 0
      %p108 = por %p106, %p107
      %p109 = scmp.ne.s32.totalorder %s95, %s96
      %p110 = scmp.eq.s32.totalorder %s22, 2
      %p111 = por %p109, %p110
      %p113 = scmp.ne.s32.totalorder %s96, %s112
      %p114 = scmp.eq.s32.totalorder %s22, 0
      %p115 = por %p113, %p114
      %s116 = ssub.s32 %s23, %s35
      %p117 = scmp.eq.s32.totalorder %s116, 0
      %s119 = sadd.s32 %s118, 1
      %s120 = scalar_select %p117, %s118, %s119
      %p123 = pneg %p117
      %p124 = scmp.eq.s32.totalorder %s16, 2
      %p125 = por %p123, %p124
      %p126 = scmp.ne.s32.totalorder %s118, %s121
      %p127 = scmp.eq.s32.totalorder %s16, 0
      %p128 = por %p126, %p127
      %p129 = scmp.ne.s32.totalorder %s118, %s121
      %p130 = scmp.eq.s32.totalorder %s21, 2
      %p131 = por %p129, %p130
      %p132 = scmp.ne.s32.totalorder %s121, %s122
      %p133 = scmp.eq.s32.totalorder %s21, 0
      %p134 = por %p132, %p133
      %p135 = scmp.ne.s32.totalorder %s121, %s122
      %p136 = scmp.eq.s32.totalorder %s22, 2
      %p137 = por %p135, %p136
      %p139 = scmp.ne.s32.totalorder %s122, %s138
      %p140 = scmp.eq.s32.totalorder %s22, 0
      %p141 = por %p139, %p140
      %p142 = scmp.le.s32.totalorder 1, %s16
      %p143 = scmp.lt.s32.totalorder %s16, 4
      %p144 = pnand %p142, %p143
      %p145 = pneg %p144
      // Predicated region
      $region9: #{tpu_custom_call.1} parent=5 // pred_check
        _
      $region10: #{tpu_custom_call.1} parent=5 // pred_check_branch
        %147 = sbr.rel (%p144) target = $region12
      $region11: #{tpu_custom_call.1} parent=5 // pred_region
        %s148 = ssub.s32 %s16, 1
        // Predicated region
        $region13: #{tpu_custom_call.1} parent=11 // pred_check
          %p149 = pneg %p108
        $region14: #{tpu_custom_call.1} parent=11 // pred_check_branch
          %151 = sbr.rel (%p149) target = $region16
        $region15: #{tpu_custom_call.1} parent=11 // pred_region
          %s152 = smul.u32 8, %s25
          %s154 = ssub.s32 128, 128
          %155 = vsyncadd [#allocation7], %s154
          %s156 = smul.addr %s152, 16
          %s157 = scalar_lea.hbm %s2, %s156
          %s159 = sshll.u32 [#allocation8], 4
          %s160 = int_to_ptr.vmem [resolvable:$true] %s159
          %162 = dma.hbm_to_vmem [thread:$0]  %s157, 128, %s160, [#allocation7]
        $region16: #{tpu_custom_call.1} parent=11 // pred_fallthru
          _
      $region12: #{tpu_custom_call.1} parent=5 // pred_fallthru
        _
      %p163 = scmp.lt.s32.totalorder %s16, 3
      // Predicated region
      $region17: #{tpu_custom_call.1} parent=5 // pred_check
        %p164 = pneg %p163
      $region18: #{tpu_custom_call.1} parent=5 // pred_check_branch
        %166 = sbr.rel (%p164) target = $region20
      $region19: #{tpu_custom_call.1} parent=5 // pred_region
        // Predicated region
        $region21: #{tpu_custom_call.1} parent=19 // pred_check
          %p167 = pneg %p48
        $region22: #{tpu_custom_call.1} parent=19 // pred_check_branch
          %169 = sbr.rel (%p167) target = $region24
        $region23: #{tpu_custom_call.1} parent=19 // pred_region
          %s170 = sand.u32 %s38, 1
          %s171 = scalar_lea.sflag [#allocation4], %s170
          %s172 = sand.u32 %s38, 1
          %s173 = smul.addr %s172, 184
          %s174 = scalar_lea.vmem [#allocation3], %s173
          %s175 = smul.u32 23, %s24
          %s177 = ssub.s32 2944, 2944
          %178 = vsyncadd %s171, %s177
          %s179 = smul.addr %s175, 128
          %s180 = scalar_lea.hbm %s0, %s179
          %s182 = sshll.u32 %s174, 4
          %s183 = int_to_ptr.vmem [resolvable:$true] %s182
          %185 = dma.hbm_to_vmem [thread:$0]  %s180, 2944, %s183, %s171
        $region24: #{tpu_custom_call.1} parent=19 // pred_fallthru
          _
        // Predicated region
        $region25: #{tpu_custom_call.1} parent=19 // pred_check
          %p186 = pneg %p76
        $region26: #{tpu_custom_call.1} parent=19 // pred_check_branch
          %188 = sbr.rel (%p186) target = $region28
        $region27: #{tpu_custom_call.1} parent=19 // pred_region
          %s189 = sand.u32 %s16, 1
          %s190 = scalar_lea.sflag [#allocation7], %s189
          %s191 = sand.u32 %s66, 1
          %s192 = smul.addr %s191, 11776
          %s193 = scalar_lea.vmem [#allocation6], %s192
          %s194 = smul.u32 368, %s24
          %s195 = smul.u32 8, %s23
          %s197 = ssub.s32 188416, 188416
          %198 = vsyncadd %s190, %s197
          %s199 = smul.addr %s194, 8
          %s200 = sadd.s32 %s195, %s199
          %s201 = smul.addr %s200, 64
          %s202 = scalar_lea.hbm %s1, %s201
          %s203 = sshll.u32 %s193, 4
          %s204 = int_to_ptr.vmem [resolvable:$true] %s203
          %209 = dma.hbm_to_vmem [thread:$0]  %s202, 188416, %s204, %s190, 512, 512, 32
        $region28: #{tpu_custom_call.1} parent=19 // pred_fallthru
          _
      $region20: #{tpu_custom_call.1} parent=5 // pred_fallthru
        _
      %p210 = scmp.le.s32.totalorder 1, %s16
      %p211 = scmp.lt.s32.totalorder %s16, 4
      %p212 = pnand %p210, %p211
      %p213 = pneg %p212
      // Predicated region
      $region29: #{tpu_custom_call.1} parent=5 // pred_check
        _
      $region30: #{tpu_custom_call.1} parent=5 // pred_check_branch
        %215 = sbr.rel (%p212) target = $region32
      $region31: #{tpu_custom_call.1} parent=5 // pred_region
        %s216 = ssub.s32 %s16, 1
        %s217 = sand.u32 %s41, 1
        %s218 = scalar_lea.sflag [#allocation4], %s217
        %s219 = sand.u32 %s41, 1
        %s220 = smul.addr %s219, 184
        %s221 = scalar_lea.vmem [#allocation3], %s220
        // Predicated region
        $region33: #{tpu_custom_call.1} parent=31 // pred_check
          %p222 = pneg %p54
        $region34: #{tpu_custom_call.1} parent=31 // pred_check_branch
          %224 = sbr.rel (%p222) target = $region36
        $region35: #{tpu_custom_call.1} parent=31 // pred_region
          %225 = dma.done %s218, 2944
        $region36: #{tpu_custom_call.1} parent=31 // pred_fallthru
          _
        %s226 = sand.u32 %s21, 1
        %s227 = scalar_lea.sflag [#allocation7], %s226
        %s228 = sand.u32 %s69, 1
        %s229 = smul.addr %s228, 11776
        %s230 = scalar_lea.vmem [#allocation6], %s229
        // Predicated region
        $region37: #{tpu_custom_call.1} parent=31 // pred_check
          %p231 = pneg %p82
        $region38: #{tpu_custom_call.1} parent=31 // pred_check_branch
          %233 = sbr.rel (%p231) target = $region40
        $region39: #{tpu_custom_call.1} parent=31 // pred_region
          %234 = dma.done %s227, 188416
        $region40: #{tpu_custom_call.1} parent=31 // pred_fallthru
          _
        // Predicated region
        $region41: #{tpu_custom_call.1} parent=31 // pred_check
          %p235 = pneg %p108
        $region42: #{tpu_custom_call.1} parent=31 // pred_check_branch
          %237 = sbr.rel (%p235) target = $region44
        $region43: #{tpu_custom_call.1} parent=31 // pred_region
          %238 = dma.done [#allocation7], 128
        $region44: #{tpu_custom_call.1} parent=31 // pred_fallthru
          _
        %s239 = sand.u32 %s41, 1
        %s240 = scalar_lea.sflag [#allocation4], %s239
        %s241 = sand.u32 %s41, 1
        %s242 = smul.addr %s241, 184
        %s243 = scalar_lea.vmem [#allocation3], %s242
        %p244 = pneg %p54
        %p245 = pneg %p51
        %s246 = sand.u32 %s21, 1
        %s247 = scalar_lea.sflag [#allocation7], %s246
        %s248 = sand.u32 %s69, 1
        %s249 = smul.addr %s248, 11776
        %s250 = scalar_lea.vmem [#allocation6], %s249
        %p251 = pneg %p82
        %p252 = pneg %p79
        %p253 = pneg %p108
        %p254 = pneg %p105
        %p255 = pneg %p134
        %p256 = pneg %p131
        %s257 = smul.u32 23, %s26
        %s258 = smul.u32 368, %s26
        %s259 = smul.u32 8, %s25
        %s260 = smul.u32 8, %s25
        %s261 = smul.u32 8, %s25
        %p263 = scmp.eq.s32.totalorder %s26, 0
        // Predicated region
        $region45: #{tpu_custom_call.1} parent=31 // pred_check
          %p264 = pneg %p263
        $region46: #{tpu_custom_call.1} parent=31 // pred_check_branch
          %266 = sbr.rel (%p264) target = $region48
        $region47: #{tpu_custom_call.1} parent=31 // pred_region
          %267 = vst [vmem:[#allocation2] sm:$0xff] 0.0
          %268 = vst [vmem:[#allocation2 + $0x8] sm:$0xff] 0.0
          %269 = vst [vmem:[#allocation2 + $0x10] sm:$0xff] 0.0
          %270 = vst [vmem:[#allocation2 + $0x18] sm:$0xff] 0.0
          %271 = vst [vmem:[#allocation2 + $0x20] sm:$0xff] 0.0
          %272 = vst [vmem:[#allocation2 + $0x28] sm:$0xff] 0.0
          %273 = vst [vmem:[#allocation2 + $0x30] sm:$0xff] 0.0
          %274 = vst [vmem:[#allocation2 + $0x38] sm:$0xff] 0.0
        $region48: #{tpu_custom_call.1} parent=31 // pred_fallthru
          _
        %v275 = vld [vmem:[#allocation2] sm:$0xff]
        %v276 = vld [vmem:[#allocation2 + $0x8] sm:$0xff]
        %v277 = vld [vmem:[#allocation2 + $0x10] sm:$0xff]
        %v278 = vld [vmem:[#allocation2 + $0x18] sm:$0xff]
        %v279 = vld [vmem:[#allocation2 + $0x20] sm:$0xff]
        %v280 = vld [vmem:[#allocation2 + $0x28] sm:$0xff]
        %v281 = vld [vmem:[#allocation2 + $0x30] sm:$0xff]
        %v282 = vld [vmem:[#allocation2 + $0x38] sm:$0xff]
        %v283 = vld [vmem:[%s221] sm:$0xff]
        %v284 = vld [vmem:[%s221 + $0x8] sm:$0xff]
        %v285 = vld [vmem:[%s221 + $0x10] sm:$0xff]
        %v286 = vld [vmem:[%s221 + $0x18] sm:$0xff]
        %v287 = vld [vmem:[%s221 + $0x20] sm:$0xff]
        %v288 = vld [vmem:[%s221 + $0x28] sm:$0xff]
        %v289 = vld [vmem:[%s221 + $0x30] sm:$0xff]
        %v290 = vld [vmem:[%s221 + $0x38] sm:$0xff]
        %v291 = vld [vmem:[%s221 + $0x40] sm:$0xff]
        %v292 = vld [vmem:[%s221 + $0x48] sm:$0xff]
        %v293 = vld [vmem:[%s221 + $0x50] sm:$0xff]
        %v294 = vld [vmem:[%s221 + $0x58] sm:$0xff]
        %v295 = vld [vmem:[%s221 + $0x60] sm:$0xff]
        %v296 = vld [vmem:[%s221 + $0x68] sm:$0xff]
        %v297 = vld [vmem:[%s221 + $0x70] sm:$0xff]
        %v298 = vld [vmem:[%s221 + $0x78] sm:$0xff]
        %v299 = vld [vmem:[%s221 + $0x80] sm:$0xff]
        %v300 = vld [vmem:[%s221 + $0x88] sm:$0xff]
        %v301 = vld [vmem:[%s221 + $0x90] sm:$0xff]
        %v302 = vld [vmem:[%s221 + $0x98] sm:$0xff]
        %v303 = vld [vmem:[%s221 + $0xa0] sm:$0xff]
        %v304 = vld [vmem:[%s221 + $0xa8] sm:$0xff]
        %v305 = vld [vmem:[%s221 + $0xb0] sm:$0xff]
        %v306 = vpack.c.bf16 %v283, %v283
        %v307 = vpack.c.bf16 %v284, %v284
        %v308 = vpack.c.bf16 %v285, %v285
        %v309 = vpack.c.bf16 %v286, %v286
        %v310 = vpack.c.bf16 %v287, %v287
        %v311 = vpack.c.bf16 %v288, %v288
        %v312 = vpack.c.bf16 %v289, %v289
        %v313 = vpack.c.bf16 %v290, %v290
        %v314 = vpack.c.bf16 %v291, %v291
        %v315 = vpack.c.bf16 %v292, %v292
        %v316 = vpack.c.bf16 %v293, %v293
        %v317 = vpack.c.bf16 %v294, %v294
        %v318 = vpack.c.bf16 %v295, %v295
        %v319 = vpack.c.bf16 %v296, %v296
        %v320 = vpack.c.bf16 %v297, %v297
        %v321 = vpack.c.bf16 %v298, %v298
        %v322 = vpack.c.bf16 %v299, %v299
        %v323 = vpack.c.bf16 %v300, %v300
        %v324 = vpack.c.bf16 %v301, %v301
        %v325 = vpack.c.bf16 %v302, %v302
        %v326 = vpack.c.bf16 %v303, %v303
        %v327 = vpack.c.bf16 %v304, %v304
        %v328 = vpack.c.bf16 %v305, %v305
        %v329 = vld [vmem:[%s230] sm:$0xff]
        %v330 = vld [vmem:[%s230 + $0x8] sm:$0xff]
        %v331 = vld [vmem:[%s230 + $0x10] sm:$0xff]
        %v332 = vld [vmem:[%s230 + $0x18] sm:$0xff]
        %v333 = vld [vmem:[%s230 + $0x20] sm:$0xff]
        %v334 = vld [vmem:[%s230 + $0x28] sm:$0xff]
        %v335 = vld [vmem:[%s230 + $0x30] sm:$0xff]
        %v336 = vld [vmem:[%s230 + $0x38] sm:$0xff]
        %v337 = vld [vmem:[%s230 + $0x40] sm:$0xff]
        %v338 = vld [vmem:[%s230 + $0x48] sm:$0xff]
        %v339 = vld [vmem:[%s230 + $0x50] sm:$0xff]
        %v340 = vld [vmem:[%s230 + $0x58] sm:$0xff]
        %v341 = vld [vmem:[%s230 + $0x60] sm:$0xff]
        %v342 = vld [vmem:[%s230 + $0x68] sm:$0xff]
        %v343 = vld [vmem:[%s230 + $0x70] sm:$0xff]
        %v344 = vld [vmem:[%s230 + $0x78] sm:$0xff]
        %v345 = vld [vmem:[%s230 + $0x80] sm:$0xff]
        %v346 = vld [vmem:[%s230 + $0x88] sm:$0xff]
        %v347 = vld [vmem:[%s230 + $0x90] sm:$0xff]
        %v348 = vld [vmem:[%s230 + $0x98] sm:$0xff]
        %v349 = vld [vmem:[%s230 + $0xa0] sm:$0xff]
        %v350 = vld [vmem:[%s230 + $0xa8] sm:$0xff]
        %v351 = vld [vmem:[%s230 + $0xb0] sm:$0xff]
        %v352 = vld [vmem:[%s230 + $0xb8] sm:$0xff]
        %v353 = vld [vmem:[%s230 + $0xc0] sm:$0xff]
        %v354 = vld [vmem:[%s230 + $0xc8] sm:$0xff]
        %v355 = vld [vmem:[%s230 + $0xd0] sm:$0xff]
        %v356 = vld [vmem:[%s230 + $0xd8] sm:$0xff]
        %v357 = vld [vmem:[%s230 + $0xe0] sm:$0xff]
        %v358 = vld [vmem:[%s230 + $0xe8] sm:$0xff]
        %v359 = vld [vmem:[%s230 + $0xf0] sm:$0xff]
        %v360 = vld [vmem:[%s230 + $0xf8] sm:$0xff]
        %v361 = vld [vmem:[%s230 + $0x100] sm:$0xff]
        %v362 = vld [vmem:[%s230 + $0x108] sm:$0xff]
        %v363 = vld [vmem:[%s230 + $0x110] sm:$0xff]
        %v364 = vld [vmem:[%s230 + $0x118] sm:$0xff]
        %v365 = vld [vmem:[%s230 + $0x120] sm:$0xff]
        %v366 = vld [vmem:[%s230 + $0x128] sm:$0xff]
        %v367 = vld [vmem:[%s230 + $0x130] sm:$0xff]
        %v368 = vld [vmem:[%s230 + $0x138] sm:$0xff]
        %v369 = vld [vmem:[%s230 + $0x140] sm:$0xff]
        %v370 = vld [vmem:[%s230 + $0x148] sm:$0xff]
        %v371 = vld [vmem:[%s230 + $0x150] sm:$0xff]
        %v372 = vld [vmem:[%s230 + $0x158] sm:$0xff]
        %v373 = vld [vmem:[%s230 + $0x160] sm:$0xff]
        %v374 = vld [vmem:[%s230 + $0x168] sm:$0xff]
        %v375 = vld [vmem:[%s230 + $0x170] sm:$0xff]
        %v376 = vld [vmem:[%s230 + $0x178] sm:$0xff]
        %v377 = vld [vmem:[%s230 + $0x180] sm:$0xff]
        %v378 = vld [vmem:[%s230 + $0x188] sm:$0xff]
        %v379 = vld [vmem:[%s230 + $0x190] sm:$0xff]
        %v380 = vld [vmem:[%s230 + $0x198] sm:$0xff]
        %v381 = vld [vmem:[%s230 + $0x1a0] sm:$0xff]
        %v382 = vld [vmem:[%s230 + $0x1a8] sm:$0xff]
        %v383 = vld [vmem:[%s230 + $0x1b0] sm:$0xff]
        %v384 = vld [vmem:[%s230 + $0x1b8] sm:$0xff]
        %v385 = vld [vmem:[%s230 + $0x1c0] sm:$0xff]
        %v386 = vld [vmem:[%s230 + $0x1c8] sm:$0xff]
        %v387 = vld [vmem:[%s230 + $0x1d0] sm:$0xff]
        %v388 = vld [vmem:[%s230 + $0x1d8] sm:$0xff]
        %v389 = vld [vmem:[%s230 + $0x1e0] sm:$0xff]
        %v390 = vld [vmem:[%s230 + $0x1e8] sm:$0xff]
        %v391 = vld [vmem:[%s230 + $0x1f0] sm:$0xff]
        %v392 = vld [vmem:[%s230 + $0x1f8] sm:$0xff]
        %v393 = vld [vmem:[%s230 + $0x200] sm:$0xff]
        %v394 = vld [vmem:[%s230 + $0x208] sm:$0xff]
        %v395 = vld [vmem:[%s230 + $0x210] sm:$0xff]
        %v396 = vld [vmem:[%s230 + $0x218] sm:$0xff]
        %v397 = vld [vmem:[%s230 + $0x220] sm:$0xff]
        %v398 = vld [vmem:[%s230 + $0x228] sm:$0xff]
        %v399 = vld [vmem:[%s230 + $0x230] sm:$0xff]
        %v400 = vld [vmem:[%s230 + $0x238] sm:$0xff]
        %v401 = vld [vmem:[%s230 + $0x240] sm:$0xff]
        %v402 = vld [vmem:[%s230 + $0x248] sm:$0xff]
        %v403 = vld [vmem:[%s230 + $0x250] sm:$0xff]
        %v404 = vld [vmem:[%s230 + $0x258] sm:$0xff]
        %v405 = vld [vmem:[%s230 + $0x260] sm:$0xff]
        %v406 = vld [vmem:[%s230 + $0x268] sm:$0xff]
        %v407 = vld [vmem:[%s230 + $0x270] sm:$0xff]
        %v408 = vld [vmem:[%s230 + $0x278] sm:$0xff]
        %v409 = vld [vmem:[%s230 + $0x280] sm:$0xff]
        %v410 = vld [vmem:[%s230 + $0x288] sm:$0xff]
        %v411 = vld [vmem:[%s230 + $0x290] sm:$0xff]
        %v412 = vld [vmem:[%s230 + $0x298] sm:$0xff]
        %v413 = vld [vmem:[%s230 + $0x2a0] sm:$0xff]
        %v414 = vld [vmem:[%s230 + $0x2a8] sm:$0xff]
        %v415 = vld [vmem:[%s230 + $0x2b0] sm:$0xff]
        %v416 = vld [vmem:[%s230 + $0x2b8] sm:$0xff]
        %v417 = vld [vmem:[%s230 + $0x2c0] sm:$0xff]
        %v418 = vld [vmem:[%s230 + $0x2c8] sm:$0xff]
        %v419 = vld [vmem:[%s230 + $0x2d0] sm:$0xff]
        %v420 = vld [vmem:[%s230 + $0x2d8] sm:$0xff]
        %v421 = vld [vmem:[%s230 + $0x2e0] sm:$0xff]
        %v422 = vld [vmem:[%s230 + $0x2e8] sm:$0xff]
        %v423 = vld [vmem:[%s230 + $0x2f0] sm:$0xff]
        %v424 = vld [vmem:[%s230 + $0x2f8] sm:$0xff]
        %v425 = vld [vmem:[%s230 + $0x300] sm:$0xff]
        %v426 = vld [vmem:[%s230 + $0x308] sm:$0xff]
        %v427 = vld [vmem:[%s230 + $0x310] sm:$0xff]
        %v428 = vld [vmem:[%s230 + $0x318] sm:$0xff]
        %v429 = vld [vmem:[%s230 + $0x320] sm:$0xff]
        %v430 = vld [vmem:[%s230 + $0x328] sm:$0xff]
        %v431 = vld [vmem:[%s230 + $0x330] sm:$0xff]
        %v432 = vld [vmem:[%s230 + $0x338] sm:$0xff]
        %v433 = vld [vmem:[%s230 + $0x340] sm:$0xff]
        %v434 = vld [vmem:[%s230 + $0x348] sm:$0xff]
        %v435 = vld [vmem:[%s230 + $0x350] sm:$0xff]
        %v436 = vld [vmem:[%s230 + $0x358] sm:$0xff]
        %v437 = vld [vmem:[%s230 + $0x360] sm:$0xff]
        %v438 = vld [vmem:[%s230 + $0x368] sm:$0xff]
        %v439 = vld [vmem:[%s230 + $0x370] sm:$0xff]
        %v440 = vld [vmem:[%s230 + $0x378] sm:$0xff]
        %v441 = vld [vmem:[%s230 + $0x380] sm:$0xff]
        %v442 = vld [vmem:[%s230 + $0x388] sm:$0xff]
        %v443 = vld [vmem:[%s230 + $0x390] sm:$0xff]
        %v444 = vld [vmem:[%s230 + $0x398] sm:$0xff]
        %v445 = vld [vmem:[%s230 + $0x3a0] sm:$0xff]
        %v446 = vld [vmem:[%s230 + $0x3a8] sm:$0xff]
        %v447 = vld [vmem:[%s230 + $0x3b0] sm:$0xff]
        %v448 = vld [vmem:[%s230 + $0x3b8] sm:$0xff]
        %v449 = vld [vmem:[%s230 + $0x3c0] sm:$0xff]
        %v450 = vld [vmem:[%s230 + $0x3c8] sm:$0xff]
        %v451 = vld [vmem:[%s230 + $0x3d0] sm:$0xff]
        %v452 = vld [vmem:[%s230 + $0x3d8] sm:$0xff]
        %v453 = vld [vmem:[%s230 + $0x3e0] sm:$0xff]
        %v454 = vld [vmem:[%s230 + $0x3e8] sm:$0xff]
        %v455 = vld [vmem:[%s230 + $0x3f0] sm:$0xff]
        %v456 = vld [vmem:[%s230 + $0x3f8] sm:$0xff]
        %v457 = vld [vmem:[%s230 + $0x400] sm:$0xff]
        %v458 = vld [vmem:[%s230 + $0x408] sm:$0xff]
        %v459 = vld [vmem:[%s230 + $0x410] sm:$0xff]
        %v460 = vld [vmem:[%s230 + $0x418] sm:$0xff]
        %v461 = vld [vmem:[%s230 + $0x420] sm:$0xff]
        %v462 = vld [vmem:[%s230 + $0x428] sm:$0xff]
        %v463 = vld [vmem:[%s230 + $0x430] sm:$0xff]
        %v464 = vld [vmem:[%s230 + $0x438] sm:$0xff]
        %v465 = vld [vmem:[%s230 + $0x440] sm:$0xff]
        %v466 = vld [vmem:[%s230 + $0x448] sm:$0xff]
        %v467 = vld [vmem:[%s230 + $0x450] sm:$0xff]
        %v468 = vld [vmem:[%s230 + $0x458] sm:$0xff]
        %v469 = vld [vmem:[%s230 + $0x460] sm:$0xff]
        %v470 = vld [vmem:[%s230 + $0x468] sm:$0xff]
        %v471 = vld [vmem:[%s230 + $0x470] sm:$0xff]
        %v472 = vld [vmem:[%s230 + $0x478] sm:$0xff]
        %v473 = vld [vmem:[%s230 + $0x480] sm:$0xff]
        %v474 = vld [vmem:[%s230 + $0x488] sm:$0xff]
        %v475 = vld [vmem:[%s230 + $0x490] sm:$0xff]
        %v476 = vld [vmem:[%s230 + $0x498] sm:$0xff]
        %v477 = vld [vmem:[%s230 + $0x4a0] sm:$0xff]
        %v478 = vld [vmem:[%s230 + $0x4a8] sm:$0xff]
        %v479 = vld [vmem:[%s230 + $0x4b0] sm:$0xff]
        %v480 = vld [vmem:[%s230 + $0x4b8] sm:$0xff]
        %v481 = vld [vmem:[%s230 + $0x4c0] sm:$0xff]
        %v482 = vld [vmem:[%s230 + $0x4c8] sm:$0xff]
        %v483 = vld [vmem:[%s230 + $0x4d0] sm:$0xff]
        %v484 = vld [vmem:[%s230 + $0x4d8] sm:$0xff]
        %v485 = vld [vmem:[%s230 + $0x4e0] sm:$0xff]
        %v486 = vld [vmem:[%s230 + $0x4e8] sm:$0xff]
        %v487 = vld [vmem:[%s230 + $0x4f0] sm:$0xff]
        %v488 = vld [vmem:[%s230 + $0x4f8] sm:$0xff]
        %v489 = vld [vmem:[%s230 + $0x500] sm:$0xff]
        %v490 = vld [vmem:[%s230 + $0x508] sm:$0xff]
        %v491 = vld [vmem:[%s230 + $0x510] sm:$0xff]
        %v492 = vld [vmem:[%s230 + $0x518] sm:$0xff]
        %v493 = vld [vmem:[%s230 + $0x520] sm:$0xff]
        %v494 = vld [vmem:[%s230 + $0x528] sm:$0xff]
        %v495 = vld [vmem:[%s230 + $0x530] sm:$0xff]
        %v496 = vld [vmem:[%s230 + $0x538] sm:$0xff]
        %v497 = vld [vmem:[%s230 + $0x540] sm:$0xff]
        %v498 = vld [vmem:[%s230 + $0x548] sm:$0xff]
        %v499 = vld [vmem:[%s230 + $0x550] sm:$0xff]
        %v500 = vld [vmem:[%s230 + $0x558] sm:$0xff]
        %v501 = vld [vmem:[%s230 + $0x560] sm:$0xff]
        %v502 = vld [vmem:[%s230 + $0x568] sm:$0xff]
        %v503 = vld [vmem:[%s230 + $0x570] sm:$0xff]
        %v504 = vld [vmem:[%s230 + $0x578] sm:$0xff]
        %v505 = vld [vmem:[%s230 + $0x580] sm:$0xff]
        %v506 = vld [vmem:[%s230 + $0x588] sm:$0xff]
        %v507 = vld [vmem:[%s230 + $0x590] sm:$0xff]
        %v508 = vld [vmem:[%s230 + $0x598] sm:$0xff]
        %v509 = vld [vmem:[%s230 + $0x5a0] sm:$0xff]
        %v510 = vld [vmem:[%s230 + $0x5a8] sm:$0xff]
        %v511 = vld [vmem:[%s230 + $0x5b0] sm:$0xff]
        %v512 = vld [vmem:[%s230 + $0x5b8] sm:$0xff]
        %v513 = vld [vmem:[%s230 + $0x5c0] sm:$0xff]
        %v514 = vld [vmem:[%s230 + $0x5c8] sm:$0xff]
        %v515 = vld [vmem:[%s230 + $0x5d0] sm:$0xff]
        %v516 = vld [vmem:[%s230 + $0x5d8] sm:$0xff]
        %v517 = vld [vmem:[%s230 + $0x5e0] sm:$0xff]
        %v518 = vld [vmem:[%s230 + $0x5e8] sm:$0xff]
        %v519 = vld [vmem:[%s230 + $0x5f0] sm:$0xff]
        %v520 = vld [vmem:[%s230 + $0x5f8] sm:$0xff]
        %v521 = vld [vmem:[%s230 + $0x600] sm:$0xff]
        %v522 = vld [vmem:[%s230 + $0x608] sm:$0xff]
        %v523 = vld [vmem:[%s230 + $0x610] sm:$0xff]
        %v524 = vld [vmem:[%s230 + $0x618] sm:$0xff]
        %v525 = vld [vmem:[%s230 + $0x620] sm:$0xff]
        %v526 = vld [vmem:[%s230 + $0x628] sm:$0xff]
        %v527 = vld [vmem:[%s230 + $0x630] sm:$0xff]
        %v528 = vld [vmem:[%s230 + $0x638] sm:$0xff]
        %v529 = vld [vmem:[%s230 + $0x640] sm:$0xff]
        %v530 = vld [vmem:[%s230 + $0x648] sm:$0xff]
        %v531 = vld [vmem:[%s230 + $0x650] sm:$0xff]
        %v532 = vld [vmem:[%s230 + $0x658] sm:$0xff]
        %v533 = vld [vmem:[%s230 + $0x660] sm:$0xff]
        %v534 = vld [vmem:[%s230 + $0x668] sm:$0xff]
        %v535 = vld [vmem:[%s230 + $0x670] sm:$0xff]
        %v536 = vld [vmem:[%s230 + $0x678] sm:$0xff]
        %v537 = vld [vmem:[%s230 + $0x680] sm:$0xff]
        %v538 = vld [vmem:[%s230 + $0x688] sm:$0xff]
        %v539 = vld [vmem:[%s230 + $0x690] sm:$0xff]
        %v540 = vld [vmem:[%s230 + $0x698] sm:$0xff]
        %v541 = vld [vmem:[%s230 + $0x6a0] sm:$0xff]
        %v542 = vld [vmem:[%s230 + $0x6a8] sm:$0xff]
        %v543 = vld [vmem:[%s230 + $0x6b0] sm:$0xff]
        %v544 = vld [vmem:[%s230 + $0x6b8] sm:$0xff]
        %v545 = vld [vmem:[%s230 + $0x6c0] sm:$0xff]
        %v546 = vld [vmem:[%s230 + $0x6c8] sm:$0xff]
        %v547 = vld [vmem:[%s230 + $0x6d0] sm:$0xff]
        %v548 = vld [vmem:[%s230 + $0x6d8] sm:$0xff]
        %v549 = vld [vmem:[%s230 + $0x6e0] sm:$0xff]
        %v550 = vld [vmem:[%s230 + $0x6e8] sm:$0xff]
        %v551 = vld [vmem:[%s230 + $0x6f0] sm:$0xff]
        %v552 = vld [vmem:[%s230 + $0x6f8] sm:$0xff]
        %v553 = vld [vmem:[%s230 + $0x700] sm:$0xff]
        %v554 = vld [vmem:[%s230 + $0x708] sm:$0xff]
        %v555 = vld [vmem:[%s230 + $0x710] sm:$0xff]
        %v556 = vld [vmem:[%s230 + $0x718] sm:$0xff]
        %v557 = vld [vmem:[%s230 + $0x720] sm:$0xff]
        %v558 = vld [vmem:[%s230 + $0x728] sm:$0xff]
        %v559 = vld [vmem:[%s230 + $0x730] sm:$0xff]
        %v560 = vld [vmem:[%s230 + $0x738] sm:$0xff]
        %v561 = vld [vmem:[%s230 + $0x740] sm:$0xff]
        %v562 = vld [vmem:[%s230 + $0x748] sm:$0xff]
        %v563 = vld [vmem:[%s230 + $0x750] sm:$0xff]
        %v564 = vld [vmem:[%s230 + $0x758] sm:$0xff]
        %v565 = vld [vmem:[%s230 + $0x760] sm:$0xff]
        %v566 = vld [vmem:[%s230 + $0x768] sm:$0xff]
        %v567 = vld [vmem:[%s230 + $0x770] sm:$0xff]
        %v568 = vld [vmem:[%s230 + $0x778] sm:$0xff]
        %v569 = vld [vmem:[%s230 + $0x780] sm:$0xff]
        %v570 = vld [vmem:[%s230 + $0x788] sm:$0xff]
        %v571 = vld [vmem:[%s230 + $0x790] sm:$0xff]
        %v572 = vld [vmem:[%s230 + $0x798] sm:$0xff]
        %v573 = vld [vmem:[%s230 + $0x7a0] sm:$0xff]
        %v574 = vld [vmem:[%s230 + $0x7a8] sm:$0xff]
        %v575 = vld [vmem:[%s230 + $0x7b0] sm:$0xff]
        %v576 = vld [vmem:[%s230 + $0x7b8] sm:$0xff]
        %v577 = vld [vmem:[%s230 + $0x7c0] sm:$0xff]
        %v578 = vld [vmem:[%s230 + $0x7c8] sm:$0xff]
        %v579 = vld [vmem:[%s230 + $0x7d0] sm:$0xff]
        %v580 = vld [vmem:[%s230 + $0x7d8] sm:$0xff]
        %v581 = vld [vmem:[%s230 + $0x7e0] sm:$0xff]
        %v582 = vld [vmem:[%s230 + $0x7e8] sm:$0xff]
        %v583 = vld [vmem:[%s230 + $0x7f0] sm:$0xff]
        %v584 = vld [vmem:[%s230 + $0x7f8] sm:$0xff]
        %v585 = vld [vmem:[%s230 + $0x800] sm:$0xff]
        %v586 = vld [vmem:[%s230 + $0x808] sm:$0xff]
        %v587 = vld [vmem:[%s230 + $0x810] sm:$0xff]
        %v588 = vld [vmem:[%s230 + $0x818] sm:$0xff]
        %v589 = vld [vmem:[%s230 + $0x820] sm:$0xff]
        %v590 = vld [vmem:[%s230 + $0x828] sm:$0xff]
        %v591 = vld [vmem:[%s230 + $0x830] sm:$0xff]
        %v592 = vld [vmem:[%s230 + $0x838] sm:$0xff]
        %v593 = vld [vmem:[%s230 + $0x840] sm:$0xff]
        %v594 = vld [vmem:[%s230 + $0x848] sm:$0xff]
        %v595 = vld [vmem:[%s230 + $0x850] sm:$0xff]
        %v596 = vld [vmem:[%s230 + $0x858] sm:$0xff]
        %v597 = vld [vmem:[%s230 + $0x860] sm:$0xff]
        %v598 = vld [vmem:[%s230 + $0x868] sm:$0xff]
        %v599 = vld [vmem:[%s230 + $0x870] sm:$0xff]
        %v600 = vld [vmem:[%s230 + $0x878] sm:$0xff]
        %v601 = vld [vmem:[%s230 + $0x880] sm:$0xff]
        %v602 = vld [vmem:[%s230 + $0x888] sm:$0xff]
        %v603 = vld [vmem:[%s230 + $0x890] sm:$0xff]
        %v604 = vld [vmem:[%s230 + $0x898] sm:$0xff]
        %v605 = vld [vmem:[%s230 + $0x8a0] sm:$0xff]
        %v606 = vld [vmem:[%s230 + $0x8a8] sm:$0xff]
        %v607 = vld [vmem:[%s230 + $0x8b0] sm:$0xff]
        %v608 = vld [vmem:[%s230 + $0x8b8] sm:$0xff]
        %v609 = vld [vmem:[%s230 + $0x8c0] sm:$0xff]
        %v610 = vld [vmem:[%s230 + $0x8c8] sm:$0xff]
        %v611 = vld [vmem:[%s230 + $0x8d0] sm:$0xff]
        %v612 = vld [vmem:[%s230 + $0x8d8] sm:$0xff]
        %v613 = vld [vmem:[%s230 + $0x8e0] sm:$0xff]
        %v614 = vld [vmem:[%s230 + $0x8e8] sm:$0xff]
        %v615 = vld [vmem:[%s230 + $0x8f0] sm:$0xff]
        %v616 = vld [vmem:[%s230 + $0x8f8] sm:$0xff]
        %v617 = vld [vmem:[%s230 + $0x900] sm:$0xff]
        %v618 = vld [vmem:[%s230 + $0x908] sm:$0xff]
        %v619 = vld [vmem:[%s230 + $0x910] sm:$0xff]
        %v620 = vld [vmem:[%s230 + $0x918] sm:$0xff]
        %v621 = vld [vmem:[%s230 + $0x920] sm:$0xff]
        %v622 = vld [vmem:[%s230 + $0x928] sm:$0xff]
        %v623 = vld [vmem:[%s230 + $0x930] sm:$0xff]
        %v624 = vld [vmem:[%s230 + $0x938] sm:$0xff]
        %v625 = vld [vmem:[%s230 + $0x940] sm:$0xff]
        %v626 = vld [vmem:[%s230 + $0x948] sm:$0xff]
        %v627 = vld [vmem:[%s230 + $0x950] sm:$0xff]
        %v628 = vld [vmem:[%s230 + $0x958] sm:$0xff]
        %v629 = vld [vmem:[%s230 + $0x960] sm:$0xff]
        %v630 = vld [vmem:[%s230 + $0x968] sm:$0xff]
        %v631 = vld [vmem:[%s230 + $0x970] sm:$0xff]
        %v632 = vld [vmem:[%s230 + $0x978] sm:$0xff]
        %v633 = vld [vmem:[%s230 + $0x980] sm:$0xff]
        %v634 = vld [vmem:[%s230 + $0x988] sm:$0xff]
        %v635 = vld [vmem:[%s230 + $0x990] sm:$0xff]
        %v636 = vld [vmem:[%s230 + $0x998] sm:$0xff]
        %v637 = vld [vmem:[%s230 + $0x9a0] sm:$0xff]
        %v638 = vld [vmem:[%s230 + $0x9a8] sm:$0xff]
        %v639 = vld [vmem:[%s230 + $0x9b0] sm:$0xff]
        %v640 = vld [vmem:[%s230 + $0x9b8] sm:$0xff]
        %v641 = vld [vmem:[%s230 + $0x9c0] sm:$0xff]
        %v642 = vld [vmem:[%s230 + $0x9c8] sm:$0xff]
        %v643 = vld [vmem:[%s230 + $0x9d0] sm:$0xff]
        %v644 = vld [vmem:[%s230 + $0x9d8] sm:$0xff]
        %v645 = vld [vmem:[%s230 + $0x9e0] sm:$0xff]
        %v646 = vld [vmem:[%s230 + $0x9e8] sm:$0xff]
        %v647 = vld [vmem:[%s230 + $0x9f0] sm:$0xff]
        %v648 = vld [vmem:[%s230 + $0x9f8] sm:$0xff]
        %v649 = vld [vmem:[%s230 + $0xa00] sm:$0xff]
        %v650 = vld [vmem:[%s230 + $0xa08] sm:$0xff]
        %v651 = vld [vmem:[%s230 + $0xa10] sm:$0xff]
        %v652 = vld [vmem:[%s230 + $0xa18] sm:$0xff]
        %v653 = vld [vmem:[%s230 + $0xa20] sm:$0xff]
        %v654 = vld [vmem:[%s230 + $0xa28] sm:$0xff]
        %v655 = vld [vmem:[%s230 + $0xa30] sm:$0xff]
        %v656 = vld [vmem:[%s230 + $0xa38] sm:$0xff]
        %v657 = vld [vmem:[%s230 + $0xa40] sm:$0xff]
        %v658 = vld [vmem:[%s230 + $0xa48] sm:$0xff]
        %v659 = vld [vmem:[%s230 + $0xa50] sm:$0xff]
        %v660 = vld [vmem:[%s230 + $0xa58] sm:$0xff]
        %v661 = vld [vmem:[%s230 + $0xa60] sm:$0xff]
        %v662 = vld [vmem:[%s230 + $0xa68] sm:$0xff]
        %v663 = vld [vmem:[%s230 + $0xa70] sm:$0xff]
        %v664 = vld [vmem:[%s230 + $0xa78] sm:$0xff]
        %v665 = vld [vmem:[%s230 + $0xa80] sm:$0xff]
        %v666 = vld [vmem:[%s230 + $0xa88] sm:$0xff]
        %v667 = vld [vmem:[%s230 + $0xa90] sm:$0xff]
        %v668 = vld [vmem:[%s230 + $0xa98] sm:$0xff]
        %v669 = vld [vmem:[%s230 + $0xaa0] sm:$0xff]
        %v670 = vld [vmem:[%s230 + $0xaa8] sm:$0xff]
        %v671 = vld [vmem:[%s230 + $0xab0] sm:$0xff]
        %v672 = vld [vmem:[%s230 + $0xab8] sm:$0xff]
        %v673 = vld [vmem:[%s230 + $0xac0] sm:$0xff]
        %v674 = vld [vmem:[%s230 + $0xac8] sm:$0xff]
        %v675 = vld [vmem:[%s230 + $0xad0] sm:$0xff]
        %v676 = vld [vmem:[%s230 + $0xad8] sm:$0xff]
        %v677 = vld [vmem:[%s230 + $0xae0] sm:$0xff]
        %v678 = vld [vmem:[%s230 + $0xae8] sm:$0xff]
        %v679 = vld [vmem:[%s230 + $0xaf0] sm:$0xff]
        %v680 = vld [vmem:[%s230 + $0xaf8] sm:$0xff]
        %v681 = vld [vmem:[%s230 + $0xb00] sm:$0xff]
        %v682 = vld [vmem:[%s230 + $0xb08] sm:$0xff]
        %v683 = vld [vmem:[%s230 + $0xb10] sm:$0xff]
        %v684 = vld [vmem:[%s230 + $0xb18] sm:$0xff]
        %v685 = vld [vmem:[%s230 + $0xb20] sm:$0xff]
        %v686 = vld [vmem:[%s230 + $0xb28] sm:$0xff]
        %v687 = vld [vmem:[%s230 + $0xb30] sm:$0xff]
        %v688 = vld [vmem:[%s230 + $0xb38] sm:$0xff]
        %v689 = vld [vmem:[%s230 + $0xb40] sm:$0xff]
        %v690 = vld [vmem:[%s230 + $0xb48] sm:$0xff]
        %v691 = vld [vmem:[%s230 + $0xb50] sm:$0xff]
        %v692 = vld [vmem:[%s230 + $0xb58] sm:$0xff]
        %v693 = vld [vmem:[%s230 + $0xb60] sm:$0xff]
        %v694 = vld [vmem:[%s230 + $0xb68] sm:$0xff]
        %v695 = vld [vmem:[%s230 + $0xb70] sm:$0xff]
        %v696 = vld [vmem:[%s230 + $0xb78] sm:$0xff]
        %v697 = vld [vmem:[%s230 + $0xb80] sm:$0xff]
        %v698 = vld [vmem:[%s230 + $0xb88] sm:$0xff]
        %v699 = vld [vmem:[%s230 + $0xb90] sm:$0xff]
        %v700 = vld [vmem:[%s230 + $0xb98] sm:$0xff]
        %v701 = vld [vmem:[%s230 + $0xba0] sm:$0xff]
        %v702 = vld [vmem:[%s230 + $0xba8] sm:$0xff]
        %v703 = vld [vmem:[%s230 + $0xbb0] sm:$0xff]
        %v704 = vld [vmem:[%s230 + $0xbb8] sm:$0xff]
        %v705 = vld [vmem:[%s230 + $0xbc0] sm:$0xff]
        %v706 = vld [vmem:[%s230 + $0xbc8] sm:$0xff]
        %v707 = vld [vmem:[%s230 + $0xbd0] sm:$0xff]
        %v708 = vld [vmem:[%s230 + $0xbd8] sm:$0xff]
        %v709 = vld [vmem:[%s230 + $0xbe0] sm:$0xff]
        %v710 = vld [vmem:[%s230 + $0xbe8] sm:$0xff]
        %v711 = vld [vmem:[%s230 + $0xbf0] sm:$0xff]
        %v712 = vld [vmem:[%s230 + $0xbf8] sm:$0xff]
        %v713 = vld [vmem:[%s230 + $0xc00] sm:$0xff]
        %v714 = vld [vmem:[%s230 + $0xc08] sm:$0xff]
        %v715 = vld [vmem:[%s230 + $0xc10] sm:$0xff]
        %v716 = vld [vmem:[%s230 + $0xc18] sm:$0xff]
        %v717 = vld [vmem:[%s230 + $0xc20] sm:$0xff]
        %v718 = vld [vmem:[%s230 + $0xc28] sm:$0xff]
        %v719 = vld [vmem:[%s230 + $0xc30] sm:$0xff]
        %v720 = vld [vmem:[%s230 + $0xc38] sm:$0xff]
        %v721 = vld [vmem:[%s230 + $0xc40] sm:$0xff]
        %v722 = vld [vmem:[%s230 + $0xc48] sm:$0xff]
        %v723 = vld [vmem:[%s230 + $0xc50] sm:$0xff]
        %v724 = vld [vmem:[%s230 + $0xc58] sm:$0xff]
        %v725 = vld [vmem:[%s230 + $0xc60] sm:$0xff]
        %v726 = vld [vmem:[%s230 + $0xc68] sm:$0xff]
        %v727 = vld [vmem:[%s230 + $0xc70] sm:$0xff]
        %v728 = vld [vmem:[%s230 + $0xc78] sm:$0xff]
        %v729 = vld [vmem:[%s230 + $0xc80] sm:$0xff]
        %v730 = vld [vmem:[%s230 + $0xc88] sm:$0xff]
        %v731 = vld [vmem:[%s230 + $0xc90] sm:$0xff]
        %v732 = vld [vmem:[%s230 + $0xc98] sm:$0xff]
        %v733 = vld [vmem:[%s230 + $0xca0] sm:$0xff]
        %v734 = vld [vmem:[%s230 + $0xca8] sm:$0xff]
        %v735 = vld [vmem:[%s230 + $0xcb0] sm:$0xff]
        %v736 = vld [vmem:[%s230 + $0xcb8] sm:$0xff]
        %v737 = vld [vmem:[%s230 + $0xcc0] sm:$0xff]
        %v738 = vld [vmem:[%s230 + $0xcc8] sm:$0xff]
        %v739 = vld [vmem:[%s230 + $0xcd0] sm:$0xff]
        %v740 = vld [vmem:[%s230 + $0xcd8] sm:$0xff]
        %v741 = vld [vmem:[%s230 + $0xce0] sm:$0xff]
        %v742 = vld [vmem:[%s230 + $0xce8] sm:$0xff]
        %v743 = vld [vmem:[%s230 + $0xcf0] sm:$0xff]
        %v744 = vld [vmem:[%s230 + $0xcf8] sm:$0xff]
        %v745 = vld [vmem:[%s230 + $0xd00] sm:$0xff]
        %v746 = vld [vmem:[%s230 + $0xd08] sm:$0xff]
        %v747 = vld [vmem:[%s230 + $0xd10] sm:$0xff]
        %v748 = vld [vmem:[%s230 + $0xd18] sm:$0xff]
        %v749 = vld [vmem:[%s230 + $0xd20] sm:$0xff]
        %v750 = vld [vmem:[%s230 + $0xd28] sm:$0xff]
        %v751 = vld [vmem:[%s230 + $0xd30] sm:$0xff]
        %v752 = vld [vmem:[%s230 + $0xd38] sm:$0xff]
        %v753 = vld [vmem:[%s230 + $0xd40] sm:$0xff]
        %v754 = vld [vmem:[%s230 + $0xd48] sm:$0xff]
        %v755 = vld [vmem:[%s230 + $0xd50] sm:$0xff]
        %v756 = vld [vmem:[%s230 + $0xd58] sm:$0xff]
        %v757 = vld [vmem:[%s230 + $0xd60] sm:$0xff]
        %v758 = vld [vmem:[%s230 + $0xd68] sm:$0xff]
        %v759 = vld [vmem:[%s230 + $0xd70] sm:$0xff]
        %v760 = vld [vmem:[%s230 + $0xd78] sm:$0xff]
        %v761 = vld [vmem:[%s230 + $0xd80] sm:$0xff]
        %v762 = vld [vmem:[%s230 + $0xd88] sm:$0xff]
        %v763 = vld [vmem:[%s230 + $0xd90] sm:$0xff]
        %v764 = vld [vmem:[%s230 + $0xd98] sm:$0xff]
        %v765 = vld [vmem:[%s230 + $0xda0] sm:$0xff]
        %v766 = vld [vmem:[%s230 + $0xda8] sm:$0xff]
        %v767 = vld [vmem:[%s230 + $0xdb0] sm:$0xff]
        %v768 = vld [vmem:[%s230 + $0xdb8] sm:$0xff]
        %v769 = vld [vmem:[%s230 + $0xdc0] sm:$0xff]
        %v770 = vld [vmem:[%s230 + $0xdc8] sm:$0xff]
        %v771 = vld [vmem:[%s230 + $0xdd0] sm:$0xff]
        %v772 = vld [vmem:[%s230 + $0xdd8] sm:$0xff]
        %v773 = vld [vmem:[%s230 + $0xde0] sm:$0xff]
        %v774 = vld [vmem:[%s230 + $0xde8] sm:$0xff]
        %v775 = vld [vmem:[%s230 + $0xdf0] sm:$0xff]
        %v776 = vld [vmem:[%s230 + $0xdf8] sm:$0xff]
        %v777 = vld [vmem:[%s230 + $0xe00] sm:$0xff]
        %v778 = vld [vmem:[%s230 + $0xe08] sm:$0xff]
        %v779 = vld [vmem:[%s230 + $0xe10] sm:$0xff]
        %v780 = vld [vmem:[%s230 + $0xe18] sm:$0xff]
        %v781 = vld [vmem:[%s230 + $0xe20] sm:$0xff]
        %v782 = vld [vmem:[%s230 + $0xe28] sm:$0xff]
        %v783 = vld [vmem:[%s230 + $0xe30] sm:$0xff]
        %v784 = vld [vmem:[%s230 + $0xe38] sm:$0xff]
        %v785 = vld [vmem:[%s230 + $0xe40] sm:$0xff]
        %v786 = vld [vmem:[%s230 + $0xe48] sm:$0xff]
        %v787 = vld [vmem:[%s230 + $0xe50] sm:$0xff]
        %v788 = vld [vmem:[%s230 + $0xe58] sm:$0xff]
        %v789 = vld [vmem:[%s230 + $0xe60] sm:$0xff]
        %v790 = vld [vmem:[%s230 + $0xe68] sm:$0xff]
        %v791 = vld [vmem:[%s230 + $0xe70] sm:$0xff]
        %v792 = vld [vmem:[%s230 + $0xe78] sm:$0xff]
        %v793 = vld [vmem:[%s230 + $0xe80] sm:$0xff]
        %v794 = vld [vmem:[%s230 + $0xe88] sm:$0xff]
        %v795 = vld [vmem:[%s230 + $0xe90] sm:$0xff]
        %v796 = vld [vmem:[%s230 + $0xe98] sm:$0xff]
        %v797 = vld [vmem:[%s230 + $0xea0] sm:$0xff]
        %v798 = vld [vmem:[%s230 + $0xea8] sm:$0xff]
        %v799 = vld [vmem:[%s230 + $0xeb0] sm:$0xff]
        %v800 = vld [vmem:[%s230 + $0xeb8] sm:$0xff]
        %v801 = vld [vmem:[%s230 + $0xec0] sm:$0xff]
        %v802 = vld [vmem:[%s230 + $0xec8] sm:$0xff]
        %v803 = vld [vmem:[%s230 + $0xed0] sm:$0xff]
        %v804 = vld [vmem:[%s230 + $0xed8] sm:$0xff]
        %v805 = vld [vmem:[%s230 + $0xee0] sm:$0xff]
        %v806 = vld [vmem:[%s230 + $0xee8] sm:$0xff]
        %v807 = vld [vmem:[%s230 + $0xef0] sm:$0xff]
        %v808 = vld [vmem:[%s230 + $0xef8] sm:$0xff]
        %v809 = vld [vmem:[%s230 + $0xf00] sm:$0xff]
        %v810 = vld [vmem:[%s230 + $0xf08] sm:$0xff]
        %v811 = vld [vmem:[%s230 + $0xf10] sm:$0xff]
        %v812 = vld [vmem:[%s230 + $0xf18] sm:$0xff]
        %v813 = vld [vmem:[%s230 + $0xf20] sm:$0xff]
        %v814 = vld [vmem:[%s230 + $0xf28] sm:$0xff]
        %v815 = vld [vmem:[%s230 + $0xf30] sm:$0xff]
        %v816 = vld [vmem:[%s230 + $0xf38] sm:$0xff]
        %v817 = vld [vmem:[%s230 + $0xf40] sm:$0xff]
        %v818 = vld [vmem:[%s230 + $0xf48] sm:$0xff]
        %v819 = vld [vmem:[%s230 + $0xf50] sm:$0xff]
        %v820 = vld [vmem:[%s230 + $0xf58] sm:$0xff]
        %v821 = vld [vmem:[%s230 + $0xf60] sm:$0xff]
        %v822 = vld [vmem:[%s230 + $0xf68] sm:$0xff]
        %v823 = vld [vmem:[%s230 + $0xf70] sm:$0xff]
        %v824 = vld [vmem:[%s230 + $0xf78] sm:$0xff]
        %v825 = vld [vmem:[%s230 + $0xf80] sm:$0xff]
        %v826 = vld [vmem:[%s230 + $0xf88] sm:$0xff]
        %v827 = vld [vmem:[%s230 + $0xf90] sm:$0xff]
        %v828 = vld [vmem:[%s230 + $0xf98] sm:$0xff]
        %v829 = vld [vmem:[%s230 + $0xfa0] sm:$0xff]
        %v830 = vld [vmem:[%s230 + $0xfa8] sm:$0xff]
        %v831 = vld [vmem:[%s230 + $0xfb0] sm:$0xff]
        %v832 = vld [vmem:[%s230 + $0xfb8] sm:$0xff]
        %v833 = vld [vmem:[%s230 + $0xfc0] sm:$0xff]
        %v834 = vld [vmem:[%s230 + $0xfc8] sm:$0xff]
        %v835 = vld [vmem:[%s230 + $0xfd0] sm:$0xff]
        %v836 = vld [vmem:[%s230 + $0xfd8] sm:$0xff]
        %v837 = vld [vmem:[%s230 + $0xfe0] sm:$0xff]
        %v838 = vld [vmem:[%s230 + $0xfe8] sm:$0xff]
        %v839 = vld [vmem:[%s230 + $0xff0] sm:$0xff]
        %v840 = vld [vmem:[%s230 + $0xff8] sm:$0xff]
        %v841 = vld [vmem:[%s230 + $0x1000] sm:$0xff]
        %v842 = vld [vmem:[%s230 + $0x1008] sm:$0xff]
        %v843 = vld [vmem:[%s230 + $0x1010] sm:$0xff]
        %v844 = vld [vmem:[%s230 + $0x1018] sm:$0xff]
        %v845 = vld [vmem:[%s230 + $0x1020] sm:$0xff]
        %v846 = vld [vmem:[%s230 + $0x1028] sm:$0xff]
        %v847 = vld [vmem:[%s230 + $0x1030] sm:$0xff]
        %v848 = vld [vmem:[%s230 + $0x1038] sm:$0xff]
        %v849 = vld [vmem:[%s230 + $0x1040] sm:$0xff]
        %v850 = vld [vmem:[%s230 + $0x1048] sm:$0xff]
        %v851 = vld [vmem:[%s230 + $0x1050] sm:$0xff]
        %v852 = vld [vmem:[%s230 + $0x1058] sm:$0xff]
        %v853 = vld [vmem:[%s230 + $0x1060] sm:$0xff]
        %v854 = vld [vmem:[%s230 + $0x1068] sm:$0xff]
        %v855 = vld [vmem:[%s230 + $0x1070] sm:$0xff]
        %v856 = vld [vmem:[%s230 + $0x1078] sm:$0xff]
        %v857 = vld [vmem:[%s230 + $0x1080] sm:$0xff]
        %v858 = vld [vmem:[%s230 + $0x1088] sm:$0xff]
        %v859 = vld [vmem:[%s230 + $0x1090] sm:$0xff]
        %v860 = vld [vmem:[%s230 + $0x1098] sm:$0xff]
        %v861 = vld [vmem:[%s230 + $0x10a0] sm:$0xff]
        %v862 = vld [vmem:[%s230 + $0x10a8] sm:$0xff]
        %v863 = vld [vmem:[%s230 + $0x10b0] sm:$0xff]
        %v864 = vld [vmem:[%s230 + $0x10b8] sm:$0xff]
        %v865 = vld [vmem:[%s230 + $0x10c0] sm:$0xff]
        %v866 = vld [vmem:[%s230 + $0x10c8] sm:$0xff]
        %v867 = vld [vmem:[%s230 + $0x10d0] sm:$0xff]
        %v868 = vld [vmem:[%s230 + $0x10d8] sm:$0xff]
        %v869 = vld [vmem:[%s230 + $0x10e0] sm:$0xff]
        %v870 = vld [vmem:[%s230 + $0x10e8] sm:$0xff]
        %v871 = vld [vmem:[%s230 + $0x10f0] sm:$0xff]
        %v872 = vld [vmem:[%s230 + $0x10f8] sm:$0xff]
        %v873 = vld [vmem:[%s230 + $0x1100] sm:$0xff]
        %v874 = vld [vmem:[%s230 + $0x1108] sm:$0xff]
        %v875 = vld [vmem:[%s230 + $0x1110] sm:$0xff]
        %v876 = vld [vmem:[%s230 + $0x1118] sm:$0xff]
        %v877 = vld [vmem:[%s230 + $0x1120] sm:$0xff]
        %v878 = vld [vmem:[%s230 + $0x1128] sm:$0xff]
        %v879 = vld [vmem:[%s230 + $0x1130] sm:$0xff]
        %v880 = vld [vmem:[%s230 + $0x1138] sm:$0xff]
        %v881 = vld [vmem:[%s230 + $0x1140] sm:$0xff]
        %v882 = vld [vmem:[%s230 + $0x1148] sm:$0xff]
        %v883 = vld [vmem:[%s230 + $0x1150] sm:$0xff]
        %v884 = vld [vmem:[%s230 + $0x1158] sm:$0xff]
        %v885 = vld [vmem:[%s230 + $0x1160] sm:$0xff]
        %v886 = vld [vmem:[%s230 + $0x1168] sm:$0xff]
        %v887 = vld [vmem:[%s230 + $0x1170] sm:$0xff]
        %v888 = vld [vmem:[%s230 + $0x1178] sm:$0xff]
        %v889 = vld [vmem:[%s230 + $0x1180] sm:$0xff]
        %v890 = vld [vmem:[%s230 + $0x1188] sm:$0xff]
        %v891 = vld [vmem:[%s230 + $0x1190] sm:$0xff]
        %v892 = vld [vmem:[%s230 + $0x1198] sm:$0xff]
        %v893 = vld [vmem:[%s230 + $0x11a0] sm:$0xff]
        %v894 = vld [vmem:[%s230 + $0x11a8] sm:$0xff]
        %v895 = vld [vmem:[%s230 + $0x11b0] sm:$0xff]
        %v896 = vld [vmem:[%s230 + $0x11b8] sm:$0xff]
        %v897 = vld [vmem:[%s230 + $0x11c0] sm:$0xff]
        %v898 = vld [vmem:[%s230 + $0x11c8] sm:$0xff]
        %v899 = vld [vmem:[%s230 + $0x11d0] sm:$0xff]
        %v900 = vld [vmem:[%s230 + $0x11d8] sm:$0xff]
        %v901 = vld [vmem:[%s230 + $0x11e0] sm:$0xff]
        %v902 = vld [vmem:[%s230 + $0x11e8] sm:$0xff]
        %v903 = vld [vmem:[%s230 + $0x11f0] sm:$0xff]
        %v904 = vld [vmem:[%s230 + $0x11f8] sm:$0xff]
        %v905 = vld [vmem:[%s230 + $0x1200] sm:$0xff]
        %v906 = vld [vmem:[%s230 + $0x1208] sm:$0xff]
        %v907 = vld [vmem:[%s230 + $0x1210] sm:$0xff]
        %v908 = vld [vmem:[%s230 + $0x1218] sm:$0xff]
        %v909 = vld [vmem:[%s230 + $0x1220] sm:$0xff]
        %v910 = vld [vmem:[%s230 + $0x1228] sm:$0xff]
        %v911 = vld [vmem:[%s230 + $0x1230] sm:$0xff]
        %v912 = vld [vmem:[%s230 + $0x1238] sm:$0xff]
        %v913 = vld [vmem:[%s230 + $0x1240] sm:$0xff]
        %v914 = vld [vmem:[%s230 + $0x1248] sm:$0xff]
        %v915 = vld [vmem:[%s230 + $0x1250] sm:$0xff]
        %v916 = vld [vmem:[%s230 + $0x1258] sm:$0xff]
        %v917 = vld [vmem:[%s230 + $0x1260] sm:$0xff]
        %v918 = vld [vmem:[%s230 + $0x1268] sm:$0xff]
        %v919 = vld [vmem:[%s230 + $0x1270] sm:$0xff]
        %v920 = vld [vmem:[%s230 + $0x1278] sm:$0xff]
        %v921 = vld [vmem:[%s230 + $0x1280] sm:$0xff]
        %v922 = vld [vmem:[%s230 + $0x1288] sm:$0xff]
        %v923 = vld [vmem:[%s230 + $0x1290] sm:$0xff]
        %v924 = vld [vmem:[%s230 + $0x1298] sm:$0xff]
        %v925 = vld [vmem:[%s230 + $0x12a0] sm:$0xff]
        %v926 = vld [vmem:[%s230 + $0x12a8] sm:$0xff]
        %v927 = vld [vmem:[%s230 + $0x12b0] sm:$0xff]
        %v928 = vld [vmem:[%s230 + $0x12b8] sm:$0xff]
        %v929 = vld [vmem:[%s230 + $0x12c0] sm:$0xff]
        %v930 = vld [vmem:[%s230 + $0x12c8] sm:$0xff]
        %v931 = vld [vmem:[%s230 + $0x12d0] sm:$0xff]
        %v932 = vld [vmem:[%s230 + $0x12d8] sm:$0xff]
        %v933 = vld [vmem:[%s230 + $0x12e0] sm:$0xff]
        %v934 = vld [vmem:[%s230 + $0x12e8] sm:$0xff]
        %v935 = vld [vmem:[%s230 + $0x12f0] sm:$0xff]
        %v936 = vld [vmem:[%s230 + $0x12f8] sm:$0xff]
        %v937 = vld [vmem:[%s230 + $0x1300] sm:$0xff]
        %v938 = vld [vmem:[%s230 + $0x1308] sm:$0xff]
        %v939 = vld [vmem:[%s230 + $0x1310] sm:$0xff]
        %v940 = vld [vmem:[%s230 + $0x1318] sm:$0xff]
        %v941 = vld [vmem:[%s230 + $0x1320] sm:$0xff]
        %v942 = vld [vmem:[%s230 + $0x1328] sm:$0xff]
        %v943 = vld [vmem:[%s230 + $0x1330] sm:$0xff]
        %v944 = vld [vmem:[%s230 + $0x1338] sm:$0xff]
        %v945 = vld [vmem:[%s230 + $0x1340] sm:$0xff]
        %v946 = vld [vmem:[%s230 + $0x1348] sm:$0xff]
        %v947 = vld [vmem:[%s230 + $0x1350] sm:$0xff]
        %v948 = vld [vmem:[%s230 + $0x1358] sm:$0xff]
        %v949 = vld [vmem:[%s230 + $0x1360] sm:$0xff]
        %v950 = vld [vmem:[%s230 + $0x1368] sm:$0xff]
        %v951 = vld [vmem:[%s230 + $0x1370] sm:$0xff]
        %v952 = vld [vmem:[%s230 + $0x1378] sm:$0xff]
        %v953 = vld [vmem:[%s230 + $0x1380] sm:$0xff]
        %v954 = vld [vmem:[%s230 + $0x1388] sm:$0xff]
        %v955 = vld [vmem:[%s230 + $0x1390] sm:$0xff]
        %v956 = vld [vmem:[%s230 + $0x1398] sm:$0xff]
        %v957 = vld [vmem:[%s230 + $0x13a0] sm:$0xff]
        %v958 = vld [vmem:[%s230 + $0x13a8] sm:$0xff]
        %v959 = vld [vmem:[%s230 + $0x13b0] sm:$0xff]
        %v960 = vld [vmem:[%s230 + $0x13b8] sm:$0xff]
        %v961 = vld [vmem:[%s230 + $0x13c0] sm:$0xff]
        %v962 = vld [vmem:[%s230 + $0x13c8] sm:$0xff]
        %v963 = vld [vmem:[%s230 + $0x13d0] sm:$0xff]
        %v964 = vld [vmem:[%s230 + $0x13d8] sm:$0xff]
        %v965 = vld [vmem:[%s230 + $0x13e0] sm:$0xff]
        %v966 = vld [vmem:[%s230 + $0x13e8] sm:$0xff]
        %v967 = vld [vmem:[%s230 + $0x13f0] sm:$0xff]
        %v968 = vld [vmem:[%s230 + $0x13f8] sm:$0xff]
        %v969 = vld [vmem:[%s230 + $0x1400] sm:$0xff]
        %v970 = vld [vmem:[%s230 + $0x1408] sm:$0xff]
        %v971 = vld [vmem:[%s230 + $0x1410] sm:$0xff]
        %v972 = vld [vmem:[%s230 + $0x1418] sm:$0xff]
        %v973 = vld [vmem:[%s230 + $0x1420] sm:$0xff]
        %v974 = vld [vmem:[%s230 + $0x1428] sm:$0xff]
        %v975 = vld [vmem:[%s230 + $0x1430] sm:$0xff]
        %v976 = vld [vmem:[%s230 + $0x1438] sm:$0xff]
        %v977 = vld [vmem:[%s230 + $0x1440] sm:$0xff]
        %v978 = vld [vmem:[%s230 + $0x1448] sm:$0xff]
        %v979 = vld [vmem:[%s230 + $0x1450] sm:$0xff]
        %v980 = vld [vmem:[%s230 + $0x1458] sm:$0xff]
        %v981 = vld [vmem:[%s230 + $0x1460] sm:$0xff]
        %v982 = vld [vmem:[%s230 + $0x1468] sm:$0xff]
        %v983 = vld [vmem:[%s230 + $0x1470] sm:$0xff]
        %v984 = vld [vmem:[%s230 + $0x1478] sm:$0xff]
        %v985 = vld [vmem:[%s230 + $0x1480] sm:$0xff]
        %v986 = vld [vmem:[%s230 + $0x1488] sm:$0xff]
        %v987 = vld [vmem:[%s230 + $0x1490] sm:$0xff]
        %v988 = vld [vmem:[%s230 + $0x1498] sm:$0xff]
        %v989 = vld [vmem:[%s230 + $0x14a0] sm:$0xff]
        %v990 = vld [vmem:[%s230 + $0x14a8] sm:$0xff]
        %v991 = vld [vmem:[%s230 + $0x14b0] sm:$0xff]
        %v992 = vld [vmem:[%s230 + $0x14b8] sm:$0xff]
        %v993 = vld [vmem:[%s230 + $0x14c0] sm:$0xff]
        %v994 = vld [vmem:[%s230 + $0x14c8] sm:$0xff]
        %v995 = vld [vmem:[%s230 + $0x14d0] sm:$0xff]
        %v996 = vld [vmem:[%s230 + $0x14d8] sm:$0xff]
        %v997 = vld [vmem:[%s230 + $0x14e0] sm:$0xff]
        %v998 = vld [vmem:[%s230 + $0x14e8] sm:$0xff]
        %v999 = vld [vmem:[%s230 + $0x14f0] sm:$0xff]
        %v1000 = vld [vmem:[%s230 + $0x14f8] sm:$0xff]
        %v1001 = vld [vmem:[%s230 + $0x1500] sm:$0xff]
        %v1002 = vld [vmem:[%s230 + $0x1508] sm:$0xff]
        %v1003 = vld [vmem:[%s230 + $0x1510] sm:$0xff]
        %v1004 = vld [vmem:[%s230 + $0x1518] sm:$0xff]
        %v1005 = vld [vmem:[%s230 + $0x1520] sm:$0xff]
        %v1006 = vld [vmem:[%s230 + $0x1528] sm:$0xff]
        %v1007 = vld [vmem:[%s230 + $0x1530] sm:$0xff]
        %v1008 = vld [vmem:[%s230 + $0x1538] sm:$0xff]
        %v1009 = vld [vmem:[%s230 + $0x1540] sm:$0xff]
        %v1010 = vld [vmem:[%s230 + $0x1548] sm:$0xff]
        %v1011 = vld [vmem:[%s230 + $0x1550] sm:$0xff]
        %v1012 = vld [vmem:[%s230 + $0x1558] sm:$0xff]
        %v1013 = vld [vmem:[%s230 + $0x1560] sm:$0xff]
        %v1014 = vld [vmem:[%s230 + $0x1568] sm:$0xff]
        %v1015 = vld [vmem:[%s230 + $0x1570] sm:$0xff]
        %v1016 = vld [vmem:[%s230 + $0x1578] sm:$0xff]
        %v1017 = vld [vmem:[%s230 + $0x1580] sm:$0xff]
        %v1018 = vld [vmem:[%s230 + $0x1588] sm:$0xff]
        %v1019 = vld [vmem:[%s230 + $0x1590] sm:$0xff]
        %v1020 = vld [vmem:[%s230 + $0x1598] sm:$0xff]
        %v1021 = vld [vmem:[%s230 + $0x15a0] sm:$0xff]
        %v1022 = vld [vmem:[%s230 + $0x15a8] sm:$0xff]
        %v1023 = vld [vmem:[%s230 + $0x15b0] sm:$0xff]
        %v1024 = vld [vmem:[%s230 + $0x15b8] sm:$0xff]
        %v1025 = vld [vmem:[%s230 + $0x15c0] sm:$0xff]
        %v1026 = vld [vmem:[%s230 + $0x15c8] sm:$0xff]
        %v1027 = vld [vmem:[%s230 + $0x15d0] sm:$0xff]
        %v1028 = vld [vmem:[%s230 + $0x15d8] sm:$0xff]
        %v1029 = vld [vmem:[%s230 + $0x15e0] sm:$0xff]
        %v1030 = vld [vmem:[%s230 + $0x15e8] sm:$0xff]
        %v1031 = vld [vmem:[%s230 + $0x15f0] sm:$0xff]
        %v1032 = vld [vmem:[%s230 + $0x15f8] sm:$0xff]
        %v1033 = vld [vmem:[%s230 + $0x1600] sm:$0xff]
        %v1034 = vld [vmem:[%s230 + $0x1608] sm:$0xff]
        %v1035 = vld [vmem:[%s230 + $0x1610] sm:$0xff]
        %v1036 = vld [vmem:[%s230 + $0x1618] sm:$0xff]
        %v1037 = vld [vmem:[%s230 + $0x1620] sm:$0xff]
        %v1038 = vld [vmem:[%s230 + $0x1628] sm:$0xff]
        %v1039 = vld [vmem:[%s230 + $0x1630] sm:$0xff]
        %v1040 = vld [vmem:[%s230 + $0x1638] sm:$0xff]
        %v1041 = vld [vmem:[%s230 + $0x1640] sm:$0xff]
        %v1042 = vld [vmem:[%s230 + $0x1648] sm:$0xff]
        %v1043 = vld [vmem:[%s230 + $0x1650] sm:$0xff]
        %v1044 = vld [vmem:[%s230 + $0x1658] sm:$0xff]
        %v1045 = vld [vmem:[%s230 + $0x1660] sm:$0xff]
        %v1046 = vld [vmem:[%s230 + $0x1668] sm:$0xff]
        %v1047 = vld [vmem:[%s230 + $0x1670] sm:$0xff]
        %v1048 = vld [vmem:[%s230 + $0x1678] sm:$0xff]
        %v1049 = vld [vmem:[%s230 + $0x1680] sm:$0xff]
        %v1050 = vld [vmem:[%s230 + $0x1688] sm:$0xff]
        %v1051 = vld [vmem:[%s230 + $0x1690] sm:$0xff]
        %v1052 = vld [vmem:[%s230 + $0x1698] sm:$0xff]
        %v1053 = vld [vmem:[%s230 + $0x16a0] sm:$0xff]
        %v1054 = vld [vmem:[%s230 + $0x16a8] sm:$0xff]
        %v1055 = vld [vmem:[%s230 + $0x16b0] sm:$0xff]
        %v1056 = vld [vmem:[%s230 + $0x16b8] sm:$0xff]
        %v1057 = vld [vmem:[%s230 + $0x16c0] sm:$0xff]
        %v1058 = vld [vmem:[%s230 + $0x16c8] sm:$0xff]
        %v1059 = vld [vmem:[%s230 + $0x16d0] sm:$0xff]
        %v1060 = vld [vmem:[%s230 + $0x16d8] sm:$0xff]
        %v1061 = vld [vmem:[%s230 + $0x16e0] sm:$0xff]
        %v1062 = vld [vmem:[%s230 + $0x16e8] sm:$0xff]
        %v1063 = vld [vmem:[%s230 + $0x16f0] sm:$0xff]
        %v1064 = vld [vmem:[%s230 + $0x16f8] sm:$0xff]
        %v1065 = vld [vmem:[%s230 + $0x1700] sm:$0xff]
        %v1066 = vld [vmem:[%s230 + $0x1708] sm:$0xff]
        %v1067 = vld [vmem:[%s230 + $0x1710] sm:$0xff]
        %v1068 = vld [vmem:[%s230 + $0x1718] sm:$0xff]
        %v1069 = vld [vmem:[%s230 + $0x1720] sm:$0xff]
        %v1070 = vld [vmem:[%s230 + $0x1728] sm:$0xff]
        %v1071 = vld [vmem:[%s230 + $0x1730] sm:$0xff]
        %v1072 = vld [vmem:[%s230 + $0x1738] sm:$0xff]
        %v1073 = vld [vmem:[%s230 + $0x1740] sm:$0xff]
        %v1074 = vld [vmem:[%s230 + $0x1748] sm:$0xff]
        %v1075 = vld [vmem:[%s230 + $0x1750] sm:$0xff]
        %v1076 = vld [vmem:[%s230 + $0x1758] sm:$0xff]
        %v1077 = vld [vmem:[%s230 + $0x1760] sm:$0xff]
        %v1078 = vld [vmem:[%s230 + $0x1768] sm:$0xff]
        %v1079 = vld [vmem:[%s230 + $0x1770] sm:$0xff]
        %v1080 = vld [vmem:[%s230 + $0x1778] sm:$0xff]
        %v1081 = vld [vmem:[%s230 + $0x1780] sm:$0xff]
        %v1082 = vld [vmem:[%s230 + $0x1788] sm:$0xff]
        %v1083 = vld [vmem:[%s230 + $0x1790] sm:$0xff]
        %v1084 = vld [vmem:[%s230 + $0x1798] sm:$0xff]
        %v1085 = vld [vmem:[%s230 + $0x17a0] sm:$0xff]
        %v1086 = vld [vmem:[%s230 + $0x17a8] sm:$0xff]
        %v1087 = vld [vmem:[%s230 + $0x17b0] sm:$0xff]
        %v1088 = vld [vmem:[%s230 + $0x17b8] sm:$0xff]
        %v1089 = vld [vmem:[%s230 + $0x17c0] sm:$0xff]
        %v1090 = vld [vmem:[%s230 + $0x17c8] sm:$0xff]
        %v1091 = vld [vmem:[%s230 + $0x17d0] sm:$0xff]
        %v1092 = vld [vmem:[%s230 + $0x17d8] sm:$0xff]
        %v1093 = vld [vmem:[%s230 + $0x17e0] sm:$0xff]
        %v1094 = vld [vmem:[%s230 + $0x17e8] sm:$0xff]
        %v1095 = vld [vmem:[%s230 + $0x17f0] sm:$0xff]
        %v1096 = vld [vmem:[%s230 + $0x17f8] sm:$0xff]
        %v1097 = vld [vmem:[%s230 + $0x1800] sm:$0xff]
        %v1098 = vld [vmem:[%s230 + $0x1808] sm:$0xff]
        %v1099 = vld [vmem:[%s230 + $0x1810] sm:$0xff]
        %v1100 = vld [vmem:[%s230 + $0x1818] sm:$0xff]
        %v1101 = vld [vmem:[%s230 + $0x1820] sm:$0xff]
        %v1102 = vld [vmem:[%s230 + $0x1828] sm:$0xff]
        %v1103 = vld [vmem:[%s230 + $0x1830] sm:$0xff]
        %v1104 = vld [vmem:[%s230 + $0x1838] sm:$0xff]
        %v1105 = vld [vmem:[%s230 + $0x1840] sm:$0xff]
        %v1106 = vld [vmem:[%s230 + $0x1848] sm:$0xff]
        %v1107 = vld [vmem:[%s230 + $0x1850] sm:$0xff]
        %v1108 = vld [vmem:[%s230 + $0x1858] sm:$0xff]
        %v1109 = vld [vmem:[%s230 + $0x1860] sm:$0xff]
        %v1110 = vld [vmem:[%s230 + $0x1868] sm:$0xff]
        %v1111 = vld [vmem:[%s230 + $0x1870] sm:$0xff]
        %v1112 = vld [vmem:[%s230 + $0x1878] sm:$0xff]
        %v1113 = vld [vmem:[%s230 + $0x1880] sm:$0xff]
        %v1114 = vld [vmem:[%s230 + $0x1888] sm:$0xff]
        %v1115 = vld [vmem:[%s230 + $0x1890] sm:$0xff]
        %v1116 = vld [vmem:[%s230 + $0x1898] sm:$0xff]
        %v1117 = vld [vmem:[%s230 + $0x18a0] sm:$0xff]
        %v1118 = vld [vmem:[%s230 + $0x18a8] sm:$0xff]
        %v1119 = vld [vmem:[%s230 + $0x18b0] sm:$0xff]
        %v1120 = vld [vmem:[%s230 + $0x18b8] sm:$0xff]
        %v1121 = vld [vmem:[%s230 + $0x18c0] sm:$0xff]
        %v1122 = vld [vmem:[%s230 + $0x18c8] sm:$0xff]
        %v1123 = vld [vmem:[%s230 + $0x18d0] sm:$0xff]
        %v1124 = vld [vmem:[%s230 + $0x18d8] sm:$0xff]
        %v1125 = vld [vmem:[%s230 + $0x18e0] sm:$0xff]
        %v1126 = vld [vmem:[%s230 + $0x18e8] sm:$0xff]
        %v1127 = vld [vmem:[%s230 + $0x18f0] sm:$0xff]
        %v1128 = vld [vmem:[%s230 + $0x18f8] sm:$0xff]
        %v1129 = vld [vmem:[%s230 + $0x1900] sm:$0xff]
        %v1130 = vld [vmem:[%s230 + $0x1908] sm:$0xff]
        %v1131 = vld [vmem:[%s230 + $0x1910] sm:$0xff]
        %v1132 = vld [vmem:[%s230 + $0x1918] sm:$0xff]
        %v1133 = vld [vmem:[%s230 + $0x1920] sm:$0xff]
        %v1134 = vld [vmem:[%s230 + $0x1928] sm:$0xff]
        %v1135 = vld [vmem:[%s230 + $0x1930] sm:$0xff]
        %v1136 = vld [vmem:[%s230 + $0x1938] sm:$0xff]
        %v1137 = vld [vmem:[%s230 + $0x1940] sm:$0xff]
        %v1138 = vld [vmem:[%s230 + $0x1948] sm:$0xff]
        %v1139 = vld [vmem:[%s230 + $0x1950] sm:$0xff]
        %v1140 = vld [vmem:[%s230 + $0x1958] sm:$0xff]
        %v1141 = vld [vmem:[%s230 + $0x1960] sm:$0xff]
        %v1142 = vld [vmem:[%s230 + $0x1968] sm:$0xff]
        %v1143 = vld [vmem:[%s230 + $0x1970] sm:$0xff]
        %v1144 = vld [vmem:[%s230 + $0x1978] sm:$0xff]
        %v1145 = vld [vmem:[%s230 + $0x1980] sm:$0xff]
        %v1146 = vld [vmem:[%s230 + $0x1988] sm:$0xff]
        %v1147 = vld [vmem:[%s230 + $0x1990] sm:$0xff]
        %v1148 = vld [vmem:[%s230 + $0x1998] sm:$0xff]
        %v1149 = vld [vmem:[%s230 + $0x19a0] sm:$0xff]
        %v1150 = vld [vmem:[%s230 + $0x19a8] sm:$0xff]
        %v1151 = vld [vmem:[%s230 + $0x19b0] sm:$0xff]
        %v1152 = vld [vmem:[%s230 + $0x19b8] sm:$0xff]
        %v1153 = vld [vmem:[%s230 + $0x19c0] sm:$0xff]
        %v1154 = vld [vmem:[%s230 + $0x19c8] sm:$0xff]
        %v1155 = vld [vmem:[%s230 + $0x19d0] sm:$0xff]
        %v1156 = vld [vmem:[%s230 + $0x19d8] sm:$0xff]
        %v1157 = vld [vmem:[%s230 + $0x19e0] sm:$0xff]
        %v1158 = vld [vmem:[%s230 + $0x19e8] sm:$0xff]
        %v1159 = vld [vmem:[%s230 + $0x19f0] sm:$0xff]
        %v1160 = vld [vmem:[%s230 + $0x19f8] sm:$0xff]
        %v1161 = vld [vmem:[%s230 + $0x1a00] sm:$0xff]
        %v1162 = vld [vmem:[%s230 + $0x1a08] sm:$0xff]
        %v1163 = vld [vmem:[%s230 + $0x1a10] sm:$0xff]
        %v1164 = vld [vmem:[%s230 + $0x1a18] sm:$0xff]
        %v1165 = vld [vmem:[%s230 + $0x1a20] sm:$0xff]
        %v1166 = vld [vmem:[%s230 + $0x1a28] sm:$0xff]
        %v1167 = vld [vmem:[%s230 + $0x1a30] sm:$0xff]
        %v1168 = vld [vmem:[%s230 + $0x1a38] sm:$0xff]
        %v1169 = vld [vmem:[%s230 + $0x1a40] sm:$0xff]
        %v1170 = vld [vmem:[%s230 + $0x1a48] sm:$0xff]
        %v1171 = vld [vmem:[%s230 + $0x1a50] sm:$0xff]
        %v1172 = vld [vmem:[%s230 + $0x1a58] sm:$0xff]
        %v1173 = vld [vmem:[%s230 + $0x1a60] sm:$0xff]
        %v1174 = vld [vmem:[%s230 + $0x1a68] sm:$0xff]
        %v1175 = vld [vmem:[%s230 + $0x1a70] sm:$0xff]
        %v1176 = vld [vmem:[%s230 + $0x1a78] sm:$0xff]
        %v1177 = vld [vmem:[%s230 + $0x1a80] sm:$0xff]
        %v1178 = vld [vmem:[%s230 + $0x1a88] sm:$0xff]
        %v1179 = vld [vmem:[%s230 + $0x1a90] sm:$0xff]
        %v1180 = vld [vmem:[%s230 + $0x1a98] sm:$0xff]
        %v1181 = vld [vmem:[%s230 + $0x1aa0] sm:$0xff]
        %v1182 = vld [vmem:[%s230 + $0x1aa8] sm:$0xff]
        %v1183 = vld [vmem:[%s230 + $0x1ab0] sm:$0xff]
        %v1184 = vld [vmem:[%s230 + $0x1ab8] sm:$0xff]
        %v1185 = vld [vmem:[%s230 + $0x1ac0] sm:$0xff]
        %v1186 = vld [vmem:[%s230 + $0x1ac8] sm:$0xff]
        %v1187 = vld [vmem:[%s230 + $0x1ad0] sm:$0xff]
        %v1188 = vld [vmem:[%s230 + $0x1ad8] sm:$0xff]
        %v1189 = vld [vmem:[%s230 + $0x1ae0] sm:$0xff]
        %v1190 = vld [vmem:[%s230 + $0x1ae8] sm:$0xff]
        %v1191 = vld [vmem:[%s230 + $0x1af0] sm:$0xff]
        %v1192 = vld [vmem:[%s230 + $0x1af8] sm:$0xff]
        %v1193 = vld [vmem:[%s230 + $0x1b00] sm:$0xff]
        %v1194 = vld [vmem:[%s230 + $0x1b08] sm:$0xff]
        %v1195 = vld [vmem:[%s230 + $0x1b10] sm:$0xff]
        %v1196 = vld [vmem:[%s230 + $0x1b18] sm:$0xff]
        %v1197 = vld [vmem:[%s230 + $0x1b20] sm:$0xff]
        %v1198 = vld [vmem:[%s230 + $0x1b28] sm:$0xff]
        %v1199 = vld [vmem:[%s230 + $0x1b30] sm:$0xff]
        %v1200 = vld [vmem:[%s230 + $0x1b38] sm:$0xff]
        %v1201 = vld [vmem:[%s230 + $0x1b40] sm:$0xff]
        %v1202 = vld [vmem:[%s230 + $0x1b48] sm:$0xff]
        %v1203 = vld [vmem:[%s230 + $0x1b50] sm:$0xff]
        %v1204 = vld [vmem:[%s230 + $0x1b58] sm:$0xff]
        %v1205 = vld [vmem:[%s230 + $0x1b60] sm:$0xff]
        %v1206 = vld [vmem:[%s230 + $0x1b68] sm:$0xff]
        %v1207 = vld [vmem:[%s230 + $0x1b70] sm:$0xff]
        %v1208 = vld [vmem:[%s230 + $0x1b78] sm:$0xff]
        %v1209 = vld [vmem:[%s230 + $0x1b80] sm:$0xff]
        %v1210 = vld [vmem:[%s230 + $0x1b88] sm:$0xff]
        %v1211 = vld [vmem:[%s230 + $0x1b90] sm:$0xff]
        %v1212 = vld [vmem:[%s230 + $0x1b98] sm:$0xff]
        %v1213 = vld [vmem:[%s230 + $0x1ba0] sm:$0xff]
        %v1214 = vld [vmem:[%s230 + $0x1ba8] sm:$0xff]
        %v1215 = vld [vmem:[%s230 + $0x1bb0] sm:$0xff]
        %v1216 = vld [vmem:[%s230 + $0x1bb8] sm:$0xff]
        %v1217 = vld [vmem:[%s230 + $0x1bc0] sm:$0xff]
        %v1218 = vld [vmem:[%s230 + $0x1bc8] sm:$0xff]
        %v1219 = vld [vmem:[%s230 + $0x1bd0] sm:$0xff]
        %v1220 = vld [vmem:[%s230 + $0x1bd8] sm:$0xff]
        %v1221 = vld [vmem:[%s230 + $0x1be0] sm:$0xff]
        %v1222 = vld [vmem:[%s230 + $0x1be8] sm:$0xff]
        %v1223 = vld [vmem:[%s230 + $0x1bf0] sm:$0xff]
        %v1224 = vld [vmem:[%s230 + $0x1bf8] sm:$0xff]
        %v1225 = vld [vmem:[%s230 + $0x1c00] sm:$0xff]
        %v1226 = vld [vmem:[%s230 + $0x1c08] sm:$0xff]
        %v1227 = vld [vmem:[%s230 + $0x1c10] sm:$0xff]
        %v1228 = vld [vmem:[%s230 + $0x1c18] sm:$0xff]
        %v1229 = vld [vmem:[%s230 + $0x1c20] sm:$0xff]
        %v1230 = vld [vmem:[%s230 + $0x1c28] sm:$0xff]
        %v1231 = vld [vmem:[%s230 + $0x1c30] sm:$0xff]
        %v1232 = vld [vmem:[%s230 + $0x1c38] sm:$0xff]
        %v1233 = vld [vmem:[%s230 + $0x1c40] sm:$0xff]
        %v1234 = vld [vmem:[%s230 + $0x1c48] sm:$0xff]
        %v1235 = vld [vmem:[%s230 + $0x1c50] sm:$0xff]
        %v1236 = vld [vmem:[%s230 + $0x1c58] sm:$0xff]
        %v1237 = vld [vmem:[%s230 + $0x1c60] sm:$0xff]
        %v1238 = vld [vmem:[%s230 + $0x1c68] sm:$0xff]
        %v1239 = vld [vmem:[%s230 + $0x1c70] sm:$0xff]
        %v1240 = vld [vmem:[%s230 + $0x1c78] sm:$0xff]
        %v1241 = vld [vmem:[%s230 + $0x1c80] sm:$0xff]
        %v1242 = vld [vmem:[%s230 + $0x1c88] sm:$0xff]
        %v1243 = vld [vmem:[%s230 + $0x1c90] sm:$0xff]
        %v1244 = vld [vmem:[%s230 + $0x1c98] sm:$0xff]
        %v1245 = vld [vmem:[%s230 + $0x1ca0] sm:$0xff]
        %v1246 = vld [vmem:[%s230 + $0x1ca8] sm:$0xff]
        %v1247 = vld [vmem:[%s230 + $0x1cb0] sm:$0xff]
        %v1248 = vld [vmem:[%s230 + $0x1cb8] sm:$0xff]
        %v1249 = vld [vmem:[%s230 + $0x1cc0] sm:$0xff]
        %v1250 = vld [vmem:[%s230 + $0x1cc8] sm:$0xff]
        %v1251 = vld [vmem:[%s230 + $0x1cd0] sm:$0xff]
        %v1252 = vld [vmem:[%s230 + $0x1cd8] sm:$0xff]
        %v1253 = vld [vmem:[%s230 + $0x1ce0] sm:$0xff]
        %v1254 = vld [vmem:[%s230 + $0x1ce8] sm:$0xff]
        %v1255 = vld [vmem:[%s230 + $0x1cf0] sm:$0xff]
        %v1256 = vld [vmem:[%s230 + $0x1cf8] sm:$0xff]
        %v1257 = vld [vmem:[%s230 + $0x1d00] sm:$0xff]
        %v1258 = vld [vmem:[%s230 + $0x1d08] sm:$0xff]
        %v1259 = vld [vmem:[%s230 + $0x1d10] sm:$0xff]
        %v1260 = vld [vmem:[%s230 + $0x1d18] sm:$0xff]
        %v1261 = vld [vmem:[%s230 + $0x1d20] sm:$0xff]
        %v1262 = vld [vmem:[%s230 + $0x1d28] sm:$0xff]
        %v1263 = vld [vmem:[%s230 + $0x1d30] sm:$0xff]
        %v1264 = vld [vmem:[%s230 + $0x1d38] sm:$0xff]
        %v1265 = vld [vmem:[%s230 + $0x1d40] sm:$0xff]
        %v1266 = vld [vmem:[%s230 + $0x1d48] sm:$0xff]
        %v1267 = vld [vmem:[%s230 + $0x1d50] sm:$0xff]
        %v1268 = vld [vmem:[%s230 + $0x1d58] sm:$0xff]
        %v1269 = vld [vmem:[%s230 + $0x1d60] sm:$0xff]
        %v1270 = vld [vmem:[%s230 + $0x1d68] sm:$0xff]
        %v1271 = vld [vmem:[%s230 + $0x1d70] sm:$0xff]
        %v1272 = vld [vmem:[%s230 + $0x1d78] sm:$0xff]
        %v1273 = vld [vmem:[%s230 + $0x1d80] sm:$0xff]
        %v1274 = vld [vmem:[%s230 + $0x1d88] sm:$0xff]
        %v1275 = vld [vmem:[%s230 + $0x1d90] sm:$0xff]
        %v1276 = vld [vmem:[%s230 + $0x1d98] sm:$0xff]
        %v1277 = vld [vmem:[%s230 + $0x1da0] sm:$0xff]
        %v1278 = vld [vmem:[%s230 + $0x1da8] sm:$0xff]
        %v1279 = vld [vmem:[%s230 + $0x1db0] sm:$0xff]
        %v1280 = vld [vmem:[%s230 + $0x1db8] sm:$0xff]
        %v1281 = vld [vmem:[%s230 + $0x1dc0] sm:$0xff]
        %v1282 = vld [vmem:[%s230 + $0x1dc8] sm:$0xff]
        %v1283 = vld [vmem:[%s230 + $0x1dd0] sm:$0xff]
        %v1284 = vld [vmem:[%s230 + $0x1dd8] sm:$0xff]
        %v1285 = vld [vmem:[%s230 + $0x1de0] sm:$0xff]
        %v1286 = vld [vmem:[%s230 + $0x1de8] sm:$0xff]
        %v1287 = vld [vmem:[%s230 + $0x1df0] sm:$0xff]
        %v1288 = vld [vmem:[%s230 + $0x1df8] sm:$0xff]
        %v1289 = vld [vmem:[%s230 + $0x1e00] sm:$0xff]
        %v1290 = vld [vmem:[%s230 + $0x1e08] sm:$0xff]
        %v1291 = vld [vmem:[%s230 + $0x1e10] sm:$0xff]
        %v1292 = vld [vmem:[%s230 + $0x1e18] sm:$0xff]
        %v1293 = vld [vmem:[%s230 + $0x1e20] sm:$0xff]
        %v1294 = vld [vmem:[%s230 + $0x1e28] sm:$0xff]
        %v1295 = vld [vmem:[%s230 + $0x1e30] sm:$0xff]
        %v1296 = vld [vmem:[%s230 + $0x1e38] sm:$0xff]
        %v1297 = vld [vmem:[%s230 + $0x1e40] sm:$0xff]
        %v1298 = vld [vmem:[%s230 + $0x1e48] sm:$0xff]
        %v1299 = vld [vmem:[%s230 + $0x1e50] sm:$0xff]
        %v1300 = vld [vmem:[%s230 + $0x1e58] sm:$0xff]
        %v1301 = vld [vmem:[%s230 + $0x1e60] sm:$0xff]
        %v1302 = vld [vmem:[%s230 + $0x1e68] sm:$0xff]
        %v1303 = vld [vmem:[%s230 + $0x1e70] sm:$0xff]
        %v1304 = vld [vmem:[%s230 + $0x1e78] sm:$0xff]
        %v1305 = vld [vmem:[%s230 + $0x1e80] sm:$0xff]
        %v1306 = vld [vmem:[%s230 + $0x1e88] sm:$0xff]
        %v1307 = vld [vmem:[%s230 + $0x1e90] sm:$0xff]
        %v1308 = vld [vmem:[%s230 + $0x1e98] sm:$0xff]
        %v1309 = vld [vmem:[%s230 + $0x1ea0] sm:$0xff]
        %v1310 = vld [vmem:[%s230 + $0x1ea8] sm:$0xff]
        %v1311 = vld [vmem:[%s230 + $0x1eb0] sm:$0xff]
        %v1312 = vld [vmem:[%s230 + $0x1eb8] sm:$0xff]
        %v1313 = vld [vmem:[%s230 + $0x1ec0] sm:$0xff]
        %v1314 = vld [vmem:[%s230 + $0x1ec8] sm:$0xff]
        %v1315 = vld [vmem:[%s230 + $0x1ed0] sm:$0xff]
        %v1316 = vld [vmem:[%s230 + $0x1ed8] sm:$0xff]
        %v1317 = vld [vmem:[%s230 + $0x1ee0] sm:$0xff]
        %v1318 = vld [vmem:[%s230 + $0x1ee8] sm:$0xff]
        %v1319 = vld [vmem:[%s230 + $0x1ef0] sm:$0xff]
        %v1320 = vld [vmem:[%s230 + $0x1ef8] sm:$0xff]
        %v1321 = vld [vmem:[%s230 + $0x1f00] sm:$0xff]
        %v1322 = vld [vmem:[%s230 + $0x1f08] sm:$0xff]
        %v1323 = vld [vmem:[%s230 + $0x1f10] sm:$0xff]
        %v1324 = vld [vmem:[%s230 + $0x1f18] sm:$0xff]
        %v1325 = vld [vmem:[%s230 + $0x1f20] sm:$0xff]
        %v1326 = vld [vmem:[%s230 + $0x1f28] sm:$0xff]
        %v1327 = vld [vmem:[%s230 + $0x1f30] sm:$0xff]
        %v1328 = vld [vmem:[%s230 + $0x1f38] sm:$0xff]
        %v1329 = vld [vmem:[%s230 + $0x1f40] sm:$0xff]
        %v1330 = vld [vmem:[%s230 + $0x1f48] sm:$0xff]
        %v1331 = vld [vmem:[%s230 + $0x1f50] sm:$0xff]
        %v1332 = vld [vmem:[%s230 + $0x1f58] sm:$0xff]
        %v1333 = vld [vmem:[%s230 + $0x1f60] sm:$0xff]
        %v1334 = vld [vmem:[%s230 + $0x1f68] sm:$0xff]
        %v1335 = vld [vmem:[%s230 + $0x1f70] sm:$0xff]
        %v1336 = vld [vmem:[%s230 + $0x1f78] sm:$0xff]
        %v1337 = vld [vmem:[%s230 + $0x1f80] sm:$0xff]
        %v1338 = vld [vmem:[%s230 + $0x1f88] sm:$0xff]
        %v1339 = vld [vmem:[%s230 + $0x1f90] sm:$0xff]
        %v1340 = vld [vmem:[%s230 + $0x1f98] sm:$0xff]
        %v1341 = vld [vmem:[%s230 + $0x1fa0] sm:$0xff]
        %v1342 = vld [vmem:[%s230 + $0x1fa8] sm:$0xff]
        %v1343 = vld [vmem:[%s230 + $0x1fb0] sm:$0xff]
        %v1344 = vld [vmem:[%s230 + $0x1fb8] sm:$0xff]
        %v1345 = vld [vmem:[%s230 + $0x1fc0] sm:$0xff]
        %v1346 = vld [vmem:[%s230 + $0x1fc8] sm:$0xff]
        %v1347 = vld [vmem:[%s230 + $0x1fd0] sm:$0xff]
        %v1348 = vld [vmem:[%s230 + $0x1fd8] sm:$0xff]
        %v1349 = vld [vmem:[%s230 + $0x1fe0] sm:$0xff]
        %v1350 = vld [vmem:[%s230 + $0x1fe8] sm:$0xff]
        %v1351 = vld [vmem:[%s230 + $0x1ff0] sm:$0xff]
        %v1352 = vld [vmem:[%s230 + $0x1ff8] sm:$0xff]
        %v1353 = vld [vmem:[%s230 + $0x2000] sm:$0xff]
        %v1354 = vld [vmem:[%s230 + $0x2008] sm:$0xff]
        %v1355 = vld [vmem:[%s230 + $0x2010] sm:$0xff]
        %v1356 = vld [vmem:[%s230 + $0x2018] sm:$0xff]
        %v1357 = vld [vmem:[%s230 + $0x2020] sm:$0xff]
        %v1358 = vld [vmem:[%s230 + $0x2028] sm:$0xff]
        %v1359 = vld [vmem:[%s230 + $0x2030] sm:$0xff]
        %v1360 = vld [vmem:[%s230 + $0x2038] sm:$0xff]
        %v1361 = vld [vmem:[%s230 + $0x2040] sm:$0xff]
        %v1362 = vld [vmem:[%s230 + $0x2048] sm:$0xff]
        %v1363 = vld [vmem:[%s230 + $0x2050] sm:$0xff]
        %v1364 = vld [vmem:[%s230 + $0x2058] sm:$0xff]
        %v1365 = vld [vmem:[%s230 + $0x2060] sm:$0xff]
        %v1366 = vld [vmem:[%s230 + $0x2068] sm:$0xff]
        %v1367 = vld [vmem:[%s230 + $0x2070] sm:$0xff]
        %v1368 = vld [vmem:[%s230 + $0x2078] sm:$0xff]
        %v1369 = vld [vmem:[%s230 + $0x2080] sm:$0xff]
        %v1370 = vld [vmem:[%s230 + $0x2088] sm:$0xff]
        %v1371 = vld [vmem:[%s230 + $0x2090] sm:$0xff]
        %v1372 = vld [vmem:[%s230 + $0x2098] sm:$0xff]
        %v1373 = vld [vmem:[%s230 + $0x20a0] sm:$0xff]
        %v1374 = vld [vmem:[%s230 + $0x20a8] sm:$0xff]
        %v1375 = vld [vmem:[%s230 + $0x20b0] sm:$0xff]
        %v1376 = vld [vmem:[%s230 + $0x20b8] sm:$0xff]
        %v1377 = vld [vmem:[%s230 + $0x20c0] sm:$0xff]
        %v1378 = vld [vmem:[%s230 + $0x20c8] sm:$0xff]
        %v1379 = vld [vmem:[%s230 + $0x20d0] sm:$0xff]
        %v1380 = vld [vmem:[%s230 + $0x20d8] sm:$0xff]
        %v1381 = vld [vmem:[%s230 + $0x20e0] sm:$0xff]
        %v1382 = vld [vmem:[%s230 + $0x20e8] sm:$0xff]
        %v1383 = vld [vmem:[%s230 + $0x20f0] sm:$0xff]
        %v1384 = vld [vmem:[%s230 + $0x20f8] sm:$0xff]
        %v1385 = vld [vmem:[%s230 + $0x2100] sm:$0xff]
        %v1386 = vld [vmem:[%s230 + $0x2108] sm:$0xff]
        %v1387 = vld [vmem:[%s230 + $0x2110] sm:$0xff]
        %v1388 = vld [vmem:[%s230 + $0x2118] sm:$0xff]
        %v1389 = vld [vmem:[%s230 + $0x2120] sm:$0xff]
        %v1390 = vld [vmem:[%s230 + $0x2128] sm:$0xff]
        %v1391 = vld [vmem:[%s230 + $0x2130] sm:$0xff]
        %v1392 = vld [vmem:[%s230 + $0x2138] sm:$0xff]
        %v1393 = vld [vmem:[%s230 + $0x2140] sm:$0xff]
        %v1394 = vld [vmem:[%s230 + $0x2148] sm:$0xff]
        %v1395 = vld [vmem:[%s230 + $0x2150] sm:$0xff]
        %v1396 = vld [vmem:[%s230 + $0x2158] sm:$0xff]
        %v1397 = vld [vmem:[%s230 + $0x2160] sm:$0xff]
        %v1398 = vld [vmem:[%s230 + $0x2168] sm:$0xff]
        %v1399 = vld [vmem:[%s230 + $0x2170] sm:$0xff]
        %v1400 = vld [vmem:[%s230 + $0x2178] sm:$0xff]
        %v1401 = vld [vmem:[%s230 + $0x2180] sm:$0xff]
        %v1402 = vld [vmem:[%s230 + $0x2188] sm:$0xff]
        %v1403 = vld [vmem:[%s230 + $0x2190] sm:$0xff]
        %v1404 = vld [vmem:[%s230 + $0x2198] sm:$0xff]
        %v1405 = vld [vmem:[%s230 + $0x21a0] sm:$0xff]
        %v1406 = vld [vmem:[%s230 + $0x21a8] sm:$0xff]
        %v1407 = vld [vmem:[%s230 + $0x21b0] sm:$0xff]
        %v1408 = vld [vmem:[%s230 + $0x21b8] sm:$0xff]
        %v1409 = vld [vmem:[%s230 + $0x21c0] sm:$0xff]
        %v1410 = vld [vmem:[%s230 + $0x21c8] sm:$0xff]
        %v1411 = vld [vmem:[%s230 + $0x21d0] sm:$0xff]
        %v1412 = vld [vmem:[%s230 + $0x21d8] sm:$0xff]
        %v1413 = vld [vmem:[%s230 + $0x21e0] sm:$0xff]
        %v1414 = vld [vmem:[%s230 + $0x21e8] sm:$0xff]
        %v1415 = vld [vmem:[%s230 + $0x21f0] sm:$0xff]
        %v1416 = vld [vmem:[%s230 + $0x21f8] sm:$0xff]
        %v1417 = vld [vmem:[%s230 + $0x2200] sm:$0xff]
        %v1418 = vld [vmem:[%s230 + $0x2208] sm:$0xff]
        %v1419 = vld [vmem:[%s230 + $0x2210] sm:$0xff]
        %v1420 = vld [vmem:[%s230 + $0x2218] sm:$0xff]
        %v1421 = vld [vmem:[%s230 + $0x2220] sm:$0xff]
        %v1422 = vld [vmem:[%s230 + $0x2228] sm:$0xff]
        %v1423 = vld [vmem:[%s230 + $0x2230] sm:$0xff]
        %v1424 = vld [vmem:[%s230 + $0x2238] sm:$0xff]
        %v1425 = vld [vmem:[%s230 + $0x2240] sm:$0xff]
        %v1426 = vld [vmem:[%s230 + $0x2248] sm:$0xff]
        %v1427 = vld [vmem:[%s230 + $0x2250] sm:$0xff]
        %v1428 = vld [vmem:[%s230 + $0x2258] sm:$0xff]
        %v1429 = vld [vmem:[%s230 + $0x2260] sm:$0xff]
        %v1430 = vld [vmem:[%s230 + $0x2268] sm:$0xff]
        %v1431 = vld [vmem:[%s230 + $0x2270] sm:$0xff]
        %v1432 = vld [vmem:[%s230 + $0x2278] sm:$0xff]
        %v1433 = vld [vmem:[%s230 + $0x2280] sm:$0xff]
        %v1434 = vld [vmem:[%s230 + $0x2288] sm:$0xff]
        %v1435 = vld [vmem:[%s230 + $0x2290] sm:$0xff]
        %v1436 = vld [vmem:[%s230 + $0x2298] sm:$0xff]
        %v1437 = vld [vmem:[%s230 + $0x22a0] sm:$0xff]
        %v1438 = vld [vmem:[%s230 + $0x22a8] sm:$0xff]
        %v1439 = vld [vmem:[%s230 + $0x22b0] sm:$0xff]
        %v1440 = vld [vmem:[%s230 + $0x22b8] sm:$0xff]
        %v1441 = vld [vmem:[%s230 + $0x22c0] sm:$0xff]
        %v1442 = vld [vmem:[%s230 + $0x22c8] sm:$0xff]
        %v1443 = vld [vmem:[%s230 + $0x22d0] sm:$0xff]
        %v1444 = vld [vmem:[%s230 + $0x22d8] sm:$0xff]
        %v1445 = vld [vmem:[%s230 + $0x22e0] sm:$0xff]
        %v1446 = vld [vmem:[%s230 + $0x22e8] sm:$0xff]
        %v1447 = vld [vmem:[%s230 + $0x22f0] sm:$0xff]
        %v1448 = vld [vmem:[%s230 + $0x22f8] sm:$0xff]
        %v1449 = vld [vmem:[%s230 + $0x2300] sm:$0xff]
        %v1450 = vld [vmem:[%s230 + $0x2308] sm:$0xff]
        %v1451 = vld [vmem:[%s230 + $0x2310] sm:$0xff]
        %v1452 = vld [vmem:[%s230 + $0x2318] sm:$0xff]
        %v1453 = vld [vmem:[%s230 + $0x2320] sm:$0xff]
        %v1454 = vld [vmem:[%s230 + $0x2328] sm:$0xff]
        %v1455 = vld [vmem:[%s230 + $0x2330] sm:$0xff]
        %v1456 = vld [vmem:[%s230 + $0x2338] sm:$0xff]
        %v1457 = vld [vmem:[%s230 + $0x2340] sm:$0xff]
        %v1458 = vld [vmem:[%s230 + $0x2348] sm:$0xff]
        %v1459 = vld [vmem:[%s230 + $0x2350] sm:$0xff]
        %v1460 = vld [vmem:[%s230 + $0x2358] sm:$0xff]
        %v1461 = vld [vmem:[%s230 + $0x2360] sm:$0xff]
        %v1462 = vld [vmem:[%s230 + $0x2368] sm:$0xff]
        %v1463 = vld [vmem:[%s230 + $0x2370] sm:$0xff]
        %v1464 = vld [vmem:[%s230 + $0x2378] sm:$0xff]
        %v1465 = vld [vmem:[%s230 + $0x2380] sm:$0xff]
        %v1466 = vld [vmem:[%s230 + $0x2388] sm:$0xff]
        %v1467 = vld [vmem:[%s230 + $0x2390] sm:$0xff]
        %v1468 = vld [vmem:[%s230 + $0x2398] sm:$0xff]
        %v1469 = vld [vmem:[%s230 + $0x23a0] sm:$0xff]
        %v1470 = vld [vmem:[%s230 + $0x23a8] sm:$0xff]
        %v1471 = vld [vmem:[%s230 + $0x23b0] sm:$0xff]
        %v1472 = vld [vmem:[%s230 + $0x23b8] sm:$0xff]
        %v1473 = vld [vmem:[%s230 + $0x23c0] sm:$0xff]
        %v1474 = vld [vmem:[%s230 + $0x23c8] sm:$0xff]
        %v1475 = vld [vmem:[%s230 + $0x23d0] sm:$0xff]
        %v1476 = vld [vmem:[%s230 + $0x23d8] sm:$0xff]
        %v1477 = vld [vmem:[%s230 + $0x23e0] sm:$0xff]
        %v1478 = vld [vmem:[%s230 + $0x23e8] sm:$0xff]
        %v1479 = vld [vmem:[%s230 + $0x23f0] sm:$0xff]
        %v1480 = vld [vmem:[%s230 + $0x23f8] sm:$0xff]
        %v1481 = vld [vmem:[%s230 + $0x2400] sm:$0xff]
        %v1482 = vld [vmem:[%s230 + $0x2408] sm:$0xff]
        %v1483 = vld [vmem:[%s230 + $0x2410] sm:$0xff]
        %v1484 = vld [vmem:[%s230 + $0x2418] sm:$0xff]
        %v1485 = vld [vmem:[%s230 + $0x2420] sm:$0xff]
        %v1486 = vld [vmem:[%s230 + $0x2428] sm:$0xff]
        %v1487 = vld [vmem:[%s230 + $0x2430] sm:$0xff]
        %v1488 = vld [vmem:[%s230 + $0x2438] sm:$0xff]
        %v1489 = vld [vmem:[%s230 + $0x2440] sm:$0xff]
        %v1490 = vld [vmem:[%s230 + $0x2448] sm:$0xff]
        %v1491 = vld [vmem:[%s230 + $0x2450] sm:$0xff]
        %v1492 = vld [vmem:[%s230 + $0x2458] sm:$0xff]
        %v1493 = vld [vmem:[%s230 + $0x2460] sm:$0xff]
        %v1494 = vld [vmem:[%s230 + $0x2468] sm:$0xff]
        %v1495 = vld [vmem:[%s230 + $0x2470] sm:$0xff]
        %v1496 = vld [vmem:[%s230 + $0x2478] sm:$0xff]
        %v1497 = vld [vmem:[%s230 + $0x2480] sm:$0xff]
        %v1498 = vld [vmem:[%s230 + $0x2488] sm:$0xff]
        %v1499 = vld [vmem:[%s230 + $0x2490] sm:$0xff]
        %v1500 = vld [vmem:[%s230 + $0x2498] sm:$0xff]
        %v1501 = vld [vmem:[%s230 + $0x24a0] sm:$0xff]
        %v1502 = vld [vmem:[%s230 + $0x24a8] sm:$0xff]
        %v1503 = vld [vmem:[%s230 + $0x24b0] sm:$0xff]
        %v1504 = vld [vmem:[%s230 + $0x24b8] sm:$0xff]
        %v1505 = vld [vmem:[%s230 + $0x24c0] sm:$0xff]
        %v1506 = vld [vmem:[%s230 + $0x24c8] sm:$0xff]
        %v1507 = vld [vmem:[%s230 + $0x24d0] sm:$0xff]
        %v1508 = vld [vmem:[%s230 + $0x24d8] sm:$0xff]
        %v1509 = vld [vmem:[%s230 + $0x24e0] sm:$0xff]
        %v1510 = vld [vmem:[%s230 + $0x24e8] sm:$0xff]
        %v1511 = vld [vmem:[%s230 + $0x24f0] sm:$0xff]
        %v1512 = vld [vmem:[%s230 + $0x24f8] sm:$0xff]
        %v1513 = vld [vmem:[%s230 + $0x2500] sm:$0xff]
        %v1514 = vld [vmem:[%s230 + $0x2508] sm:$0xff]
        %v1515 = vld [vmem:[%s230 + $0x2510] sm:$0xff]
        %v1516 = vld [vmem:[%s230 + $0x2518] sm:$0xff]
        %v1517 = vld [vmem:[%s230 + $0x2520] sm:$0xff]
        %v1518 = vld [vmem:[%s230 + $0x2528] sm:$0xff]
        %v1519 = vld [vmem:[%s230 + $0x2530] sm:$0xff]
        %v1520 = vld [vmem:[%s230 + $0x2538] sm:$0xff]
        %v1521 = vld [vmem:[%s230 + $0x2540] sm:$0xff]
        %v1522 = vld [vmem:[%s230 + $0x2548] sm:$0xff]
        %v1523 = vld [vmem:[%s230 + $0x2550] sm:$0xff]
        %v1524 = vld [vmem:[%s230 + $0x2558] sm:$0xff]
        %v1525 = vld [vmem:[%s230 + $0x2560] sm:$0xff]
        %v1526 = vld [vmem:[%s230 + $0x2568] sm:$0xff]
        %v1527 = vld [vmem:[%s230 + $0x2570] sm:$0xff]
        %v1528 = vld [vmem:[%s230 + $0x2578] sm:$0xff]
        %v1529 = vld [vmem:[%s230 + $0x2580] sm:$0xff]
        %v1530 = vld [vmem:[%s230 + $0x2588] sm:$0xff]
        %v1531 = vld [vmem:[%s230 + $0x2590] sm:$0xff]
        %v1532 = vld [vmem:[%s230 + $0x2598] sm:$0xff]
        %v1533 = vld [vmem:[%s230 + $0x25a0] sm:$0xff]
        %v1534 = vld [vmem:[%s230 + $0x25a8] sm:$0xff]
        %v1535 = vld [vmem:[%s230 + $0x25b0] sm:$0xff]
        %v1536 = vld [vmem:[%s230 + $0x25b8] sm:$0xff]
        %v1537 = vld [vmem:[%s230 + $0x25c0] sm:$0xff]
        %v1538 = vld [vmem:[%s230 + $0x25c8] sm:$0xff]
        %v1539 = vld [vmem:[%s230 + $0x25d0] sm:$0xff]
        %v1540 = vld [vmem:[%s230 + $0x25d8] sm:$0xff]
        %v1541 = vld [vmem:[%s230 + $0x25e0] sm:$0xff]
        %v1542 = vld [vmem:[%s230 + $0x25e8] sm:$0xff]
        %v1543 = vld [vmem:[%s230 + $0x25f0] sm:$0xff]
        %v1544 = vld [vmem:[%s230 + $0x25f8] sm:$0xff]
        %v1545 = vld [vmem:[%s230 + $0x2600] sm:$0xff]
        %v1546 = vld [vmem:[%s230 + $0x2608] sm:$0xff]
        %v1547 = vld [vmem:[%s230 + $0x2610] sm:$0xff]
        %v1548 = vld [vmem:[%s230 + $0x2618] sm:$0xff]
        %v1549 = vld [vmem:[%s230 + $0x2620] sm:$0xff]
        %v1550 = vld [vmem:[%s230 + $0x2628] sm:$0xff]
        %v1551 = vld [vmem:[%s230 + $0x2630] sm:$0xff]
        %v1552 = vld [vmem:[%s230 + $0x2638] sm:$0xff]
        %v1553 = vld [vmem:[%s230 + $0x2640] sm:$0xff]
        %v1554 = vld [vmem:[%s230 + $0x2648] sm:$0xff]
        %v1555 = vld [vmem:[%s230 + $0x2650] sm:$0xff]
        %v1556 = vld [vmem:[%s230 + $0x2658] sm:$0xff]
        %v1557 = vld [vmem:[%s230 + $0x2660] sm:$0xff]
        %v1558 = vld [vmem:[%s230 + $0x2668] sm:$0xff]
        %v1559 = vld [vmem:[%s230 + $0x2670] sm:$0xff]
        %v1560 = vld [vmem:[%s230 + $0x2678] sm:$0xff]
        %v1561 = vld [vmem:[%s230 + $0x2680] sm:$0xff]
        %v1562 = vld [vmem:[%s230 + $0x2688] sm:$0xff]
        %v1563 = vld [vmem:[%s230 + $0x2690] sm:$0xff]
        %v1564 = vld [vmem:[%s230 + $0x2698] sm:$0xff]
        %v1565 = vld [vmem:[%s230 + $0x26a0] sm:$0xff]
        %v1566 = vld [vmem:[%s230 + $0x26a8] sm:$0xff]
        %v1567 = vld [vmem:[%s230 + $0x26b0] sm:$0xff]
        %v1568 = vld [vmem:[%s230 + $0x26b8] sm:$0xff]
        %v1569 = vld [vmem:[%s230 + $0x26c0] sm:$0xff]
        %v1570 = vld [vmem:[%s230 + $0x26c8] sm:$0xff]
        %v1571 = vld [vmem:[%s230 + $0x26d0] sm:$0xff]
        %v1572 = vld [vmem:[%s230 + $0x26d8] sm:$0xff]
        %v1573 = vld [vmem:[%s230 + $0x26e0] sm:$0xff]
        %v1574 = vld [vmem:[%s230 + $0x26e8] sm:$0xff]
        %v1575 = vld [vmem:[%s230 + $0x26f0] sm:$0xff]
        %v1576 = vld [vmem:[%s230 + $0x26f8] sm:$0xff]
        %v1577 = vld [vmem:[%s230 + $0x2700] sm:$0xff]
        %v1578 = vld [vmem:[%s230 + $0x2708] sm:$0xff]
        %v1579 = vld [vmem:[%s230 + $0x2710] sm:$0xff]
        %v1580 = vld [vmem:[%s230 + $0x2718] sm:$0xff]
        %v1581 = vld [vmem:[%s230 + $0x2720] sm:$0xff]
        %v1582 = vld [vmem:[%s230 + $0x2728] sm:$0xff]
        %v1583 = vld [vmem:[%s230 + $0x2730] sm:$0xff]
        %v1584 = vld [vmem:[%s230 + $0x2738] sm:$0xff]
        %v1585 = vld [vmem:[%s230 + $0x2740] sm:$0xff]
        %v1586 = vld [vmem:[%s230 + $0x2748] sm:$0xff]
        %v1587 = vld [vmem:[%s230 + $0x2750] sm:$0xff]
        %v1588 = vld [vmem:[%s230 + $0x2758] sm:$0xff]
        %v1589 = vld [vmem:[%s230 + $0x2760] sm:$0xff]
        %v1590 = vld [vmem:[%s230 + $0x2768] sm:$0xff]
        %v1591 = vld [vmem:[%s230 + $0x2770] sm:$0xff]
        %v1592 = vld [vmem:[%s230 + $0x2778] sm:$0xff]
        %v1593 = vld [vmem:[%s230 + $0x2780] sm:$0xff]
        %v1594 = vld [vmem:[%s230 + $0x2788] sm:$0xff]
        %v1595 = vld [vmem:[%s230 + $0x2790] sm:$0xff]
        %v1596 = vld [vmem:[%s230 + $0x2798] sm:$0xff]
        %v1597 = vld [vmem:[%s230 + $0x27a0] sm:$0xff]
        %v1598 = vld [vmem:[%s230 + $0x27a8] sm:$0xff]
        %v1599 = vld [vmem:[%s230 + $0x27b0] sm:$0xff]
        %v1600 = vld [vmem:[%s230 + $0x27b8] sm:$0xff]
        %v1601 = vld [vmem:[%s230 + $0x27c0] sm:$0xff]
        %v1602 = vld [vmem:[%s230 + $0x27c8] sm:$0xff]
        %v1603 = vld [vmem:[%s230 + $0x27d0] sm:$0xff]
        %v1604 = vld [vmem:[%s230 + $0x27d8] sm:$0xff]
        %v1605 = vld [vmem:[%s230 + $0x27e0] sm:$0xff]
        %v1606 = vld [vmem:[%s230 + $0x27e8] sm:$0xff]
        %v1607 = vld [vmem:[%s230 + $0x27f0] sm:$0xff]
        %v1608 = vld [vmem:[%s230 + $0x27f8] sm:$0xff]
        %v1609 = vld [vmem:[%s230 + $0x2800] sm:$0xff]
        %v1610 = vld [vmem:[%s230 + $0x2808] sm:$0xff]
        %v1611 = vld [vmem:[%s230 + $0x2810] sm:$0xff]
        %v1612 = vld [vmem:[%s230 + $0x2818] sm:$0xff]
        %v1613 = vld [vmem:[%s230 + $0x2820] sm:$0xff]
        %v1614 = vld [vmem:[%s230 + $0x2828] sm:$0xff]
        %v1615 = vld [vmem:[%s230 + $0x2830] sm:$0xff]
        %v1616 = vld [vmem:[%s230 + $0x2838] sm:$0xff]
        %v1617 = vld [vmem:[%s230 + $0x2840] sm:$0xff]
        %v1618 = vld [vmem:[%s230 + $0x2848] sm:$0xff]
        %v1619 = vld [vmem:[%s230 + $0x2850] sm:$0xff]
        %v1620 = vld [vmem:[%s230 + $0x2858] sm:$0xff]
        %v1621 = vld [vmem:[%s230 + $0x2860] sm:$0xff]
        %v1622 = vld [vmem:[%s230 + $0x2868] sm:$0xff]
        %v1623 = vld [vmem:[%s230 + $0x2870] sm:$0xff]
        %v1624 = vld [vmem:[%s230 + $0x2878] sm:$0xff]
        %v1625 = vld [vmem:[%s230 + $0x2880] sm:$0xff]
        %v1626 = vld [vmem:[%s230 + $0x2888] sm:$0xff]
        %v1627 = vld [vmem:[%s230 + $0x2890] sm:$0xff]
        %v1628 = vld [vmem:[%s230 + $0x2898] sm:$0xff]
        %v1629 = vld [vmem:[%s230 + $0x28a0] sm:$0xff]
        %v1630 = vld [vmem:[%s230 + $0x28a8] sm:$0xff]
        %v1631 = vld [vmem:[%s230 + $0x28b0] sm:$0xff]
        %v1632 = vld [vmem:[%s230 + $0x28b8] sm:$0xff]
        %v1633 = vld [vmem:[%s230 + $0x28c0] sm:$0xff]
        %v1634 = vld [vmem:[%s230 + $0x28c8] sm:$0xff]
        %v1635 = vld [vmem:[%s230 + $0x28d0] sm:$0xff]
        %v1636 = vld [vmem:[%s230 + $0x28d8] sm:$0xff]
        %v1637 = vld [vmem:[%s230 + $0x28e0] sm:$0xff]
        %v1638 = vld [vmem:[%s230 + $0x28e8] sm:$0xff]
        %v1639 = vld [vmem:[%s230 + $0x28f0] sm:$0xff]
        %v1640 = vld [vmem:[%s230 + $0x28f8] sm:$0xff]
        %v1641 = vld [vmem:[%s230 + $0x2900] sm:$0xff]
        %v1642 = vld [vmem:[%s230 + $0x2908] sm:$0xff]
        %v1643 = vld [vmem:[%s230 + $0x2910] sm:$0xff]
        %v1644 = vld [vmem:[%s230 + $0x2918] sm:$0xff]
        %v1645 = vld [vmem:[%s230 + $0x2920] sm:$0xff]
        %v1646 = vld [vmem:[%s230 + $0x2928] sm:$0xff]
        %v1647 = vld [vmem:[%s230 + $0x2930] sm:$0xff]
        %v1648 = vld [vmem:[%s230 + $0x2938] sm:$0xff]
        %v1649 = vld [vmem:[%s230 + $0x2940] sm:$0xff]
        %v1650 = vld [vmem:[%s230 + $0x2948] sm:$0xff]
        %v1651 = vld [vmem:[%s230 + $0x2950] sm:$0xff]
        %v1652 = vld [vmem:[%s230 + $0x2958] sm:$0xff]
        %v1653 = vld [vmem:[%s230 + $0x2960] sm:$0xff]
        %v1654 = vld [vmem:[%s230 + $0x2968] sm:$0xff]
        %v1655 = vld [vmem:[%s230 + $0x2970] sm:$0xff]
        %v1656 = vld [vmem:[%s230 + $0x2978] sm:$0xff]
        %v1657 = vld [vmem:[%s230 + $0x2980] sm:$0xff]
        %v1658 = vld [vmem:[%s230 + $0x2988] sm:$0xff]
        %v1659 = vld [vmem:[%s230 + $0x2990] sm:$0xff]
        %v1660 = vld [vmem:[%s230 + $0x2998] sm:$0xff]
        %v1661 = vld [vmem:[%s230 + $0x29a0] sm:$0xff]
        %v1662 = vld [vmem:[%s230 + $0x29a8] sm:$0xff]
        %v1663 = vld [vmem:[%s230 + $0x29b0] sm:$0xff]
        %v1664 = vld [vmem:[%s230 + $0x29b8] sm:$0xff]
        %v1665 = vld [vmem:[%s230 + $0x29c0] sm:$0xff]
        %v1666 = vld [vmem:[%s230 + $0x29c8] sm:$0xff]
        %v1667 = vld [vmem:[%s230 + $0x29d0] sm:$0xff]
        %v1668 = vld [vmem:[%s230 + $0x29d8] sm:$0xff]
        %v1669 = vld [vmem:[%s230 + $0x29e0] sm:$0xff]
        %v1670 = vld [vmem:[%s230 + $0x29e8] sm:$0xff]
        %v1671 = vld [vmem:[%s230 + $0x29f0] sm:$0xff]
        %v1672 = vld [vmem:[%s230 + $0x29f8] sm:$0xff]
        %v1673 = vld [vmem:[%s230 + $0x2a00] sm:$0xff]
        %v1674 = vld [vmem:[%s230 + $0x2a08] sm:$0xff]
        %v1675 = vld [vmem:[%s230 + $0x2a10] sm:$0xff]
        %v1676 = vld [vmem:[%s230 + $0x2a18] sm:$0xff]
        %v1677 = vld [vmem:[%s230 + $0x2a20] sm:$0xff]
        %v1678 = vld [vmem:[%s230 + $0x2a28] sm:$0xff]
        %v1679 = vld [vmem:[%s230 + $0x2a30] sm:$0xff]
        %v1680 = vld [vmem:[%s230 + $0x2a38] sm:$0xff]
        %v1681 = vld [vmem:[%s230 + $0x2a40] sm:$0xff]
        %v1682 = vld [vmem:[%s230 + $0x2a48] sm:$0xff]
        %v1683 = vld [vmem:[%s230 + $0x2a50] sm:$0xff]
        %v1684 = vld [vmem:[%s230 + $0x2a58] sm:$0xff]
        %v1685 = vld [vmem:[%s230 + $0x2a60] sm:$0xff]
        %v1686 = vld [vmem:[%s230 + $0x2a68] sm:$0xff]
        %v1687 = vld [vmem:[%s230 + $0x2a70] sm:$0xff]
        %v1688 = vld [vmem:[%s230 + $0x2a78] sm:$0xff]
        %v1689 = vld [vmem:[%s230 + $0x2a80] sm:$0xff]
        %v1690 = vld [vmem:[%s230 + $0x2a88] sm:$0xff]
        %v1691 = vld [vmem:[%s230 + $0x2a90] sm:$0xff]
        %v1692 = vld [vmem:[%s230 + $0x2a98] sm:$0xff]
        %v1693 = vld [vmem:[%s230 + $0x2aa0] sm:$0xff]
        %v1694 = vld [vmem:[%s230 + $0x2aa8] sm:$0xff]
        %v1695 = vld [vmem:[%s230 + $0x2ab0] sm:$0xff]
        %v1696 = vld [vmem:[%s230 + $0x2ab8] sm:$0xff]
        %v1697 = vld [vmem:[%s230 + $0x2ac0] sm:$0xff]
        %v1698 = vld [vmem:[%s230 + $0x2ac8] sm:$0xff]
        %v1699 = vld [vmem:[%s230 + $0x2ad0] sm:$0xff]
        %v1700 = vld [vmem:[%s230 + $0x2ad8] sm:$0xff]
        %v1701 = vld [vmem:[%s230 + $0x2ae0] sm:$0xff]
        %v1702 = vld [vmem:[%s230 + $0x2ae8] sm:$0xff]
        %v1703 = vld [vmem:[%s230 + $0x2af0] sm:$0xff]
        %v1704 = vld [vmem:[%s230 + $0x2af8] sm:$0xff]
        %v1705 = vld [vmem:[%s230 + $0x2b00] sm:$0xff]
        %v1706 = vld [vmem:[%s230 + $0x2b08] sm:$0xff]
        %v1707 = vld [vmem:[%s230 + $0x2b10] sm:$0xff]
        %v1708 = vld [vmem:[%s230 + $0x2b18] sm:$0xff]
        %v1709 = vld [vmem:[%s230 + $0x2b20] sm:$0xff]
        %v1710 = vld [vmem:[%s230 + $0x2b28] sm:$0xff]
        %v1711 = vld [vmem:[%s230 + $0x2b30] sm:$0xff]
        %v1712 = vld [vmem:[%s230 + $0x2b38] sm:$0xff]
        %v1713 = vld [vmem:[%s230 + $0x2b40] sm:$0xff]
        %v1714 = vld [vmem:[%s230 + $0x2b48] sm:$0xff]
        %v1715 = vld [vmem:[%s230 + $0x2b50] sm:$0xff]
        %v1716 = vld [vmem:[%s230 + $0x2b58] sm:$0xff]
        %v1717 = vld [vmem:[%s230 + $0x2b60] sm:$0xff]
        %v1718 = vld [vmem:[%s230 + $0x2b68] sm:$0xff]
        %v1719 = vld [vmem:[%s230 + $0x2b70] sm:$0xff]
        %v1720 = vld [vmem:[%s230 + $0x2b78] sm:$0xff]
        %v1721 = vld [vmem:[%s230 + $0x2b80] sm:$0xff]
        %v1722 = vld [vmem:[%s230 + $0x2b88] sm:$0xff]
        %v1723 = vld [vmem:[%s230 + $0x2b90] sm:$0xff]
        %v1724 = vld [vmem:[%s230 + $0x2b98] sm:$0xff]
        %v1725 = vld [vmem:[%s230 + $0x2ba0] sm:$0xff]
        %v1726 = vld [vmem:[%s230 + $0x2ba8] sm:$0xff]
        %v1727 = vld [vmem:[%s230 + $0x2bb0] sm:$0xff]
        %v1728 = vld [vmem:[%s230 + $0x2bb8] sm:$0xff]
        %v1729 = vld [vmem:[%s230 + $0x2bc0] sm:$0xff]
        %v1730 = vld [vmem:[%s230 + $0x2bc8] sm:$0xff]
        %v1731 = vld [vmem:[%s230 + $0x2bd0] sm:$0xff]
        %v1732 = vld [vmem:[%s230 + $0x2bd8] sm:$0xff]
        %v1733 = vld [vmem:[%s230 + $0x2be0] sm:$0xff]
        %v1734 = vld [vmem:[%s230 + $0x2be8] sm:$0xff]
        %v1735 = vld [vmem:[%s230 + $0x2bf0] sm:$0xff]
        %v1736 = vld [vmem:[%s230 + $0x2bf8] sm:$0xff]
        %v1737 = vld [vmem:[%s230 + $0x2c00] sm:$0xff]
        %v1738 = vld [vmem:[%s230 + $0x2c08] sm:$0xff]
        %v1739 = vld [vmem:[%s230 + $0x2c10] sm:$0xff]
        %v1740 = vld [vmem:[%s230 + $0x2c18] sm:$0xff]
        %v1741 = vld [vmem:[%s230 + $0x2c20] sm:$0xff]
        %v1742 = vld [vmem:[%s230 + $0x2c28] sm:$0xff]
        %v1743 = vld [vmem:[%s230 + $0x2c30] sm:$0xff]
        %v1744 = vld [vmem:[%s230 + $0x2c38] sm:$0xff]
        %v1745 = vld [vmem:[%s230 + $0x2c40] sm:$0xff]
        %v1746 = vld [vmem:[%s230 + $0x2c48] sm:$0xff]
        %v1747 = vld [vmem:[%s230 + $0x2c50] sm:$0xff]
        %v1748 = vld [vmem:[%s230 + $0x2c58] sm:$0xff]
        %v1749 = vld [vmem:[%s230 + $0x2c60] sm:$0xff]
        %v1750 = vld [vmem:[%s230 + $0x2c68] sm:$0xff]
        %v1751 = vld [vmem:[%s230 + $0x2c70] sm:$0xff]
        %v1752 = vld [vmem:[%s230 + $0x2c78] sm:$0xff]
        %v1753 = vld [vmem:[%s230 + $0x2c80] sm:$0xff]
        %v1754 = vld [vmem:[%s230 + $0x2c88] sm:$0xff]
        %v1755 = vld [vmem:[%s230 + $0x2c90] sm:$0xff]
        %v1756 = vld [vmem:[%s230 + $0x2c98] sm:$0xff]
        %v1757 = vld [vmem:[%s230 + $0x2ca0] sm:$0xff]
        %v1758 = vld [vmem:[%s230 + $0x2ca8] sm:$0xff]
        %v1759 = vld [vmem:[%s230 + $0x2cb0] sm:$0xff]
        %v1760 = vld [vmem:[%s230 + $0x2cb8] sm:$0xff]
        %v1761 = vld [vmem:[%s230 + $0x2cc0] sm:$0xff]
        %v1762 = vld [vmem:[%s230 + $0x2cc8] sm:$0xff]
        %v1763 = vld [vmem:[%s230 + $0x2cd0] sm:$0xff]
        %v1764 = vld [vmem:[%s230 + $0x2cd8] sm:$0xff]
        %v1765 = vld [vmem:[%s230 + $0x2ce0] sm:$0xff]
        %v1766 = vld [vmem:[%s230 + $0x2ce8] sm:$0xff]
        %v1767 = vld [vmem:[%s230 + $0x2cf0] sm:$0xff]
        %v1768 = vld [vmem:[%s230 + $0x2cf8] sm:$0xff]
        %v1769 = vld [vmem:[%s230 + $0x2d00] sm:$0xff]
        %v1770 = vld [vmem:[%s230 + $0x2d08] sm:$0xff]
        %v1771 = vld [vmem:[%s230 + $0x2d10] sm:$0xff]
        %v1772 = vld [vmem:[%s230 + $0x2d18] sm:$0xff]
        %v1773 = vld [vmem:[%s230 + $0x2d20] sm:$0xff]
        %v1774 = vld [vmem:[%s230 + $0x2d28] sm:$0xff]
        %v1775 = vld [vmem:[%s230 + $0x2d30] sm:$0xff]
        %v1776 = vld [vmem:[%s230 + $0x2d38] sm:$0xff]
        %v1777 = vld [vmem:[%s230 + $0x2d40] sm:$0xff]
        %v1778 = vld [vmem:[%s230 + $0x2d48] sm:$0xff]
        %v1779 = vld [vmem:[%s230 + $0x2d50] sm:$0xff]
        %v1780 = vld [vmem:[%s230 + $0x2d58] sm:$0xff]
        %v1781 = vld [vmem:[%s230 + $0x2d60] sm:$0xff]
        %v1782 = vld [vmem:[%s230 + $0x2d68] sm:$0xff]
        %v1783 = vld [vmem:[%s230 + $0x2d70] sm:$0xff]
        %v1784 = vld [vmem:[%s230 + $0x2d78] sm:$0xff]
        %v1785 = vld [vmem:[%s230 + $0x2d80] sm:$0xff]
        %v1786 = vld [vmem:[%s230 + $0x2d88] sm:$0xff]
        %v1787 = vld [vmem:[%s230 + $0x2d90] sm:$0xff]
        %v1788 = vld [vmem:[%s230 + $0x2d98] sm:$0xff]
        %v1789 = vld [vmem:[%s230 + $0x2da0] sm:$0xff]
        %v1790 = vld [vmem:[%s230 + $0x2da8] sm:$0xff]
        %v1791 = vld [vmem:[%s230 + $0x2db0] sm:$0xff]
        %v1792 = vld [vmem:[%s230 + $0x2db8] sm:$0xff]
        %v1793 = vld [vmem:[%s230 + $0x2dc0] sm:$0xff]
        %v1794 = vld [vmem:[%s230 + $0x2dc8] sm:$0xff]
        %v1795 = vld [vmem:[%s230 + $0x2dd0] sm:$0xff]
        %v1796 = vld [vmem:[%s230 + $0x2dd8] sm:$0xff]
        %v1797 = vld [vmem:[%s230 + $0x2de0] sm:$0xff]
        %v1798 = vld [vmem:[%s230 + $0x2de8] sm:$0xff]
        %v1799 = vld [vmem:[%s230 + $0x2df0] sm:$0xff]
        %v1800 = vld [vmem:[%s230 + $0x2df8] sm:$0xff]
        %v3273 = vunpack.c.l.b16 %v329
        %v3274 = vunpack.c.h.b16 %v329
        %v3275 = vunpack.c.l.b16 %v330
        %v3276 = vunpack.c.h.b16 %v330
        %v3277 = vunpack.c.l.b16 %v331
        %v3278 = vunpack.c.h.b16 %v331
        %v3279 = vunpack.c.l.b16 %v332
        %v3280 = vunpack.c.h.b16 %v332
        %v3281 = vunpack.c.l.b16 %v333
        %v3282 = vunpack.c.h.b16 %v333
        %v3283 = vunpack.c.l.b16 %v334
        %v3284 = vunpack.c.h.b16 %v334
        %v3285 = vunpack.c.l.b16 %v335
        %v3286 = vunpack.c.h.b16 %v335
        %v3287 = vunpack.c.l.b16 %v336
        %v3288 = vunpack.c.h.b16 %v336
        %v3289 = vunpack.c.l.b16 %v337
        %v3290 = vunpack.c.h.b16 %v337
        %v3291 = vunpack.c.l.b16 %v338
        %v3292 = vunpack.c.h.b16 %v338
        %v3293 = vunpack.c.l.b16 %v339
        %v3294 = vunpack.c.h.b16 %v339
        %v3295 = vunpack.c.l.b16 %v340
        %v3296 = vunpack.c.h.b16 %v340
        %v3297 = vunpack.c.l.b16 %v341
        %v3298 = vunpack.c.h.b16 %v341
        %v3299 = vunpack.c.l.b16 %v342
        %v3300 = vunpack.c.h.b16 %v342
        %v3301 = vunpack.c.l.b16 %v343
        %v3302 = vunpack.c.h.b16 %v343
        %v3303 = vunpack.c.l.b16 %v344
        %v3304 = vunpack.c.h.b16 %v344
        %v3305 = vunpack.c.l.b16 %v345
        %v3306 = vunpack.c.h.b16 %v345
        %v3307 = vunpack.c.l.b16 %v346
        %v3308 = vunpack.c.h.b16 %v346
        %v3309 = vunpack.c.l.b16 %v347
        %v3310 = vunpack.c.h.b16 %v347
        %v3311 = vunpack.c.l.b16 %v348
        %v3312 = vunpack.c.h.b16 %v348
        %v3313 = vunpack.c.l.b16 %v349
        %v3314 = vunpack.c.h.b16 %v349
        %v3315 = vunpack.c.l.b16 %v350
        %v3316 = vunpack.c.h.b16 %v350
        %v3317 = vunpack.c.l.b16 %v351
        %v3318 = vunpack.c.h.b16 %v351
        %v3319 = vunpack.c.l.b16 %v352
        %v3320 = vunpack.c.h.b16 %v352
        %v3321 = vunpack.c.l.b16 %v353
        %v3322 = vunpack.c.h.b16 %v353
        %v3323 = vunpack.c.l.b16 %v354
        %v3324 = vunpack.c.h.b16 %v354
        %v3325 = vunpack.c.l.b16 %v355
        %v3326 = vunpack.c.h.b16 %v355
        %v3327 = vunpack.c.l.b16 %v356
        %v3328 = vunpack.c.h.b16 %v356
        %v3329 = vunpack.c.l.b16 %v357
        %v3330 = vunpack.c.h.b16 %v357
        %v3331 = vunpack.c.l.b16 %v358
        %v3332 = vunpack.c.h.b16 %v358
        %v3333 = vunpack.c.l.b16 %v359
        %v3334 = vunpack.c.h.b16 %v359
        %v3335 = vunpack.c.l.b16 %v360
        %v3336 = vunpack.c.h.b16 %v360
        %v3337 = vunpack.c.l.b16 %v361
        %v3338 = vunpack.c.h.b16 %v361
        %v3339 = vunpack.c.l.b16 %v362
        %v3340 = vunpack.c.h.b16 %v362
        %v3341 = vunpack.c.l.b16 %v363
        %v3342 = vunpack.c.h.b16 %v363
        %v3343 = vunpack.c.l.b16 %v364
        %v3344 = vunpack.c.h.b16 %v364
        %v3345 = vunpack.c.l.b16 %v365
        %v3346 = vunpack.c.h.b16 %v365
        %v3347 = vunpack.c.l.b16 %v366
        %v3348 = vunpack.c.h.b16 %v366
        %v3349 = vunpack.c.l.b16 %v367
        %v3350 = vunpack.c.h.b16 %v367
        %v3351 = vunpack.c.l.b16 %v368
        %v3352 = vunpack.c.h.b16 %v368
        %v3353 = vunpack.c.l.b16 %v369
        %v3354 = vunpack.c.h.b16 %v369
        %v3355 = vunpack.c.l.b16 %v370
        %v3356 = vunpack.c.h.b16 %v370
        %v3357 = vunpack.c.l.b16 %v371
        %v3358 = vunpack.c.h.b16 %v371
        %v3359 = vunpack.c.l.b16 %v372
        %v3360 = vunpack.c.h.b16 %v372
        %v3361 = vunpack.c.l.b16 %v373
        %v3362 = vunpack.c.h.b16 %v373
        %v3363 = vunpack.c.l.b16 %v374
        %v3364 = vunpack.c.h.b16 %v374
        %v3365 = vunpack.c.l.b16 %v375
        %v3366 = vunpack.c.h.b16 %v375
        %v3367 = vunpack.c.l.b16 %v376
        %v3368 = vunpack.c.h.b16 %v376
        %v3369 = vunpack.c.l.b16 %v377
        %v3370 = vunpack.c.h.b16 %v377
        %v3371 = vunpack.c.l.b16 %v378
        %v3372 = vunpack.c.h.b16 %v378
        %v3373 = vunpack.c.l.b16 %v379
        %v3374 = vunpack.c.h.b16 %v379
        %v3375 = vunpack.c.l.b16 %v380
        %v3376 = vunpack.c.h.b16 %v380
        %v3377 = vunpack.c.l.b16 %v381
        %v3378 = vunpack.c.h.b16 %v381
        %v3379 = vunpack.c.l.b16 %v382
        %v3380 = vunpack.c.h.b16 %v382
        %v3381 = vunpack.c.l.b16 %v383
        %v3382 = vunpack.c.h.b16 %v383
        %v3383 = vunpack.c.l.b16 %v384
        %v3384 = vunpack.c.h.b16 %v384
        %v3385 = vunpack.c.l.b16 %v385
        %v3386 = vunpack.c.h.b16 %v385
        %v3387 = vunpack.c.l.b16 %v386
        %v3388 = vunpack.c.h.b16 %v386
        %v3389 = vunpack.c.l.b16 %v387
        %v3390 = vunpack.c.h.b16 %v387
        %v3391 = vunpack.c.l.b16 %v388
        %v3392 = vunpack.c.h.b16 %v388
        %v3393 = vunpack.c.l.b16 %v389
        %v3394 = vunpack.c.h.b16 %v389
        %v3395 = vunpack.c.l.b16 %v390
        %v3396 = vunpack.c.h.b16 %v390
        %v3397 = vunpack.c.l.b16 %v391
        %v3398 = vunpack.c.h.b16 %v391
        %v3399 = vunpack.c.l.b16 %v392
        %v3400 = vunpack.c.h.b16 %v392
        %v3401 = vunpack.c.l.b16 %v393
        %v3402 = vunpack.c.h.b16 %v393
        %v3403 = vunpack.c.l.b16 %v394
        %v3404 = vunpack.c.h.b16 %v394
        %v3405 = vunpack.c.l.b16 %v395
        %v3406 = vunpack.c.h.b16 %v395
        %v3407 = vunpack.c.l.b16 %v396
        %v3408 = vunpack.c.h.b16 %v396
        %v3409 = vunpack.c.l.b16 %v397
        %v3410 = vunpack.c.h.b16 %v397
        %v3411 = vunpack.c.l.b16 %v398
        %v3412 = vunpack.c.h.b16 %v398
        %v3413 = vunpack.c.l.b16 %v399
        %v3414 = vunpack.c.h.b16 %v399
        %v3415 = vunpack.c.l.b16 %v400
        %v3416 = vunpack.c.h.b16 %v400
        %v3417 = vunpack.c.l.b16 %v401
        %v3418 = vunpack.c.h.b16 %v401
        %v3419 = vunpack.c.l.b16 %v402
        %v3420 = vunpack.c.h.b16 %v402
        %v3421 = vunpack.c.l.b16 %v403
        %v3422 = vunpack.c.h.b16 %v403
        %v3423 = vunpack.c.l.b16 %v404
        %v3424 = vunpack.c.h.b16 %v404
        %v3425 = vunpack.c.l.b16 %v405
        %v3426 = vunpack.c.h.b16 %v405
        %v3427 = vunpack.c.l.b16 %v406
        %v3428 = vunpack.c.h.b16 %v406
        %v3429 = vunpack.c.l.b16 %v407
        %v3430 = vunpack.c.h.b16 %v407
        %v3431 = vunpack.c.l.b16 %v408
        %v3432 = vunpack.c.h.b16 %v408
        %v3433 = vunpack.c.l.b16 %v409
        %v3434 = vunpack.c.h.b16 %v409
        %v3435 = vunpack.c.l.b16 %v410
        %v3436 = vunpack.c.h.b16 %v410
        %v3437 = vunpack.c.l.b16 %v411
        %v3438 = vunpack.c.h.b16 %v411
        %v3439 = vunpack.c.l.b16 %v412
        %v3440 = vunpack.c.h.b16 %v412
        %v3441 = vunpack.c.l.b16 %v413
        %v3442 = vunpack.c.h.b16 %v413
        %v3443 = vunpack.c.l.b16 %v414
        %v3444 = vunpack.c.h.b16 %v414
        %v3445 = vunpack.c.l.b16 %v415
        %v3446 = vunpack.c.h.b16 %v415
        %v3447 = vunpack.c.l.b16 %v416
        %v3448 = vunpack.c.h.b16 %v416
        %v3449 = vunpack.c.l.b16 %v417
        %v3450 = vunpack.c.h.b16 %v417
        %v3451 = vunpack.c.l.b16 %v418
        %v3452 = vunpack.c.h.b16 %v418
        %v3453 = vunpack.c.l.b16 %v419
        %v3454 = vunpack.c.h.b16 %v419
        %v3455 = vunpack.c.l.b16 %v420
        %v3456 = vunpack.c.h.b16 %v420
        %v3457 = vunpack.c.l.b16 %v421
        %v3458 = vunpack.c.h.b16 %v421
        %v3459 = vunpack.c.l.b16 %v422
        %v3460 = vunpack.c.h.b16 %v422
        %v3461 = vunpack.c.l.b16 %v423
        %v3462 = vunpack.c.h.b16 %v423
        %v3463 = vunpack.c.l.b16 %v424
        %v3464 = vunpack.c.h.b16 %v424
        %v3465 = vunpack.c.l.b16 %v425
        %v3466 = vunpack.c.h.b16 %v425
        %v3467 = vunpack.c.l.b16 %v426
        %v3468 = vunpack.c.h.b16 %v426
        %v3469 = vunpack.c.l.b16 %v427
        %v3470 = vunpack.c.h.b16 %v427
        %v3471 = vunpack.c.l.b16 %v428
        %v3472 = vunpack.c.h.b16 %v428
        %v3473 = vunpack.c.l.b16 %v429
        %v3474 = vunpack.c.h.b16 %v429
        %v3475 = vunpack.c.l.b16 %v430
        %v3476 = vunpack.c.h.b16 %v430
        %v3477 = vunpack.c.l.b16 %v431
        %v3478 = vunpack.c.h.b16 %v431
        %v3479 = vunpack.c.l.b16 %v432
        %v3480 = vunpack.c.h.b16 %v432
        %v3481 = vunpack.c.l.b16 %v433
        %v3482 = vunpack.c.h.b16 %v433
        %v3483 = vunpack.c.l.b16 %v434
        %v3484 = vunpack.c.h.b16 %v434
        %v3485 = vunpack.c.l.b16 %v435
        %v3486 = vunpack.c.h.b16 %v435
        %v3487 = vunpack.c.l.b16 %v436
        %v3488 = vunpack.c.h.b16 %v436
        %v3489 = vunpack.c.l.b16 %v437
        %v3490 = vunpack.c.h.b16 %v437
        %v3491 = vunpack.c.l.b16 %v438
        %v3492 = vunpack.c.h.b16 %v438
        %v3493 = vunpack.c.l.b16 %v439
        %v3494 = vunpack.c.h.b16 %v439
        %v3495 = vunpack.c.l.b16 %v440
        %v3496 = vunpack.c.h.b16 %v440
        %v3497 = vunpack.c.l.b16 %v441
        %v3498 = vunpack.c.h.b16 %v441
        %v3499 = vunpack.c.l.b16 %v442
        %v3500 = vunpack.c.h.b16 %v442
        %v3501 = vunpack.c.l.b16 %v443
        %v3502 = vunpack.c.h.b16 %v443
        %v3503 = vunpack.c.l.b16 %v444
        %v3504 = vunpack.c.h.b16 %v444
        %v3505 = vunpack.c.l.b16 %v445
        %v3506 = vunpack.c.h.b16 %v445
        %v3507 = vunpack.c.l.b16 %v446
        %v3508 = vunpack.c.h.b16 %v446
        %v3509 = vunpack.c.l.b16 %v447
        %v3510 = vunpack.c.h.b16 %v447
        %v3511 = vunpack.c.l.b16 %v448
        %v3512 = vunpack.c.h.b16 %v448
        %v3513 = vunpack.c.l.b16 %v449
        %v3514 = vunpack.c.h.b16 %v449
        %v3515 = vunpack.c.l.b16 %v450
        %v3516 = vunpack.c.h.b16 %v450
        %v3517 = vunpack.c.l.b16 %v451
        %v3518 = vunpack.c.h.b16 %v451
        %v3519 = vunpack.c.l.b16 %v452
        %v3520 = vunpack.c.h.b16 %v452
        %v3521 = vunpack.c.l.b16 %v453
        %v3522 = vunpack.c.h.b16 %v453
        %v3523 = vunpack.c.l.b16 %v454
        %v3524 = vunpack.c.h.b16 %v454
        %v3525 = vunpack.c.l.b16 %v455
        %v3526 = vunpack.c.h.b16 %v455
        %v3527 = vunpack.c.l.b16 %v456
        %v3528 = vunpack.c.h.b16 %v456
        %v3529 = vunpack.c.l.b16 %v457
        %v3530 = vunpack.c.h.b16 %v457
        %v3531 = vunpack.c.l.b16 %v458
        %v3532 = vunpack.c.h.b16 %v458
        %v3533 = vunpack.c.l.b16 %v459
        %v3534 = vunpack.c.h.b16 %v459
        %v3535 = vunpack.c.l.b16 %v460
        %v3536 = vunpack.c.h.b16 %v460
        %v3537 = vunpack.c.l.b16 %v461
        %v3538 = vunpack.c.h.b16 %v461
        %v3539 = vunpack.c.l.b16 %v462
        %v3540 = vunpack.c.h.b16 %v462
        %v3541 = vunpack.c.l.b16 %v463
        %v3542 = vunpack.c.h.b16 %v463
        %v3543 = vunpack.c.l.b16 %v464
        %v3544 = vunpack.c.h.b16 %v464
        %v3545 = vunpack.c.l.b16 %v465
        %v3546 = vunpack.c.h.b16 %v465
        %v3547 = vunpack.c.l.b16 %v466
        %v3548 = vunpack.c.h.b16 %v466
        %v3549 = vunpack.c.l.b16 %v467
        %v3550 = vunpack.c.h.b16 %v467
        %v3551 = vunpack.c.l.b16 %v468
        %v3552 = vunpack.c.h.b16 %v468
        %v3553 = vunpack.c.l.b16 %v469
        %v3554 = vunpack.c.h.b16 %v469
        %v3555 = vunpack.c.l.b16 %v470
        %v3556 = vunpack.c.h.b16 %v470
        %v3557 = vunpack.c.l.b16 %v471
        %v3558 = vunpack.c.h.b16 %v471
        %v3559 = vunpack.c.l.b16 %v472
        %v3560 = vunpack.c.h.b16 %v472
        %v3561 = vunpack.c.l.b16 %v473
        %v3562 = vunpack.c.h.b16 %v473
        %v3563 = vunpack.c.l.b16 %v474
        %v3564 = vunpack.c.h.b16 %v474
        %v3565 = vunpack.c.l.b16 %v475
        %v3566 = vunpack.c.h.b16 %v475
        %v3567 = vunpack.c.l.b16 %v476
        %v3568 = vunpack.c.h.b16 %v476
        %v3569 = vunpack.c.l.b16 %v477
        %v3570 = vunpack.c.h.b16 %v477
        %v3571 = vunpack.c.l.b16 %v478
        %v3572 = vunpack.c.h.b16 %v478
        %v3573 = vunpack.c.l.b16 %v479
        %v3574 = vunpack.c.h.b16 %v479
        %v3575 = vunpack.c.l.b16 %v480
        %v3576 = vunpack.c.h.b16 %v480
        %v3577 = vunpack.c.l.b16 %v481
        %v3578 = vunpack.c.h.b16 %v481
        %v3579 = vunpack.c.l.b16 %v482
        %v3580 = vunpack.c.h.b16 %v482
        %v3581 = vunpack.c.l.b16 %v483
        %v3582 = vunpack.c.h.b16 %v483
        %v3583 = vunpack.c.l.b16 %v484
        %v3584 = vunpack.c.h.b16 %v484
        %v3585 = vunpack.c.l.b16 %v485
        %v3586 = vunpack.c.h.b16 %v485
        %v3587 = vunpack.c.l.b16 %v486
        %v3588 = vunpack.c.h.b16 %v486
        %v3589 = vunpack.c.l.b16 %v487
        %v3590 = vunpack.c.h.b16 %v487
        %v3591 = vunpack.c.l.b16 %v488
        %v3592 = vunpack.c.h.b16 %v488
        %v3593 = vunpack.c.l.b16 %v489
        %v3594 = vunpack.c.h.b16 %v489
        %v3595 = vunpack.c.l.b16 %v490
        %v3596 = vunpack.c.h.b16 %v490
        %v3597 = vunpack.c.l.b16 %v491
        %v3598 = vunpack.c.h.b16 %v491
        %v3599 = vunpack.c.l.b16 %v492
        %v3600 = vunpack.c.h.b16 %v492
        %v3601 = vunpack.c.l.b16 %v493
        %v3602 = vunpack.c.h.b16 %v493
        %v3603 = vunpack.c.l.b16 %v494
        %v3604 = vunpack.c.h.b16 %v494
        %v3605 = vunpack.c.l.b16 %v495
        %v3606 = vunpack.c.h.b16 %v495
        %v3607 = vunpack.c.l.b16 %v496
        %v3608 = vunpack.c.h.b16 %v496
        %v3609 = vunpack.c.l.b16 %v497
        %v3610 = vunpack.c.h.b16 %v497
        %v3611 = vunpack.c.l.b16 %v498
        %v3612 = vunpack.c.h.b16 %v498
        %v3613 = vunpack.c.l.b16 %v499
        %v3614 = vunpack.c.h.b16 %v499
        %v3615 = vunpack.c.l.b16 %v500
        %v3616 = vunpack.c.h.b16 %v500
        %v3617 = vunpack.c.l.b16 %v501
        %v3618 = vunpack.c.h.b16 %v501
        %v3619 = vunpack.c.l.b16 %v502
        %v3620 = vunpack.c.h.b16 %v502
        %v3621 = vunpack.c.l.b16 %v503
        %v3622 = vunpack.c.h.b16 %v503
        %v3623 = vunpack.c.l.b16 %v504
        %v3624 = vunpack.c.h.b16 %v504
        %v3625 = vunpack.c.l.b16 %v505
        %v3626 = vunpack.c.h.b16 %v505
        %v3627 = vunpack.c.l.b16 %v506
        %v3628 = vunpack.c.h.b16 %v506
        %v3629 = vunpack.c.l.b16 %v507
        %v3630 = vunpack.c.h.b16 %v507
        %v3631 = vunpack.c.l.b16 %v508
        %v3632 = vunpack.c.h.b16 %v508
        %v3633 = vunpack.c.l.b16 %v509
        %v3634 = vunpack.c.h.b16 %v509
        %v3635 = vunpack.c.l.b16 %v510
        %v3636 = vunpack.c.h.b16 %v510
        %v3637 = vunpack.c.l.b16 %v511
        %v3638 = vunpack.c.h.b16 %v511
        %v3639 = vunpack.c.l.b16 %v512
        %v3640 = vunpack.c.h.b16 %v512
        %v3641 = vunpack.c.l.b16 %v513
        %v3642 = vunpack.c.h.b16 %v513
        %v3643 = vunpack.c.l.b16 %v514
        %v3644 = vunpack.c.h.b16 %v514
        %v3645 = vunpack.c.l.b16 %v515
        %v3646 = vunpack.c.h.b16 %v515
        %v3647 = vunpack.c.l.b16 %v516
        %v3648 = vunpack.c.h.b16 %v516
        %v3649 = vunpack.c.l.b16 %v517
        %v3650 = vunpack.c.h.b16 %v517
        %v3651 = vunpack.c.l.b16 %v518
        %v3652 = vunpack.c.h.b16 %v518
        %v3653 = vunpack.c.l.b16 %v519
        %v3654 = vunpack.c.h.b16 %v519
        %v3655 = vunpack.c.l.b16 %v520
        %v3656 = vunpack.c.h.b16 %v520
        %v3657 = vunpack.c.l.b16 %v521
        %v3658 = vunpack.c.h.b16 %v521
        %v3659 = vunpack.c.l.b16 %v522
        %v3660 = vunpack.c.h.b16 %v522
        %v3661 = vunpack.c.l.b16 %v523
        %v3662 = vunpack.c.h.b16 %v523
        %v3663 = vunpack.c.l.b16 %v524
        %v3664 = vunpack.c.h.b16 %v524
        %v3665 = vunpack.c.l.b16 %v525
        %v3666 = vunpack.c.h.b16 %v525
        %v3667 = vunpack.c.l.b16 %v526
        %v3668 = vunpack.c.h.b16 %v526
        %v3669 = vunpack.c.l.b16 %v527
        %v3670 = vunpack.c.h.b16 %v527
        %v3671 = vunpack.c.l.b16 %v528
        %v3672 = vunpack.c.h.b16 %v528
        %v3673 = vunpack.c.l.b16 %v529
        %v3674 = vunpack.c.h.b16 %v529
        %v3675 = vunpack.c.l.b16 %v530
        %v3676 = vunpack.c.h.b16 %v530
        %v3677 = vunpack.c.l.b16 %v531
        %v3678 = vunpack.c.h.b16 %v531
        %v3679 = vunpack.c.l.b16 %v532
        %v3680 = vunpack.c.h.b16 %v532
        %v3681 = vunpack.c.l.b16 %v533
        %v3682 = vunpack.c.h.b16 %v533
        %v3683 = vunpack.c.l.b16 %v534
        %v3684 = vunpack.c.h.b16 %v534
        %v3685 = vunpack.c.l.b16 %v535
        %v3686 = vunpack.c.h.b16 %v535
        %v3687 = vunpack.c.l.b16 %v536
        %v3688 = vunpack.c.h.b16 %v536
        %v3689 = vunpack.c.l.b16 %v537
        %v3690 = vunpack.c.h.b16 %v537
        %v3691 = vunpack.c.l.b16 %v538
        %v3692 = vunpack.c.h.b16 %v538
        %v3693 = vunpack.c.l.b16 %v539
        %v3694 = vunpack.c.h.b16 %v539
        %v3695 = vunpack.c.l.b16 %v540
        %v3696 = vunpack.c.h.b16 %v540
        %v3697 = vunpack.c.l.b16 %v541
        %v3698 = vunpack.c.h.b16 %v541
        %v3699 = vunpack.c.l.b16 %v542
        %v3700 = vunpack.c.h.b16 %v542
        %v3701 = vunpack.c.l.b16 %v543
        %v3702 = vunpack.c.h.b16 %v543
        %v3703 = vunpack.c.l.b16 %v544
        %v3704 = vunpack.c.h.b16 %v544
        %v3705 = vunpack.c.l.b16 %v545
        %v3706 = vunpack.c.h.b16 %v545
        %v3707 = vunpack.c.l.b16 %v546
        %v3708 = vunpack.c.h.b16 %v546
        %v3709 = vunpack.c.l.b16 %v547
        %v3710 = vunpack.c.h.b16 %v547
        %v3711 = vunpack.c.l.b16 %v548
        %v3712 = vunpack.c.h.b16 %v548
        %v3713 = vunpack.c.l.b16 %v549
        %v3714 = vunpack.c.h.b16 %v549
        %v3715 = vunpack.c.l.b16 %v550
        %v3716 = vunpack.c.h.b16 %v550
        %v3717 = vunpack.c.l.b16 %v551
        %v3718 = vunpack.c.h.b16 %v551
        %v3719 = vunpack.c.l.b16 %v552
        %v3720 = vunpack.c.h.b16 %v552
        %v3721 = vunpack.c.l.b16 %v553
        %v3722 = vunpack.c.h.b16 %v553
        %v3723 = vunpack.c.l.b16 %v554
        %v3724 = vunpack.c.h.b16 %v554
        %v3725 = vunpack.c.l.b16 %v555
        %v3726 = vunpack.c.h.b16 %v555
        %v3727 = vunpack.c.l.b16 %v556
        %v3728 = vunpack.c.h.b16 %v556
        %v3729 = vunpack.c.l.b16 %v557
        %v3730 = vunpack.c.h.b16 %v557
        %v3731 = vunpack.c.l.b16 %v558
        %v3732 = vunpack.c.h.b16 %v558
        %v3733 = vunpack.c.l.b16 %v559
        %v3734 = vunpack.c.h.b16 %v559
        %v3735 = vunpack.c.l.b16 %v560
        %v3736 = vunpack.c.h.b16 %v560
        %v3737 = vunpack.c.l.b16 %v561
        %v3738 = vunpack.c.h.b16 %v561
        %v3739 = vunpack.c.l.b16 %v562
        %v3740 = vunpack.c.h.b16 %v562
        %v3741 = vunpack.c.l.b16 %v563
        %v3742 = vunpack.c.h.b16 %v563
        %v3743 = vunpack.c.l.b16 %v564
        %v3744 = vunpack.c.h.b16 %v564
        %v3745 = vunpack.c.l.b16 %v565
        %v3746 = vunpack.c.h.b16 %v565
        %v3747 = vunpack.c.l.b16 %v566
        %v3748 = vunpack.c.h.b16 %v566
        %v3749 = vunpack.c.l.b16 %v567
        %v3750 = vunpack.c.h.b16 %v567
        %v3751 = vunpack.c.l.b16 %v568
        %v3752 = vunpack.c.h.b16 %v568
        %v3753 = vunpack.c.l.b16 %v569
        %v3754 = vunpack.c.h.b16 %v569
        %v3755 = vunpack.c.l.b16 %v570
        %v3756 = vunpack.c.h.b16 %v570
        %v3757 = vunpack.c.l.b16 %v571
        %v3758 = vunpack.c.h.b16 %v571
        %v3759 = vunpack.c.l.b16 %v572
        %v3760 = vunpack.c.h.b16 %v572
        %v3761 = vunpack.c.l.b16 %v573
        %v3762 = vunpack.c.h.b16 %v573
        %v3763 = vunpack.c.l.b16 %v574
        %v3764 = vunpack.c.h.b16 %v574
        %v3765 = vunpack.c.l.b16 %v575
        %v3766 = vunpack.c.h.b16 %v575
        %v3767 = vunpack.c.l.b16 %v576
        %v3768 = vunpack.c.h.b16 %v576
        %v3769 = vunpack.c.l.b16 %v577
        %v3770 = vunpack.c.h.b16 %v577
        %v3771 = vunpack.c.l.b16 %v578
        %v3772 = vunpack.c.h.b16 %v578
        %v3773 = vunpack.c.l.b16 %v579
        %v3774 = vunpack.c.h.b16 %v579
        %v3775 = vunpack.c.l.b16 %v580
        %v3776 = vunpack.c.h.b16 %v580
        %v3777 = vunpack.c.l.b16 %v581
        %v3778 = vunpack.c.h.b16 %v581
        %v3779 = vunpack.c.l.b16 %v582
        %v3780 = vunpack.c.h.b16 %v582
        %v3781 = vunpack.c.l.b16 %v583
        %v3782 = vunpack.c.h.b16 %v583
        %v3783 = vunpack.c.l.b16 %v584
        %v3784 = vunpack.c.h.b16 %v584
        %v3785 = vunpack.c.l.b16 %v585
        %v3786 = vunpack.c.h.b16 %v585
        %v3787 = vunpack.c.l.b16 %v586
        %v3788 = vunpack.c.h.b16 %v586
        %v3789 = vunpack.c.l.b16 %v587
        %v3790 = vunpack.c.h.b16 %v587
        %v3791 = vunpack.c.l.b16 %v588
        %v3792 = vunpack.c.h.b16 %v588
        %v3793 = vunpack.c.l.b16 %v589
        %v3794 = vunpack.c.h.b16 %v589
        %v3795 = vunpack.c.l.b16 %v590
        %v3796 = vunpack.c.h.b16 %v590
        %v3797 = vunpack.c.l.b16 %v591
        %v3798 = vunpack.c.h.b16 %v591
        %v3799 = vunpack.c.l.b16 %v592
        %v3800 = vunpack.c.h.b16 %v592
        %v3801 = vunpack.c.l.b16 %v593
        %v3802 = vunpack.c.h.b16 %v593
        %v3803 = vunpack.c.l.b16 %v594
        %v3804 = vunpack.c.h.b16 %v594
        %v3805 = vunpack.c.l.b16 %v595
        %v3806 = vunpack.c.h.b16 %v595
        %v3807 = vunpack.c.l.b16 %v596
        %v3808 = vunpack.c.h.b16 %v596
        %v3809 = vunpack.c.l.b16 %v597
        %v3810 = vunpack.c.h.b16 %v597
        %v3811 = vunpack.c.l.b16 %v598
        %v3812 = vunpack.c.h.b16 %v598
        %v3813 = vunpack.c.l.b16 %v599
        %v3814 = vunpack.c.h.b16 %v599
        %v3815 = vunpack.c.l.b16 %v600
        %v3816 = vunpack.c.h.b16 %v600
        %v3817 = vunpack.c.l.b16 %v601
        %v3818 = vunpack.c.h.b16 %v601
        %v3819 = vunpack.c.l.b16 %v602
        %v3820 = vunpack.c.h.b16 %v602
        %v3821 = vunpack.c.l.b16 %v603
        %v3822 = vunpack.c.h.b16 %v603
        %v3823 = vunpack.c.l.b16 %v604
        %v3824 = vunpack.c.h.b16 %v604
        %v3825 = vunpack.c.l.b16 %v605
        %v3826 = vunpack.c.h.b16 %v605
        %v3827 = vunpack.c.l.b16 %v606
        %v3828 = vunpack.c.h.b16 %v606
        %v3829 = vunpack.c.l.b16 %v607
        %v3830 = vunpack.c.h.b16 %v607
        %v3831 = vunpack.c.l.b16 %v608
        %v3832 = vunpack.c.h.b16 %v608
        %v3833 = vunpack.c.l.b16 %v609
        %v3834 = vunpack.c.h.b16 %v609
        %v3835 = vunpack.c.l.b16 %v610
        %v3836 = vunpack.c.h.b16 %v610
        %v3837 = vunpack.c.l.b16 %v611
        %v3838 = vunpack.c.h.b16 %v611
        %v3839 = vunpack.c.l.b16 %v612
        %v3840 = vunpack.c.h.b16 %v612
        %v3841 = vunpack.c.l.b16 %v613
        %v3842 = vunpack.c.h.b16 %v613
        %v3843 = vunpack.c.l.b16 %v614
        %v3844 = vunpack.c.h.b16 %v614
        %v3845 = vunpack.c.l.b16 %v615
        %v3846 = vunpack.c.h.b16 %v615
        %v3847 = vunpack.c.l.b16 %v616
        %v3848 = vunpack.c.h.b16 %v616
        %v3849 = vunpack.c.l.b16 %v617
        %v3850 = vunpack.c.h.b16 %v617
        %v3851 = vunpack.c.l.b16 %v618
        %v3852 = vunpack.c.h.b16 %v618
        %v3853 = vunpack.c.l.b16 %v619
        %v3854 = vunpack.c.h.b16 %v619
        %v3855 = vunpack.c.l.b16 %v620
        %v3856 = vunpack.c.h.b16 %v620
        %v3857 = vunpack.c.l.b16 %v621
        %v3858 = vunpack.c.h.b16 %v621
        %v3859 = vunpack.c.l.b16 %v622
        %v3860 = vunpack.c.h.b16 %v622
        %v3861 = vunpack.c.l.b16 %v623
        %v3862 = vunpack.c.h.b16 %v623
        %v3863 = vunpack.c.l.b16 %v624
        %v3864 = vunpack.c.h.b16 %v624
        %v3865 = vunpack.c.l.b16 %v625
        %v3866 = vunpack.c.h.b16 %v625
        %v3867 = vunpack.c.l.b16 %v626
        %v3868 = vunpack.c.h.b16 %v626
        %v3869 = vunpack.c.l.b16 %v627
        %v3870 = vunpack.c.h.b16 %v627
        %v3871 = vunpack.c.l.b16 %v628
        %v3872 = vunpack.c.h.b16 %v628
        %v3873 = vunpack.c.l.b16 %v629
        %v3874 = vunpack.c.h.b16 %v629
        %v3875 = vunpack.c.l.b16 %v630
        %v3876 = vunpack.c.h.b16 %v630
        %v3877 = vunpack.c.l.b16 %v631
        %v3878 = vunpack.c.h.b16 %v631
        %v3879 = vunpack.c.l.b16 %v632
        %v3880 = vunpack.c.h.b16 %v632
        %v3881 = vunpack.c.l.b16 %v633
        %v3882 = vunpack.c.h.b16 %v633
        %v3883 = vunpack.c.l.b16 %v634
        %v3884 = vunpack.c.h.b16 %v634
        %v3885 = vunpack.c.l.b16 %v635
        %v3886 = vunpack.c.h.b16 %v635
        %v3887 = vunpack.c.l.b16 %v636
        %v3888 = vunpack.c.h.b16 %v636
        %v3889 = vunpack.c.l.b16 %v637
        %v3890 = vunpack.c.h.b16 %v637
        %v3891 = vunpack.c.l.b16 %v638
        %v3892 = vunpack.c.h.b16 %v638
        %v3893 = vunpack.c.l.b16 %v639
        %v3894 = vunpack.c.h.b16 %v639
        %v3895 = vunpack.c.l.b16 %v640
        %v3896 = vunpack.c.h.b16 %v640
        %v3897 = vunpack.c.l.b16 %v641
        %v3898 = vunpack.c.h.b16 %v641
        %v3899 = vunpack.c.l.b16 %v642
        %v3900 = vunpack.c.h.b16 %v642
        %v3901 = vunpack.c.l.b16 %v643
        %v3902 = vunpack.c.h.b16 %v643
        %v3903 = vunpack.c.l.b16 %v644
        %v3904 = vunpack.c.h.b16 %v644
        %v3905 = vunpack.c.l.b16 %v645
        %v3906 = vunpack.c.h.b16 %v645
        %v3907 = vunpack.c.l.b16 %v646
        %v3908 = vunpack.c.h.b16 %v646
        %v3909 = vunpack.c.l.b16 %v647
        %v3910 = vunpack.c.h.b16 %v647
        %v3911 = vunpack.c.l.b16 %v648
        %v3912 = vunpack.c.h.b16 %v648
        %v3913 = vunpack.c.l.b16 %v649
        %v3914 = vunpack.c.h.b16 %v649
        %v3915 = vunpack.c.l.b16 %v650
        %v3916 = vunpack.c.h.b16 %v650
        %v3917 = vunpack.c.l.b16 %v651
        %v3918 = vunpack.c.h.b16 %v651
        %v3919 = vunpack.c.l.b16 %v652
        %v3920 = vunpack.c.h.b16 %v652
        %v3921 = vunpack.c.l.b16 %v653
        %v3922 = vunpack.c.h.b16 %v653
        %v3923 = vunpack.c.l.b16 %v654
        %v3924 = vunpack.c.h.b16 %v654
        %v3925 = vunpack.c.l.b16 %v655
        %v3926 = vunpack.c.h.b16 %v655
        %v3927 = vunpack.c.l.b16 %v656
        %v3928 = vunpack.c.h.b16 %v656
        %v3929 = vunpack.c.l.b16 %v657
        %v3930 = vunpack.c.h.b16 %v657
        %v3931 = vunpack.c.l.b16 %v658
        %v3932 = vunpack.c.h.b16 %v658
        %v3933 = vunpack.c.l.b16 %v659
        %v3934 = vunpack.c.h.b16 %v659
        %v3935 = vunpack.c.l.b16 %v660
        %v3936 = vunpack.c.h.b16 %v660
        %v3937 = vunpack.c.l.b16 %v661
        %v3938 = vunpack.c.h.b16 %v661
        %v3939 = vunpack.c.l.b16 %v662
        %v3940 = vunpack.c.h.b16 %v662
        %v3941 = vunpack.c.l.b16 %v663
        %v3942 = vunpack.c.h.b16 %v663
        %v3943 = vunpack.c.l.b16 %v664
        %v3944 = vunpack.c.h.b16 %v664
        %v3945 = vunpack.c.l.b16 %v665
        %v3946 = vunpack.c.h.b16 %v665
        %v3947 = vunpack.c.l.b16 %v666
        %v3948 = vunpack.c.h.b16 %v666
        %v3949 = vunpack.c.l.b16 %v667
        %v3950 = vunpack.c.h.b16 %v667
        %v3951 = vunpack.c.l.b16 %v668
        %v3952 = vunpack.c.h.b16 %v668
        %v3953 = vunpack.c.l.b16 %v669
        %v3954 = vunpack.c.h.b16 %v669
        %v3955 = vunpack.c.l.b16 %v670
        %v3956 = vunpack.c.h.b16 %v670
        %v3957 = vunpack.c.l.b16 %v671
        %v3958 = vunpack.c.h.b16 %v671
        %v3959 = vunpack.c.l.b16 %v672
        %v3960 = vunpack.c.h.b16 %v672
        %v3961 = vunpack.c.l.b16 %v673
        %v3962 = vunpack.c.h.b16 %v673
        %v3963 = vunpack.c.l.b16 %v674
        %v3964 = vunpack.c.h.b16 %v674
        %v3965 = vunpack.c.l.b16 %v675
        %v3966 = vunpack.c.h.b16 %v675
        %v3967 = vunpack.c.l.b16 %v676
        %v3968 = vunpack.c.h.b16 %v676
        %v3969 = vunpack.c.l.b16 %v677
        %v3970 = vunpack.c.h.b16 %v677
        %v3971 = vunpack.c.l.b16 %v678
        %v3972 = vunpack.c.h.b16 %v678
        %v3973 = vunpack.c.l.b16 %v679
        %v3974 = vunpack.c.h.b16 %v679
        %v3975 = vunpack.c.l.b16 %v680
        %v3976 = vunpack.c.h.b16 %v680
        %v3977 = vunpack.c.l.b16 %v681
        %v3978 = vunpack.c.h.b16 %v681
        %v3979 = vunpack.c.l.b16 %v682
        %v3980 = vunpack.c.h.b16 %v682
        %v3981 = vunpack.c.l.b16 %v683
        %v3982 = vunpack.c.h.b16 %v683
        %v3983 = vunpack.c.l.b16 %v684
        %v3984 = vunpack.c.h.b16 %v684
        %v3985 = vunpack.c.l.b16 %v685
        %v3986 = vunpack.c.h.b16 %v685
        %v3987 = vunpack.c.l.b16 %v686
        %v3988 = vunpack.c.h.b16 %v686
        %v3989 = vunpack.c.l.b16 %v687
        %v3990 = vunpack.c.h.b16 %v687
        %v3991 = vunpack.c.l.b16 %v688
        %v3992 = vunpack.c.h.b16 %v688
        %v3993 = vunpack.c.l.b16 %v689
        %v3994 = vunpack.c.h.b16 %v689
        %v3995 = vunpack.c.l.b16 %v690
        %v3996 = vunpack.c.h.b16 %v690
        %v3997 = vunpack.c.l.b16 %v691
        %v3998 = vunpack.c.h.b16 %v691
        %v3999 = vunpack.c.l.b16 %v692
        %v4000 = vunpack.c.h.b16 %v692
        %v4001 = vunpack.c.l.b16 %v693
        %v4002 = vunpack.c.h.b16 %v693
        %v4003 = vunpack.c.l.b16 %v694
        %v4004 = vunpack.c.h.b16 %v694
        %v4005 = vunpack.c.l.b16 %v695
        %v4006 = vunpack.c.h.b16 %v695
        %v4007 = vunpack.c.l.b16 %v696
        %v4008 = vunpack.c.h.b16 %v696
        %v4009 = vunpack.c.l.b16 %v697
        %v4010 = vunpack.c.h.b16 %v697
        %v4011 = vunpack.c.l.b16 %v698
        %v4012 = vunpack.c.h.b16 %v698
        %v4013 = vunpack.c.l.b16 %v699
        %v4014 = vunpack.c.h.b16 %v699
        %v4015 = vunpack.c.l.b16 %v700
        %v4016 = vunpack.c.h.b16 %v700
        %v4017 = vunpack.c.l.b16 %v701
        %v4018 = vunpack.c.h.b16 %v701
        %v4019 = vunpack.c.l.b16 %v702
        %v4020 = vunpack.c.h.b16 %v702
        %v4021 = vunpack.c.l.b16 %v703
        %v4022 = vunpack.c.h.b16 %v703
        %v4023 = vunpack.c.l.b16 %v704
        %v4024 = vunpack.c.h.b16 %v704
        %v4025 = vunpack.c.l.b16 %v705
        %v4026 = vunpack.c.h.b16 %v705
        %v4027 = vunpack.c.l.b16 %v706
        %v4028 = vunpack.c.h.b16 %v706
        %v4029 = vunpack.c.l.b16 %v707
        %v4030 = vunpack.c.h.b16 %v707
        %v4031 = vunpack.c.l.b16 %v708
        %v4032 = vunpack.c.h.b16 %v708
        %v4033 = vunpack.c.l.b16 %v709
        %v4034 = vunpack.c.h.b16 %v709
        %v4035 = vunpack.c.l.b16 %v710
        %v4036 = vunpack.c.h.b16 %v710
        %v4037 = vunpack.c.l.b16 %v711
        %v4038 = vunpack.c.h.b16 %v711
        %v4039 = vunpack.c.l.b16 %v712
        %v4040 = vunpack.c.h.b16 %v712
        %v4041 = vunpack.c.l.b16 %v713
        %v4042 = vunpack.c.h.b16 %v713
        %v4043 = vunpack.c.l.b16 %v714
        %v4044 = vunpack.c.h.b16 %v714
        %v4045 = vunpack.c.l.b16 %v715
        %v4046 = vunpack.c.h.b16 %v715
        %v4047 = vunpack.c.l.b16 %v716
        %v4048 = vunpack.c.h.b16 %v716
        %v4049 = vunpack.c.l.b16 %v717
        %v4050 = vunpack.c.h.b16 %v717
        %v4051 = vunpack.c.l.b16 %v718
        %v4052 = vunpack.c.h.b16 %v718
        %v4053 = vunpack.c.l.b16 %v719
        %v4054 = vunpack.c.h.b16 %v719
        %v4055 = vunpack.c.l.b16 %v720
        %v4056 = vunpack.c.h.b16 %v720
        %v4057 = vunpack.c.l.b16 %v721
        %v4058 = vunpack.c.h.b16 %v721
        %v4059 = vunpack.c.l.b16 %v722
        %v4060 = vunpack.c.h.b16 %v722
        %v4061 = vunpack.c.l.b16 %v723
        %v4062 = vunpack.c.h.b16 %v723
        %v4063 = vunpack.c.l.b16 %v724
        %v4064 = vunpack.c.h.b16 %v724
        %v4065 = vunpack.c.l.b16 %v725
        %v4066 = vunpack.c.h.b16 %v725
        %v4067 = vunpack.c.l.b16 %v726
        %v4068 = vunpack.c.h.b16 %v726
        %v4069 = vunpack.c.l.b16 %v727
        %v4070 = vunpack.c.h.b16 %v727
        %v4071 = vunpack.c.l.b16 %v728
        %v4072 = vunpack.c.h.b16 %v728
        %v4073 = vunpack.c.l.b16 %v729
        %v4074 = vunpack.c.h.b16 %v729
        %v4075 = vunpack.c.l.b16 %v730
        %v4076 = vunpack.c.h.b16 %v730
        %v4077 = vunpack.c.l.b16 %v731
        %v4078 = vunpack.c.h.b16 %v731
        %v4079 = vunpack.c.l.b16 %v732
        %v4080 = vunpack.c.h.b16 %v732
        %v4081 = vunpack.c.l.b16 %v733
        %v4082 = vunpack.c.h.b16 %v733
        %v4083 = vunpack.c.l.b16 %v734
        %v4084 = vunpack.c.h.b16 %v734
        %v4085 = vunpack.c.l.b16 %v735
        %v4086 = vunpack.c.h.b16 %v735
        %v4087 = vunpack.c.l.b16 %v736
        %v4088 = vunpack.c.h.b16 %v736
        %v4089 = vunpack.c.l.b16 %v737
        %v4090 = vunpack.c.h.b16 %v737
        %v4091 = vunpack.c.l.b16 %v738
        %v4092 = vunpack.c.h.b16 %v738
        %v4093 = vunpack.c.l.b16 %v739
        %v4094 = vunpack.c.h.b16 %v739
        %v4095 = vunpack.c.l.b16 %v740
        %v4096 = vunpack.c.h.b16 %v740
        %v4097 = vunpack.c.l.b16 %v741
        %v4098 = vunpack.c.h.b16 %v741
        %v4099 = vunpack.c.l.b16 %v742
        %v4100 = vunpack.c.h.b16 %v742
        %v4101 = vunpack.c.l.b16 %v743
        %v4102 = vunpack.c.h.b16 %v743
        %v4103 = vunpack.c.l.b16 %v744
        %v4104 = vunpack.c.h.b16 %v744
        %v4105 = vunpack.c.l.b16 %v745
        %v4106 = vunpack.c.h.b16 %v745
        %v4107 = vunpack.c.l.b16 %v746
        %v4108 = vunpack.c.h.b16 %v746
        %v4109 = vunpack.c.l.b16 %v747
        %v4110 = vunpack.c.h.b16 %v747
        %v4111 = vunpack.c.l.b16 %v748
        %v4112 = vunpack.c.h.b16 %v748
        %v4113 = vunpack.c.l.b16 %v749
        %v4114 = vunpack.c.h.b16 %v749
        %v4115 = vunpack.c.l.b16 %v750
        %v4116 = vunpack.c.h.b16 %v750
        %v4117 = vunpack.c.l.b16 %v751
        %v4118 = vunpack.c.h.b16 %v751
        %v4119 = vunpack.c.l.b16 %v752
        %v4120 = vunpack.c.h.b16 %v752
        %v4121 = vunpack.c.l.b16 %v753
        %v4122 = vunpack.c.h.b16 %v753
        %v4123 = vunpack.c.l.b16 %v754
        %v4124 = vunpack.c.h.b16 %v754
        %v4125 = vunpack.c.l.b16 %v755
        %v4126 = vunpack.c.h.b16 %v755
        %v4127 = vunpack.c.l.b16 %v756
        %v4128 = vunpack.c.h.b16 %v756
        %v4129 = vunpack.c.l.b16 %v757
        %v4130 = vunpack.c.h.b16 %v757
        %v4131 = vunpack.c.l.b16 %v758
        %v4132 = vunpack.c.h.b16 %v758
        %v4133 = vunpack.c.l.b16 %v759
        %v4134 = vunpack.c.h.b16 %v759
        %v4135 = vunpack.c.l.b16 %v760
        %v4136 = vunpack.c.h.b16 %v760
        %v4137 = vunpack.c.l.b16 %v761
        %v4138 = vunpack.c.h.b16 %v761
        %v4139 = vunpack.c.l.b16 %v762
        %v4140 = vunpack.c.h.b16 %v762
        %v4141 = vunpack.c.l.b16 %v763
        %v4142 = vunpack.c.h.b16 %v763
        %v4143 = vunpack.c.l.b16 %v764
        %v4144 = vunpack.c.h.b16 %v764
        %v4145 = vunpack.c.l.b16 %v765
        %v4146 = vunpack.c.h.b16 %v765
        %v4147 = vunpack.c.l.b16 %v766
        %v4148 = vunpack.c.h.b16 %v766
        %v4149 = vunpack.c.l.b16 %v767
        %v4150 = vunpack.c.h.b16 %v767
        %v4151 = vunpack.c.l.b16 %v768
        %v4152 = vunpack.c.h.b16 %v768
        %v4153 = vunpack.c.l.b16 %v769
        %v4154 = vunpack.c.h.b16 %v769
        %v4155 = vunpack.c.l.b16 %v770
        %v4156 = vunpack.c.h.b16 %v770
        %v4157 = vunpack.c.l.b16 %v771
        %v4158 = vunpack.c.h.b16 %v771
        %v4159 = vunpack.c.l.b16 %v772
        %v4160 = vunpack.c.h.b16 %v772
        %v4161 = vunpack.c.l.b16 %v773
        %v4162 = vunpack.c.h.b16 %v773
        %v4163 = vunpack.c.l.b16 %v774
        %v4164 = vunpack.c.h.b16 %v774
        %v4165 = vunpack.c.l.b16 %v775
        %v4166 = vunpack.c.h.b16 %v775
        %v4167 = vunpack.c.l.b16 %v776
        %v4168 = vunpack.c.h.b16 %v776
        %v4169 = vunpack.c.l.b16 %v777
        %v4170 = vunpack.c.h.b16 %v777
        %v4171 = vunpack.c.l.b16 %v778
        %v4172 = vunpack.c.h.b16 %v778
        %v4173 = vunpack.c.l.b16 %v779
        %v4174 = vunpack.c.h.b16 %v779
        %v4175 = vunpack.c.l.b16 %v780
        %v4176 = vunpack.c.h.b16 %v780
        %v4177 = vunpack.c.l.b16 %v781
        %v4178 = vunpack.c.h.b16 %v781
        %v4179 = vunpack.c.l.b16 %v782
        %v4180 = vunpack.c.h.b16 %v782
        %v4181 = vunpack.c.l.b16 %v783
        %v4182 = vunpack.c.h.b16 %v783
        %v4183 = vunpack.c.l.b16 %v784
        %v4184 = vunpack.c.h.b16 %v784
        %v4185 = vunpack.c.l.b16 %v785
        %v4186 = vunpack.c.h.b16 %v785
        %v4187 = vunpack.c.l.b16 %v786
        %v4188 = vunpack.c.h.b16 %v786
        %v4189 = vunpack.c.l.b16 %v787
        %v4190 = vunpack.c.h.b16 %v787
        %v4191 = vunpack.c.l.b16 %v788
        %v4192 = vunpack.c.h.b16 %v788
        %v4193 = vunpack.c.l.b16 %v789
        %v4194 = vunpack.c.h.b16 %v789
        %v4195 = vunpack.c.l.b16 %v790
        %v4196 = vunpack.c.h.b16 %v790
        %v4197 = vunpack.c.l.b16 %v791
        %v4198 = vunpack.c.h.b16 %v791
        %v4199 = vunpack.c.l.b16 %v792
        %v4200 = vunpack.c.h.b16 %v792
        %v4201 = vunpack.c.l.b16 %v793
        %v4202 = vunpack.c.h.b16 %v793
        %v4203 = vunpack.c.l.b16 %v794
        %v4204 = vunpack.c.h.b16 %v794
        %v4205 = vunpack.c.l.b16 %v795
        %v4206 = vunpack.c.h.b16 %v795
        %v4207 = vunpack.c.l.b16 %v796
        %v4208 = vunpack.c.h.b16 %v796
        %v4209 = vunpack.c.l.b16 %v797
        %v4210 = vunpack.c.h.b16 %v797
        %v4211 = vunpack.c.l.b16 %v798
        %v4212 = vunpack.c.h.b16 %v798
        %v4213 = vunpack.c.l.b16 %v799
        %v4214 = vunpack.c.h.b16 %v799
        %v4215 = vunpack.c.l.b16 %v800
        %v4216 = vunpack.c.h.b16 %v800
        %v4217 = vunpack.c.l.b16 %v801
        %v4218 = vunpack.c.h.b16 %v801
        %v4219 = vunpack.c.l.b16 %v802
        %v4220 = vunpack.c.h.b16 %v802
        %v4221 = vunpack.c.l.b16 %v803
        %v4222 = vunpack.c.h.b16 %v803
        %v4223 = vunpack.c.l.b16 %v804
        %v4224 = vunpack.c.h.b16 %v804
        %v4225 = vunpack.c.l.b16 %v805
        %v4226 = vunpack.c.h.b16 %v805
        %v4227 = vunpack.c.l.b16 %v806
        %v4228 = vunpack.c.h.b16 %v806
        %v4229 = vunpack.c.l.b16 %v807
        %v4230 = vunpack.c.h.b16 %v807
        %v4231 = vunpack.c.l.b16 %v808
        %v4232 = vunpack.c.h.b16 %v808
        %v4233 = vunpack.c.l.b16 %v809
        %v4234 = vunpack.c.h.b16 %v809
        %v4235 = vunpack.c.l.b16 %v810
        %v4236 = vunpack.c.h.b16 %v810
        %v4237 = vunpack.c.l.b16 %v811
        %v4238 = vunpack.c.h.b16 %v811
        %v4239 = vunpack.c.l.b16 %v812
        %v4240 = vunpack.c.h.b16 %v812
        %v4241 = vunpack.c.l.b16 %v813
        %v4242 = vunpack.c.h.b16 %v813
        %v4243 = vunpack.c.l.b16 %v814
        %v4244 = vunpack.c.h.b16 %v814
        %v4245 = vunpack.c.l.b16 %v815
        %v4246 = vunpack.c.h.b16 %v815
        %v4247 = vunpack.c.l.b16 %v816
        %v4248 = vunpack.c.h.b16 %v816
        %v4249 = vunpack.c.l.b16 %v817
        %v4250 = vunpack.c.h.b16 %v817
        %v4251 = vunpack.c.l.b16 %v818
        %v4252 = vunpack.c.h.b16 %v818
        %v4253 = vunpack.c.l.b16 %v819
        %v4254 = vunpack.c.h.b16 %v819
        %v4255 = vunpack.c.l.b16 %v820
        %v4256 = vunpack.c.h.b16 %v820
        %v4257 = vunpack.c.l.b16 %v821
        %v4258 = vunpack.c.h.b16 %v821
        %v4259 = vunpack.c.l.b16 %v822
        %v4260 = vunpack.c.h.b16 %v822
        %v4261 = vunpack.c.l.b16 %v823
        %v4262 = vunpack.c.h.b16 %v823
        %v4263 = vunpack.c.l.b16 %v824
        %v4264 = vunpack.c.h.b16 %v824
        %v4265 = vunpack.c.l.b16 %v825
        %v4266 = vunpack.c.h.b16 %v825
        %v4267 = vunpack.c.l.b16 %v826
        %v4268 = vunpack.c.h.b16 %v826
        %v4269 = vunpack.c.l.b16 %v827
        %v4270 = vunpack.c.h.b16 %v827
        %v4271 = vunpack.c.l.b16 %v828
        %v4272 = vunpack.c.h.b16 %v828
        %v4273 = vunpack.c.l.b16 %v829
        %v4274 = vunpack.c.h.b16 %v829
        %v4275 = vunpack.c.l.b16 %v830
        %v4276 = vunpack.c.h.b16 %v830
        %v4277 = vunpack.c.l.b16 %v831
        %v4278 = vunpack.c.h.b16 %v831
        %v4279 = vunpack.c.l.b16 %v832
        %v4280 = vunpack.c.h.b16 %v832
        %v4281 = vunpack.c.l.b16 %v833
        %v4282 = vunpack.c.h.b16 %v833
        %v4283 = vunpack.c.l.b16 %v834
        %v4284 = vunpack.c.h.b16 %v834
        %v4285 = vunpack.c.l.b16 %v835
        %v4286 = vunpack.c.h.b16 %v835
        %v4287 = vunpack.c.l.b16 %v836
        %v4288 = vunpack.c.h.b16 %v836
        %v4289 = vunpack.c.l.b16 %v837
        %v4290 = vunpack.c.h.b16 %v837
        %v4291 = vunpack.c.l.b16 %v838
        %v4292 = vunpack.c.h.b16 %v838
        %v4293 = vunpack.c.l.b16 %v839
        %v4294 = vunpack.c.h.b16 %v839
        %v4295 = vunpack.c.l.b16 %v840
        %v4296 = vunpack.c.h.b16 %v840
        %v4297 = vunpack.c.l.b16 %v841
        %v4298 = vunpack.c.h.b16 %v841
        %v4299 = vunpack.c.l.b16 %v842
        %v4300 = vunpack.c.h.b16 %v842
        %v4301 = vunpack.c.l.b16 %v843
        %v4302 = vunpack.c.h.b16 %v843
        %v4303 = vunpack.c.l.b16 %v844
        %v4304 = vunpack.c.h.b16 %v844
        %v4305 = vunpack.c.l.b16 %v845
        %v4306 = vunpack.c.h.b16 %v845
        %v4307 = vunpack.c.l.b16 %v846
        %v4308 = vunpack.c.h.b16 %v846
        %v4309 = vunpack.c.l.b16 %v847
        %v4310 = vunpack.c.h.b16 %v847
        %v4311 = vunpack.c.l.b16 %v848
        %v4312 = vunpack.c.h.b16 %v848
        %v4313 = vunpack.c.l.b16 %v849
        %v4314 = vunpack.c.h.b16 %v849
        %v4315 = vunpack.c.l.b16 %v850
        %v4316 = vunpack.c.h.b16 %v850
        %v4317 = vunpack.c.l.b16 %v851
        %v4318 = vunpack.c.h.b16 %v851
        %v4319 = vunpack.c.l.b16 %v852
        %v4320 = vunpack.c.h.b16 %v852
        %v4321 = vunpack.c.l.b16 %v853
        %v4322 = vunpack.c.h.b16 %v853
        %v4323 = vunpack.c.l.b16 %v854
        %v4324 = vunpack.c.h.b16 %v854
        %v4325 = vunpack.c.l.b16 %v855
        %v4326 = vunpack.c.h.b16 %v855
        %v4327 = vunpack.c.l.b16 %v856
        %v4328 = vunpack.c.h.b16 %v856
        %v4329 = vunpack.c.l.b16 %v857
        %v4330 = vunpack.c.h.b16 %v857
        %v4331 = vunpack.c.l.b16 %v858
        %v4332 = vunpack.c.h.b16 %v858
        %v4333 = vunpack.c.l.b16 %v859
        %v4334 = vunpack.c.h.b16 %v859
        %v4335 = vunpack.c.l.b16 %v860
        %v4336 = vunpack.c.h.b16 %v860
        %v4337 = vunpack.c.l.b16 %v861
        %v4338 = vunpack.c.h.b16 %v861
        %v4339 = vunpack.c.l.b16 %v862
        %v4340 = vunpack.c.h.b16 %v862
        %v4341 = vunpack.c.l.b16 %v863
        %v4342 = vunpack.c.h.b16 %v863
        %v4343 = vunpack.c.l.b16 %v864
        %v4344 = vunpack.c.h.b16 %v864
        %v4345 = vunpack.c.l.b16 %v865
        %v4346 = vunpack.c.h.b16 %v865
        %v4347 = vunpack.c.l.b16 %v866
        %v4348 = vunpack.c.h.b16 %v866
        %v4349 = vunpack.c.l.b16 %v867
        %v4350 = vunpack.c.h.b16 %v867
        %v4351 = vunpack.c.l.b16 %v868
        %v4352 = vunpack.c.h.b16 %v868
        %v4353 = vunpack.c.l.b16 %v869
        %v4354 = vunpack.c.h.b16 %v869
        %v4355 = vunpack.c.l.b16 %v870
        %v4356 = vunpack.c.h.b16 %v870
        %v4357 = vunpack.c.l.b16 %v871
        %v4358 = vunpack.c.h.b16 %v871
        %v4359 = vunpack.c.l.b16 %v872
        %v4360 = vunpack.c.h.b16 %v872
        %v4361 = vunpack.c.l.b16 %v873
        %v4362 = vunpack.c.h.b16 %v873
        %v4363 = vunpack.c.l.b16 %v874
        %v4364 = vunpack.c.h.b16 %v874
        %v4365 = vunpack.c.l.b16 %v875
        %v4366 = vunpack.c.h.b16 %v875
        %v4367 = vunpack.c.l.b16 %v876
        %v4368 = vunpack.c.h.b16 %v876
        %v4369 = vunpack.c.l.b16 %v877
        %v4370 = vunpack.c.h.b16 %v877
        %v4371 = vunpack.c.l.b16 %v878
        %v4372 = vunpack.c.h.b16 %v878
        %v4373 = vunpack.c.l.b16 %v879
        %v4374 = vunpack.c.h.b16 %v879
        %v4375 = vunpack.c.l.b16 %v880
        %v4376 = vunpack.c.h.b16 %v880
        %v4377 = vunpack.c.l.b16 %v881
        %v4378 = vunpack.c.h.b16 %v881
        %v4379 = vunpack.c.l.b16 %v882
        %v4380 = vunpack.c.h.b16 %v882
        %v4381 = vunpack.c.l.b16 %v883
        %v4382 = vunpack.c.h.b16 %v883
        %v4383 = vunpack.c.l.b16 %v884
        %v4384 = vunpack.c.h.b16 %v884
        %v4385 = vunpack.c.l.b16 %v885
        %v4386 = vunpack.c.h.b16 %v885
        %v4387 = vunpack.c.l.b16 %v886
        %v4388 = vunpack.c.h.b16 %v886
        %v4389 = vunpack.c.l.b16 %v887
        %v4390 = vunpack.c.h.b16 %v887
        %v4391 = vunpack.c.l.b16 %v888
        %v4392 = vunpack.c.h.b16 %v888
        %v4393 = vunpack.c.l.b16 %v889
        %v4394 = vunpack.c.h.b16 %v889
        %v4395 = vunpack.c.l.b16 %v890
        %v4396 = vunpack.c.h.b16 %v890
        %v4397 = vunpack.c.l.b16 %v891
        %v4398 = vunpack.c.h.b16 %v891
        %v4399 = vunpack.c.l.b16 %v892
        %v4400 = vunpack.c.h.b16 %v892
        %v4401 = vunpack.c.l.b16 %v893
        %v4402 = vunpack.c.h.b16 %v893
        %v4403 = vunpack.c.l.b16 %v894
        %v4404 = vunpack.c.h.b16 %v894
        %v4405 = vunpack.c.l.b16 %v895
        %v4406 = vunpack.c.h.b16 %v895
        %v4407 = vunpack.c.l.b16 %v896
        %v4408 = vunpack.c.h.b16 %v896
        %v4409 = vunpack.c.l.b16 %v897
        %v4410 = vunpack.c.h.b16 %v897
        %v4411 = vunpack.c.l.b16 %v898
        %v4412 = vunpack.c.h.b16 %v898
        %v4413 = vunpack.c.l.b16 %v899
        %v4414 = vunpack.c.h.b16 %v899
        %v4415 = vunpack.c.l.b16 %v900
        %v4416 = vunpack.c.h.b16 %v900
        %v4417 = vunpack.c.l.b16 %v901
        %v4418 = vunpack.c.h.b16 %v901
        %v4419 = vunpack.c.l.b16 %v902
        %v4420 = vunpack.c.h.b16 %v902
        %v4421 = vunpack.c.l.b16 %v903
        %v4422 = vunpack.c.h.b16 %v903
        %v4423 = vunpack.c.l.b16 %v904
        %v4424 = vunpack.c.h.b16 %v904
        %v4425 = vunpack.c.l.b16 %v905
        %v4426 = vunpack.c.h.b16 %v905
        %v4427 = vunpack.c.l.b16 %v906
        %v4428 = vunpack.c.h.b16 %v906
        %v4429 = vunpack.c.l.b16 %v907
        %v4430 = vunpack.c.h.b16 %v907
        %v4431 = vunpack.c.l.b16 %v908
        %v4432 = vunpack.c.h.b16 %v908
        %v4433 = vunpack.c.l.b16 %v909
        %v4434 = vunpack.c.h.b16 %v909
        %v4435 = vunpack.c.l.b16 %v910
        %v4436 = vunpack.c.h.b16 %v910
        %v4437 = vunpack.c.l.b16 %v911
        %v4438 = vunpack.c.h.b16 %v911
        %v4439 = vunpack.c.l.b16 %v912
        %v4440 = vunpack.c.h.b16 %v912
        %v4441 = vunpack.c.l.b16 %v913
        %v4442 = vunpack.c.h.b16 %v913
        %v4443 = vunpack.c.l.b16 %v914
        %v4444 = vunpack.c.h.b16 %v914
        %v4445 = vunpack.c.l.b16 %v915
        %v4446 = vunpack.c.h.b16 %v915
        %v4447 = vunpack.c.l.b16 %v916
        %v4448 = vunpack.c.h.b16 %v916
        %v4449 = vunpack.c.l.b16 %v917
        %v4450 = vunpack.c.h.b16 %v917
        %v4451 = vunpack.c.l.b16 %v918
        %v4452 = vunpack.c.h.b16 %v918
        %v4453 = vunpack.c.l.b16 %v919
        %v4454 = vunpack.c.h.b16 %v919
        %v4455 = vunpack.c.l.b16 %v920
        %v4456 = vunpack.c.h.b16 %v920
        %v4457 = vunpack.c.l.b16 %v921
        %v4458 = vunpack.c.h.b16 %v921
        %v4459 = vunpack.c.l.b16 %v922
        %v4460 = vunpack.c.h.b16 %v922
        %v4461 = vunpack.c.l.b16 %v923
        %v4462 = vunpack.c.h.b16 %v923
        %v4463 = vunpack.c.l.b16 %v924
        %v4464 = vunpack.c.h.b16 %v924
        %v4465 = vunpack.c.l.b16 %v925
        %v4466 = vunpack.c.h.b16 %v925
        %v4467 = vunpack.c.l.b16 %v926
        %v4468 = vunpack.c.h.b16 %v926
        %v4469 = vunpack.c.l.b16 %v927
        %v4470 = vunpack.c.h.b16 %v927
        %v4471 = vunpack.c.l.b16 %v928
        %v4472 = vunpack.c.h.b16 %v928
        %v4473 = vunpack.c.l.b16 %v929
        %v4474 = vunpack.c.h.b16 %v929
        %v4475 = vunpack.c.l.b16 %v930
        %v4476 = vunpack.c.h.b16 %v930
        %v4477 = vunpack.c.l.b16 %v931
        %v4478 = vunpack.c.h.b16 %v931
        %v4479 = vunpack.c.l.b16 %v932
        %v4480 = vunpack.c.h.b16 %v932
        %v4481 = vunpack.c.l.b16 %v933
        %v4482 = vunpack.c.h.b16 %v933
        %v4483 = vunpack.c.l.b16 %v934
        %v4484 = vunpack.c.h.b16 %v934
        %v4485 = vunpack.c.l.b16 %v935
        %v4486 = vunpack.c.h.b16 %v935
        %v4487 = vunpack.c.l.b16 %v936
        %v4488 = vunpack.c.h.b16 %v936
        %v4489 = vunpack.c.l.b16 %v937
        %v4490 = vunpack.c.h.b16 %v937
        %v4491 = vunpack.c.l.b16 %v938
        %v4492 = vunpack.c.h.b16 %v938
        %v4493 = vunpack.c.l.b16 %v939
        %v4494 = vunpack.c.h.b16 %v939
        %v4495 = vunpack.c.l.b16 %v940
        %v4496 = vunpack.c.h.b16 %v940
        %v4497 = vunpack.c.l.b16 %v941
        %v4498 = vunpack.c.h.b16 %v941
        %v4499 = vunpack.c.l.b16 %v942
        %v4500 = vunpack.c.h.b16 %v942
        %v4501 = vunpack.c.l.b16 %v943
        %v4502 = vunpack.c.h.b16 %v943
        %v4503 = vunpack.c.l.b16 %v944
        %v4504 = vunpack.c.h.b16 %v944
        %v4505 = vunpack.c.l.b16 %v945
        %v4506 = vunpack.c.h.b16 %v945
        %v4507 = vunpack.c.l.b16 %v946
        %v4508 = vunpack.c.h.b16 %v946
        %v4509 = vunpack.c.l.b16 %v947
        %v4510 = vunpack.c.h.b16 %v947
        %v4511 = vunpack.c.l.b16 %v948
        %v4512 = vunpack.c.h.b16 %v948
        %v4513 = vunpack.c.l.b16 %v949
        %v4514 = vunpack.c.h.b16 %v949
        %v4515 = vunpack.c.l.b16 %v950
        %v4516 = vunpack.c.h.b16 %v950
        %v4517 = vunpack.c.l.b16 %v951
        %v4518 = vunpack.c.h.b16 %v951
        %v4519 = vunpack.c.l.b16 %v952
        %v4520 = vunpack.c.h.b16 %v952
        %v4521 = vunpack.c.l.b16 %v953
        %v4522 = vunpack.c.h.b16 %v953
        %v4523 = vunpack.c.l.b16 %v954
        %v4524 = vunpack.c.h.b16 %v954
        %v4525 = vunpack.c.l.b16 %v955
        %v4526 = vunpack.c.h.b16 %v955
        %v4527 = vunpack.c.l.b16 %v956
        %v4528 = vunpack.c.h.b16 %v956
        %v4529 = vunpack.c.l.b16 %v957
        %v4530 = vunpack.c.h.b16 %v957
        %v4531 = vunpack.c.l.b16 %v958
        %v4532 = vunpack.c.h.b16 %v958
        %v4533 = vunpack.c.l.b16 %v959
        %v4534 = vunpack.c.h.b16 %v959
        %v4535 = vunpack.c.l.b16 %v960
        %v4536 = vunpack.c.h.b16 %v960
        %v4537 = vunpack.c.l.b16 %v961
        %v4538 = vunpack.c.h.b16 %v961
        %v4539 = vunpack.c.l.b16 %v962
        %v4540 = vunpack.c.h.b16 %v962
        %v4541 = vunpack.c.l.b16 %v963
        %v4542 = vunpack.c.h.b16 %v963
        %v4543 = vunpack.c.l.b16 %v964
        %v4544 = vunpack.c.h.b16 %v964
        %v4545 = vunpack.c.l.b16 %v965
        %v4546 = vunpack.c.h.b16 %v965
        %v4547 = vunpack.c.l.b16 %v966
        %v4548 = vunpack.c.h.b16 %v966
        %v4549 = vunpack.c.l.b16 %v967
        %v4550 = vunpack.c.h.b16 %v967
        %v4551 = vunpack.c.l.b16 %v968
        %v4552 = vunpack.c.h.b16 %v968
        %v4553 = vunpack.c.l.b16 %v969
        %v4554 = vunpack.c.h.b16 %v969
        %v4555 = vunpack.c.l.b16 %v970
        %v4556 = vunpack.c.h.b16 %v970
        %v4557 = vunpack.c.l.b16 %v971
        %v4558 = vunpack.c.h.b16 %v971
        %v4559 = vunpack.c.l.b16 %v972
        %v4560 = vunpack.c.h.b16 %v972
        %v4561 = vunpack.c.l.b16 %v973
        %v4562 = vunpack.c.h.b16 %v973
        %v4563 = vunpack.c.l.b16 %v974
        %v4564 = vunpack.c.h.b16 %v974
        %v4565 = vunpack.c.l.b16 %v975
        %v4566 = vunpack.c.h.b16 %v975
        %v4567 = vunpack.c.l.b16 %v976
        %v4568 = vunpack.c.h.b16 %v976
        %v4569 = vunpack.c.l.b16 %v977
        %v4570 = vunpack.c.h.b16 %v977
        %v4571 = vunpack.c.l.b16 %v978
        %v4572 = vunpack.c.h.b16 %v978
        %v4573 = vunpack.c.l.b16 %v979
        %v4574 = vunpack.c.h.b16 %v979
        %v4575 = vunpack.c.l.b16 %v980
        %v4576 = vunpack.c.h.b16 %v980
        %v4577 = vunpack.c.l.b16 %v981
        %v4578 = vunpack.c.h.b16 %v981
        %v4579 = vunpack.c.l.b16 %v982
        %v4580 = vunpack.c.h.b16 %v982
        %v4581 = vunpack.c.l.b16 %v983
        %v4582 = vunpack.c.h.b16 %v983
        %v4583 = vunpack.c.l.b16 %v984
        %v4584 = vunpack.c.h.b16 %v984
        %v4585 = vunpack.c.l.b16 %v985
        %v4586 = vunpack.c.h.b16 %v985
        %v4587 = vunpack.c.l.b16 %v986
        %v4588 = vunpack.c.h.b16 %v986
        %v4589 = vunpack.c.l.b16 %v987
        %v4590 = vunpack.c.h.b16 %v987
        %v4591 = vunpack.c.l.b16 %v988
        %v4592 = vunpack.c.h.b16 %v988
        %v4593 = vunpack.c.l.b16 %v989
        %v4594 = vunpack.c.h.b16 %v989
        %v4595 = vunpack.c.l.b16 %v990
        %v4596 = vunpack.c.h.b16 %v990
        %v4597 = vunpack.c.l.b16 %v991
        %v4598 = vunpack.c.h.b16 %v991
        %v4599 = vunpack.c.l.b16 %v992
        %v4600 = vunpack.c.h.b16 %v992
        %v4601 = vunpack.c.l.b16 %v993
        %v4602 = vunpack.c.h.b16 %v993
        %v4603 = vunpack.c.l.b16 %v994
        %v4604 = vunpack.c.h.b16 %v994
        %v4605 = vunpack.c.l.b16 %v995
        %v4606 = vunpack.c.h.b16 %v995
        %v4607 = vunpack.c.l.b16 %v996
        %v4608 = vunpack.c.h.b16 %v996
        %v4609 = vunpack.c.l.b16 %v997
        %v4610 = vunpack.c.h.b16 %v997
        %v4611 = vunpack.c.l.b16 %v998
        %v4612 = vunpack.c.h.b16 %v998
        %v4613 = vunpack.c.l.b16 %v999
        %v4614 = vunpack.c.h.b16 %v999
        %v4615 = vunpack.c.l.b16 %v1000
        %v4616 = vunpack.c.h.b16 %v1000
        %v4617 = vunpack.c.l.b16 %v1001
        %v4618 = vunpack.c.h.b16 %v1001
        %v4619 = vunpack.c.l.b16 %v1002
        %v4620 = vunpack.c.h.b16 %v1002
        %v4621 = vunpack.c.l.b16 %v1003
        %v4622 = vunpack.c.h.b16 %v1003
        %v4623 = vunpack.c.l.b16 %v1004
        %v4624 = vunpack.c.h.b16 %v1004
        %v4625 = vunpack.c.l.b16 %v1005
        %v4626 = vunpack.c.h.b16 %v1005
        %v4627 = vunpack.c.l.b16 %v1006
        %v4628 = vunpack.c.h.b16 %v1006
        %v4629 = vunpack.c.l.b16 %v1007
        %v4630 = vunpack.c.h.b16 %v1007
        %v4631 = vunpack.c.l.b16 %v1008
        %v4632 = vunpack.c.h.b16 %v1008
        %v4633 = vunpack.c.l.b16 %v1009
        %v4634 = vunpack.c.h.b16 %v1009
        %v4635 = vunpack.c.l.b16 %v1010
        %v4636 = vunpack.c.h.b16 %v1010
        %v4637 = vunpack.c.l.b16 %v1011
        %v4638 = vunpack.c.h.b16 %v1011
        %v4639 = vunpack.c.l.b16 %v1012
        %v4640 = vunpack.c.h.b16 %v1012
        %v4641 = vunpack.c.l.b16 %v1013
        %v4642 = vunpack.c.h.b16 %v1013
        %v4643 = vunpack.c.l.b16 %v1014
        %v4644 = vunpack.c.h.b16 %v1014
        %v4645 = vunpack.c.l.b16 %v1015
        %v4646 = vunpack.c.h.b16 %v1015
        %v4647 = vunpack.c.l.b16 %v1016
        %v4648 = vunpack.c.h.b16 %v1016
        %v4649 = vunpack.c.l.b16 %v1017
        %v4650 = vunpack.c.h.b16 %v1017
        %v4651 = vunpack.c.l.b16 %v1018
        %v4652 = vunpack.c.h.b16 %v1018
        %v4653 = vunpack.c.l.b16 %v1019
        %v4654 = vunpack.c.h.b16 %v1019
        %v4655 = vunpack.c.l.b16 %v1020
        %v4656 = vunpack.c.h.b16 %v1020
        %v4657 = vunpack.c.l.b16 %v1021
        %v4658 = vunpack.c.h.b16 %v1021
        %v4659 = vunpack.c.l.b16 %v1022
        %v4660 = vunpack.c.h.b16 %v1022
        %v4661 = vunpack.c.l.b16 %v1023
        %v4662 = vunpack.c.h.b16 %v1023
        %v4663 = vunpack.c.l.b16 %v1024
        %v4664 = vunpack.c.h.b16 %v1024
        %v4665 = vunpack.c.l.b16 %v1025
        %v4666 = vunpack.c.h.b16 %v1025
        %v4667 = vunpack.c.l.b16 %v1026
        %v4668 = vunpack.c.h.b16 %v1026
        %v4669 = vunpack.c.l.b16 %v1027
        %v4670 = vunpack.c.h.b16 %v1027
        %v4671 = vunpack.c.l.b16 %v1028
        %v4672 = vunpack.c.h.b16 %v1028
        %v4673 = vunpack.c.l.b16 %v1029
        %v4674 = vunpack.c.h.b16 %v1029
        %v4675 = vunpack.c.l.b16 %v1030
        %v4676 = vunpack.c.h.b16 %v1030
        %v4677 = vunpack.c.l.b16 %v1031
        %v4678 = vunpack.c.h.b16 %v1031
        %v4679 = vunpack.c.l.b16 %v1032
        %v4680 = vunpack.c.h.b16 %v1032
        %v4681 = vunpack.c.l.b16 %v1033
        %v4682 = vunpack.c.h.b16 %v1033
        %v4683 = vunpack.c.l.b16 %v1034
        %v4684 = vunpack.c.h.b16 %v1034
        %v4685 = vunpack.c.l.b16 %v1035
        %v4686 = vunpack.c.h.b16 %v1035
        %v4687 = vunpack.c.l.b16 %v1036
        %v4688 = vunpack.c.h.b16 %v1036
        %v4689 = vunpack.c.l.b16 %v1037
        %v4690 = vunpack.c.h.b16 %v1037
        %v4691 = vunpack.c.l.b16 %v1038
        %v4692 = vunpack.c.h.b16 %v1038
        %v4693 = vunpack.c.l.b16 %v1039
        %v4694 = vunpack.c.h.b16 %v1039
        %v4695 = vunpack.c.l.b16 %v1040
        %v4696 = vunpack.c.h.b16 %v1040
        %v4697 = vunpack.c.l.b16 %v1041
        %v4698 = vunpack.c.h.b16 %v1041
        %v4699 = vunpack.c.l.b16 %v1042
        %v4700 = vunpack.c.h.b16 %v1042
        %v4701 = vunpack.c.l.b16 %v1043
        %v4702 = vunpack.c.h.b16 %v1043
        %v4703 = vunpack.c.l.b16 %v1044
        %v4704 = vunpack.c.h.b16 %v1044
        %v4705 = vunpack.c.l.b16 %v1045
        %v4706 = vunpack.c.h.b16 %v1045
        %v4707 = vunpack.c.l.b16 %v1046
        %v4708 = vunpack.c.h.b16 %v1046
        %v4709 = vunpack.c.l.b16 %v1047
        %v4710 = vunpack.c.h.b16 %v1047
        %v4711 = vunpack.c.l.b16 %v1048
        %v4712 = vunpack.c.h.b16 %v1048
        %v4713 = vunpack.c.l.b16 %v1049
        %v4714 = vunpack.c.h.b16 %v1049
        %v4715 = vunpack.c.l.b16 %v1050
        %v4716 = vunpack.c.h.b16 %v1050
        %v4717 = vunpack.c.l.b16 %v1051
        %v4718 = vunpack.c.h.b16 %v1051
        %v4719 = vunpack.c.l.b16 %v1052
        %v4720 = vunpack.c.h.b16 %v1052
        %v4721 = vunpack.c.l.b16 %v1053
        %v4722 = vunpack.c.h.b16 %v1053
        %v4723 = vunpack.c.l.b16 %v1054
        %v4724 = vunpack.c.h.b16 %v1054
        %v4725 = vunpack.c.l.b16 %v1055
        %v4726 = vunpack.c.h.b16 %v1055
        %v4727 = vunpack.c.l.b16 %v1056
        %v4728 = vunpack.c.h.b16 %v1056
        %v4729 = vunpack.c.l.b16 %v1057
        %v4730 = vunpack.c.h.b16 %v1057
        %v4731 = vunpack.c.l.b16 %v1058
        %v4732 = vunpack.c.h.b16 %v1058
        %v4733 = vunpack.c.l.b16 %v1059
        %v4734 = vunpack.c.h.b16 %v1059
        %v4735 = vunpack.c.l.b16 %v1060
        %v4736 = vunpack.c.h.b16 %v1060
        %v4737 = vunpack.c.l.b16 %v1061
        %v4738 = vunpack.c.h.b16 %v1061
        %v4739 = vunpack.c.l.b16 %v1062
        %v4740 = vunpack.c.h.b16 %v1062
        %v4741 = vunpack.c.l.b16 %v1063
        %v4742 = vunpack.c.h.b16 %v1063
        %v4743 = vunpack.c.l.b16 %v1064
        %v4744 = vunpack.c.h.b16 %v1064
        %v4745 = vunpack.c.l.b16 %v1065
        %v4746 = vunpack.c.h.b16 %v1065
        %v4747 = vunpack.c.l.b16 %v1066
        %v4748 = vunpack.c.h.b16 %v1066
        %v4749 = vunpack.c.l.b16 %v1067
        %v4750 = vunpack.c.h.b16 %v1067
        %v4751 = vunpack.c.l.b16 %v1068
        %v4752 = vunpack.c.h.b16 %v1068
        %v4753 = vunpack.c.l.b16 %v1069
        %v4754 = vunpack.c.h.b16 %v1069
        %v4755 = vunpack.c.l.b16 %v1070
        %v4756 = vunpack.c.h.b16 %v1070
        %v4757 = vunpack.c.l.b16 %v1071
        %v4758 = vunpack.c.h.b16 %v1071
        %v4759 = vunpack.c.l.b16 %v1072
        %v4760 = vunpack.c.h.b16 %v1072
        %v4761 = vunpack.c.l.b16 %v1073
        %v4762 = vunpack.c.h.b16 %v1073
        %v4763 = vunpack.c.l.b16 %v1074
        %v4764 = vunpack.c.h.b16 %v1074
        %v4765 = vunpack.c.l.b16 %v1075
        %v4766 = vunpack.c.h.b16 %v1075
        %v4767 = vunpack.c.l.b16 %v1076
        %v4768 = vunpack.c.h.b16 %v1076
        %v4769 = vunpack.c.l.b16 %v1077
        %v4770 = vunpack.c.h.b16 %v1077
        %v4771 = vunpack.c.l.b16 %v1078
        %v4772 = vunpack.c.h.b16 %v1078
        %v4773 = vunpack.c.l.b16 %v1079
        %v4774 = vunpack.c.h.b16 %v1079
        %v4775 = vunpack.c.l.b16 %v1080
        %v4776 = vunpack.c.h.b16 %v1080
        %v4777 = vunpack.c.l.b16 %v1081
        %v4778 = vunpack.c.h.b16 %v1081
        %v4779 = vunpack.c.l.b16 %v1082
        %v4780 = vunpack.c.h.b16 %v1082
        %v4781 = vunpack.c.l.b16 %v1083
        %v4782 = vunpack.c.h.b16 %v1083
        %v4783 = vunpack.c.l.b16 %v1084
        %v4784 = vunpack.c.h.b16 %v1084
        %v4785 = vunpack.c.l.b16 %v1085
        %v4786 = vunpack.c.h.b16 %v1085
        %v4787 = vunpack.c.l.b16 %v1086
        %v4788 = vunpack.c.h.b16 %v1086
        %v4789 = vunpack.c.l.b16 %v1087
        %v4790 = vunpack.c.h.b16 %v1087
        %v4791 = vunpack.c.l.b16 %v1088
        %v4792 = vunpack.c.h.b16 %v1088
        %v4793 = vunpack.c.l.b16 %v1089
        %v4794 = vunpack.c.h.b16 %v1089
        %v4795 = vunpack.c.l.b16 %v1090
        %v4796 = vunpack.c.h.b16 %v1090
        %v4797 = vunpack.c.l.b16 %v1091
        %v4798 = vunpack.c.h.b16 %v1091
        %v4799 = vunpack.c.l.b16 %v1092
        %v4800 = vunpack.c.h.b16 %v1092
        %v4801 = vunpack.c.l.b16 %v1093
        %v4802 = vunpack.c.h.b16 %v1093
        %v4803 = vunpack.c.l.b16 %v1094
        %v4804 = vunpack.c.h.b16 %v1094
        %v4805 = vunpack.c.l.b16 %v1095
        %v4806 = vunpack.c.h.b16 %v1095
        %v4807 = vunpack.c.l.b16 %v1096
        %v4808 = vunpack.c.h.b16 %v1096
        %v4809 = vunpack.c.l.b16 %v1097
        %v4810 = vunpack.c.h.b16 %v1097
        %v4811 = vunpack.c.l.b16 %v1098
        %v4812 = vunpack.c.h.b16 %v1098
        %v4813 = vunpack.c.l.b16 %v1099
        %v4814 = vunpack.c.h.b16 %v1099
        %v4815 = vunpack.c.l.b16 %v1100
        %v4816 = vunpack.c.h.b16 %v1100
        %v4817 = vunpack.c.l.b16 %v1101
        %v4818 = vunpack.c.h.b16 %v1101
        %v4819 = vunpack.c.l.b16 %v1102
        %v4820 = vunpack.c.h.b16 %v1102
        %v4821 = vunpack.c.l.b16 %v1103
        %v4822 = vunpack.c.h.b16 %v1103
        %v4823 = vunpack.c.l.b16 %v1104
        %v4824 = vunpack.c.h.b16 %v1104
        %v4825 = vunpack.c.l.b16 %v1105
        %v4826 = vunpack.c.h.b16 %v1105
        %v4827 = vunpack.c.l.b16 %v1106
        %v4828 = vunpack.c.h.b16 %v1106
        %v4829 = vunpack.c.l.b16 %v1107
        %v4830 = vunpack.c.h.b16 %v1107
        %v4831 = vunpack.c.l.b16 %v1108
        %v4832 = vunpack.c.h.b16 %v1108
        %v4833 = vunpack.c.l.b16 %v1109
        %v4834 = vunpack.c.h.b16 %v1109
        %v4835 = vunpack.c.l.b16 %v1110
        %v4836 = vunpack.c.h.b16 %v1110
        %v4837 = vunpack.c.l.b16 %v1111
        %v4838 = vunpack.c.h.b16 %v1111
        %v4839 = vunpack.c.l.b16 %v1112
        %v4840 = vunpack.c.h.b16 %v1112
        %v4841 = vunpack.c.l.b16 %v1113
        %v4842 = vunpack.c.h.b16 %v1113
        %v4843 = vunpack.c.l.b16 %v1114
        %v4844 = vunpack.c.h.b16 %v1114
        %v4845 = vunpack.c.l.b16 %v1115
        %v4846 = vunpack.c.h.b16 %v1115
        %v4847 = vunpack.c.l.b16 %v1116
        %v4848 = vunpack.c.h.b16 %v1116
        %v4849 = vunpack.c.l.b16 %v1117
        %v4850 = vunpack.c.h.b16 %v1117
        %v4851 = vunpack.c.l.b16 %v1118
        %v4852 = vunpack.c.h.b16 %v1118
        %v4853 = vunpack.c.l.b16 %v1119
        %v4854 = vunpack.c.h.b16 %v1119
        %v4855 = vunpack.c.l.b16 %v1120
        %v4856 = vunpack.c.h.b16 %v1120
        %v4857 = vunpack.c.l.b16 %v1121
        %v4858 = vunpack.c.h.b16 %v1121
        %v4859 = vunpack.c.l.b16 %v1122
        %v4860 = vunpack.c.h.b16 %v1122
        %v4861 = vunpack.c.l.b16 %v1123
        %v4862 = vunpack.c.h.b16 %v1123
        %v4863 = vunpack.c.l.b16 %v1124
        %v4864 = vunpack.c.h.b16 %v1124
        %v4865 = vunpack.c.l.b16 %v1125
        %v4866 = vunpack.c.h.b16 %v1125
        %v4867 = vunpack.c.l.b16 %v1126
        %v4868 = vunpack.c.h.b16 %v1126
        %v4869 = vunpack.c.l.b16 %v1127
        %v4870 = vunpack.c.h.b16 %v1127
        %v4871 = vunpack.c.l.b16 %v1128
        %v4872 = vunpack.c.h.b16 %v1128
        %v4873 = vunpack.c.l.b16 %v1129
        %v4874 = vunpack.c.h.b16 %v1129
        %v4875 = vunpack.c.l.b16 %v1130
        %v4876 = vunpack.c.h.b16 %v1130
        %v4877 = vunpack.c.l.b16 %v1131
        %v4878 = vunpack.c.h.b16 %v1131
        %v4879 = vunpack.c.l.b16 %v1132
        %v4880 = vunpack.c.h.b16 %v1132
        %v4881 = vunpack.c.l.b16 %v1133
        %v4882 = vunpack.c.h.b16 %v1133
        %v4883 = vunpack.c.l.b16 %v1134
        %v4884 = vunpack.c.h.b16 %v1134
        %v4885 = vunpack.c.l.b16 %v1135
        %v4886 = vunpack.c.h.b16 %v1135
        %v4887 = vunpack.c.l.b16 %v1136
        %v4888 = vunpack.c.h.b16 %v1136
        %v4889 = vunpack.c.l.b16 %v1137
        %v4890 = vunpack.c.h.b16 %v1137
        %v4891 = vunpack.c.l.b16 %v1138
        %v4892 = vunpack.c.h.b16 %v1138
        %v4893 = vunpack.c.l.b16 %v1139
        %v4894 = vunpack.c.h.b16 %v1139
        %v4895 = vunpack.c.l.b16 %v1140
        %v4896 = vunpack.c.h.b16 %v1140
        %v4897 = vunpack.c.l.b16 %v1141
        %v4898 = vunpack.c.h.b16 %v1141
        %v4899 = vunpack.c.l.b16 %v1142
        %v4900 = vunpack.c.h.b16 %v1142
        %v4901 = vunpack.c.l.b16 %v1143
        %v4902 = vunpack.c.h.b16 %v1143
        %v4903 = vunpack.c.l.b16 %v1144
        %v4904 = vunpack.c.h.b16 %v1144
        %v4905 = vunpack.c.l.b16 %v1145
        %v4906 = vunpack.c.h.b16 %v1145
        %v4907 = vunpack.c.l.b16 %v1146
        %v4908 = vunpack.c.h.b16 %v1146
        %v4909 = vunpack.c.l.b16 %v1147
        %v4910 = vunpack.c.h.b16 %v1147
        %v4911 = vunpack.c.l.b16 %v1148
        %v4912 = vunpack.c.h.b16 %v1148
        %v4913 = vunpack.c.l.b16 %v1149
        %v4914 = vunpack.c.h.b16 %v1149
        %v4915 = vunpack.c.l.b16 %v1150
        %v4916 = vunpack.c.h.b16 %v1150
        %v4917 = vunpack.c.l.b16 %v1151
        %v4918 = vunpack.c.h.b16 %v1151
        %v4919 = vunpack.c.l.b16 %v1152
        %v4920 = vunpack.c.h.b16 %v1152
        %v4921 = vunpack.c.l.b16 %v1153
        %v4922 = vunpack.c.h.b16 %v1153
        %v4923 = vunpack.c.l.b16 %v1154
        %v4924 = vunpack.c.h.b16 %v1154
        %v4925 = vunpack.c.l.b16 %v1155
        %v4926 = vunpack.c.h.b16 %v1155
        %v4927 = vunpack.c.l.b16 %v1156
        %v4928 = vunpack.c.h.b16 %v1156
        %v4929 = vunpack.c.l.b16 %v1157
        %v4930 = vunpack.c.h.b16 %v1157
        %v4931 = vunpack.c.l.b16 %v1158
        %v4932 = vunpack.c.h.b16 %v1158
        %v4933 = vunpack.c.l.b16 %v1159
        %v4934 = vunpack.c.h.b16 %v1159
        %v4935 = vunpack.c.l.b16 %v1160
        %v4936 = vunpack.c.h.b16 %v1160
        %v4937 = vunpack.c.l.b16 %v1161
        %v4938 = vunpack.c.h.b16 %v1161
        %v4939 = vunpack.c.l.b16 %v1162
        %v4940 = vunpack.c.h.b16 %v1162
        %v4941 = vunpack.c.l.b16 %v1163
        %v4942 = vunpack.c.h.b16 %v1163
        %v4943 = vunpack.c.l.b16 %v1164
        %v4944 = vunpack.c.h.b16 %v1164
        %v4945 = vunpack.c.l.b16 %v1165
        %v4946 = vunpack.c.h.b16 %v1165
        %v4947 = vunpack.c.l.b16 %v1166
        %v4948 = vunpack.c.h.b16 %v1166
        %v4949 = vunpack.c.l.b16 %v1167
        %v4950 = vunpack.c.h.b16 %v1167
        %v4951 = vunpack.c.l.b16 %v1168
        %v4952 = vunpack.c.h.b16 %v1168
        %v4953 = vunpack.c.l.b16 %v1169
        %v4954 = vunpack.c.h.b16 %v1169
        %v4955 = vunpack.c.l.b16 %v1170
        %v4956 = vunpack.c.h.b16 %v1170
        %v4957 = vunpack.c.l.b16 %v1171
        %v4958 = vunpack.c.h.b16 %v1171
        %v4959 = vunpack.c.l.b16 %v1172
        %v4960 = vunpack.c.h.b16 %v1172
        %v4961 = vunpack.c.l.b16 %v1173
        %v4962 = vunpack.c.h.b16 %v1173
        %v4963 = vunpack.c.l.b16 %v1174
        %v4964 = vunpack.c.h.b16 %v1174
        %v4965 = vunpack.c.l.b16 %v1175
        %v4966 = vunpack.c.h.b16 %v1175
        %v4967 = vunpack.c.l.b16 %v1176
        %v4968 = vunpack.c.h.b16 %v1176
        %v4969 = vunpack.c.l.b16 %v1177
        %v4970 = vunpack.c.h.b16 %v1177
        %v4971 = vunpack.c.l.b16 %v1178
        %v4972 = vunpack.c.h.b16 %v1178
        %v4973 = vunpack.c.l.b16 %v1179
        %v4974 = vunpack.c.h.b16 %v1179
        %v4975 = vunpack.c.l.b16 %v1180
        %v4976 = vunpack.c.h.b16 %v1180
        %v4977 = vunpack.c.l.b16 %v1181
        %v4978 = vunpack.c.h.b16 %v1181
        %v4979 = vunpack.c.l.b16 %v1182
        %v4980 = vunpack.c.h.b16 %v1182
        %v4981 = vunpack.c.l.b16 %v1183
        %v4982 = vunpack.c.h.b16 %v1183
        %v4983 = vunpack.c.l.b16 %v1184
        %v4984 = vunpack.c.h.b16 %v1184
        %v4985 = vunpack.c.l.b16 %v1185
        %v4986 = vunpack.c.h.b16 %v1185
        %v4987 = vunpack.c.l.b16 %v1186
        %v4988 = vunpack.c.h.b16 %v1186
        %v4989 = vunpack.c.l.b16 %v1187
        %v4990 = vunpack.c.h.b16 %v1187
        %v4991 = vunpack.c.l.b16 %v1188
        %v4992 = vunpack.c.h.b16 %v1188
        %v4993 = vunpack.c.l.b16 %v1189
        %v4994 = vunpack.c.h.b16 %v1189
        %v4995 = vunpack.c.l.b16 %v1190
        %v4996 = vunpack.c.h.b16 %v1190
        %v4997 = vunpack.c.l.b16 %v1191
        %v4998 = vunpack.c.h.b16 %v1191
        %v4999 = vunpack.c.l.b16 %v1192
        %v5000 = vunpack.c.h.b16 %v1192
        %v5001 = vunpack.c.l.b16 %v1193
        %v5002 = vunpack.c.h.b16 %v1193
        %v5003 = vunpack.c.l.b16 %v1194
        %v5004 = vunpack.c.h.b16 %v1194
        %v5005 = vunpack.c.l.b16 %v1195
        %v5006 = vunpack.c.h.b16 %v1195
        %v5007 = vunpack.c.l.b16 %v1196
        %v5008 = vunpack.c.h.b16 %v1196
        %v5009 = vunpack.c.l.b16 %v1197
        %v5010 = vunpack.c.h.b16 %v1197
        %v5011 = vunpack.c.l.b16 %v1198
        %v5012 = vunpack.c.h.b16 %v1198
        %v5013 = vunpack.c.l.b16 %v1199
        %v5014 = vunpack.c.h.b16 %v1199
        %v5015 = vunpack.c.l.b16 %v1200
        %v5016 = vunpack.c.h.b16 %v1200
        %v5017 = vunpack.c.l.b16 %v1201
        %v5018 = vunpack.c.h.b16 %v1201
        %v5019 = vunpack.c.l.b16 %v1202
        %v5020 = vunpack.c.h.b16 %v1202
        %v5021 = vunpack.c.l.b16 %v1203
        %v5022 = vunpack.c.h.b16 %v1203
        %v5023 = vunpack.c.l.b16 %v1204
        %v5024 = vunpack.c.h.b16 %v1204
        %v5025 = vunpack.c.l.b16 %v1205
        %v5026 = vunpack.c.h.b16 %v1205
        %v5027 = vunpack.c.l.b16 %v1206
        %v5028 = vunpack.c.h.b16 %v1206
        %v5029 = vunpack.c.l.b16 %v1207
        %v5030 = vunpack.c.h.b16 %v1207
        %v5031 = vunpack.c.l.b16 %v1208
        %v5032 = vunpack.c.h.b16 %v1208
        %v5033 = vunpack.c.l.b16 %v1209
        %v5034 = vunpack.c.h.b16 %v1209
        %v5035 = vunpack.c.l.b16 %v1210
        %v5036 = vunpack.c.h.b16 %v1210
        %v5037 = vunpack.c.l.b16 %v1211
        %v5038 = vunpack.c.h.b16 %v1211
        %v5039 = vunpack.c.l.b16 %v1212
        %v5040 = vunpack.c.h.b16 %v1212
        %v5041 = vunpack.c.l.b16 %v1213
        %v5042 = vunpack.c.h.b16 %v1213
        %v5043 = vunpack.c.l.b16 %v1214
        %v5044 = vunpack.c.h.b16 %v1214
        %v5045 = vunpack.c.l.b16 %v1215
        %v5046 = vunpack.c.h.b16 %v1215
        %v5047 = vunpack.c.l.b16 %v1216
        %v5048 = vunpack.c.h.b16 %v1216
        %v5049 = vunpack.c.l.b16 %v1217
        %v5050 = vunpack.c.h.b16 %v1217
        %v5051 = vunpack.c.l.b16 %v1218
        %v5052 = vunpack.c.h.b16 %v1218
        %v5053 = vunpack.c.l.b16 %v1219
        %v5054 = vunpack.c.h.b16 %v1219
        %v5055 = vunpack.c.l.b16 %v1220
        %v5056 = vunpack.c.h.b16 %v1220
        %v5057 = vunpack.c.l.b16 %v1221
        %v5058 = vunpack.c.h.b16 %v1221
        %v5059 = vunpack.c.l.b16 %v1222
        %v5060 = vunpack.c.h.b16 %v1222
        %v5061 = vunpack.c.l.b16 %v1223
        %v5062 = vunpack.c.h.b16 %v1223
        %v5063 = vunpack.c.l.b16 %v1224
        %v5064 = vunpack.c.h.b16 %v1224
        %v5065 = vunpack.c.l.b16 %v1225
        %v5066 = vunpack.c.h.b16 %v1225
        %v5067 = vunpack.c.l.b16 %v1226
        %v5068 = vunpack.c.h.b16 %v1226
        %v5069 = vunpack.c.l.b16 %v1227
        %v5070 = vunpack.c.h.b16 %v1227
        %v5071 = vunpack.c.l.b16 %v1228
        %v5072 = vunpack.c.h.b16 %v1228
        %v5073 = vunpack.c.l.b16 %v1229
        %v5074 = vunpack.c.h.b16 %v1229
        %v5075 = vunpack.c.l.b16 %v1230
        %v5076 = vunpack.c.h.b16 %v1230
        %v5077 = vunpack.c.l.b16 %v1231
        %v5078 = vunpack.c.h.b16 %v1231
        %v5079 = vunpack.c.l.b16 %v1232
        %v5080 = vunpack.c.h.b16 %v1232
        %v5081 = vunpack.c.l.b16 %v1233
        %v5082 = vunpack.c.h.b16 %v1233
        %v5083 = vunpack.c.l.b16 %v1234
        %v5084 = vunpack.c.h.b16 %v1234
        %v5085 = vunpack.c.l.b16 %v1235
        %v5086 = vunpack.c.h.b16 %v1235
        %v5087 = vunpack.c.l.b16 %v1236
        %v5088 = vunpack.c.h.b16 %v1236
        %v5089 = vunpack.c.l.b16 %v1237
        %v5090 = vunpack.c.h.b16 %v1237
        %v5091 = vunpack.c.l.b16 %v1238
        %v5092 = vunpack.c.h.b16 %v1238
        %v5093 = vunpack.c.l.b16 %v1239
        %v5094 = vunpack.c.h.b16 %v1239
        %v5095 = vunpack.c.l.b16 %v1240
        %v5096 = vunpack.c.h.b16 %v1240
        %v5097 = vunpack.c.l.b16 %v1241
        %v5098 = vunpack.c.h.b16 %v1241
        %v5099 = vunpack.c.l.b16 %v1242
        %v5100 = vunpack.c.h.b16 %v1242
        %v5101 = vunpack.c.l.b16 %v1243
        %v5102 = vunpack.c.h.b16 %v1243
        %v5103 = vunpack.c.l.b16 %v1244
        %v5104 = vunpack.c.h.b16 %v1244
        %v5105 = vunpack.c.l.b16 %v1245
        %v5106 = vunpack.c.h.b16 %v1245
        %v5107 = vunpack.c.l.b16 %v1246
        %v5108 = vunpack.c.h.b16 %v1246
        %v5109 = vunpack.c.l.b16 %v1247
        %v5110 = vunpack.c.h.b16 %v1247
        %v5111 = vunpack.c.l.b16 %v1248
        %v5112 = vunpack.c.h.b16 %v1248
        %v5113 = vunpack.c.l.b16 %v1249
        %v5114 = vunpack.c.h.b16 %v1249
        %v5115 = vunpack.c.l.b16 %v1250
        %v5116 = vunpack.c.h.b16 %v1250
        %v5117 = vunpack.c.l.b16 %v1251
        %v5118 = vunpack.c.h.b16 %v1251
        %v5119 = vunpack.c.l.b16 %v1252
        %v5120 = vunpack.c.h.b16 %v1252
        %v5121 = vunpack.c.l.b16 %v1253
        %v5122 = vunpack.c.h.b16 %v1253
        %v5123 = vunpack.c.l.b16 %v1254
        %v5124 = vunpack.c.h.b16 %v1254
        %v5125 = vunpack.c.l.b16 %v1255
        %v5126 = vunpack.c.h.b16 %v1255
        %v5127 = vunpack.c.l.b16 %v1256
        %v5128 = vunpack.c.h.b16 %v1256
        %v5129 = vunpack.c.l.b16 %v1257
        %v5130 = vunpack.c.h.b16 %v1257
        %v5131 = vunpack.c.l.b16 %v1258
        %v5132 = vunpack.c.h.b16 %v1258
        %v5133 = vunpack.c.l.b16 %v1259
        %v5134 = vunpack.c.h.b16 %v1259
        %v5135 = vunpack.c.l.b16 %v1260
        %v5136 = vunpack.c.h.b16 %v1260
        %v5137 = vunpack.c.l.b16 %v1261
        %v5138 = vunpack.c.h.b16 %v1261
        %v5139 = vunpack.c.l.b16 %v1262
        %v5140 = vunpack.c.h.b16 %v1262
        %v5141 = vunpack.c.l.b16 %v1263
        %v5142 = vunpack.c.h.b16 %v1263
        %v5143 = vunpack.c.l.b16 %v1264
        %v5144 = vunpack.c.h.b16 %v1264
        %v5145 = vunpack.c.l.b16 %v1265
        %v5146 = vunpack.c.h.b16 %v1265
        %v5147 = vunpack.c.l.b16 %v1266
        %v5148 = vunpack.c.h.b16 %v1266
        %v5149 = vunpack.c.l.b16 %v1267
        %v5150 = vunpack.c.h.b16 %v1267
        %v5151 = vunpack.c.l.b16 %v1268
        %v5152 = vunpack.c.h.b16 %v1268
        %v5153 = vunpack.c.l.b16 %v1269
        %v5154 = vunpack.c.h.b16 %v1269
        %v5155 = vunpack.c.l.b16 %v1270
        %v5156 = vunpack.c.h.b16 %v1270
        %v5157 = vunpack.c.l.b16 %v1271
        %v5158 = vunpack.c.h.b16 %v1271
        %v5159 = vunpack.c.l.b16 %v1272
        %v5160 = vunpack.c.h.b16 %v1272
        %v5161 = vunpack.c.l.b16 %v1273
        %v5162 = vunpack.c.h.b16 %v1273
        %v5163 = vunpack.c.l.b16 %v1274
        %v5164 = vunpack.c.h.b16 %v1274
        %v5165 = vunpack.c.l.b16 %v1275
        %v5166 = vunpack.c.h.b16 %v1275
        %v5167 = vunpack.c.l.b16 %v1276
        %v5168 = vunpack.c.h.b16 %v1276
        %v5169 = vunpack.c.l.b16 %v1277
        %v5170 = vunpack.c.h.b16 %v1277
        %v5171 = vunpack.c.l.b16 %v1278
        %v5172 = vunpack.c.h.b16 %v1278
        %v5173 = vunpack.c.l.b16 %v1279
        %v5174 = vunpack.c.h.b16 %v1279
        %v5175 = vunpack.c.l.b16 %v1280
        %v5176 = vunpack.c.h.b16 %v1280
        %v5177 = vunpack.c.l.b16 %v1281
        %v5178 = vunpack.c.h.b16 %v1281
        %v5179 = vunpack.c.l.b16 %v1282
        %v5180 = vunpack.c.h.b16 %v1282
        %v5181 = vunpack.c.l.b16 %v1283
        %v5182 = vunpack.c.h.b16 %v1283
        %v5183 = vunpack.c.l.b16 %v1284
        %v5184 = vunpack.c.h.b16 %v1284
        %v5185 = vunpack.c.l.b16 %v1285
        %v5186 = vunpack.c.h.b16 %v1285
        %v5187 = vunpack.c.l.b16 %v1286
        %v5188 = vunpack.c.h.b16 %v1286
        %v5189 = vunpack.c.l.b16 %v1287
        %v5190 = vunpack.c.h.b16 %v1287
        %v5191 = vunpack.c.l.b16 %v1288
        %v5192 = vunpack.c.h.b16 %v1288
        %v5193 = vunpack.c.l.b16 %v1289
        %v5194 = vunpack.c.h.b16 %v1289
        %v5195 = vunpack.c.l.b16 %v1290
        %v5196 = vunpack.c.h.b16 %v1290
        %v5197 = vunpack.c.l.b16 %v1291
        %v5198 = vunpack.c.h.b16 %v1291
        %v5199 = vunpack.c.l.b16 %v1292
        %v5200 = vunpack.c.h.b16 %v1292
        %v5201 = vunpack.c.l.b16 %v1293
        %v5202 = vunpack.c.h.b16 %v1293
        %v5203 = vunpack.c.l.b16 %v1294
        %v5204 = vunpack.c.h.b16 %v1294
        %v5205 = vunpack.c.l.b16 %v1295
        %v5206 = vunpack.c.h.b16 %v1295
        %v5207 = vunpack.c.l.b16 %v1296
        %v5208 = vunpack.c.h.b16 %v1296
        %v5209 = vunpack.c.l.b16 %v1297
        %v5210 = vunpack.c.h.b16 %v1297
        %v5211 = vunpack.c.l.b16 %v1298
        %v5212 = vunpack.c.h.b16 %v1298
        %v5213 = vunpack.c.l.b16 %v1299
        %v5214 = vunpack.c.h.b16 %v1299
        %v5215 = vunpack.c.l.b16 %v1300
        %v5216 = vunpack.c.h.b16 %v1300
        %v5217 = vunpack.c.l.b16 %v1301
        %v5218 = vunpack.c.h.b16 %v1301
        %v5219 = vunpack.c.l.b16 %v1302
        %v5220 = vunpack.c.h.b16 %v1302
        %v5221 = vunpack.c.l.b16 %v1303
        %v5222 = vunpack.c.h.b16 %v1303
        %v5223 = vunpack.c.l.b16 %v1304
        %v5224 = vunpack.c.h.b16 %v1304
        %v5225 = vunpack.c.l.b16 %v1305
        %v5226 = vunpack.c.h.b16 %v1305
        %v5227 = vunpack.c.l.b16 %v1306
        %v5228 = vunpack.c.h.b16 %v1306
        %v5229 = vunpack.c.l.b16 %v1307
        %v5230 = vunpack.c.h.b16 %v1307
        %v5231 = vunpack.c.l.b16 %v1308
        %v5232 = vunpack.c.h.b16 %v1308
        %v5233 = vunpack.c.l.b16 %v1309
        %v5234 = vunpack.c.h.b16 %v1309
        %v5235 = vunpack.c.l.b16 %v1310
        %v5236 = vunpack.c.h.b16 %v1310
        %v5237 = vunpack.c.l.b16 %v1311
        %v5238 = vunpack.c.h.b16 %v1311
        %v5239 = vunpack.c.l.b16 %v1312
        %v5240 = vunpack.c.h.b16 %v1312
        %v5241 = vunpack.c.l.b16 %v1313
        %v5242 = vunpack.c.h.b16 %v1313
        %v5243 = vunpack.c.l.b16 %v1314
        %v5244 = vunpack.c.h.b16 %v1314
        %v5245 = vunpack.c.l.b16 %v1315
        %v5246 = vunpack.c.h.b16 %v1315
        %v5247 = vunpack.c.l.b16 %v1316
        %v5248 = vunpack.c.h.b16 %v1316
        %v5249 = vunpack.c.l.b16 %v1317
        %v5250 = vunpack.c.h.b16 %v1317
        %v5251 = vunpack.c.l.b16 %v1318
        %v5252 = vunpack.c.h.b16 %v1318
        %v5253 = vunpack.c.l.b16 %v1319
        %v5254 = vunpack.c.h.b16 %v1319
        %v5255 = vunpack.c.l.b16 %v1320
        %v5256 = vunpack.c.h.b16 %v1320
        %v5257 = vunpack.c.l.b16 %v1321
        %v5258 = vunpack.c.h.b16 %v1321
        %v5259 = vunpack.c.l.b16 %v1322
        %v5260 = vunpack.c.h.b16 %v1322
        %v5261 = vunpack.c.l.b16 %v1323
        %v5262 = vunpack.c.h.b16 %v1323
        %v5263 = vunpack.c.l.b16 %v1324
        %v5264 = vunpack.c.h.b16 %v1324
        %v5265 = vunpack.c.l.b16 %v1325
        %v5266 = vunpack.c.h.b16 %v1325
        %v5267 = vunpack.c.l.b16 %v1326
        %v5268 = vunpack.c.h.b16 %v1326
        %v5269 = vunpack.c.l.b16 %v1327
        %v5270 = vunpack.c.h.b16 %v1327
        %v5271 = vunpack.c.l.b16 %v1328
        %v5272 = vunpack.c.h.b16 %v1328
        %v5273 = vunpack.c.l.b16 %v1329
        %v5274 = vunpack.c.h.b16 %v1329
        %v5275 = vunpack.c.l.b16 %v1330
        %v5276 = vunpack.c.h.b16 %v1330
        %v5277 = vunpack.c.l.b16 %v1331
        %v5278 = vunpack.c.h.b16 %v1331
        %v5279 = vunpack.c.l.b16 %v1332
        %v5280 = vunpack.c.h.b16 %v1332
        %v5281 = vunpack.c.l.b16 %v1333
        %v5282 = vunpack.c.h.b16 %v1333
        %v5283 = vunpack.c.l.b16 %v1334
        %v5284 = vunpack.c.h.b16 %v1334
        %v5285 = vunpack.c.l.b16 %v1335
        %v5286 = vunpack.c.h.b16 %v1335
        %v5287 = vunpack.c.l.b16 %v1336
        %v5288 = vunpack.c.h.b16 %v1336
        %v5289 = vunpack.c.l.b16 %v1337
        %v5290 = vunpack.c.h.b16 %v1337
        %v5291 = vunpack.c.l.b16 %v1338
        %v5292 = vunpack.c.h.b16 %v1338
        %v5293 = vunpack.c.l.b16 %v1339
        %v5294 = vunpack.c.h.b16 %v1339
        %v5295 = vunpack.c.l.b16 %v1340
        %v5296 = vunpack.c.h.b16 %v1340
        %v5297 = vunpack.c.l.b16 %v1341
        %v5298 = vunpack.c.h.b16 %v1341
        %v5299 = vunpack.c.l.b16 %v1342
        %v5300 = vunpack.c.h.b16 %v1342
        %v5301 = vunpack.c.l.b16 %v1343
        %v5302 = vunpack.c.h.b16 %v1343
        %v5303 = vunpack.c.l.b16 %v1344
        %v5304 = vunpack.c.h.b16 %v1344
        %v5305 = vunpack.c.l.b16 %v1345
        %v5306 = vunpack.c.h.b16 %v1345
        %v5307 = vunpack.c.l.b16 %v1346
        %v5308 = vunpack.c.h.b16 %v1346
        %v5309 = vunpack.c.l.b16 %v1347
        %v5310 = vunpack.c.h.b16 %v1347
        %v5311 = vunpack.c.l.b16 %v1348
        %v5312 = vunpack.c.h.b16 %v1348
        %v5313 = vunpack.c.l.b16 %v1349
        %v5314 = vunpack.c.h.b16 %v1349
        %v5315 = vunpack.c.l.b16 %v1350
        %v5316 = vunpack.c.h.b16 %v1350
        %v5317 = vunpack.c.l.b16 %v1351
        %v5318 = vunpack.c.h.b16 %v1351
        %v5319 = vunpack.c.l.b16 %v1352
        %v5320 = vunpack.c.h.b16 %v1352
        %v5321 = vunpack.c.l.b16 %v1353
        %v5322 = vunpack.c.h.b16 %v1353
        %v5323 = vunpack.c.l.b16 %v1354
        %v5324 = vunpack.c.h.b16 %v1354
        %v5325 = vunpack.c.l.b16 %v1355
        %v5326 = vunpack.c.h.b16 %v1355
        %v5327 = vunpack.c.l.b16 %v1356
        %v5328 = vunpack.c.h.b16 %v1356
        %v5329 = vunpack.c.l.b16 %v1357
        %v5330 = vunpack.c.h.b16 %v1357
        %v5331 = vunpack.c.l.b16 %v1358
        %v5332 = vunpack.c.h.b16 %v1358
        %v5333 = vunpack.c.l.b16 %v1359
        %v5334 = vunpack.c.h.b16 %v1359
        %v5335 = vunpack.c.l.b16 %v1360
        %v5336 = vunpack.c.h.b16 %v1360
        %v5337 = vunpack.c.l.b16 %v1361
        %v5338 = vunpack.c.h.b16 %v1361
        %v5339 = vunpack.c.l.b16 %v1362
        %v5340 = vunpack.c.h.b16 %v1362
        %v5341 = vunpack.c.l.b16 %v1363
        %v5342 = vunpack.c.h.b16 %v1363
        %v5343 = vunpack.c.l.b16 %v1364
        %v5344 = vunpack.c.h.b16 %v1364
        %v5345 = vunpack.c.l.b16 %v1365
        %v5346 = vunpack.c.h.b16 %v1365
        %v5347 = vunpack.c.l.b16 %v1366
        %v5348 = vunpack.c.h.b16 %v1366
        %v5349 = vunpack.c.l.b16 %v1367
        %v5350 = vunpack.c.h.b16 %v1367
        %v5351 = vunpack.c.l.b16 %v1368
        %v5352 = vunpack.c.h.b16 %v1368
        %v5353 = vunpack.c.l.b16 %v1369
        %v5354 = vunpack.c.h.b16 %v1369
        %v5355 = vunpack.c.l.b16 %v1370
        %v5356 = vunpack.c.h.b16 %v1370
        %v5357 = vunpack.c.l.b16 %v1371
        %v5358 = vunpack.c.h.b16 %v1371
        %v5359 = vunpack.c.l.b16 %v1372
        %v5360 = vunpack.c.h.b16 %v1372
        %v5361 = vunpack.c.l.b16 %v1373
        %v5362 = vunpack.c.h.b16 %v1373
        %v5363 = vunpack.c.l.b16 %v1374
        %v5364 = vunpack.c.h.b16 %v1374
        %v5365 = vunpack.c.l.b16 %v1375
        %v5366 = vunpack.c.h.b16 %v1375
        %v5367 = vunpack.c.l.b16 %v1376
        %v5368 = vunpack.c.h.b16 %v1376
        %v5369 = vunpack.c.l.b16 %v1377
        %v5370 = vunpack.c.h.b16 %v1377
        %v5371 = vunpack.c.l.b16 %v1378
        %v5372 = vunpack.c.h.b16 %v1378
        %v5373 = vunpack.c.l.b16 %v1379
        %v5374 = vunpack.c.h.b16 %v1379
        %v5375 = vunpack.c.l.b16 %v1380
        %v5376 = vunpack.c.h.b16 %v1380
        %v5377 = vunpack.c.l.b16 %v1381
        %v5378 = vunpack.c.h.b16 %v1381
        %v5379 = vunpack.c.l.b16 %v1382
        %v5380 = vunpack.c.h.b16 %v1382
        %v5381 = vunpack.c.l.b16 %v1383
        %v5382 = vunpack.c.h.b16 %v1383
        %v5383 = vunpack.c.l.b16 %v1384
        %v5384 = vunpack.c.h.b16 %v1384
        %v5385 = vunpack.c.l.b16 %v1385
        %v5386 = vunpack.c.h.b16 %v1385
        %v5387 = vunpack.c.l.b16 %v1386
        %v5388 = vunpack.c.h.b16 %v1386
        %v5389 = vunpack.c.l.b16 %v1387
        %v5390 = vunpack.c.h.b16 %v1387
        %v5391 = vunpack.c.l.b16 %v1388
        %v5392 = vunpack.c.h.b16 %v1388
        %v5393 = vunpack.c.l.b16 %v1389
        %v5394 = vunpack.c.h.b16 %v1389
        %v5395 = vunpack.c.l.b16 %v1390
        %v5396 = vunpack.c.h.b16 %v1390
        %v5397 = vunpack.c.l.b16 %v1391
        %v5398 = vunpack.c.h.b16 %v1391
        %v5399 = vunpack.c.l.b16 %v1392
        %v5400 = vunpack.c.h.b16 %v1392
        %v5401 = vunpack.c.l.b16 %v1393
        %v5402 = vunpack.c.h.b16 %v1393
        %v5403 = vunpack.c.l.b16 %v1394
        %v5404 = vunpack.c.h.b16 %v1394
        %v5405 = vunpack.c.l.b16 %v1395
        %v5406 = vunpack.c.h.b16 %v1395
        %v5407 = vunpack.c.l.b16 %v1396
        %v5408 = vunpack.c.h.b16 %v1396
        %v5409 = vunpack.c.l.b16 %v1397
        %v5410 = vunpack.c.h.b16 %v1397
        %v5411 = vunpack.c.l.b16 %v1398
        %v5412 = vunpack.c.h.b16 %v1398
        %v5413 = vunpack.c.l.b16 %v1399
        %v5414 = vunpack.c.h.b16 %v1399
        %v5415 = vunpack.c.l.b16 %v1400
        %v5416 = vunpack.c.h.b16 %v1400
        %v5417 = vunpack.c.l.b16 %v1401
        %v5418 = vunpack.c.h.b16 %v1401
        %v5419 = vunpack.c.l.b16 %v1402
        %v5420 = vunpack.c.h.b16 %v1402
        %v5421 = vunpack.c.l.b16 %v1403
        %v5422 = vunpack.c.h.b16 %v1403
        %v5423 = vunpack.c.l.b16 %v1404
        %v5424 = vunpack.c.h.b16 %v1404
        %v5425 = vunpack.c.l.b16 %v1405
        %v5426 = vunpack.c.h.b16 %v1405
        %v5427 = vunpack.c.l.b16 %v1406
        %v5428 = vunpack.c.h.b16 %v1406
        %v5429 = vunpack.c.l.b16 %v1407
        %v5430 = vunpack.c.h.b16 %v1407
        %v5431 = vunpack.c.l.b16 %v1408
        %v5432 = vunpack.c.h.b16 %v1408
        %v5433 = vunpack.c.l.b16 %v1409
        %v5434 = vunpack.c.h.b16 %v1409
        %v5435 = vunpack.c.l.b16 %v1410
        %v5436 = vunpack.c.h.b16 %v1410
        %v5437 = vunpack.c.l.b16 %v1411
        %v5438 = vunpack.c.h.b16 %v1411
        %v5439 = vunpack.c.l.b16 %v1412
        %v5440 = vunpack.c.h.b16 %v1412
        %v5441 = vunpack.c.l.b16 %v1413
        %v5442 = vunpack.c.h.b16 %v1413
        %v5443 = vunpack.c.l.b16 %v1414
        %v5444 = vunpack.c.h.b16 %v1414
        %v5445 = vunpack.c.l.b16 %v1415
        %v5446 = vunpack.c.h.b16 %v1415
        %v5447 = vunpack.c.l.b16 %v1416
        %v5448 = vunpack.c.h.b16 %v1416
        %v5449 = vunpack.c.l.b16 %v1417
        %v5450 = vunpack.c.h.b16 %v1417
        %v5451 = vunpack.c.l.b16 %v1418
        %v5452 = vunpack.c.h.b16 %v1418
        %v5453 = vunpack.c.l.b16 %v1419
        %v5454 = vunpack.c.h.b16 %v1419
        %v5455 = vunpack.c.l.b16 %v1420
        %v5456 = vunpack.c.h.b16 %v1420
        %v5457 = vunpack.c.l.b16 %v1421
        %v5458 = vunpack.c.h.b16 %v1421
        %v5459 = vunpack.c.l.b16 %v1422
        %v5460 = vunpack.c.h.b16 %v1422
        %v5461 = vunpack.c.l.b16 %v1423
        %v5462 = vunpack.c.h.b16 %v1423
        %v5463 = vunpack.c.l.b16 %v1424
        %v5464 = vunpack.c.h.b16 %v1424
        %v5465 = vunpack.c.l.b16 %v1425
        %v5466 = vunpack.c.h.b16 %v1425
        %v5467 = vunpack.c.l.b16 %v1426
        %v5468 = vunpack.c.h.b16 %v1426
        %v5469 = vunpack.c.l.b16 %v1427
        %v5470 = vunpack.c.h.b16 %v1427
        %v5471 = vunpack.c.l.b16 %v1428
        %v5472 = vunpack.c.h.b16 %v1428
        %v5473 = vunpack.c.l.b16 %v1429
        %v5474 = vunpack.c.h.b16 %v1429
        %v5475 = vunpack.c.l.b16 %v1430
        %v5476 = vunpack.c.h.b16 %v1430
        %v5477 = vunpack.c.l.b16 %v1431
        %v5478 = vunpack.c.h.b16 %v1431
        %v5479 = vunpack.c.l.b16 %v1432
        %v5480 = vunpack.c.h.b16 %v1432
        %v5481 = vunpack.c.l.b16 %v1433
        %v5482 = vunpack.c.h.b16 %v1433
        %v5483 = vunpack.c.l.b16 %v1434
        %v5484 = vunpack.c.h.b16 %v1434
        %v5485 = vunpack.c.l.b16 %v1435
        %v5486 = vunpack.c.h.b16 %v1435
        %v5487 = vunpack.c.l.b16 %v1436
        %v5488 = vunpack.c.h.b16 %v1436
        %v5489 = vunpack.c.l.b16 %v1437
        %v5490 = vunpack.c.h.b16 %v1437
        %v5491 = vunpack.c.l.b16 %v1438
        %v5492 = vunpack.c.h.b16 %v1438
        %v5493 = vunpack.c.l.b16 %v1439
        %v5494 = vunpack.c.h.b16 %v1439
        %v5495 = vunpack.c.l.b16 %v1440
        %v5496 = vunpack.c.h.b16 %v1440
        %v5497 = vunpack.c.l.b16 %v1441
        %v5498 = vunpack.c.h.b16 %v1441
        %v5499 = vunpack.c.l.b16 %v1442
        %v5500 = vunpack.c.h.b16 %v1442
        %v5501 = vunpack.c.l.b16 %v1443
        %v5502 = vunpack.c.h.b16 %v1443
        %v5503 = vunpack.c.l.b16 %v1444
        %v5504 = vunpack.c.h.b16 %v1444
        %v5505 = vunpack.c.l.b16 %v1445
        %v5506 = vunpack.c.h.b16 %v1445
        %v5507 = vunpack.c.l.b16 %v1446
        %v5508 = vunpack.c.h.b16 %v1446
        %v5509 = vunpack.c.l.b16 %v1447
        %v5510 = vunpack.c.h.b16 %v1447
        %v5511 = vunpack.c.l.b16 %v1448
        %v5512 = vunpack.c.h.b16 %v1448
        %v5513 = vunpack.c.l.b16 %v1449
        %v5514 = vunpack.c.h.b16 %v1449
        %v5515 = vunpack.c.l.b16 %v1450
        %v5516 = vunpack.c.h.b16 %v1450
        %v5517 = vunpack.c.l.b16 %v1451
        %v5518 = vunpack.c.h.b16 %v1451
        %v5519 = vunpack.c.l.b16 %v1452
        %v5520 = vunpack.c.h.b16 %v1452
        %v5521 = vunpack.c.l.b16 %v1453
        %v5522 = vunpack.c.h.b16 %v1453
        %v5523 = vunpack.c.l.b16 %v1454
        %v5524 = vunpack.c.h.b16 %v1454
        %v5525 = vunpack.c.l.b16 %v1455
        %v5526 = vunpack.c.h.b16 %v1455
        %v5527 = vunpack.c.l.b16 %v1456
        %v5528 = vunpack.c.h.b16 %v1456
        %v5529 = vunpack.c.l.b16 %v1457
        %v5530 = vunpack.c.h.b16 %v1457
        %v5531 = vunpack.c.l.b16 %v1458
        %v5532 = vunpack.c.h.b16 %v1458
        %v5533 = vunpack.c.l.b16 %v1459
        %v5534 = vunpack.c.h.b16 %v1459
        %v5535 = vunpack.c.l.b16 %v1460
        %v5536 = vunpack.c.h.b16 %v1460
        %v5537 = vunpack.c.l.b16 %v1461
        %v5538 = vunpack.c.h.b16 %v1461
        %v5539 = vunpack.c.l.b16 %v1462
        %v5540 = vunpack.c.h.b16 %v1462
        %v5541 = vunpack.c.l.b16 %v1463
        %v5542 = vunpack.c.h.b16 %v1463
        %v5543 = vunpack.c.l.b16 %v1464
        %v5544 = vunpack.c.h.b16 %v1464
        %v5545 = vunpack.c.l.b16 %v1465
        %v5546 = vunpack.c.h.b16 %v1465
        %v5547 = vunpack.c.l.b16 %v1466
        %v5548 = vunpack.c.h.b16 %v1466
        %v5549 = vunpack.c.l.b16 %v1467
        %v5550 = vunpack.c.h.b16 %v1467
        %v5551 = vunpack.c.l.b16 %v1468
        %v5552 = vunpack.c.h.b16 %v1468
        %v5553 = vunpack.c.l.b16 %v1469
        %v5554 = vunpack.c.h.b16 %v1469
        %v5555 = vunpack.c.l.b16 %v1470
        %v5556 = vunpack.c.h.b16 %v1470
        %v5557 = vunpack.c.l.b16 %v1471
        %v5558 = vunpack.c.h.b16 %v1471
        %v5559 = vunpack.c.l.b16 %v1472
        %v5560 = vunpack.c.h.b16 %v1472
        %v5561 = vunpack.c.l.b16 %v1473
        %v5562 = vunpack.c.h.b16 %v1473
        %v5563 = vunpack.c.l.b16 %v1474
        %v5564 = vunpack.c.h.b16 %v1474
        %v5565 = vunpack.c.l.b16 %v1475
        %v5566 = vunpack.c.h.b16 %v1475
        %v5567 = vunpack.c.l.b16 %v1476
        %v5568 = vunpack.c.h.b16 %v1476
        %v5569 = vunpack.c.l.b16 %v1477
        %v5570 = vunpack.c.h.b16 %v1477
        %v5571 = vunpack.c.l.b16 %v1478
        %v5572 = vunpack.c.h.b16 %v1478
        %v5573 = vunpack.c.l.b16 %v1479
        %v5574 = vunpack.c.h.b16 %v1479
        %v5575 = vunpack.c.l.b16 %v1480
        %v5576 = vunpack.c.h.b16 %v1480
        %v5577 = vunpack.c.l.b16 %v1481
        %v5578 = vunpack.c.h.b16 %v1481
        %v5579 = vunpack.c.l.b16 %v1482
        %v5580 = vunpack.c.h.b16 %v1482
        %v5581 = vunpack.c.l.b16 %v1483
        %v5582 = vunpack.c.h.b16 %v1483
        %v5583 = vunpack.c.l.b16 %v1484
        %v5584 = vunpack.c.h.b16 %v1484
        %v5585 = vunpack.c.l.b16 %v1485
        %v5586 = vunpack.c.h.b16 %v1485
        %v5587 = vunpack.c.l.b16 %v1486
        %v5588 = vunpack.c.h.b16 %v1486
        %v5589 = vunpack.c.l.b16 %v1487
        %v5590 = vunpack.c.h.b16 %v1487
        %v5591 = vunpack.c.l.b16 %v1488
        %v5592 = vunpack.c.h.b16 %v1488
        %v5593 = vunpack.c.l.b16 %v1489
        %v5594 = vunpack.c.h.b16 %v1489
        %v5595 = vunpack.c.l.b16 %v1490
        %v5596 = vunpack.c.h.b16 %v1490
        %v5597 = vunpack.c.l.b16 %v1491
        %v5598 = vunpack.c.h.b16 %v1491
        %v5599 = vunpack.c.l.b16 %v1492
        %v5600 = vunpack.c.h.b16 %v1492
        %v5601 = vunpack.c.l.b16 %v1493
        %v5602 = vunpack.c.h.b16 %v1493
        %v5603 = vunpack.c.l.b16 %v1494
        %v5604 = vunpack.c.h.b16 %v1494
        %v5605 = vunpack.c.l.b16 %v1495
        %v5606 = vunpack.c.h.b16 %v1495
        %v5607 = vunpack.c.l.b16 %v1496
        %v5608 = vunpack.c.h.b16 %v1496
        %v5609 = vunpack.c.l.b16 %v1497
        %v5610 = vunpack.c.h.b16 %v1497
        %v5611 = vunpack.c.l.b16 %v1498
        %v5612 = vunpack.c.h.b16 %v1498
        %v5613 = vunpack.c.l.b16 %v1499
        %v5614 = vunpack.c.h.b16 %v1499
        %v5615 = vunpack.c.l.b16 %v1500
        %v5616 = vunpack.c.h.b16 %v1500
        %v5617 = vunpack.c.l.b16 %v1501
        %v5618 = vunpack.c.h.b16 %v1501
        %v5619 = vunpack.c.l.b16 %v1502
        %v5620 = vunpack.c.h.b16 %v1502
        %v5621 = vunpack.c.l.b16 %v1503
        %v5622 = vunpack.c.h.b16 %v1503
        %v5623 = vunpack.c.l.b16 %v1504
        %v5624 = vunpack.c.h.b16 %v1504
        %v5625 = vunpack.c.l.b16 %v1505
        %v5626 = vunpack.c.h.b16 %v1505
        %v5627 = vunpack.c.l.b16 %v1506
        %v5628 = vunpack.c.h.b16 %v1506
        %v5629 = vunpack.c.l.b16 %v1507
        %v5630 = vunpack.c.h.b16 %v1507
        %v5631 = vunpack.c.l.b16 %v1508
        %v5632 = vunpack.c.h.b16 %v1508
        %v5633 = vunpack.c.l.b16 %v1509
        %v5634 = vunpack.c.h.b16 %v1509
        %v5635 = vunpack.c.l.b16 %v1510
        %v5636 = vunpack.c.h.b16 %v1510
        %v5637 = vunpack.c.l.b16 %v1511
        %v5638 = vunpack.c.h.b16 %v1511
        %v5639 = vunpack.c.l.b16 %v1512
        %v5640 = vunpack.c.h.b16 %v1512
        %v5641 = vunpack.c.l.b16 %v1513
        %v5642 = vunpack.c.h.b16 %v1513
        %v5643 = vunpack.c.l.b16 %v1514
        %v5644 = vunpack.c.h.b16 %v1514
        %v5645 = vunpack.c.l.b16 %v1515
        %v5646 = vunpack.c.h.b16 %v1515
        %v5647 = vunpack.c.l.b16 %v1516
        %v5648 = vunpack.c.h.b16 %v1516
        %v5649 = vunpack.c.l.b16 %v1517
        %v5650 = vunpack.c.h.b16 %v1517
        %v5651 = vunpack.c.l.b16 %v1518
        %v5652 = vunpack.c.h.b16 %v1518
        %v5653 = vunpack.c.l.b16 %v1519
        %v5654 = vunpack.c.h.b16 %v1519
        %v5655 = vunpack.c.l.b16 %v1520
        %v5656 = vunpack.c.h.b16 %v1520
        %v5657 = vunpack.c.l.b16 %v1521
        %v5658 = vunpack.c.h.b16 %v1521
        %v5659 = vunpack.c.l.b16 %v1522
        %v5660 = vunpack.c.h.b16 %v1522
        %v5661 = vunpack.c.l.b16 %v1523
        %v5662 = vunpack.c.h.b16 %v1523
        %v5663 = vunpack.c.l.b16 %v1524
        %v5664 = vunpack.c.h.b16 %v1524
        %v5665 = vunpack.c.l.b16 %v1525
        %v5666 = vunpack.c.h.b16 %v1525
        %v5667 = vunpack.c.l.b16 %v1526
        %v5668 = vunpack.c.h.b16 %v1526
        %v5669 = vunpack.c.l.b16 %v1527
        %v5670 = vunpack.c.h.b16 %v1527
        %v5671 = vunpack.c.l.b16 %v1528
        %v5672 = vunpack.c.h.b16 %v1528
        %v5673 = vunpack.c.l.b16 %v1529
        %v5674 = vunpack.c.h.b16 %v1529
        %v5675 = vunpack.c.l.b16 %v1530
        %v5676 = vunpack.c.h.b16 %v1530
        %v5677 = vunpack.c.l.b16 %v1531
        %v5678 = vunpack.c.h.b16 %v1531
        %v5679 = vunpack.c.l.b16 %v1532
        %v5680 = vunpack.c.h.b16 %v1532
        %v5681 = vunpack.c.l.b16 %v1533
        %v5682 = vunpack.c.h.b16 %v1533
        %v5683 = vunpack.c.l.b16 %v1534
        %v5684 = vunpack.c.h.b16 %v1534
        %v5685 = vunpack.c.l.b16 %v1535
        %v5686 = vunpack.c.h.b16 %v1535
        %v5687 = vunpack.c.l.b16 %v1536
        %v5688 = vunpack.c.h.b16 %v1536
        %v5689 = vunpack.c.l.b16 %v1537
        %v5690 = vunpack.c.h.b16 %v1537
        %v5691 = vunpack.c.l.b16 %v1538
        %v5692 = vunpack.c.h.b16 %v1538
        %v5693 = vunpack.c.l.b16 %v1539
        %v5694 = vunpack.c.h.b16 %v1539
        %v5695 = vunpack.c.l.b16 %v1540
        %v5696 = vunpack.c.h.b16 %v1540
        %v5697 = vunpack.c.l.b16 %v1541
        %v5698 = vunpack.c.h.b16 %v1541
        %v5699 = vunpack.c.l.b16 %v1542
        %v5700 = vunpack.c.h.b16 %v1542
        %v5701 = vunpack.c.l.b16 %v1543
        %v5702 = vunpack.c.h.b16 %v1543
        %v5703 = vunpack.c.l.b16 %v1544
        %v5704 = vunpack.c.h.b16 %v1544
        %v5705 = vunpack.c.l.b16 %v1545
        %v5706 = vunpack.c.h.b16 %v1545
        %v5707 = vunpack.c.l.b16 %v1546
        %v5708 = vunpack.c.h.b16 %v1546
        %v5709 = vunpack.c.l.b16 %v1547
        %v5710 = vunpack.c.h.b16 %v1547
        %v5711 = vunpack.c.l.b16 %v1548
        %v5712 = vunpack.c.h.b16 %v1548
        %v5713 = vunpack.c.l.b16 %v1549
        %v5714 = vunpack.c.h.b16 %v1549
        %v5715 = vunpack.c.l.b16 %v1550
        %v5716 = vunpack.c.h.b16 %v1550
        %v5717 = vunpack.c.l.b16 %v1551
        %v5718 = vunpack.c.h.b16 %v1551
        %v5719 = vunpack.c.l.b16 %v1552
        %v5720 = vunpack.c.h.b16 %v1552
        %v5721 = vunpack.c.l.b16 %v1553
        %v5722 = vunpack.c.h.b16 %v1553
        %v5723 = vunpack.c.l.b16 %v1554
        %v5724 = vunpack.c.h.b16 %v1554
        %v5725 = vunpack.c.l.b16 %v1555
        %v5726 = vunpack.c.h.b16 %v1555
        %v5727 = vunpack.c.l.b16 %v1556
        %v5728 = vunpack.c.h.b16 %v1556
        %v5729 = vunpack.c.l.b16 %v1557
        %v5730 = vunpack.c.h.b16 %v1557
        %v5731 = vunpack.c.l.b16 %v1558
        %v5732 = vunpack.c.h.b16 %v1558
        %v5733 = vunpack.c.l.b16 %v1559
        %v5734 = vunpack.c.h.b16 %v1559
        %v5735 = vunpack.c.l.b16 %v1560
        %v5736 = vunpack.c.h.b16 %v1560
        %v5737 = vunpack.c.l.b16 %v1561
        %v5738 = vunpack.c.h.b16 %v1561
        %v5739 = vunpack.c.l.b16 %v1562
        %v5740 = vunpack.c.h.b16 %v1562
        %v5741 = vunpack.c.l.b16 %v1563
        %v5742 = vunpack.c.h.b16 %v1563
        %v5743 = vunpack.c.l.b16 %v1564
        %v5744 = vunpack.c.h.b16 %v1564
        %v5745 = vunpack.c.l.b16 %v1565
        %v5746 = vunpack.c.h.b16 %v1565
        %v5747 = vunpack.c.l.b16 %v1566
        %v5748 = vunpack.c.h.b16 %v1566
        %v5749 = vunpack.c.l.b16 %v1567
        %v5750 = vunpack.c.h.b16 %v1567
        %v5751 = vunpack.c.l.b16 %v1568
        %v5752 = vunpack.c.h.b16 %v1568
        %v5753 = vunpack.c.l.b16 %v1569
        %v5754 = vunpack.c.h.b16 %v1569
        %v5755 = vunpack.c.l.b16 %v1570
        %v5756 = vunpack.c.h.b16 %v1570
        %v5757 = vunpack.c.l.b16 %v1571
        %v5758 = vunpack.c.h.b16 %v1571
        %v5759 = vunpack.c.l.b16 %v1572
        %v5760 = vunpack.c.h.b16 %v1572
        %v5761 = vunpack.c.l.b16 %v1573
        %v5762 = vunpack.c.h.b16 %v1573
        %v5763 = vunpack.c.l.b16 %v1574
        %v5764 = vunpack.c.h.b16 %v1574
        %v5765 = vunpack.c.l.b16 %v1575
        %v5766 = vunpack.c.h.b16 %v1575
        %v5767 = vunpack.c.l.b16 %v1576
        %v5768 = vunpack.c.h.b16 %v1576
        %v5769 = vunpack.c.l.b16 %v1577
        %v5770 = vunpack.c.h.b16 %v1577
        %v5771 = vunpack.c.l.b16 %v1578
        %v5772 = vunpack.c.h.b16 %v1578
        %v5773 = vunpack.c.l.b16 %v1579
        %v5774 = vunpack.c.h.b16 %v1579
        %v5775 = vunpack.c.l.b16 %v1580
        %v5776 = vunpack.c.h.b16 %v1580
        %v5777 = vunpack.c.l.b16 %v1581
        %v5778 = vunpack.c.h.b16 %v1581
        %v5779 = vunpack.c.l.b16 %v1582
        %v5780 = vunpack.c.h.b16 %v1582
        %v5781 = vunpack.c.l.b16 %v1583
        %v5782 = vunpack.c.h.b16 %v1583
        %v5783 = vunpack.c.l.b16 %v1584
        %v5784 = vunpack.c.h.b16 %v1584
        %v5785 = vunpack.c.l.b16 %v1585
        %v5786 = vunpack.c.h.b16 %v1585
        %v5787 = vunpack.c.l.b16 %v1586
        %v5788 = vunpack.c.h.b16 %v1586
        %v5789 = vunpack.c.l.b16 %v1587
        %v5790 = vunpack.c.h.b16 %v1587
        %v5791 = vunpack.c.l.b16 %v1588
        %v5792 = vunpack.c.h.b16 %v1588
        %v5793 = vunpack.c.l.b16 %v1589
        %v5794 = vunpack.c.h.b16 %v1589
        %v5795 = vunpack.c.l.b16 %v1590
        %v5796 = vunpack.c.h.b16 %v1590
        %v5797 = vunpack.c.l.b16 %v1591
        %v5798 = vunpack.c.h.b16 %v1591
        %v5799 = vunpack.c.l.b16 %v1592
        %v5800 = vunpack.c.h.b16 %v1592
        %v5801 = vunpack.c.l.b16 %v1593
        %v5802 = vunpack.c.h.b16 %v1593
        %v5803 = vunpack.c.l.b16 %v1594
        %v5804 = vunpack.c.h.b16 %v1594
        %v5805 = vunpack.c.l.b16 %v1595
        %v5806 = vunpack.c.h.b16 %v1595
        %v5807 = vunpack.c.l.b16 %v1596
        %v5808 = vunpack.c.h.b16 %v1596
        %v5809 = vunpack.c.l.b16 %v1597
        %v5810 = vunpack.c.h.b16 %v1597
        %v5811 = vunpack.c.l.b16 %v1598
        %v5812 = vunpack.c.h.b16 %v1598
        %v5813 = vunpack.c.l.b16 %v1599
        %v5814 = vunpack.c.h.b16 %v1599
        %v5815 = vunpack.c.l.b16 %v1600
        %v5816 = vunpack.c.h.b16 %v1600
        %v5817 = vunpack.c.l.b16 %v1601
        %v5818 = vunpack.c.h.b16 %v1601
        %v5819 = vunpack.c.l.b16 %v1602
        %v5820 = vunpack.c.h.b16 %v1602
        %v5821 = vunpack.c.l.b16 %v1603
        %v5822 = vunpack.c.h.b16 %v1603
        %v5823 = vunpack.c.l.b16 %v1604
        %v5824 = vunpack.c.h.b16 %v1604
        %v5825 = vunpack.c.l.b16 %v1605
        %v5826 = vunpack.c.h.b16 %v1605
        %v5827 = vunpack.c.l.b16 %v1606
        %v5828 = vunpack.c.h.b16 %v1606
        %v5829 = vunpack.c.l.b16 %v1607
        %v5830 = vunpack.c.h.b16 %v1607
        %v5831 = vunpack.c.l.b16 %v1608
        %v5832 = vunpack.c.h.b16 %v1608
        %v5833 = vunpack.c.l.b16 %v1609
        %v5834 = vunpack.c.h.b16 %v1609
        %v5835 = vunpack.c.l.b16 %v1610
        %v5836 = vunpack.c.h.b16 %v1610
        %v5837 = vunpack.c.l.b16 %v1611
        %v5838 = vunpack.c.h.b16 %v1611
        %v5839 = vunpack.c.l.b16 %v1612
        %v5840 = vunpack.c.h.b16 %v1612
        %v5841 = vunpack.c.l.b16 %v1613
        %v5842 = vunpack.c.h.b16 %v1613
        %v5843 = vunpack.c.l.b16 %v1614
        %v5844 = vunpack.c.h.b16 %v1614
        %v5845 = vunpack.c.l.b16 %v1615
        %v5846 = vunpack.c.h.b16 %v1615
        %v5847 = vunpack.c.l.b16 %v1616
        %v5848 = vunpack.c.h.b16 %v1616
        %v5849 = vunpack.c.l.b16 %v1617
        %v5850 = vunpack.c.h.b16 %v1617
        %v5851 = vunpack.c.l.b16 %v1618
        %v5852 = vunpack.c.h.b16 %v1618
        %v5853 = vunpack.c.l.b16 %v1619
        %v5854 = vunpack.c.h.b16 %v1619
        %v5855 = vunpack.c.l.b16 %v1620
        %v5856 = vunpack.c.h.b16 %v1620
        %v5857 = vunpack.c.l.b16 %v1621
        %v5858 = vunpack.c.h.b16 %v1621
        %v5859 = vunpack.c.l.b16 %v1622
        %v5860 = vunpack.c.h.b16 %v1622
        %v5861 = vunpack.c.l.b16 %v1623
        %v5862 = vunpack.c.h.b16 %v1623
        %v5863 = vunpack.c.l.b16 %v1624
        %v5864 = vunpack.c.h.b16 %v1624
        %v5865 = vunpack.c.l.b16 %v1625
        %v5866 = vunpack.c.h.b16 %v1625
        %v5867 = vunpack.c.l.b16 %v1626
        %v5868 = vunpack.c.h.b16 %v1626
        %v5869 = vunpack.c.l.b16 %v1627
        %v5870 = vunpack.c.h.b16 %v1627
        %v5871 = vunpack.c.l.b16 %v1628
        %v5872 = vunpack.c.h.b16 %v1628
        %v5873 = vunpack.c.l.b16 %v1629
        %v5874 = vunpack.c.h.b16 %v1629
        %v5875 = vunpack.c.l.b16 %v1630
        %v5876 = vunpack.c.h.b16 %v1630
        %v5877 = vunpack.c.l.b16 %v1631
        %v5878 = vunpack.c.h.b16 %v1631
        %v5879 = vunpack.c.l.b16 %v1632
        %v5880 = vunpack.c.h.b16 %v1632
        %v5881 = vunpack.c.l.b16 %v1633
        %v5882 = vunpack.c.h.b16 %v1633
        %v5883 = vunpack.c.l.b16 %v1634
        %v5884 = vunpack.c.h.b16 %v1634
        %v5885 = vunpack.c.l.b16 %v1635
        %v5886 = vunpack.c.h.b16 %v1635
        %v5887 = vunpack.c.l.b16 %v1636
        %v5888 = vunpack.c.h.b16 %v1636
        %v5889 = vunpack.c.l.b16 %v1637
        %v5890 = vunpack.c.h.b16 %v1637
        %v5891 = vunpack.c.l.b16 %v1638
        %v5892 = vunpack.c.h.b16 %v1638
        %v5893 = vunpack.c.l.b16 %v1639
        %v5894 = vunpack.c.h.b16 %v1639
        %v5895 = vunpack.c.l.b16 %v1640
        %v5896 = vunpack.c.h.b16 %v1640
        %v5897 = vunpack.c.l.b16 %v1641
        %v5898 = vunpack.c.h.b16 %v1641
        %v5899 = vunpack.c.l.b16 %v1642
        %v5900 = vunpack.c.h.b16 %v1642
        %v5901 = vunpack.c.l.b16 %v1643
        %v5902 = vunpack.c.h.b16 %v1643
        %v5903 = vunpack.c.l.b16 %v1644
        %v5904 = vunpack.c.h.b16 %v1644
        %v5905 = vunpack.c.l.b16 %v1645
        %v5906 = vunpack.c.h.b16 %v1645
        %v5907 = vunpack.c.l.b16 %v1646
        %v5908 = vunpack.c.h.b16 %v1646
        %v5909 = vunpack.c.l.b16 %v1647
        %v5910 = vunpack.c.h.b16 %v1647
        %v5911 = vunpack.c.l.b16 %v1648
        %v5912 = vunpack.c.h.b16 %v1648
        %v5913 = vunpack.c.l.b16 %v1649
        %v5914 = vunpack.c.h.b16 %v1649
        %v5915 = vunpack.c.l.b16 %v1650
        %v5916 = vunpack.c.h.b16 %v1650
        %v5917 = vunpack.c.l.b16 %v1651
        %v5918 = vunpack.c.h.b16 %v1651
        %v5919 = vunpack.c.l.b16 %v1652
        %v5920 = vunpack.c.h.b16 %v1652
        %v5921 = vunpack.c.l.b16 %v1653
        %v5922 = vunpack.c.h.b16 %v1653
        %v5923 = vunpack.c.l.b16 %v1654
        %v5924 = vunpack.c.h.b16 %v1654
        %v5925 = vunpack.c.l.b16 %v1655
        %v5926 = vunpack.c.h.b16 %v1655
        %v5927 = vunpack.c.l.b16 %v1656
        %v5928 = vunpack.c.h.b16 %v1656
        %v5929 = vunpack.c.l.b16 %v1657
        %v5930 = vunpack.c.h.b16 %v1657
        %v5931 = vunpack.c.l.b16 %v1658
        %v5932 = vunpack.c.h.b16 %v1658
        %v5933 = vunpack.c.l.b16 %v1659
        %v5934 = vunpack.c.h.b16 %v1659
        %v5935 = vunpack.c.l.b16 %v1660
        %v5936 = vunpack.c.h.b16 %v1660
        %v5937 = vunpack.c.l.b16 %v1661
        %v5938 = vunpack.c.h.b16 %v1661
        %v5939 = vunpack.c.l.b16 %v1662
        %v5940 = vunpack.c.h.b16 %v1662
        %v5941 = vunpack.c.l.b16 %v1663
        %v5942 = vunpack.c.h.b16 %v1663
        %v5943 = vunpack.c.l.b16 %v1664
        %v5944 = vunpack.c.h.b16 %v1664
        %v5945 = vunpack.c.l.b16 %v1665
        %v5946 = vunpack.c.h.b16 %v1665
        %v5947 = vunpack.c.l.b16 %v1666
        %v5948 = vunpack.c.h.b16 %v1666
        %v5949 = vunpack.c.l.b16 %v1667
        %v5950 = vunpack.c.h.b16 %v1667
        %v5951 = vunpack.c.l.b16 %v1668
        %v5952 = vunpack.c.h.b16 %v1668
        %v5953 = vunpack.c.l.b16 %v1669
        %v5954 = vunpack.c.h.b16 %v1669
        %v5955 = vunpack.c.l.b16 %v1670
        %v5956 = vunpack.c.h.b16 %v1670
        %v5957 = vunpack.c.l.b16 %v1671
        %v5958 = vunpack.c.h.b16 %v1671
        %v5959 = vunpack.c.l.b16 %v1672
        %v5960 = vunpack.c.h.b16 %v1672
        %v5961 = vunpack.c.l.b16 %v1673
        %v5962 = vunpack.c.h.b16 %v1673
        %v5963 = vunpack.c.l.b16 %v1674
        %v5964 = vunpack.c.h.b16 %v1674
        %v5965 = vunpack.c.l.b16 %v1675
        %v5966 = vunpack.c.h.b16 %v1675
        %v5967 = vunpack.c.l.b16 %v1676
        %v5968 = vunpack.c.h.b16 %v1676
        %v5969 = vunpack.c.l.b16 %v1677
        %v5970 = vunpack.c.h.b16 %v1677
        %v5971 = vunpack.c.l.b16 %v1678
        %v5972 = vunpack.c.h.b16 %v1678
        %v5973 = vunpack.c.l.b16 %v1679
        %v5974 = vunpack.c.h.b16 %v1679
        %v5975 = vunpack.c.l.b16 %v1680
        %v5976 = vunpack.c.h.b16 %v1680
        %v5977 = vunpack.c.l.b16 %v1681
        %v5978 = vunpack.c.h.b16 %v1681
        %v5979 = vunpack.c.l.b16 %v1682
        %v5980 = vunpack.c.h.b16 %v1682
        %v5981 = vunpack.c.l.b16 %v1683
        %v5982 = vunpack.c.h.b16 %v1683
        %v5983 = vunpack.c.l.b16 %v1684
        %v5984 = vunpack.c.h.b16 %v1684
        %v5985 = vunpack.c.l.b16 %v1685
        %v5986 = vunpack.c.h.b16 %v1685
        %v5987 = vunpack.c.l.b16 %v1686
        %v5988 = vunpack.c.h.b16 %v1686
        %v5989 = vunpack.c.l.b16 %v1687
        %v5990 = vunpack.c.h.b16 %v1687
        %v5991 = vunpack.c.l.b16 %v1688
        %v5992 = vunpack.c.h.b16 %v1688
        %v5993 = vunpack.c.l.b16 %v1689
        %v5994 = vunpack.c.h.b16 %v1689
        %v5995 = vunpack.c.l.b16 %v1690
        %v5996 = vunpack.c.h.b16 %v1690
        %v5997 = vunpack.c.l.b16 %v1691
        %v5998 = vunpack.c.h.b16 %v1691
        %v5999 = vunpack.c.l.b16 %v1692
        %v6000 = vunpack.c.h.b16 %v1692
        %v6001 = vunpack.c.l.b16 %v1693
        %v6002 = vunpack.c.h.b16 %v1693
        %v6003 = vunpack.c.l.b16 %v1694
        %v6004 = vunpack.c.h.b16 %v1694
        %v6005 = vunpack.c.l.b16 %v1695
        %v6006 = vunpack.c.h.b16 %v1695
        %v6007 = vunpack.c.l.b16 %v1696
        %v6008 = vunpack.c.h.b16 %v1696
        %v6009 = vunpack.c.l.b16 %v1697
        %v6010 = vunpack.c.h.b16 %v1697
        %v6011 = vunpack.c.l.b16 %v1698
        %v6012 = vunpack.c.h.b16 %v1698
        %v6013 = vunpack.c.l.b16 %v1699
        %v6014 = vunpack.c.h.b16 %v1699
        %v6015 = vunpack.c.l.b16 %v1700
        %v6016 = vunpack.c.h.b16 %v1700
        %v6017 = vunpack.c.l.b16 %v1701
        %v6018 = vunpack.c.h.b16 %v1701
        %v6019 = vunpack.c.l.b16 %v1702
        %v6020 = vunpack.c.h.b16 %v1702
        %v6021 = vunpack.c.l.b16 %v1703
        %v6022 = vunpack.c.h.b16 %v1703
        %v6023 = vunpack.c.l.b16 %v1704
        %v6024 = vunpack.c.h.b16 %v1704
        %v6025 = vunpack.c.l.b16 %v1705
        %v6026 = vunpack.c.h.b16 %v1705
        %v6027 = vunpack.c.l.b16 %v1706
        %v6028 = vunpack.c.h.b16 %v1706
        %v6029 = vunpack.c.l.b16 %v1707
        %v6030 = vunpack.c.h.b16 %v1707
        %v6031 = vunpack.c.l.b16 %v1708
        %v6032 = vunpack.c.h.b16 %v1708
        %v6033 = vunpack.c.l.b16 %v1709
        %v6034 = vunpack.c.h.b16 %v1709
        %v6035 = vunpack.c.l.b16 %v1710
        %v6036 = vunpack.c.h.b16 %v1710
        %v6037 = vunpack.c.l.b16 %v1711
        %v6038 = vunpack.c.h.b16 %v1711
        %v6039 = vunpack.c.l.b16 %v1712
        %v6040 = vunpack.c.h.b16 %v1712
        %v6041 = vunpack.c.l.b16 %v1713
        %v6042 = vunpack.c.h.b16 %v1713
        %v6043 = vunpack.c.l.b16 %v1714
        %v6044 = vunpack.c.h.b16 %v1714
        %v6045 = vunpack.c.l.b16 %v1715
        %v6046 = vunpack.c.h.b16 %v1715
        %v6047 = vunpack.c.l.b16 %v1716
        %v6048 = vunpack.c.h.b16 %v1716
        %v6049 = vunpack.c.l.b16 %v1717
        %v6050 = vunpack.c.h.b16 %v1717
        %v6051 = vunpack.c.l.b16 %v1718
        %v6052 = vunpack.c.h.b16 %v1718
        %v6053 = vunpack.c.l.b16 %v1719
        %v6054 = vunpack.c.h.b16 %v1719
        %v6055 = vunpack.c.l.b16 %v1720
        %v6056 = vunpack.c.h.b16 %v1720
        %v6057 = vunpack.c.l.b16 %v1721
        %v6058 = vunpack.c.h.b16 %v1721
        %v6059 = vunpack.c.l.b16 %v1722
        %v6060 = vunpack.c.h.b16 %v1722
        %v6061 = vunpack.c.l.b16 %v1723
        %v6062 = vunpack.c.h.b16 %v1723
        %v6063 = vunpack.c.l.b16 %v1724
        %v6064 = vunpack.c.h.b16 %v1724
        %v6065 = vunpack.c.l.b16 %v1725
        %v6066 = vunpack.c.h.b16 %v1725
        %v6067 = vunpack.c.l.b16 %v1726
        %v6068 = vunpack.c.h.b16 %v1726
        %v6069 = vunpack.c.l.b16 %v1727
        %v6070 = vunpack.c.h.b16 %v1727
        %v6071 = vunpack.c.l.b16 %v1728
        %v6072 = vunpack.c.h.b16 %v1728
        %v6073 = vunpack.c.l.b16 %v1729
        %v6074 = vunpack.c.h.b16 %v1729
        %v6075 = vunpack.c.l.b16 %v1730
        %v6076 = vunpack.c.h.b16 %v1730
        %v6077 = vunpack.c.l.b16 %v1731
        %v6078 = vunpack.c.h.b16 %v1731
        %v6079 = vunpack.c.l.b16 %v1732
        %v6080 = vunpack.c.h.b16 %v1732
        %v6081 = vunpack.c.l.b16 %v1733
        %v6082 = vunpack.c.h.b16 %v1733
        %v6083 = vunpack.c.l.b16 %v1734
        %v6084 = vunpack.c.h.b16 %v1734
        %v6085 = vunpack.c.l.b16 %v1735
        %v6086 = vunpack.c.h.b16 %v1735
        %v6087 = vunpack.c.l.b16 %v1736
        %v6088 = vunpack.c.h.b16 %v1736
        %v6089 = vunpack.c.l.b16 %v1737
        %v6090 = vunpack.c.h.b16 %v1737
        %v6091 = vunpack.c.l.b16 %v1738
        %v6092 = vunpack.c.h.b16 %v1738
        %v6093 = vunpack.c.l.b16 %v1739
        %v6094 = vunpack.c.h.b16 %v1739
        %v6095 = vunpack.c.l.b16 %v1740
        %v6096 = vunpack.c.h.b16 %v1740
        %v6097 = vunpack.c.l.b16 %v1741
        %v6098 = vunpack.c.h.b16 %v1741
        %v6099 = vunpack.c.l.b16 %v1742
        %v6100 = vunpack.c.h.b16 %v1742
        %v6101 = vunpack.c.l.b16 %v1743
        %v6102 = vunpack.c.h.b16 %v1743
        %v6103 = vunpack.c.l.b16 %v1744
        %v6104 = vunpack.c.h.b16 %v1744
        %v6105 = vunpack.c.l.b16 %v1745
        %v6106 = vunpack.c.h.b16 %v1745
        %v6107 = vunpack.c.l.b16 %v1746
        %v6108 = vunpack.c.h.b16 %v1746
        %v6109 = vunpack.c.l.b16 %v1747
        %v6110 = vunpack.c.h.b16 %v1747
        %v6111 = vunpack.c.l.b16 %v1748
        %v6112 = vunpack.c.h.b16 %v1748
        %v6113 = vunpack.c.l.b16 %v1749
        %v6114 = vunpack.c.h.b16 %v1749
        %v6115 = vunpack.c.l.b16 %v1750
        %v6116 = vunpack.c.h.b16 %v1750
        %v6117 = vunpack.c.l.b16 %v1751
        %v6118 = vunpack.c.h.b16 %v1751
        %v6119 = vunpack.c.l.b16 %v1752
        %v6120 = vunpack.c.h.b16 %v1752
        %v6121 = vunpack.c.l.b16 %v1753
        %v6122 = vunpack.c.h.b16 %v1753
        %v6123 = vunpack.c.l.b16 %v1754
        %v6124 = vunpack.c.h.b16 %v1754
        %v6125 = vunpack.c.l.b16 %v1755
        %v6126 = vunpack.c.h.b16 %v1755
        %v6127 = vunpack.c.l.b16 %v1756
        %v6128 = vunpack.c.h.b16 %v1756
        %v6129 = vunpack.c.l.b16 %v1757
        %v6130 = vunpack.c.h.b16 %v1757
        %v6131 = vunpack.c.l.b16 %v1758
        %v6132 = vunpack.c.h.b16 %v1758
        %v6133 = vunpack.c.l.b16 %v1759
        %v6134 = vunpack.c.h.b16 %v1759
        %v6135 = vunpack.c.l.b16 %v1760
        %v6136 = vunpack.c.h.b16 %v1760
        %v6137 = vunpack.c.l.b16 %v1761
        %v6138 = vunpack.c.h.b16 %v1761
        %v6139 = vunpack.c.l.b16 %v1762
        %v6140 = vunpack.c.h.b16 %v1762
        %v6141 = vunpack.c.l.b16 %v1763
        %v6142 = vunpack.c.h.b16 %v1763
        %v6143 = vunpack.c.l.b16 %v1764
        %v6144 = vunpack.c.h.b16 %v1764
        %v6145 = vunpack.c.l.b16 %v1765
        %v6146 = vunpack.c.h.b16 %v1765
        %v6147 = vunpack.c.l.b16 %v1766
        %v6148 = vunpack.c.h.b16 %v1766
        %v6149 = vunpack.c.l.b16 %v1767
        %v6150 = vunpack.c.h.b16 %v1767
        %v6151 = vunpack.c.l.b16 %v1768
        %v6152 = vunpack.c.h.b16 %v1768
        %v6153 = vunpack.c.l.b16 %v1769
        %v6154 = vunpack.c.h.b16 %v1769
        %v6155 = vunpack.c.l.b16 %v1770
        %v6156 = vunpack.c.h.b16 %v1770
        %v6157 = vunpack.c.l.b16 %v1771
        %v6158 = vunpack.c.h.b16 %v1771
        %v6159 = vunpack.c.l.b16 %v1772
        %v6160 = vunpack.c.h.b16 %v1772
        %v6161 = vunpack.c.l.b16 %v1773
        %v6162 = vunpack.c.h.b16 %v1773
        %v6163 = vunpack.c.l.b16 %v1774
        %v6164 = vunpack.c.h.b16 %v1774
        %v6165 = vunpack.c.l.b16 %v1775
        %v6166 = vunpack.c.h.b16 %v1775
        %v6167 = vunpack.c.l.b16 %v1776
        %v6168 = vunpack.c.h.b16 %v1776
        %v6169 = vunpack.c.l.b16 %v1777
        %v6170 = vunpack.c.h.b16 %v1777
        %v6171 = vunpack.c.l.b16 %v1778
        %v6172 = vunpack.c.h.b16 %v1778
        %v6173 = vunpack.c.l.b16 %v1779
        %v6174 = vunpack.c.h.b16 %v1779
        %v6175 = vunpack.c.l.b16 %v1780
        %v6176 = vunpack.c.h.b16 %v1780
        %v6177 = vunpack.c.l.b16 %v1781
        %v6178 = vunpack.c.h.b16 %v1781
        %v6179 = vunpack.c.l.b16 %v1782
        %v6180 = vunpack.c.h.b16 %v1782
        %v6181 = vunpack.c.l.b16 %v1783
        %v6182 = vunpack.c.h.b16 %v1783
        %v6183 = vunpack.c.l.b16 %v1784
        %v6184 = vunpack.c.h.b16 %v1784
        %v6185 = vunpack.c.l.b16 %v1785
        %v6186 = vunpack.c.h.b16 %v1785
        %v6187 = vunpack.c.l.b16 %v1786
        %v6188 = vunpack.c.h.b16 %v1786
        %v6189 = vunpack.c.l.b16 %v1787
        %v6190 = vunpack.c.h.b16 %v1787
        %v6191 = vunpack.c.l.b16 %v1788
        %v6192 = vunpack.c.h.b16 %v1788
        %v6193 = vunpack.c.l.b16 %v1789
        %v6194 = vunpack.c.h.b16 %v1789
        %v6195 = vunpack.c.l.b16 %v1790
        %v6196 = vunpack.c.h.b16 %v1790
        %v6197 = vunpack.c.l.b16 %v1791
        %v6198 = vunpack.c.h.b16 %v1791
        %v6199 = vunpack.c.l.b16 %v1792
        %v6200 = vunpack.c.h.b16 %v1792
        %v6201 = vunpack.c.l.b16 %v1793
        %v6202 = vunpack.c.h.b16 %v1793
        %v6203 = vunpack.c.l.b16 %v1794
        %v6204 = vunpack.c.h.b16 %v1794
        %v6205 = vunpack.c.l.b16 %v1795
        %v6206 = vunpack.c.h.b16 %v1795
        %v6207 = vunpack.c.l.b16 %v1796
        %v6208 = vunpack.c.h.b16 %v1796
        %v6209 = vunpack.c.l.b16 %v1797
        %v6210 = vunpack.c.h.b16 %v1797
        %v6211 = vunpack.c.l.b16 %v1798
        %v6212 = vunpack.c.h.b16 %v1798
        %v6213 = vunpack.c.l.b16 %v1799
        %v6214 = vunpack.c.h.b16 %v1799
        %v6215 = vunpack.c.l.b16 %v1800
        %v6216 = vunpack.c.h.b16 %v1800
        %v6217 = vpack.c.b16 %v3281, %v3273
        %v6218 = vpack.c.b16 %v3282, %v3274
        %v6219 = vpack.c.b16 %v3283, %v3275
        %v6220 = vpack.c.b16 %v3284, %v3276
        %v6221 = vpack.c.b16 %v3285, %v3277
        %v6222 = vpack.c.b16 %v3286, %v3278
        %v6223 = vpack.c.b16 %v3287, %v3279
        %v6224 = vpack.c.b16 %v3288, %v3280
        %v6225 = vpack.c.b16 %v3297, %v3289
        %v6226 = vpack.c.b16 %v3298, %v3290
        %v6227 = vpack.c.b16 %v3299, %v3291
        %v6228 = vpack.c.b16 %v3300, %v3292
        %v6229 = vpack.c.b16 %v3301, %v3293
        %v6230 = vpack.c.b16 %v3302, %v3294
        %v6231 = vpack.c.b16 %v3303, %v3295
        %v6232 = vpack.c.b16 %v3304, %v3296
        %v6233 = vpack.c.b16 %v3313, %v3305
        %v6234 = vpack.c.b16 %v3314, %v3306
        %v6235 = vpack.c.b16 %v3315, %v3307
        %v6236 = vpack.c.b16 %v3316, %v3308
        %v6237 = vpack.c.b16 %v3317, %v3309
        %v6238 = vpack.c.b16 %v3318, %v3310
        %v6239 = vpack.c.b16 %v3319, %v3311
        %v6240 = vpack.c.b16 %v3320, %v3312
        %v6241 = vpack.c.b16 %v3329, %v3321
        %v6242 = vpack.c.b16 %v3330, %v3322
        %v6243 = vpack.c.b16 %v3331, %v3323
        %v6244 = vpack.c.b16 %v3332, %v3324
        %v6245 = vpack.c.b16 %v3333, %v3325
        %v6246 = vpack.c.b16 %v3334, %v3326
        %v6247 = vpack.c.b16 %v3335, %v3327
        %v6248 = vpack.c.b16 %v3336, %v3328
        %v6249 = vpack.c.b16 %v3345, %v3337
        %v6250 = vpack.c.b16 %v3346, %v3338
        %v6251 = vpack.c.b16 %v3347, %v3339
        %v6252 = vpack.c.b16 %v3348, %v3340
        %v6253 = vpack.c.b16 %v3349, %v3341
        %v6254 = vpack.c.b16 %v3350, %v3342
        %v6255 = vpack.c.b16 %v3351, %v3343
        %v6256 = vpack.c.b16 %v3352, %v3344
        %v6257 = vpack.c.b16 %v3361, %v3353
        %v6258 = vpack.c.b16 %v3362, %v3354
        %v6259 = vpack.c.b16 %v3363, %v3355
        %v6260 = vpack.c.b16 %v3364, %v3356
        %v6261 = vpack.c.b16 %v3365, %v3357
        %v6262 = vpack.c.b16 %v3366, %v3358
        %v6263 = vpack.c.b16 %v3367, %v3359
        %v6264 = vpack.c.b16 %v3368, %v3360
        %v6265 = vpack.c.b16 %v3377, %v3369
        %v6266 = vpack.c.b16 %v3378, %v3370
        %v6267 = vpack.c.b16 %v3379, %v3371
        %v6268 = vpack.c.b16 %v3380, %v3372
        %v6269 = vpack.c.b16 %v3381, %v3373
        %v6270 = vpack.c.b16 %v3382, %v3374
        %v6271 = vpack.c.b16 %v3383, %v3375
        %v6272 = vpack.c.b16 %v3384, %v3376
        %v6273 = vpack.c.b16 %v3393, %v3385
        %v6274 = vpack.c.b16 %v3394, %v3386
        %v6275 = vpack.c.b16 %v3395, %v3387
        %v6276 = vpack.c.b16 %v3396, %v3388
        %v6277 = vpack.c.b16 %v3397, %v3389
        %v6278 = vpack.c.b16 %v3398, %v3390
        %v6279 = vpack.c.b16 %v3399, %v3391
        %v6280 = vpack.c.b16 %v3400, %v3392
        %v6281 = vpack.c.b16 %v3409, %v3401
        %v6282 = vpack.c.b16 %v3410, %v3402
        %v6283 = vpack.c.b16 %v3411, %v3403
        %v6284 = vpack.c.b16 %v3412, %v3404
        %v6285 = vpack.c.b16 %v3413, %v3405
        %v6286 = vpack.c.b16 %v3414, %v3406
        %v6287 = vpack.c.b16 %v3415, %v3407
        %v6288 = vpack.c.b16 %v3416, %v3408
        %v6289 = vpack.c.b16 %v3425, %v3417
        %v6290 = vpack.c.b16 %v3426, %v3418
        %v6291 = vpack.c.b16 %v3427, %v3419
        %v6292 = vpack.c.b16 %v3428, %v3420
        %v6293 = vpack.c.b16 %v3429, %v3421
        %v6294 = vpack.c.b16 %v3430, %v3422
        %v6295 = vpack.c.b16 %v3431, %v3423
        %v6296 = vpack.c.b16 %v3432, %v3424
        %v6297 = vpack.c.b16 %v3441, %v3433
        %v6298 = vpack.c.b16 %v3442, %v3434
        %v6299 = vpack.c.b16 %v3443, %v3435
        %v6300 = vpack.c.b16 %v3444, %v3436
        %v6301 = vpack.c.b16 %v3445, %v3437
        %v6302 = vpack.c.b16 %v3446, %v3438
        %v6303 = vpack.c.b16 %v3447, %v3439
        %v6304 = vpack.c.b16 %v3448, %v3440
        %v6305 = vpack.c.b16 %v3457, %v3449
        %v6306 = vpack.c.b16 %v3458, %v3450
        %v6307 = vpack.c.b16 %v3459, %v3451
        %v6308 = vpack.c.b16 %v3460, %v3452
        %v6309 = vpack.c.b16 %v3461, %v3453
        %v6310 = vpack.c.b16 %v3462, %v3454
        %v6311 = vpack.c.b16 %v3463, %v3455
        %v6312 = vpack.c.b16 %v3464, %v3456
        %v6313 = vpack.c.b16 %v3473, %v3465
        %v6314 = vpack.c.b16 %v3474, %v3466
        %v6315 = vpack.c.b16 %v3475, %v3467
        %v6316 = vpack.c.b16 %v3476, %v3468
        %v6317 = vpack.c.b16 %v3477, %v3469
        %v6318 = vpack.c.b16 %v3478, %v3470
        %v6319 = vpack.c.b16 %v3479, %v3471
        %v6320 = vpack.c.b16 %v3480, %v3472
        %v6321 = vpack.c.b16 %v3489, %v3481
        %v6322 = vpack.c.b16 %v3490, %v3482
        %v6323 = vpack.c.b16 %v3491, %v3483
        %v6324 = vpack.c.b16 %v3492, %v3484
        %v6325 = vpack.c.b16 %v3493, %v3485
        %v6326 = vpack.c.b16 %v3494, %v3486
        %v6327 = vpack.c.b16 %v3495, %v3487
        %v6328 = vpack.c.b16 %v3496, %v3488
        %v6329 = vpack.c.b16 %v3505, %v3497
        %v6330 = vpack.c.b16 %v3506, %v3498
        %v6331 = vpack.c.b16 %v3507, %v3499
        %v6332 = vpack.c.b16 %v3508, %v3500
        %v6333 = vpack.c.b16 %v3509, %v3501
        %v6334 = vpack.c.b16 %v3510, %v3502
        %v6335 = vpack.c.b16 %v3511, %v3503
        %v6336 = vpack.c.b16 %v3512, %v3504
        %v6337 = vpack.c.b16 %v3521, %v3513
        %v6338 = vpack.c.b16 %v3522, %v3514
        %v6339 = vpack.c.b16 %v3523, %v3515
        %v6340 = vpack.c.b16 %v3524, %v3516
        %v6341 = vpack.c.b16 %v3525, %v3517
        %v6342 = vpack.c.b16 %v3526, %v3518
        %v6343 = vpack.c.b16 %v3527, %v3519
        %v6344 = vpack.c.b16 %v3528, %v3520
        %v6345 = vpack.c.b16 %v3537, %v3529
        %v6346 = vpack.c.b16 %v3538, %v3530
        %v6347 = vpack.c.b16 %v3539, %v3531
        %v6348 = vpack.c.b16 %v3540, %v3532
        %v6349 = vpack.c.b16 %v3541, %v3533
        %v6350 = vpack.c.b16 %v3542, %v3534
        %v6351 = vpack.c.b16 %v3543, %v3535
        %v6352 = vpack.c.b16 %v3544, %v3536
        %v6353 = vpack.c.b16 %v3553, %v3545
        %v6354 = vpack.c.b16 %v3554, %v3546
        %v6355 = vpack.c.b16 %v3555, %v3547
        %v6356 = vpack.c.b16 %v3556, %v3548
        %v6357 = vpack.c.b16 %v3557, %v3549
        %v6358 = vpack.c.b16 %v3558, %v3550
        %v6359 = vpack.c.b16 %v3559, %v3551
        %v6360 = vpack.c.b16 %v3560, %v3552
        %v6361 = vpack.c.b16 %v3569, %v3561
        %v6362 = vpack.c.b16 %v3570, %v3562
        %v6363 = vpack.c.b16 %v3571, %v3563
        %v6364 = vpack.c.b16 %v3572, %v3564
        %v6365 = vpack.c.b16 %v3573, %v3565
        %v6366 = vpack.c.b16 %v3574, %v3566
        %v6367 = vpack.c.b16 %v3575, %v3567
        %v6368 = vpack.c.b16 %v3576, %v3568
        %v6369 = vpack.c.b16 %v3585, %v3577
        %v6370 = vpack.c.b16 %v3586, %v3578
        %v6371 = vpack.c.b16 %v3587, %v3579
        %v6372 = vpack.c.b16 %v3588, %v3580
        %v6373 = vpack.c.b16 %v3589, %v3581
        %v6374 = vpack.c.b16 %v3590, %v3582
        %v6375 = vpack.c.b16 %v3591, %v3583
        %v6376 = vpack.c.b16 %v3592, %v3584
        %v6377 = vpack.c.b16 %v3601, %v3593
        %v6378 = vpack.c.b16 %v3602, %v3594
        %v6379 = vpack.c.b16 %v3603, %v3595
        %v6380 = vpack.c.b16 %v3604, %v3596
        %v6381 = vpack.c.b16 %v3605, %v3597
        %v6382 = vpack.c.b16 %v3606, %v3598
        %v6383 = vpack.c.b16 %v3607, %v3599
        %v6384 = vpack.c.b16 %v3608, %v3600
        %v6385 = vpack.c.b16 %v3617, %v3609
        %v6386 = vpack.c.b16 %v3618, %v3610
        %v6387 = vpack.c.b16 %v3619, %v3611
        %v6388 = vpack.c.b16 %v3620, %v3612
        %v6389 = vpack.c.b16 %v3621, %v3613
        %v6390 = vpack.c.b16 %v3622, %v3614
        %v6391 = vpack.c.b16 %v3623, %v3615
        %v6392 = vpack.c.b16 %v3624, %v3616
        %v6393 = vpack.c.b16 %v3633, %v3625
        %v6394 = vpack.c.b16 %v3634, %v3626
        %v6395 = vpack.c.b16 %v3635, %v3627
        %v6396 = vpack.c.b16 %v3636, %v3628
        %v6397 = vpack.c.b16 %v3637, %v3629
        %v6398 = vpack.c.b16 %v3638, %v3630
        %v6399 = vpack.c.b16 %v3639, %v3631
        %v6400 = vpack.c.b16 %v3640, %v3632
        %v6401 = vpack.c.b16 %v3649, %v3641
        %v6402 = vpack.c.b16 %v3650, %v3642
        %v6403 = vpack.c.b16 %v3651, %v3643
        %v6404 = vpack.c.b16 %v3652, %v3644
        %v6405 = vpack.c.b16 %v3653, %v3645
        %v6406 = vpack.c.b16 %v3654, %v3646
        %v6407 = vpack.c.b16 %v3655, %v3647
        %v6408 = vpack.c.b16 %v3656, %v3648
        %v6409 = vpack.c.b16 %v3665, %v3657
        %v6410 = vpack.c.b16 %v3666, %v3658
        %v6411 = vpack.c.b16 %v3667, %v3659
        %v6412 = vpack.c.b16 %v3668, %v3660
        %v6413 = vpack.c.b16 %v3669, %v3661
        %v6414 = vpack.c.b16 %v3670, %v3662
        %v6415 = vpack.c.b16 %v3671, %v3663
        %v6416 = vpack.c.b16 %v3672, %v3664
        %v6417 = vpack.c.b16 %v3681, %v3673
        %v6418 = vpack.c.b16 %v3682, %v3674
        %v6419 = vpack.c.b16 %v3683, %v3675
        %v6420 = vpack.c.b16 %v3684, %v3676
        %v6421 = vpack.c.b16 %v3685, %v3677
        %v6422 = vpack.c.b16 %v3686, %v3678
        %v6423 = vpack.c.b16 %v3687, %v3679
        %v6424 = vpack.c.b16 %v3688, %v3680
        %v6425 = vpack.c.b16 %v3697, %v3689
        %v6426 = vpack.c.b16 %v3698, %v3690
        %v6427 = vpack.c.b16 %v3699, %v3691
        %v6428 = vpack.c.b16 %v3700, %v3692
        %v6429 = vpack.c.b16 %v3701, %v3693
        %v6430 = vpack.c.b16 %v3702, %v3694
        %v6431 = vpack.c.b16 %v3703, %v3695
        %v6432 = vpack.c.b16 %v3704, %v3696
        %v6433 = vpack.c.b16 %v3713, %v3705
        %v6434 = vpack.c.b16 %v3714, %v3706
        %v6435 = vpack.c.b16 %v3715, %v3707
        %v6436 = vpack.c.b16 %v3716, %v3708
        %v6437 = vpack.c.b16 %v3717, %v3709
        %v6438 = vpack.c.b16 %v3718, %v3710
        %v6439 = vpack.c.b16 %v3719, %v3711
        %v6440 = vpack.c.b16 %v3720, %v3712
        %v6441 = vpack.c.b16 %v3729, %v3721
        %v6442 = vpack.c.b16 %v3730, %v3722
        %v6443 = vpack.c.b16 %v3731, %v3723
        %v6444 = vpack.c.b16 %v3732, %v3724
        %v6445 = vpack.c.b16 %v3733, %v3725
        %v6446 = vpack.c.b16 %v3734, %v3726
        %v6447 = vpack.c.b16 %v3735, %v3727
        %v6448 = vpack.c.b16 %v3736, %v3728
        %v6449 = vpack.c.b16 %v3745, %v3737
        %v6450 = vpack.c.b16 %v3746, %v3738
        %v6451 = vpack.c.b16 %v3747, %v3739
        %v6452 = vpack.c.b16 %v3748, %v3740
        %v6453 = vpack.c.b16 %v3749, %v3741
        %v6454 = vpack.c.b16 %v3750, %v3742
        %v6455 = vpack.c.b16 %v3751, %v3743
        %v6456 = vpack.c.b16 %v3752, %v3744
        %v6457 = vpack.c.b16 %v3761, %v3753
        %v6458 = vpack.c.b16 %v3762, %v3754
        %v6459 = vpack.c.b16 %v3763, %v3755
        %v6460 = vpack.c.b16 %v3764, %v3756
        %v6461 = vpack.c.b16 %v3765, %v3757
        %v6462 = vpack.c.b16 %v3766, %v3758
        %v6463 = vpack.c.b16 %v3767, %v3759
        %v6464 = vpack.c.b16 %v3768, %v3760
        %v6465 = vpack.c.b16 %v3777, %v3769
        %v6466 = vpack.c.b16 %v3778, %v3770
        %v6467 = vpack.c.b16 %v3779, %v3771
        %v6468 = vpack.c.b16 %v3780, %v3772
        %v6469 = vpack.c.b16 %v3781, %v3773
        %v6470 = vpack.c.b16 %v3782, %v3774
        %v6471 = vpack.c.b16 %v3783, %v3775
        %v6472 = vpack.c.b16 %v3784, %v3776
        %v6473 = vpack.c.b16 %v3793, %v3785
        %v6474 = vpack.c.b16 %v3794, %v3786
        %v6475 = vpack.c.b16 %v3795, %v3787
        %v6476 = vpack.c.b16 %v3796, %v3788
        %v6477 = vpack.c.b16 %v3797, %v3789
        %v6478 = vpack.c.b16 %v3798, %v3790
        %v6479 = vpack.c.b16 %v3799, %v3791
        %v6480 = vpack.c.b16 %v3800, %v3792
        %v6481 = vpack.c.b16 %v3809, %v3801
        %v6482 = vpack.c.b16 %v3810, %v3802
        %v6483 = vpack.c.b16 %v3811, %v3803
        %v6484 = vpack.c.b16 %v3812, %v3804
        %v6485 = vpack.c.b16 %v3813, %v3805
        %v6486 = vpack.c.b16 %v3814, %v3806
        %v6487 = vpack.c.b16 %v3815, %v3807
        %v6488 = vpack.c.b16 %v3816, %v3808
        %v6489 = vpack.c.b16 %v3825, %v3817
        %v6490 = vpack.c.b16 %v3826, %v3818
        %v6491 = vpack.c.b16 %v3827, %v3819
        %v6492 = vpack.c.b16 %v3828, %v3820
        %v6493 = vpack.c.b16 %v3829, %v3821
        %v6494 = vpack.c.b16 %v3830, %v3822
        %v6495 = vpack.c.b16 %v3831, %v3823
        %v6496 = vpack.c.b16 %v3832, %v3824
        %v6497 = vpack.c.b16 %v3841, %v3833
        %v6498 = vpack.c.b16 %v3842, %v3834
        %v6499 = vpack.c.b16 %v3843, %v3835
        %v6500 = vpack.c.b16 %v3844, %v3836
        %v6501 = vpack.c.b16 %v3845, %v3837
        %v6502 = vpack.c.b16 %v3846, %v3838
        %v6503 = vpack.c.b16 %v3847, %v3839
        %v6504 = vpack.c.b16 %v3848, %v3840
        %v6505 = vpack.c.b16 %v3857, %v3849
        %v6506 = vpack.c.b16 %v3858, %v3850
        %v6507 = vpack.c.b16 %v3859, %v3851
        %v6508 = vpack.c.b16 %v3860, %v3852
        %v6509 = vpack.c.b16 %v3861, %v3853
        %v6510 = vpack.c.b16 %v3862, %v3854
        %v6511 = vpack.c.b16 %v3863, %v3855
        %v6512 = vpack.c.b16 %v3864, %v3856
        %v6513 = vpack.c.b16 %v3873, %v3865
        %v6514 = vpack.c.b16 %v3874, %v3866
        %v6515 = vpack.c.b16 %v3875, %v3867
        %v6516 = vpack.c.b16 %v3876, %v3868
        %v6517 = vpack.c.b16 %v3877, %v3869
        %v6518 = vpack.c.b16 %v3878, %v3870
        %v6519 = vpack.c.b16 %v3879, %v3871
        %v6520 = vpack.c.b16 %v3880, %v3872
        %v6521 = vpack.c.b16 %v3889, %v3881
        %v6522 = vpack.c.b16 %v3890, %v3882
        %v6523 = vpack.c.b16 %v3891, %v3883
        %v6524 = vpack.c.b16 %v3892, %v3884
        %v6525 = vpack.c.b16 %v3893, %v3885
        %v6526 = vpack.c.b16 %v3894, %v3886
        %v6527 = vpack.c.b16 %v3895, %v3887
        %v6528 = vpack.c.b16 %v3896, %v3888
        %v6529 = vpack.c.b16 %v3905, %v3897
        %v6530 = vpack.c.b16 %v3906, %v3898
        %v6531 = vpack.c.b16 %v3907, %v3899
        %v6532 = vpack.c.b16 %v3908, %v3900
        %v6533 = vpack.c.b16 %v3909, %v3901
        %v6534 = vpack.c.b16 %v3910, %v3902
        %v6535 = vpack.c.b16 %v3911, %v3903
        %v6536 = vpack.c.b16 %v3912, %v3904
        %v6537 = vpack.c.b16 %v3921, %v3913
        %v6538 = vpack.c.b16 %v3922, %v3914
        %v6539 = vpack.c.b16 %v3923, %v3915
        %v6540 = vpack.c.b16 %v3924, %v3916
        %v6541 = vpack.c.b16 %v3925, %v3917
        %v6542 = vpack.c.b16 %v3926, %v3918
        %v6543 = vpack.c.b16 %v3927, %v3919
        %v6544 = vpack.c.b16 %v3928, %v3920
        %v6545 = vpack.c.b16 %v3937, %v3929
        %v6546 = vpack.c.b16 %v3938, %v3930
        %v6547 = vpack.c.b16 %v3939, %v3931
        %v6548 = vpack.c.b16 %v3940, %v3932
        %v6549 = vpack.c.b16 %v3941, %v3933
        %v6550 = vpack.c.b16 %v3942, %v3934
        %v6551 = vpack.c.b16 %v3943, %v3935
        %v6552 = vpack.c.b16 %v3944, %v3936
        %v6553 = vpack.c.b16 %v3953, %v3945
        %v6554 = vpack.c.b16 %v3954, %v3946
        %v6555 = vpack.c.b16 %v3955, %v3947
        %v6556 = vpack.c.b16 %v3956, %v3948
        %v6557 = vpack.c.b16 %v3957, %v3949
        %v6558 = vpack.c.b16 %v3958, %v3950
        %v6559 = vpack.c.b16 %v3959, %v3951
        %v6560 = vpack.c.b16 %v3960, %v3952
        %v6561 = vpack.c.b16 %v3969, %v3961
        %v6562 = vpack.c.b16 %v3970, %v3962
        %v6563 = vpack.c.b16 %v3971, %v3963
        %v6564 = vpack.c.b16 %v3972, %v3964
        %v6565 = vpack.c.b16 %v3973, %v3965
        %v6566 = vpack.c.b16 %v3974, %v3966
        %v6567 = vpack.c.b16 %v3975, %v3967
        %v6568 = vpack.c.b16 %v3976, %v3968
        %v6569 = vpack.c.b16 %v3985, %v3977
        %v6570 = vpack.c.b16 %v3986, %v3978
        %v6571 = vpack.c.b16 %v3987, %v3979
        %v6572 = vpack.c.b16 %v3988, %v3980
        %v6573 = vpack.c.b16 %v3989, %v3981
        %v6574 = vpack.c.b16 %v3990, %v3982
        %v6575 = vpack.c.b16 %v3991, %v3983
        %v6576 = vpack.c.b16 %v3992, %v3984
        %v6577 = vpack.c.b16 %v4001, %v3993
        %v6578 = vpack.c.b16 %v4002, %v3994
        %v6579 = vpack.c.b16 %v4003, %v3995
        %v6580 = vpack.c.b16 %v4004, %v3996
        %v6581 = vpack.c.b16 %v4005, %v3997
        %v6582 = vpack.c.b16 %v4006, %v3998
        %v6583 = vpack.c.b16 %v4007, %v3999
        %v6584 = vpack.c.b16 %v4008, %v4000
        %v6585 = vpack.c.b16 %v4017, %v4009
        %v6586 = vpack.c.b16 %v4018, %v4010
        %v6587 = vpack.c.b16 %v4019, %v4011
        %v6588 = vpack.c.b16 %v4020, %v4012
        %v6589 = vpack.c.b16 %v4021, %v4013
        %v6590 = vpack.c.b16 %v4022, %v4014
        %v6591 = vpack.c.b16 %v4023, %v4015
        %v6592 = vpack.c.b16 %v4024, %v4016
        %v6593 = vpack.c.b16 %v4033, %v4025
        %v6594 = vpack.c.b16 %v4034, %v4026
        %v6595 = vpack.c.b16 %v4035, %v4027
        %v6596 = vpack.c.b16 %v4036, %v4028
        %v6597 = vpack.c.b16 %v4037, %v4029
        %v6598 = vpack.c.b16 %v4038, %v4030
        %v6599 = vpack.c.b16 %v4039, %v4031
        %v6600 = vpack.c.b16 %v4040, %v4032
        %v6601 = vpack.c.b16 %v4049, %v4041
        %v6602 = vpack.c.b16 %v4050, %v4042
        %v6603 = vpack.c.b16 %v4051, %v4043
        %v6604 = vpack.c.b16 %v4052, %v4044
        %v6605 = vpack.c.b16 %v4053, %v4045
        %v6606 = vpack.c.b16 %v4054, %v4046
        %v6607 = vpack.c.b16 %v4055, %v4047
        %v6608 = vpack.c.b16 %v4056, %v4048
        %v6609 = vpack.c.b16 %v4065, %v4057
        %v6610 = vpack.c.b16 %v4066, %v4058
        %v6611 = vpack.c.b16 %v4067, %v4059
        %v6612 = vpack.c.b16 %v4068, %v4060
        %v6613 = vpack.c.b16 %v4069, %v4061
        %v6614 = vpack.c.b16 %v4070, %v4062
        %v6615 = vpack.c.b16 %v4071, %v4063
        %v6616 = vpack.c.b16 %v4072, %v4064
        %v6617 = vpack.c.b16 %v4081, %v4073
        %v6618 = vpack.c.b16 %v4082, %v4074
        %v6619 = vpack.c.b16 %v4083, %v4075
        %v6620 = vpack.c.b16 %v4084, %v4076
        %v6621 = vpack.c.b16 %v4085, %v4077
        %v6622 = vpack.c.b16 %v4086, %v4078
        %v6623 = vpack.c.b16 %v4087, %v4079
        %v6624 = vpack.c.b16 %v4088, %v4080
        %v6625 = vpack.c.b16 %v4097, %v4089
        %v6626 = vpack.c.b16 %v4098, %v4090
        %v6627 = vpack.c.b16 %v4099, %v4091
        %v6628 = vpack.c.b16 %v4100, %v4092
        %v6629 = vpack.c.b16 %v4101, %v4093
        %v6630 = vpack.c.b16 %v4102, %v4094
        %v6631 = vpack.c.b16 %v4103, %v4095
        %v6632 = vpack.c.b16 %v4104, %v4096
        %v6633 = vpack.c.b16 %v4113, %v4105
        %v6634 = vpack.c.b16 %v4114, %v4106
        %v6635 = vpack.c.b16 %v4115, %v4107
        %v6636 = vpack.c.b16 %v4116, %v4108
        %v6637 = vpack.c.b16 %v4117, %v4109
        %v6638 = vpack.c.b16 %v4118, %v4110
        %v6639 = vpack.c.b16 %v4119, %v4111
        %v6640 = vpack.c.b16 %v4120, %v4112
        %v6641 = vpack.c.b16 %v4129, %v4121
        %v6642 = vpack.c.b16 %v4130, %v4122
        %v6643 = vpack.c.b16 %v4131, %v4123
        %v6644 = vpack.c.b16 %v4132, %v4124
        %v6645 = vpack.c.b16 %v4133, %v4125
        %v6646 = vpack.c.b16 %v4134, %v4126
        %v6647 = vpack.c.b16 %v4135, %v4127
        %v6648 = vpack.c.b16 %v4136, %v4128
        %v6649 = vpack.c.b16 %v4145, %v4137
        %v6650 = vpack.c.b16 %v4146, %v4138
        %v6651 = vpack.c.b16 %v4147, %v4139
        %v6652 = vpack.c.b16 %v4148, %v4140
        %v6653 = vpack.c.b16 %v4149, %v4141
        %v6654 = vpack.c.b16 %v4150, %v4142
        %v6655 = vpack.c.b16 %v4151, %v4143
        %v6656 = vpack.c.b16 %v4152, %v4144
        %v6657 = vpack.c.b16 %v4161, %v4153
        %v6658 = vpack.c.b16 %v4162, %v4154
        %v6659 = vpack.c.b16 %v4163, %v4155
        %v6660 = vpack.c.b16 %v4164, %v4156
        %v6661 = vpack.c.b16 %v4165, %v4157
        %v6662 = vpack.c.b16 %v4166, %v4158
        %v6663 = vpack.c.b16 %v4167, %v4159
        %v6664 = vpack.c.b16 %v4168, %v4160
        %v6665 = vpack.c.b16 %v4177, %v4169
        %v6666 = vpack.c.b16 %v4178, %v4170
        %v6667 = vpack.c.b16 %v4179, %v4171
        %v6668 = vpack.c.b16 %v4180, %v4172
        %v6669 = vpack.c.b16 %v4181, %v4173
        %v6670 = vpack.c.b16 %v4182, %v4174
        %v6671 = vpack.c.b16 %v4183, %v4175
        %v6672 = vpack.c.b16 %v4184, %v4176
        %v6673 = vpack.c.b16 %v4193, %v4185
        %v6674 = vpack.c.b16 %v4194, %v4186
        %v6675 = vpack.c.b16 %v4195, %v4187
        %v6676 = vpack.c.b16 %v4196, %v4188
        %v6677 = vpack.c.b16 %v4197, %v4189
        %v6678 = vpack.c.b16 %v4198, %v4190
        %v6679 = vpack.c.b16 %v4199, %v4191
        %v6680 = vpack.c.b16 %v4200, %v4192
        %v6681 = vpack.c.b16 %v4209, %v4201
        %v6682 = vpack.c.b16 %v4210, %v4202
        %v6683 = vpack.c.b16 %v4211, %v4203
        %v6684 = vpack.c.b16 %v4212, %v4204
        %v6685 = vpack.c.b16 %v4213, %v4205
        %v6686 = vpack.c.b16 %v4214, %v4206
        %v6687 = vpack.c.b16 %v4215, %v4207
        %v6688 = vpack.c.b16 %v4216, %v4208
        %v6689 = vpack.c.b16 %v4225, %v4217
        %v6690 = vpack.c.b16 %v4226, %v4218
        %v6691 = vpack.c.b16 %v4227, %v4219
        %v6692 = vpack.c.b16 %v4228, %v4220
        %v6693 = vpack.c.b16 %v4229, %v4221
        %v6694 = vpack.c.b16 %v4230, %v4222
        %v6695 = vpack.c.b16 %v4231, %v4223
        %v6696 = vpack.c.b16 %v4232, %v4224
        %v6697 = vpack.c.b16 %v4241, %v4233
        %v6698 = vpack.c.b16 %v4242, %v4234
        %v6699 = vpack.c.b16 %v4243, %v4235
        %v6700 = vpack.c.b16 %v4244, %v4236
        %v6701 = vpack.c.b16 %v4245, %v4237
        %v6702 = vpack.c.b16 %v4246, %v4238
        %v6703 = vpack.c.b16 %v4247, %v4239
        %v6704 = vpack.c.b16 %v4248, %v4240
        %v6705 = vpack.c.b16 %v4257, %v4249
        %v6706 = vpack.c.b16 %v4258, %v4250
        %v6707 = vpack.c.b16 %v4259, %v4251
        %v6708 = vpack.c.b16 %v4260, %v4252
        %v6709 = vpack.c.b16 %v4261, %v4253
        %v6710 = vpack.c.b16 %v4262, %v4254
        %v6711 = vpack.c.b16 %v4263, %v4255
        %v6712 = vpack.c.b16 %v4264, %v4256
        %v6713 = vpack.c.b16 %v4273, %v4265
        %v6714 = vpack.c.b16 %v4274, %v4266
        %v6715 = vpack.c.b16 %v4275, %v4267
        %v6716 = vpack.c.b16 %v4276, %v4268
        %v6717 = vpack.c.b16 %v4277, %v4269
        %v6718 = vpack.c.b16 %v4278, %v4270
        %v6719 = vpack.c.b16 %v4279, %v4271
        %v6720 = vpack.c.b16 %v4280, %v4272
        %v6721 = vpack.c.b16 %v4289, %v4281
        %v6722 = vpack.c.b16 %v4290, %v4282
        %v6723 = vpack.c.b16 %v4291, %v4283
        %v6724 = vpack.c.b16 %v4292, %v4284
        %v6725 = vpack.c.b16 %v4293, %v4285
        %v6726 = vpack.c.b16 %v4294, %v4286
        %v6727 = vpack.c.b16 %v4295, %v4287
        %v6728 = vpack.c.b16 %v4296, %v4288
        %v6729 = vpack.c.b16 %v4305, %v4297
        %v6730 = vpack.c.b16 %v4306, %v4298
        %v6731 = vpack.c.b16 %v4307, %v4299
        %v6732 = vpack.c.b16 %v4308, %v4300
        %v6733 = vpack.c.b16 %v4309, %v4301
        %v6734 = vpack.c.b16 %v4310, %v4302
        %v6735 = vpack.c.b16 %v4311, %v4303
        %v6736 = vpack.c.b16 %v4312, %v4304
        %v6737 = vpack.c.b16 %v4321, %v4313
        %v6738 = vpack.c.b16 %v4322, %v4314
        %v6739 = vpack.c.b16 %v4323, %v4315
        %v6740 = vpack.c.b16 %v4324, %v4316
        %v6741 = vpack.c.b16 %v4325, %v4317
        %v6742 = vpack.c.b16 %v4326, %v4318
        %v6743 = vpack.c.b16 %v4327, %v4319
        %v6744 = vpack.c.b16 %v4328, %v4320
        %v6745 = vpack.c.b16 %v4337, %v4329
        %v6746 = vpack.c.b16 %v4338, %v4330
        %v6747 = vpack.c.b16 %v4339, %v4331
        %v6748 = vpack.c.b16 %v4340, %v4332
        %v6749 = vpack.c.b16 %v4341, %v4333
        %v6750 = vpack.c.b16 %v4342, %v4334
        %v6751 = vpack.c.b16 %v4343, %v4335
        %v6752 = vpack.c.b16 %v4344, %v4336
        %v6753 = vpack.c.b16 %v4353, %v4345
        %v6754 = vpack.c.b16 %v4354, %v4346
        %v6755 = vpack.c.b16 %v4355, %v4347
        %v6756 = vpack.c.b16 %v4356, %v4348
        %v6757 = vpack.c.b16 %v4357, %v4349
        %v6758 = vpack.c.b16 %v4358, %v4350
        %v6759 = vpack.c.b16 %v4359, %v4351
        %v6760 = vpack.c.b16 %v4360, %v4352
        %v6761 = vpack.c.b16 %v4369, %v4361
        %v6762 = vpack.c.b16 %v4370, %v4362
        %v6763 = vpack.c.b16 %v4371, %v4363
        %v6764 = vpack.c.b16 %v4372, %v4364
        %v6765 = vpack.c.b16 %v4373, %v4365
        %v6766 = vpack.c.b16 %v4374, %v4366
        %v6767 = vpack.c.b16 %v4375, %v4367
        %v6768 = vpack.c.b16 %v4376, %v4368
        %v6769 = vpack.c.b16 %v4385, %v4377
        %v6770 = vpack.c.b16 %v4386, %v4378
        %v6771 = vpack.c.b16 %v4387, %v4379
        %v6772 = vpack.c.b16 %v4388, %v4380
        %v6773 = vpack.c.b16 %v4389, %v4381
        %v6774 = vpack.c.b16 %v4390, %v4382
        %v6775 = vpack.c.b16 %v4391, %v4383
        %v6776 = vpack.c.b16 %v4392, %v4384
        %v6777 = vpack.c.b16 %v4401, %v4393
        %v6778 = vpack.c.b16 %v4402, %v4394
        %v6779 = vpack.c.b16 %v4403, %v4395
        %v6780 = vpack.c.b16 %v4404, %v4396
        %v6781 = vpack.c.b16 %v4405, %v4397
        %v6782 = vpack.c.b16 %v4406, %v4398
        %v6783 = vpack.c.b16 %v4407, %v4399
        %v6784 = vpack.c.b16 %v4408, %v4400
        %v6785 = vpack.c.b16 %v4417, %v4409
        %v6786 = vpack.c.b16 %v4418, %v4410
        %v6787 = vpack.c.b16 %v4419, %v4411
        %v6788 = vpack.c.b16 %v4420, %v4412
        %v6789 = vpack.c.b16 %v4421, %v4413
        %v6790 = vpack.c.b16 %v4422, %v4414
        %v6791 = vpack.c.b16 %v4423, %v4415
        %v6792 = vpack.c.b16 %v4424, %v4416
        %v6793 = vpack.c.b16 %v4433, %v4425
        %v6794 = vpack.c.b16 %v4434, %v4426
        %v6795 = vpack.c.b16 %v4435, %v4427
        %v6796 = vpack.c.b16 %v4436, %v4428
        %v6797 = vpack.c.b16 %v4437, %v4429
        %v6798 = vpack.c.b16 %v4438, %v4430
        %v6799 = vpack.c.b16 %v4439, %v4431
        %v6800 = vpack.c.b16 %v4440, %v4432
        %v6801 = vpack.c.b16 %v4449, %v4441
        %v6802 = vpack.c.b16 %v4450, %v4442
        %v6803 = vpack.c.b16 %v4451, %v4443
        %v6804 = vpack.c.b16 %v4452, %v4444
        %v6805 = vpack.c.b16 %v4453, %v4445
        %v6806 = vpack.c.b16 %v4454, %v4446
        %v6807 = vpack.c.b16 %v4455, %v4447
        %v6808 = vpack.c.b16 %v4456, %v4448
        %v6809 = vpack.c.b16 %v4465, %v4457
        %v6810 = vpack.c.b16 %v4466, %v4458
        %v6811 = vpack.c.b16 %v4467, %v4459
        %v6812 = vpack.c.b16 %v4468, %v4460
        %v6813 = vpack.c.b16 %v4469, %v4461
        %v6814 = vpack.c.b16 %v4470, %v4462
        %v6815 = vpack.c.b16 %v4471, %v4463
        %v6816 = vpack.c.b16 %v4472, %v4464
        %v6817 = vpack.c.b16 %v4481, %v4473
        %v6818 = vpack.c.b16 %v4482, %v4474
        %v6819 = vpack.c.b16 %v4483, %v4475
        %v6820 = vpack.c.b16 %v4484, %v4476
        %v6821 = vpack.c.b16 %v4485, %v4477
        %v6822 = vpack.c.b16 %v4486, %v4478
        %v6823 = vpack.c.b16 %v4487, %v4479
        %v6824 = vpack.c.b16 %v4488, %v4480
        %v6825 = vpack.c.b16 %v4497, %v4489
        %v6826 = vpack.c.b16 %v4498, %v4490
        %v6827 = vpack.c.b16 %v4499, %v4491
        %v6828 = vpack.c.b16 %v4500, %v4492
        %v6829 = vpack.c.b16 %v4501, %v4493
        %v6830 = vpack.c.b16 %v4502, %v4494
        %v6831 = vpack.c.b16 %v4503, %v4495
        %v6832 = vpack.c.b16 %v4504, %v4496
        %v6833 = vpack.c.b16 %v4513, %v4505
        %v6834 = vpack.c.b16 %v4514, %v4506
        %v6835 = vpack.c.b16 %v4515, %v4507
        %v6836 = vpack.c.b16 %v4516, %v4508
        %v6837 = vpack.c.b16 %v4517, %v4509
        %v6838 = vpack.c.b16 %v4518, %v4510
        %v6839 = vpack.c.b16 %v4519, %v4511
        %v6840 = vpack.c.b16 %v4520, %v4512
        %v6841 = vpack.c.b16 %v4529, %v4521
        %v6842 = vpack.c.b16 %v4530, %v4522
        %v6843 = vpack.c.b16 %v4531, %v4523
        %v6844 = vpack.c.b16 %v4532, %v4524
        %v6845 = vpack.c.b16 %v4533, %v4525
        %v6846 = vpack.c.b16 %v4534, %v4526
        %v6847 = vpack.c.b16 %v4535, %v4527
        %v6848 = vpack.c.b16 %v4536, %v4528
        %v6849 = vpack.c.b16 %v4545, %v4537
        %v6850 = vpack.c.b16 %v4546, %v4538
        %v6851 = vpack.c.b16 %v4547, %v4539
        %v6852 = vpack.c.b16 %v4548, %v4540
        %v6853 = vpack.c.b16 %v4549, %v4541
        %v6854 = vpack.c.b16 %v4550, %v4542
        %v6855 = vpack.c.b16 %v4551, %v4543
        %v6856 = vpack.c.b16 %v4552, %v4544
        %v6857 = vpack.c.b16 %v4561, %v4553
        %v6858 = vpack.c.b16 %v4562, %v4554
        %v6859 = vpack.c.b16 %v4563, %v4555
        %v6860 = vpack.c.b16 %v4564, %v4556
        %v6861 = vpack.c.b16 %v4565, %v4557
        %v6862 = vpack.c.b16 %v4566, %v4558
        %v6863 = vpack.c.b16 %v4567, %v4559
        %v6864 = vpack.c.b16 %v4568, %v4560
        %v6865 = vpack.c.b16 %v4577, %v4569
        %v6866 = vpack.c.b16 %v4578, %v4570
        %v6867 = vpack.c.b16 %v4579, %v4571
        %v6868 = vpack.c.b16 %v4580, %v4572
        %v6869 = vpack.c.b16 %v4581, %v4573
        %v6870 = vpack.c.b16 %v4582, %v4574
        %v6871 = vpack.c.b16 %v4583, %v4575
        %v6872 = vpack.c.b16 %v4584, %v4576
        %v6873 = vpack.c.b16 %v4593, %v4585
        %v6874 = vpack.c.b16 %v4594, %v4586
        %v6875 = vpack.c.b16 %v4595, %v4587
        %v6876 = vpack.c.b16 %v4596, %v4588
        %v6877 = vpack.c.b16 %v4597, %v4589
        %v6878 = vpack.c.b16 %v4598, %v4590
        %v6879 = vpack.c.b16 %v4599, %v4591
        %v6880 = vpack.c.b16 %v4600, %v4592
        %v6881 = vpack.c.b16 %v4609, %v4601
        %v6882 = vpack.c.b16 %v4610, %v4602
        %v6883 = vpack.c.b16 %v4611, %v4603
        %v6884 = vpack.c.b16 %v4612, %v4604
        %v6885 = vpack.c.b16 %v4613, %v4605
        %v6886 = vpack.c.b16 %v4614, %v4606
        %v6887 = vpack.c.b16 %v4615, %v4607
        %v6888 = vpack.c.b16 %v4616, %v4608
        %v6889 = vpack.c.b16 %v4625, %v4617
        %v6890 = vpack.c.b16 %v4626, %v4618
        %v6891 = vpack.c.b16 %v4627, %v4619
        %v6892 = vpack.c.b16 %v4628, %v4620
        %v6893 = vpack.c.b16 %v4629, %v4621
        %v6894 = vpack.c.b16 %v4630, %v4622
        %v6895 = vpack.c.b16 %v4631, %v4623
        %v6896 = vpack.c.b16 %v4632, %v4624
        %v6897 = vpack.c.b16 %v4641, %v4633
        %v6898 = vpack.c.b16 %v4642, %v4634
        %v6899 = vpack.c.b16 %v4643, %v4635
        %v6900 = vpack.c.b16 %v4644, %v4636
        %v6901 = vpack.c.b16 %v4645, %v4637
        %v6902 = vpack.c.b16 %v4646, %v4638
        %v6903 = vpack.c.b16 %v4647, %v4639
        %v6904 = vpack.c.b16 %v4648, %v4640
        %v6905 = vpack.c.b16 %v4657, %v4649
        %v6906 = vpack.c.b16 %v4658, %v4650
        %v6907 = vpack.c.b16 %v4659, %v4651
        %v6908 = vpack.c.b16 %v4660, %v4652
        %v6909 = vpack.c.b16 %v4661, %v4653
        %v6910 = vpack.c.b16 %v4662, %v4654
        %v6911 = vpack.c.b16 %v4663, %v4655
        %v6912 = vpack.c.b16 %v4664, %v4656
        %v6913 = vpack.c.b16 %v4673, %v4665
        %v6914 = vpack.c.b16 %v4674, %v4666
        %v6915 = vpack.c.b16 %v4675, %v4667
        %v6916 = vpack.c.b16 %v4676, %v4668
        %v6917 = vpack.c.b16 %v4677, %v4669
        %v6918 = vpack.c.b16 %v4678, %v4670
        %v6919 = vpack.c.b16 %v4679, %v4671
        %v6920 = vpack.c.b16 %v4680, %v4672
        %v6921 = vpack.c.b16 %v4689, %v4681
        %v6922 = vpack.c.b16 %v4690, %v4682
        %v6923 = vpack.c.b16 %v4691, %v4683
        %v6924 = vpack.c.b16 %v4692, %v4684
        %v6925 = vpack.c.b16 %v4693, %v4685
        %v6926 = vpack.c.b16 %v4694, %v4686
        %v6927 = vpack.c.b16 %v4695, %v4687
        %v6928 = vpack.c.b16 %v4696, %v4688
        %v6929 = vpack.c.b16 %v4705, %v4697
        %v6930 = vpack.c.b16 %v4706, %v4698
        %v6931 = vpack.c.b16 %v4707, %v4699
        %v6932 = vpack.c.b16 %v4708, %v4700
        %v6933 = vpack.c.b16 %v4709, %v4701
        %v6934 = vpack.c.b16 %v4710, %v4702
        %v6935 = vpack.c.b16 %v4711, %v4703
        %v6936 = vpack.c.b16 %v4712, %v4704
        %v6937 = vpack.c.b16 %v4721, %v4713
        %v6938 = vpack.c.b16 %v4722, %v4714
        %v6939 = vpack.c.b16 %v4723, %v4715
        %v6940 = vpack.c.b16 %v4724, %v4716
        %v6941 = vpack.c.b16 %v4725, %v4717
        %v6942 = vpack.c.b16 %v4726, %v4718
        %v6943 = vpack.c.b16 %v4727, %v4719
        %v6944 = vpack.c.b16 %v4728, %v4720
        %v6945 = vpack.c.b16 %v4737, %v4729
        %v6946 = vpack.c.b16 %v4738, %v4730
        %v6947 = vpack.c.b16 %v4739, %v4731
        %v6948 = vpack.c.b16 %v4740, %v4732
        %v6949 = vpack.c.b16 %v4741, %v4733
        %v6950 = vpack.c.b16 %v4742, %v4734
        %v6951 = vpack.c.b16 %v4743, %v4735
        %v6952 = vpack.c.b16 %v4744, %v4736
        %v6953 = vpack.c.b16 %v4753, %v4745
        %v6954 = vpack.c.b16 %v4754, %v4746
        %v6955 = vpack.c.b16 %v4755, %v4747
        %v6956 = vpack.c.b16 %v4756, %v4748
        %v6957 = vpack.c.b16 %v4757, %v4749
        %v6958 = vpack.c.b16 %v4758, %v4750
        %v6959 = vpack.c.b16 %v4759, %v4751
        %v6960 = vpack.c.b16 %v4760, %v4752
        %v6961 = vpack.c.b16 %v4769, %v4761
        %v6962 = vpack.c.b16 %v4770, %v4762
        %v6963 = vpack.c.b16 %v4771, %v4763
        %v6964 = vpack.c.b16 %v4772, %v4764
        %v6965 = vpack.c.b16 %v4773, %v4765
        %v6966 = vpack.c.b16 %v4774, %v4766
        %v6967 = vpack.c.b16 %v4775, %v4767
        %v6968 = vpack.c.b16 %v4776, %v4768
        %v6969 = vpack.c.b16 %v4785, %v4777
        %v6970 = vpack.c.b16 %v4786, %v4778
        %v6971 = vpack.c.b16 %v4787, %v4779
        %v6972 = vpack.c.b16 %v4788, %v4780
        %v6973 = vpack.c.b16 %v4789, %v4781
        %v6974 = vpack.c.b16 %v4790, %v4782
        %v6975 = vpack.c.b16 %v4791, %v4783
        %v6976 = vpack.c.b16 %v4792, %v4784
        %v6977 = vpack.c.b16 %v4801, %v4793
        %v6978 = vpack.c.b16 %v4802, %v4794
        %v6979 = vpack.c.b16 %v4803, %v4795
        %v6980 = vpack.c.b16 %v4804, %v4796
        %v6981 = vpack.c.b16 %v4805, %v4797
        %v6982 = vpack.c.b16 %v4806, %v4798
        %v6983 = vpack.c.b16 %v4807, %v4799
        %v6984 = vpack.c.b16 %v4808, %v4800
        %v6985 = vpack.c.b16 %v4817, %v4809
        %v6986 = vpack.c.b16 %v4818, %v4810
        %v6987 = vpack.c.b16 %v4819, %v4811
        %v6988 = vpack.c.b16 %v4820, %v4812
        %v6989 = vpack.c.b16 %v4821, %v4813
        %v6990 = vpack.c.b16 %v4822, %v4814
        %v6991 = vpack.c.b16 %v4823, %v4815
        %v6992 = vpack.c.b16 %v4824, %v4816
        %v6993 = vpack.c.b16 %v4833, %v4825
        %v6994 = vpack.c.b16 %v4834, %v4826
        %v6995 = vpack.c.b16 %v4835, %v4827
        %v6996 = vpack.c.b16 %v4836, %v4828
        %v6997 = vpack.c.b16 %v4837, %v4829
        %v6998 = vpack.c.b16 %v4838, %v4830
        %v6999 = vpack.c.b16 %v4839, %v4831
        %v7000 = vpack.c.b16 %v4840, %v4832
        %v7001 = vpack.c.b16 %v4849, %v4841
        %v7002 = vpack.c.b16 %v4850, %v4842
        %v7003 = vpack.c.b16 %v4851, %v4843
        %v7004 = vpack.c.b16 %v4852, %v4844
        %v7005 = vpack.c.b16 %v4853, %v4845
        %v7006 = vpack.c.b16 %v4854, %v4846
        %v7007 = vpack.c.b16 %v4855, %v4847
        %v7008 = vpack.c.b16 %v4856, %v4848
        %v7009 = vpack.c.b16 %v4865, %v4857
        %v7010 = vpack.c.b16 %v4866, %v4858
        %v7011 = vpack.c.b16 %v4867, %v4859
        %v7012 = vpack.c.b16 %v4868, %v4860
        %v7013 = vpack.c.b16 %v4869, %v4861
        %v7014 = vpack.c.b16 %v4870, %v4862
        %v7015 = vpack.c.b16 %v4871, %v4863
        %v7016 = vpack.c.b16 %v4872, %v4864
        %v7017 = vpack.c.b16 %v4881, %v4873
        %v7018 = vpack.c.b16 %v4882, %v4874
        %v7019 = vpack.c.b16 %v4883, %v4875
        %v7020 = vpack.c.b16 %v4884, %v4876
        %v7021 = vpack.c.b16 %v4885, %v4877
        %v7022 = vpack.c.b16 %v4886, %v4878
        %v7023 = vpack.c.b16 %v4887, %v4879
        %v7024 = vpack.c.b16 %v4888, %v4880
        %v7025 = vpack.c.b16 %v4897, %v4889
        %v7026 = vpack.c.b16 %v4898, %v4890
        %v7027 = vpack.c.b16 %v4899, %v4891
        %v7028 = vpack.c.b16 %v4900, %v4892
        %v7029 = vpack.c.b16 %v4901, %v4893
        %v7030 = vpack.c.b16 %v4902, %v4894
        %v7031 = vpack.c.b16 %v4903, %v4895
        %v7032 = vpack.c.b16 %v4904, %v4896
        %v7033 = vpack.c.b16 %v4913, %v4905
        %v7034 = vpack.c.b16 %v4914, %v4906
        %v7035 = vpack.c.b16 %v4915, %v4907
        %v7036 = vpack.c.b16 %v4916, %v4908
        %v7037 = vpack.c.b16 %v4917, %v4909
        %v7038 = vpack.c.b16 %v4918, %v4910
        %v7039 = vpack.c.b16 %v4919, %v4911
        %v7040 = vpack.c.b16 %v4920, %v4912
        %v7041 = vpack.c.b16 %v4929, %v4921
        %v7042 = vpack.c.b16 %v4930, %v4922
        %v7043 = vpack.c.b16 %v4931, %v4923
        %v7044 = vpack.c.b16 %v4932, %v4924
        %v7045 = vpack.c.b16 %v4933, %v4925
        %v7046 = vpack.c.b16 %v4934, %v4926
        %v7047 = vpack.c.b16 %v4935, %v4927
        %v7048 = vpack.c.b16 %v4936, %v4928
        %v7049 = vpack.c.b16 %v4945, %v4937
        %v7050 = vpack.c.b16 %v4946, %v4938
        %v7051 = vpack.c.b16 %v4947, %v4939
        %v7052 = vpack.c.b16 %v4948, %v4940
        %v7053 = vpack.c.b16 %v4949, %v4941
        %v7054 = vpack.c.b16 %v4950, %v4942
        %v7055 = vpack.c.b16 %v4951, %v4943
        %v7056 = vpack.c.b16 %v4952, %v4944
        %v7057 = vpack.c.b16 %v4961, %v4953
        %v7058 = vpack.c.b16 %v4962, %v4954
        %v7059 = vpack.c.b16 %v4963, %v4955
        %v7060 = vpack.c.b16 %v4964, %v4956
        %v7061 = vpack.c.b16 %v4965, %v4957
        %v7062 = vpack.c.b16 %v4966, %v4958
        %v7063 = vpack.c.b16 %v4967, %v4959
        %v7064 = vpack.c.b16 %v4968, %v4960
        %v7065 = vpack.c.b16 %v4977, %v4969
        %v7066 = vpack.c.b16 %v4978, %v4970
        %v7067 = vpack.c.b16 %v4979, %v4971
        %v7068 = vpack.c.b16 %v4980, %v4972
        %v7069 = vpack.c.b16 %v4981, %v4973
        %v7070 = vpack.c.b16 %v4982, %v4974
        %v7071 = vpack.c.b16 %v4983, %v4975
        %v7072 = vpack.c.b16 %v4984, %v4976
        %v7073 = vpack.c.b16 %v4993, %v4985
        %v7074 = vpack.c.b16 %v4994, %v4986
        %v7075 = vpack.c.b16 %v4995, %v4987
        %v7076 = vpack.c.b16 %v4996, %v4988
        %v7077 = vpack.c.b16 %v4997, %v4989
        %v7078 = vpack.c.b16 %v4998, %v4990
        %v7079 = vpack.c.b16 %v4999, %v4991
        %v7080 = vpack.c.b16 %v5000, %v4992
        %v7081 = vpack.c.b16 %v5009, %v5001
        %v7082 = vpack.c.b16 %v5010, %v5002
        %v7083 = vpack.c.b16 %v5011, %v5003
        %v7084 = vpack.c.b16 %v5012, %v5004
        %v7085 = vpack.c.b16 %v5013, %v5005
        %v7086 = vpack.c.b16 %v5014, %v5006
        %v7087 = vpack.c.b16 %v5015, %v5007
        %v7088 = vpack.c.b16 %v5016, %v5008
        %v7089 = vpack.c.b16 %v5025, %v5017
        %v7090 = vpack.c.b16 %v5026, %v5018
        %v7091 = vpack.c.b16 %v5027, %v5019
        %v7092 = vpack.c.b16 %v5028, %v5020
        %v7093 = vpack.c.b16 %v5029, %v5021
        %v7094 = vpack.c.b16 %v5030, %v5022
        %v7095 = vpack.c.b16 %v5031, %v5023
        %v7096 = vpack.c.b16 %v5032, %v5024
        %v7097 = vpack.c.b16 %v5041, %v5033
        %v7098 = vpack.c.b16 %v5042, %v5034
        %v7099 = vpack.c.b16 %v5043, %v5035
        %v7100 = vpack.c.b16 %v5044, %v5036
        %v7101 = vpack.c.b16 %v5045, %v5037
        %v7102 = vpack.c.b16 %v5046, %v5038
        %v7103 = vpack.c.b16 %v5047, %v5039
        %v7104 = vpack.c.b16 %v5048, %v5040
        %v7105 = vpack.c.b16 %v5057, %v5049
        %v7106 = vpack.c.b16 %v5058, %v5050
        %v7107 = vpack.c.b16 %v5059, %v5051
        %v7108 = vpack.c.b16 %v5060, %v5052
        %v7109 = vpack.c.b16 %v5061, %v5053
        %v7110 = vpack.c.b16 %v5062, %v5054
        %v7111 = vpack.c.b16 %v5063, %v5055
        %v7112 = vpack.c.b16 %v5064, %v5056
        %v7113 = vpack.c.b16 %v5073, %v5065
        %v7114 = vpack.c.b16 %v5074, %v5066
        %v7115 = vpack.c.b16 %v5075, %v5067
        %v7116 = vpack.c.b16 %v5076, %v5068
        %v7117 = vpack.c.b16 %v5077, %v5069
        %v7118 = vpack.c.b16 %v5078, %v5070
        %v7119 = vpack.c.b16 %v5079, %v5071
        %v7120 = vpack.c.b16 %v5080, %v5072
        %v7121 = vpack.c.b16 %v5089, %v5081
        %v7122 = vpack.c.b16 %v5090, %v5082
        %v7123 = vpack.c.b16 %v5091, %v5083
        %v7124 = vpack.c.b16 %v5092, %v5084
        %v7125 = vpack.c.b16 %v5093, %v5085
        %v7126 = vpack.c.b16 %v5094, %v5086
        %v7127 = vpack.c.b16 %v5095, %v5087
        %v7128 = vpack.c.b16 %v5096, %v5088
        %v7129 = vpack.c.b16 %v5105, %v5097
        %v7130 = vpack.c.b16 %v5106, %v5098
        %v7131 = vpack.c.b16 %v5107, %v5099
        %v7132 = vpack.c.b16 %v5108, %v5100
        %v7133 = vpack.c.b16 %v5109, %v5101
        %v7134 = vpack.c.b16 %v5110, %v5102
        %v7135 = vpack.c.b16 %v5111, %v5103
        %v7136 = vpack.c.b16 %v5112, %v5104
        %v7137 = vpack.c.b16 %v5121, %v5113
        %v7138 = vpack.c.b16 %v5122, %v5114
        %v7139 = vpack.c.b16 %v5123, %v5115
        %v7140 = vpack.c.b16 %v5124, %v5116
        %v7141 = vpack.c.b16 %v5125, %v5117
        %v7142 = vpack.c.b16 %v5126, %v5118
        %v7143 = vpack.c.b16 %v5127, %v5119
        %v7144 = vpack.c.b16 %v5128, %v5120
        %v7145 = vpack.c.b16 %v5137, %v5129
        %v7146 = vpack.c.b16 %v5138, %v5130
        %v7147 = vpack.c.b16 %v5139, %v5131
        %v7148 = vpack.c.b16 %v5140, %v5132
        %v7149 = vpack.c.b16 %v5141, %v5133
        %v7150 = vpack.c.b16 %v5142, %v5134
        %v7151 = vpack.c.b16 %v5143, %v5135
        %v7152 = vpack.c.b16 %v5144, %v5136
        %v7153 = vpack.c.b16 %v5153, %v5145
        %v7154 = vpack.c.b16 %v5154, %v5146
        %v7155 = vpack.c.b16 %v5155, %v5147
        %v7156 = vpack.c.b16 %v5156, %v5148
        %v7157 = vpack.c.b16 %v5157, %v5149
        %v7158 = vpack.c.b16 %v5158, %v5150
        %v7159 = vpack.c.b16 %v5159, %v5151
        %v7160 = vpack.c.b16 %v5160, %v5152
        %v7161 = vpack.c.b16 %v5169, %v5161
        %v7162 = vpack.c.b16 %v5170, %v5162
        %v7163 = vpack.c.b16 %v5171, %v5163
        %v7164 = vpack.c.b16 %v5172, %v5164
        %v7165 = vpack.c.b16 %v5173, %v5165
        %v7166 = vpack.c.b16 %v5174, %v5166
        %v7167 = vpack.c.b16 %v5175, %v5167
        %v7168 = vpack.c.b16 %v5176, %v5168
        %v7169 = vpack.c.b16 %v5185, %v5177
        %v7170 = vpack.c.b16 %v5186, %v5178
        %v7171 = vpack.c.b16 %v5187, %v5179
        %v7172 = vpack.c.b16 %v5188, %v5180
        %v7173 = vpack.c.b16 %v5189, %v5181
        %v7174 = vpack.c.b16 %v5190, %v5182
        %v7175 = vpack.c.b16 %v5191, %v5183
        %v7176 = vpack.c.b16 %v5192, %v5184
        %v7177 = vpack.c.b16 %v5201, %v5193
        %v7178 = vpack.c.b16 %v5202, %v5194
        %v7179 = vpack.c.b16 %v5203, %v5195
        %v7180 = vpack.c.b16 %v5204, %v5196
        %v7181 = vpack.c.b16 %v5205, %v5197
        %v7182 = vpack.c.b16 %v5206, %v5198
        %v7183 = vpack.c.b16 %v5207, %v5199
        %v7184 = vpack.c.b16 %v5208, %v5200
        %v7185 = vpack.c.b16 %v5217, %v5209
        %v7186 = vpack.c.b16 %v5218, %v5210
        %v7187 = vpack.c.b16 %v5219, %v5211
        %v7188 = vpack.c.b16 %v5220, %v5212
        %v7189 = vpack.c.b16 %v5221, %v5213
        %v7190 = vpack.c.b16 %v5222, %v5214
        %v7191 = vpack.c.b16 %v5223, %v5215
        %v7192 = vpack.c.b16 %v5224, %v5216
        %v7193 = vpack.c.b16 %v5233, %v5225
        %v7194 = vpack.c.b16 %v5234, %v5226
        %v7195 = vpack.c.b16 %v5235, %v5227
        %v7196 = vpack.c.b16 %v5236, %v5228
        %v7197 = vpack.c.b16 %v5237, %v5229
        %v7198 = vpack.c.b16 %v5238, %v5230
        %v7199 = vpack.c.b16 %v5239, %v5231
        %v7200 = vpack.c.b16 %v5240, %v5232
        %v7201 = vpack.c.b16 %v5249, %v5241
        %v7202 = vpack.c.b16 %v5250, %v5242
        %v7203 = vpack.c.b16 %v5251, %v5243
        %v7204 = vpack.c.b16 %v5252, %v5244
        %v7205 = vpack.c.b16 %v5253, %v5245
        %v7206 = vpack.c.b16 %v5254, %v5246
        %v7207 = vpack.c.b16 %v5255, %v5247
        %v7208 = vpack.c.b16 %v5256, %v5248
        %v7209 = vpack.c.b16 %v5265, %v5257
        %v7210 = vpack.c.b16 %v5266, %v5258
        %v7211 = vpack.c.b16 %v5267, %v5259
        %v7212 = vpack.c.b16 %v5268, %v5260
        %v7213 = vpack.c.b16 %v5269, %v5261
        %v7214 = vpack.c.b16 %v5270, %v5262
        %v7215 = vpack.c.b16 %v5271, %v5263
        %v7216 = vpack.c.b16 %v5272, %v5264
        %v7217 = vpack.c.b16 %v5281, %v5273
        %v7218 = vpack.c.b16 %v5282, %v5274
        %v7219 = vpack.c.b16 %v5283, %v5275
        %v7220 = vpack.c.b16 %v5284, %v5276
        %v7221 = vpack.c.b16 %v5285, %v5277
        %v7222 = vpack.c.b16 %v5286, %v5278
        %v7223 = vpack.c.b16 %v5287, %v5279
        %v7224 = vpack.c.b16 %v5288, %v5280
        %v7225 = vpack.c.b16 %v5297, %v5289
        %v7226 = vpack.c.b16 %v5298, %v5290
        %v7227 = vpack.c.b16 %v5299, %v5291
        %v7228 = vpack.c.b16 %v5300, %v5292
        %v7229 = vpack.c.b16 %v5301, %v5293
        %v7230 = vpack.c.b16 %v5302, %v5294
        %v7231 = vpack.c.b16 %v5303, %v5295
        %v7232 = vpack.c.b16 %v5304, %v5296
        %v7233 = vpack.c.b16 %v5313, %v5305
        %v7234 = vpack.c.b16 %v5314, %v5306
        %v7235 = vpack.c.b16 %v5315, %v5307
        %v7236 = vpack.c.b16 %v5316, %v5308
        %v7237 = vpack.c.b16 %v5317, %v5309
        %v7238 = vpack.c.b16 %v5318, %v5310
        %v7239 = vpack.c.b16 %v5319, %v5311
        %v7240 = vpack.c.b16 %v5320, %v5312
        %v7241 = vpack.c.b16 %v5329, %v5321
        %v7242 = vpack.c.b16 %v5330, %v5322
        %v7243 = vpack.c.b16 %v5331, %v5323
        %v7244 = vpack.c.b16 %v5332, %v5324
        %v7245 = vpack.c.b16 %v5333, %v5325
        %v7246 = vpack.c.b16 %v5334, %v5326
        %v7247 = vpack.c.b16 %v5335, %v5327
        %v7248 = vpack.c.b16 %v5336, %v5328
        %v7249 = vpack.c.b16 %v5345, %v5337
        %v7250 = vpack.c.b16 %v5346, %v5338
        %v7251 = vpack.c.b16 %v5347, %v5339
        %v7252 = vpack.c.b16 %v5348, %v5340
        %v7253 = vpack.c.b16 %v5349, %v5341
        %v7254 = vpack.c.b16 %v5350, %v5342
        %v7255 = vpack.c.b16 %v5351, %v5343
        %v7256 = vpack.c.b16 %v5352, %v5344
        %v7257 = vpack.c.b16 %v5361, %v5353
        %v7258 = vpack.c.b16 %v5362, %v5354
        %v7259 = vpack.c.b16 %v5363, %v5355
        %v7260 = vpack.c.b16 %v5364, %v5356
        %v7261 = vpack.c.b16 %v5365, %v5357
        %v7262 = vpack.c.b16 %v5366, %v5358
        %v7263 = vpack.c.b16 %v5367, %v5359
        %v7264 = vpack.c.b16 %v5368, %v5360
        %v7265 = vpack.c.b16 %v5377, %v5369
        %v7266 = vpack.c.b16 %v5378, %v5370
        %v7267 = vpack.c.b16 %v5379, %v5371
        %v7268 = vpack.c.b16 %v5380, %v5372
        %v7269 = vpack.c.b16 %v5381, %v5373
        %v7270 = vpack.c.b16 %v5382, %v5374
        %v7271 = vpack.c.b16 %v5383, %v5375
        %v7272 = vpack.c.b16 %v5384, %v5376
        %v7273 = vpack.c.b16 %v5393, %v5385
        %v7274 = vpack.c.b16 %v5394, %v5386
        %v7275 = vpack.c.b16 %v5395, %v5387
        %v7276 = vpack.c.b16 %v5396, %v5388
        %v7277 = vpack.c.b16 %v5397, %v5389
        %v7278 = vpack.c.b16 %v5398, %v5390
        %v7279 = vpack.c.b16 %v5399, %v5391
        %v7280 = vpack.c.b16 %v5400, %v5392
        %v7281 = vpack.c.b16 %v5409, %v5401
        %v7282 = vpack.c.b16 %v5410, %v5402
        %v7283 = vpack.c.b16 %v5411, %v5403
        %v7284 = vpack.c.b16 %v5412, %v5404
        %v7285 = vpack.c.b16 %v5413, %v5405
        %v7286 = vpack.c.b16 %v5414, %v5406
        %v7287 = vpack.c.b16 %v5415, %v5407
        %v7288 = vpack.c.b16 %v5416, %v5408
        %v7289 = vpack.c.b16 %v5425, %v5417
        %v7290 = vpack.c.b16 %v5426, %v5418
        %v7291 = vpack.c.b16 %v5427, %v5419
        %v7292 = vpack.c.b16 %v5428, %v5420
        %v7293 = vpack.c.b16 %v5429, %v5421
        %v7294 = vpack.c.b16 %v5430, %v5422
        %v7295 = vpack.c.b16 %v5431, %v5423
        %v7296 = vpack.c.b16 %v5432, %v5424
        %v7297 = vpack.c.b16 %v5441, %v5433
        %v7298 = vpack.c.b16 %v5442, %v5434
        %v7299 = vpack.c.b16 %v5443, %v5435
        %v7300 = vpack.c.b16 %v5444, %v5436
        %v7301 = vpack.c.b16 %v5445, %v5437
        %v7302 = vpack.c.b16 %v5446, %v5438
        %v7303 = vpack.c.b16 %v5447, %v5439
        %v7304 = vpack.c.b16 %v5448, %v5440
        %v7305 = vpack.c.b16 %v5457, %v5449
        %v7306 = vpack.c.b16 %v5458, %v5450
        %v7307 = vpack.c.b16 %v5459, %v5451
        %v7308 = vpack.c.b16 %v5460, %v5452
        %v7309 = vpack.c.b16 %v5461, %v5453
        %v7310 = vpack.c.b16 %v5462, %v5454
        %v7311 = vpack.c.b16 %v5463, %v5455
        %v7312 = vpack.c.b16 %v5464, %v5456
        %v7313 = vpack.c.b16 %v5473, %v5465
        %v7314 = vpack.c.b16 %v5474, %v5466
        %v7315 = vpack.c.b16 %v5475, %v5467
        %v7316 = vpack.c.b16 %v5476, %v5468
        %v7317 = vpack.c.b16 %v5477, %v5469
        %v7318 = vpack.c.b16 %v5478, %v5470
        %v7319 = vpack.c.b16 %v5479, %v5471
        %v7320 = vpack.c.b16 %v5480, %v5472
        %v7321 = vpack.c.b16 %v5489, %v5481
        %v7322 = vpack.c.b16 %v5490, %v5482
        %v7323 = vpack.c.b16 %v5491, %v5483
        %v7324 = vpack.c.b16 %v5492, %v5484
        %v7325 = vpack.c.b16 %v5493, %v5485
        %v7326 = vpack.c.b16 %v5494, %v5486
        %v7327 = vpack.c.b16 %v5495, %v5487
        %v7328 = vpack.c.b16 %v5496, %v5488
        %v7329 = vpack.c.b16 %v5505, %v5497
        %v7330 = vpack.c.b16 %v5506, %v5498
        %v7331 = vpack.c.b16 %v5507, %v5499
        %v7332 = vpack.c.b16 %v5508, %v5500
        %v7333 = vpack.c.b16 %v5509, %v5501
        %v7334 = vpack.c.b16 %v5510, %v5502
        %v7335 = vpack.c.b16 %v5511, %v5503
        %v7336 = vpack.c.b16 %v5512, %v5504
        %v7337 = vpack.c.b16 %v5521, %v5513
        %v7338 = vpack.c.b16 %v5522, %v5514
        %v7339 = vpack.c.b16 %v5523, %v5515
        %v7340 = vpack.c.b16 %v5524, %v5516
        %v7341 = vpack.c.b16 %v5525, %v5517
        %v7342 = vpack.c.b16 %v5526, %v5518
        %v7343 = vpack.c.b16 %v5527, %v5519
        %v7344 = vpack.c.b16 %v5528, %v5520
        %v7345 = vpack.c.b16 %v5537, %v5529
        %v7346 = vpack.c.b16 %v5538, %v5530
        %v7347 = vpack.c.b16 %v5539, %v5531
        %v7348 = vpack.c.b16 %v5540, %v5532
        %v7349 = vpack.c.b16 %v5541, %v5533
        %v7350 = vpack.c.b16 %v5542, %v5534
        %v7351 = vpack.c.b16 %v5543, %v5535
        %v7352 = vpack.c.b16 %v5544, %v5536
        %v7353 = vpack.c.b16 %v5553, %v5545
        %v7354 = vpack.c.b16 %v5554, %v5546
        %v7355 = vpack.c.b16 %v5555, %v5547
        %v7356 = vpack.c.b16 %v5556, %v5548
        %v7357 = vpack.c.b16 %v5557, %v5549
        %v7358 = vpack.c.b16 %v5558, %v5550
        %v7359 = vpack.c.b16 %v5559, %v5551
        %v7360 = vpack.c.b16 %v5560, %v5552
        %v7361 = vpack.c.b16 %v5569, %v5561
        %v7362 = vpack.c.b16 %v5570, %v5562
        %v7363 = vpack.c.b16 %v5571, %v5563
        %v7364 = vpack.c.b16 %v5572, %v5564
        %v7365 = vpack.c.b16 %v5573, %v5565
        %v7366 = vpack.c.b16 %v5574, %v5566
        %v7367 = vpack.c.b16 %v5575, %v5567
        %v7368 = vpack.c.b16 %v5576, %v5568
        %v7369 = vpack.c.b16 %v5585, %v5577
        %v7370 = vpack.c.b16 %v5586, %v5578
        %v7371 = vpack.c.b16 %v5587, %v5579
        %v7372 = vpack.c.b16 %v5588, %v5580
        %v7373 = vpack.c.b16 %v5589, %v5581
        %v7374 = vpack.c.b16 %v5590, %v5582
        %v7375 = vpack.c.b16 %v5591, %v5583
        %v7376 = vpack.c.b16 %v5592, %v5584
        %v7377 = vpack.c.b16 %v5601, %v5593
        %v7378 = vpack.c.b16 %v5602, %v5594
        %v7379 = vpack.c.b16 %v5603, %v5595
        %v7380 = vpack.c.b16 %v5604, %v5596
        %v7381 = vpack.c.b16 %v5605, %v5597
        %v7382 = vpack.c.b16 %v5606, %v5598
        %v7383 = vpack.c.b16 %v5607, %v5599
        %v7384 = vpack.c.b16 %v5608, %v5600
        %v7385 = vpack.c.b16 %v5617, %v5609
        %v7386 = vpack.c.b16 %v5618, %v5610
        %v7387 = vpack.c.b16 %v5619, %v5611
        %v7388 = vpack.c.b16 %v5620, %v5612
        %v7389 = vpack.c.b16 %v5621, %v5613
        %v7390 = vpack.c.b16 %v5622, %v5614
        %v7391 = vpack.c.b16 %v5623, %v5615
        %v7392 = vpack.c.b16 %v5624, %v5616
        %v7393 = vpack.c.b16 %v5633, %v5625
        %v7394 = vpack.c.b16 %v5634, %v5626
        %v7395 = vpack.c.b16 %v5635, %v5627
        %v7396 = vpack.c.b16 %v5636, %v5628
        %v7397 = vpack.c.b16 %v5637, %v5629
        %v7398 = vpack.c.b16 %v5638, %v5630
        %v7399 = vpack.c.b16 %v5639, %v5631
        %v7400 = vpack.c.b16 %v5640, %v5632
        %v7401 = vpack.c.b16 %v5649, %v5641
        %v7402 = vpack.c.b16 %v5650, %v5642
        %v7403 = vpack.c.b16 %v5651, %v5643
        %v7404 = vpack.c.b16 %v5652, %v5644
        %v7405 = vpack.c.b16 %v5653, %v5645
        %v7406 = vpack.c.b16 %v5654, %v5646
        %v7407 = vpack.c.b16 %v5655, %v5647
        %v7408 = vpack.c.b16 %v5656, %v5648
        %v7409 = vpack.c.b16 %v5665, %v5657
        %v7410 = vpack.c.b16 %v5666, %v5658
        %v7411 = vpack.c.b16 %v5667, %v5659
        %v7412 = vpack.c.b16 %v5668, %v5660
        %v7413 = vpack.c.b16 %v5669, %v5661
        %v7414 = vpack.c.b16 %v5670, %v5662
        %v7415 = vpack.c.b16 %v5671, %v5663
        %v7416 = vpack.c.b16 %v5672, %v5664
        %v7417 = vpack.c.b16 %v5681, %v5673
        %v7418 = vpack.c.b16 %v5682, %v5674
        %v7419 = vpack.c.b16 %v5683, %v5675
        %v7420 = vpack.c.b16 %v5684, %v5676
        %v7421 = vpack.c.b16 %v5685, %v5677
        %v7422 = vpack.c.b16 %v5686, %v5678
        %v7423 = vpack.c.b16 %v5687, %v5679
        %v7424 = vpack.c.b16 %v5688, %v5680
        %v7425 = vpack.c.b16 %v5697, %v5689
        %v7426 = vpack.c.b16 %v5698, %v5690
        %v7427 = vpack.c.b16 %v5699, %v5691
        %v7428 = vpack.c.b16 %v5700, %v5692
        %v7429 = vpack.c.b16 %v5701, %v5693
        %v7430 = vpack.c.b16 %v5702, %v5694
        %v7431 = vpack.c.b16 %v5703, %v5695
        %v7432 = vpack.c.b16 %v5704, %v5696
        %v7433 = vpack.c.b16 %v5713, %v5705
        %v7434 = vpack.c.b16 %v5714, %v5706
        %v7435 = vpack.c.b16 %v5715, %v5707
        %v7436 = vpack.c.b16 %v5716, %v5708
        %v7437 = vpack.c.b16 %v5717, %v5709
        %v7438 = vpack.c.b16 %v5718, %v5710
        %v7439 = vpack.c.b16 %v5719, %v5711
        %v7440 = vpack.c.b16 %v5720, %v5712
        %v7441 = vpack.c.b16 %v5729, %v5721
        %v7442 = vpack.c.b16 %v5730, %v5722
        %v7443 = vpack.c.b16 %v5731, %v5723
        %v7444 = vpack.c.b16 %v5732, %v5724
        %v7445 = vpack.c.b16 %v5733, %v5725
        %v7446 = vpack.c.b16 %v5734, %v5726
        %v7447 = vpack.c.b16 %v5735, %v5727
        %v7448 = vpack.c.b16 %v5736, %v5728
        %v7449 = vpack.c.b16 %v5745, %v5737
        %v7450 = vpack.c.b16 %v5746, %v5738
        %v7451 = vpack.c.b16 %v5747, %v5739
        %v7452 = vpack.c.b16 %v5748, %v5740
        %v7453 = vpack.c.b16 %v5749, %v5741
        %v7454 = vpack.c.b16 %v5750, %v5742
        %v7455 = vpack.c.b16 %v5751, %v5743
        %v7456 = vpack.c.b16 %v5752, %v5744
        %v7457 = vpack.c.b16 %v5761, %v5753
        %v7458 = vpack.c.b16 %v5762, %v5754
        %v7459 = vpack.c.b16 %v5763, %v5755
        %v7460 = vpack.c.b16 %v5764, %v5756
        %v7461 = vpack.c.b16 %v5765, %v5757
        %v7462 = vpack.c.b16 %v5766, %v5758
        %v7463 = vpack.c.b16 %v5767, %v5759
        %v7464 = vpack.c.b16 %v5768, %v5760
        %v7465 = vpack.c.b16 %v5777, %v5769
        %v7466 = vpack.c.b16 %v5778, %v5770
        %v7467 = vpack.c.b16 %v5779, %v5771
        %v7468 = vpack.c.b16 %v5780, %v5772
        %v7469 = vpack.c.b16 %v5781, %v5773
        %v7470 = vpack.c.b16 %v5782, %v5774
        %v7471 = vpack.c.b16 %v5783, %v5775
        %v7472 = vpack.c.b16 %v5784, %v5776
        %v7473 = vpack.c.b16 %v5793, %v5785
        %v7474 = vpack.c.b16 %v5794, %v5786
        %v7475 = vpack.c.b16 %v5795, %v5787
        %v7476 = vpack.c.b16 %v5796, %v5788
        %v7477 = vpack.c.b16 %v5797, %v5789
        %v7478 = vpack.c.b16 %v5798, %v5790
        %v7479 = vpack.c.b16 %v5799, %v5791
        %v7480 = vpack.c.b16 %v5800, %v5792
        %v7481 = vpack.c.b16 %v5809, %v5801
        %v7482 = vpack.c.b16 %v5810, %v5802
        %v7483 = vpack.c.b16 %v5811, %v5803
        %v7484 = vpack.c.b16 %v5812, %v5804
        %v7485 = vpack.c.b16 %v5813, %v5805
        %v7486 = vpack.c.b16 %v5814, %v5806
        %v7487 = vpack.c.b16 %v5815, %v5807
        %v7488 = vpack.c.b16 %v5816, %v5808
        %v7489 = vpack.c.b16 %v5825, %v5817
        %v7490 = vpack.c.b16 %v5826, %v5818
        %v7491 = vpack.c.b16 %v5827, %v5819
        %v7492 = vpack.c.b16 %v5828, %v5820
        %v7493 = vpack.c.b16 %v5829, %v5821
        %v7494 = vpack.c.b16 %v5830, %v5822
        %v7495 = vpack.c.b16 %v5831, %v5823
        %v7496 = vpack.c.b16 %v5832, %v5824
        %v7497 = vpack.c.b16 %v5841, %v5833
        %v7498 = vpack.c.b16 %v5842, %v5834
        %v7499 = vpack.c.b16 %v5843, %v5835
        %v7500 = vpack.c.b16 %v5844, %v5836
        %v7501 = vpack.c.b16 %v5845, %v5837
        %v7502 = vpack.c.b16 %v5846, %v5838
        %v7503 = vpack.c.b16 %v5847, %v5839
        %v7504 = vpack.c.b16 %v5848, %v5840
        %v7505 = vpack.c.b16 %v5857, %v5849
        %v7506 = vpack.c.b16 %v5858, %v5850
        %v7507 = vpack.c.b16 %v5859, %v5851
        %v7508 = vpack.c.b16 %v5860, %v5852
        %v7509 = vpack.c.b16 %v5861, %v5853
        %v7510 = vpack.c.b16 %v5862, %v5854
        %v7511 = vpack.c.b16 %v5863, %v5855
        %v7512 = vpack.c.b16 %v5864, %v5856
        %v7513 = vpack.c.b16 %v5873, %v5865
        %v7514 = vpack.c.b16 %v5874, %v5866
        %v7515 = vpack.c.b16 %v5875, %v5867
        %v7516 = vpack.c.b16 %v5876, %v5868
        %v7517 = vpack.c.b16 %v5877, %v5869
        %v7518 = vpack.c.b16 %v5878, %v5870
        %v7519 = vpack.c.b16 %v5879, %v5871
        %v7520 = vpack.c.b16 %v5880, %v5872
        %v7521 = vpack.c.b16 %v5889, %v5881
        %v7522 = vpack.c.b16 %v5890, %v5882
        %v7523 = vpack.c.b16 %v5891, %v5883
        %v7524 = vpack.c.b16 %v5892, %v5884
        %v7525 = vpack.c.b16 %v5893, %v5885
        %v7526 = vpack.c.b16 %v5894, %v5886
        %v7527 = vpack.c.b16 %v5895, %v5887
        %v7528 = vpack.c.b16 %v5896, %v5888
        %v7529 = vpack.c.b16 %v5905, %v5897
        %v7530 = vpack.c.b16 %v5906, %v5898
        %v7531 = vpack.c.b16 %v5907, %v5899
        %v7532 = vpack.c.b16 %v5908, %v5900
        %v7533 = vpack.c.b16 %v5909, %v5901
        %v7534 = vpack.c.b16 %v5910, %v5902
        %v7535 = vpack.c.b16 %v5911, %v5903
        %v7536 = vpack.c.b16 %v5912, %v5904
        %v7537 = vpack.c.b16 %v5921, %v5913
        %v7538 = vpack.c.b16 %v5922, %v5914
        %v7539 = vpack.c.b16 %v5923, %v5915
        %v7540 = vpack.c.b16 %v5924, %v5916
        %v7541 = vpack.c.b16 %v5925, %v5917
        %v7542 = vpack.c.b16 %v5926, %v5918
        %v7543 = vpack.c.b16 %v5927, %v5919
        %v7544 = vpack.c.b16 %v5928, %v5920
        %v7545 = vpack.c.b16 %v5937, %v5929
        %v7546 = vpack.c.b16 %v5938, %v5930
        %v7547 = vpack.c.b16 %v5939, %v5931
        %v7548 = vpack.c.b16 %v5940, %v5932
        %v7549 = vpack.c.b16 %v5941, %v5933
        %v7550 = vpack.c.b16 %v5942, %v5934
        %v7551 = vpack.c.b16 %v5943, %v5935
        %v7552 = vpack.c.b16 %v5944, %v5936
        %v7553 = vpack.c.b16 %v5953, %v5945
        %v7554 = vpack.c.b16 %v5954, %v5946
        %v7555 = vpack.c.b16 %v5955, %v5947
        %v7556 = vpack.c.b16 %v5956, %v5948
        %v7557 = vpack.c.b16 %v5957, %v5949
        %v7558 = vpack.c.b16 %v5958, %v5950
        %v7559 = vpack.c.b16 %v5959, %v5951
        %v7560 = vpack.c.b16 %v5960, %v5952
        %v7561 = vpack.c.b16 %v5969, %v5961
        %v7562 = vpack.c.b16 %v5970, %v5962
        %v7563 = vpack.c.b16 %v5971, %v5963
        %v7564 = vpack.c.b16 %v5972, %v5964
        %v7565 = vpack.c.b16 %v5973, %v5965
        %v7566 = vpack.c.b16 %v5974, %v5966
        %v7567 = vpack.c.b16 %v5975, %v5967
        %v7568 = vpack.c.b16 %v5976, %v5968
        %v7569 = vpack.c.b16 %v5985, %v5977
        %v7570 = vpack.c.b16 %v5986, %v5978
        %v7571 = vpack.c.b16 %v5987, %v5979
        %v7572 = vpack.c.b16 %v5988, %v5980
        %v7573 = vpack.c.b16 %v5989, %v5981
        %v7574 = vpack.c.b16 %v5990, %v5982
        %v7575 = vpack.c.b16 %v5991, %v5983
        %v7576 = vpack.c.b16 %v5992, %v5984
        %v7577 = vpack.c.b16 %v6001, %v5993
        %v7578 = vpack.c.b16 %v6002, %v5994
        %v7579 = vpack.c.b16 %v6003, %v5995
        %v7580 = vpack.c.b16 %v6004, %v5996
        %v7581 = vpack.c.b16 %v6005, %v5997
        %v7582 = vpack.c.b16 %v6006, %v5998
        %v7583 = vpack.c.b16 %v6007, %v5999
        %v7584 = vpack.c.b16 %v6008, %v6000
        %v7585 = vpack.c.b16 %v6017, %v6009
        %v7586 = vpack.c.b16 %v6018, %v6010
        %v7587 = vpack.c.b16 %v6019, %v6011
        %v7588 = vpack.c.b16 %v6020, %v6012
        %v7589 = vpack.c.b16 %v6021, %v6013
        %v7590 = vpack.c.b16 %v6022, %v6014
        %v7591 = vpack.c.b16 %v6023, %v6015
        %v7592 = vpack.c.b16 %v6024, %v6016
        %v7593 = vpack.c.b16 %v6033, %v6025
        %v7594 = vpack.c.b16 %v6034, %v6026
        %v7595 = vpack.c.b16 %v6035, %v6027
        %v7596 = vpack.c.b16 %v6036, %v6028
        %v7597 = vpack.c.b16 %v6037, %v6029
        %v7598 = vpack.c.b16 %v6038, %v6030
        %v7599 = vpack.c.b16 %v6039, %v6031
        %v7600 = vpack.c.b16 %v6040, %v6032
        %v7601 = vpack.c.b16 %v6049, %v6041
        %v7602 = vpack.c.b16 %v6050, %v6042
        %v7603 = vpack.c.b16 %v6051, %v6043
        %v7604 = vpack.c.b16 %v6052, %v6044
        %v7605 = vpack.c.b16 %v6053, %v6045
        %v7606 = vpack.c.b16 %v6054, %v6046
        %v7607 = vpack.c.b16 %v6055, %v6047
        %v7608 = vpack.c.b16 %v6056, %v6048
        %v7609 = vpack.c.b16 %v6065, %v6057
        %v7610 = vpack.c.b16 %v6066, %v6058
        %v7611 = vpack.c.b16 %v6067, %v6059
        %v7612 = vpack.c.b16 %v6068, %v6060
        %v7613 = vpack.c.b16 %v6069, %v6061
        %v7614 = vpack.c.b16 %v6070, %v6062
        %v7615 = vpack.c.b16 %v6071, %v6063
        %v7616 = vpack.c.b16 %v6072, %v6064
        %v7617 = vpack.c.b16 %v6081, %v6073
        %v7618 = vpack.c.b16 %v6082, %v6074
        %v7619 = vpack.c.b16 %v6083, %v6075
        %v7620 = vpack.c.b16 %v6084, %v6076
        %v7621 = vpack.c.b16 %v6085, %v6077
        %v7622 = vpack.c.b16 %v6086, %v6078
        %v7623 = vpack.c.b16 %v6087, %v6079
        %v7624 = vpack.c.b16 %v6088, %v6080
        %v7625 = vpack.c.b16 %v6097, %v6089
        %v7626 = vpack.c.b16 %v6098, %v6090
        %v7627 = vpack.c.b16 %v6099, %v6091
        %v7628 = vpack.c.b16 %v6100, %v6092
        %v7629 = vpack.c.b16 %v6101, %v6093
        %v7630 = vpack.c.b16 %v6102, %v6094
        %v7631 = vpack.c.b16 %v6103, %v6095
        %v7632 = vpack.c.b16 %v6104, %v6096
        %v7633 = vpack.c.b16 %v6113, %v6105
        %v7634 = vpack.c.b16 %v6114, %v6106
        %v7635 = vpack.c.b16 %v6115, %v6107
        %v7636 = vpack.c.b16 %v6116, %v6108
        %v7637 = vpack.c.b16 %v6117, %v6109
        %v7638 = vpack.c.b16 %v6118, %v6110
        %v7639 = vpack.c.b16 %v6119, %v6111
        %v7640 = vpack.c.b16 %v6120, %v6112
        %v7641 = vpack.c.b16 %v6129, %v6121
        %v7642 = vpack.c.b16 %v6130, %v6122
        %v7643 = vpack.c.b16 %v6131, %v6123
        %v7644 = vpack.c.b16 %v6132, %v6124
        %v7645 = vpack.c.b16 %v6133, %v6125
        %v7646 = vpack.c.b16 %v6134, %v6126
        %v7647 = vpack.c.b16 %v6135, %v6127
        %v7648 = vpack.c.b16 %v6136, %v6128
        %v7649 = vpack.c.b16 %v6145, %v6137
        %v7650 = vpack.c.b16 %v6146, %v6138
        %v7651 = vpack.c.b16 %v6147, %v6139
        %v7652 = vpack.c.b16 %v6148, %v6140
        %v7653 = vpack.c.b16 %v6149, %v6141
        %v7654 = vpack.c.b16 %v6150, %v6142
        %v7655 = vpack.c.b16 %v6151, %v6143
        %v7656 = vpack.c.b16 %v6152, %v6144
        %v7657 = vpack.c.b16 %v6161, %v6153
        %v7658 = vpack.c.b16 %v6162, %v6154
        %v7659 = vpack.c.b16 %v6163, %v6155
        %v7660 = vpack.c.b16 %v6164, %v6156
        %v7661 = vpack.c.b16 %v6165, %v6157
        %v7662 = vpack.c.b16 %v6166, %v6158
        %v7663 = vpack.c.b16 %v6167, %v6159
        %v7664 = vpack.c.b16 %v6168, %v6160
        %v7665 = vpack.c.b16 %v6177, %v6169
        %v7666 = vpack.c.b16 %v6178, %v6170
        %v7667 = vpack.c.b16 %v6179, %v6171
        %v7668 = vpack.c.b16 %v6180, %v6172
        %v7669 = vpack.c.b16 %v6181, %v6173
        %v7670 = vpack.c.b16 %v6182, %v6174
        %v7671 = vpack.c.b16 %v6183, %v6175
        %v7672 = vpack.c.b16 %v6184, %v6176
        %v7673 = vpack.c.b16 %v6193, %v6185
        %v7674 = vpack.c.b16 %v6194, %v6186
        %v7675 = vpack.c.b16 %v6195, %v6187
        %v7676 = vpack.c.b16 %v6196, %v6188
        %v7677 = vpack.c.b16 %v6197, %v6189
        %v7678 = vpack.c.b16 %v6198, %v6190
        %v7679 = vpack.c.b16 %v6199, %v6191
        %v7680 = vpack.c.b16 %v6200, %v6192
        %v7681 = vpack.c.b16 %v6209, %v6201
        %v7682 = vpack.c.b16 %v6210, %v6202
        %v7683 = vpack.c.b16 %v6211, %v6203
        %v7684 = vpack.c.b16 %v6212, %v6204
        %v7685 = vpack.c.b16 %v6213, %v6205
        %v7686 = vpack.c.b16 %v6214, %v6206
        %v7687 = vpack.c.b16 %v6215, %v6207
        %v7688 = vpack.c.b16 %v6216, %v6208
        %9161 = vmatprep.subr.bf16.mxu0 %v6274
        %9162 = vmatpush1.bf16.msra.mxu0 %v6273
        %9163 = vmatprep.subr.bf16.mxu0 %v6266
        %9164 = vmatpush1.bf16.msra.mxu0 %v6265
        %9165 = vmatprep.subr.bf16.mxu0 %v6258
        %9166 = vmatpush1.bf16.msra.mxu0 %v6257
        %9167 = vmatprep.subr.bf16.mxu0 %v6250
        %9168 = vmatpush1.bf16.msra.mxu0 %v6249
        %9169 = vmatprep.subr.bf16.mxu0 %v6242
        %9170 = vmatpush1.bf16.msra.mxu0 %v6241
        %9171 = vmatprep.subr.bf16.mxu0 %v6234
        %9172 = vmatpush1.bf16.msra.mxu0 %v6233
        %9173 = vmatprep.subr.bf16.mxu0 %v6226
        %9174 = vmatpush1.bf16.msra.mxu0 %v6225
        %9175 = vmatprep.subr.bf16.mxu0 %v6218
        %9176 = vmatpush1.bf16.msra.mxu0 %v6217
        %9177 = vmatprep.subr.bf16.mxu0 %v6338
        %9178 = vmatpush2.bf16.msra.mxu0 %v6337
        %9179 = vmatprep.subr.bf16.mxu0 %v6330
        %9180 = vmatpush2.bf16.msra.mxu0 %v6329
        %9181 = vmatprep.subr.bf16.mxu0 %v6322
        %9182 = vmatpush2.bf16.msra.mxu0 %v6321
        %9183 = vmatprep.subr.bf16.mxu0 %v6314
        %9184 = vmatpush2.bf16.msra.mxu0 %v6313
        %9185 = vmatprep.subr.bf16.mxu0 %v6306
        %9186 = vmatpush2.bf16.msra.mxu0 %v6305
        %9187 = vmatprep.subr.bf16.mxu0 %v6298
        %9188 = vmatpush2.bf16.msra.mxu0 %v6297
        %9189 = vmatprep.subr.bf16.mxu0 %v6290
        %9190 = vmatpush2.bf16.msra.mxu0 %v6289
        %9191 = vmatprep.subr.bf16.mxu0 %v6282
        %9192 = vmatpush2.bf16.msra.mxu0 %v6281
        %9193 = vmatprep.mubr.bf16.mxu0 %v307
        %9194 = vmatmul.mubr.bf16.gmra.mxu0 %v306
        %v9195 = vpop.f32.mrf.mxu0
        %v9196 = vadd.f32 0.0, %v9195
        %v9197 = vpop.f32.mrf.mxu0
        %v9198 = vadd.f32 0.0, %v9197
        %v9199 = vpop.f32.mrf.mxu0
        %v9200 = vpop.f32.mrf.mxu0
        %9201 = vdwg.mxu0
        %9202 = vmatprep.subr.bf16.mxu0 %v6402
        %9203 = vmatpush1.bf16.msra.mxu0 %v6401
        %9204 = vmatprep.subr.bf16.mxu0 %v6394
        %9205 = vmatpush1.bf16.msra.mxu0 %v6393
        %9206 = vmatprep.subr.bf16.mxu0 %v6386
        %9207 = vmatpush1.bf16.msra.mxu0 %v6385
        %9208 = vmatprep.subr.bf16.mxu0 %v6378
        %9209 = vmatpush1.bf16.msra.mxu0 %v6377
        %9210 = vmatprep.subr.bf16.mxu0 %v6370
        %9211 = vmatpush1.bf16.msra.mxu0 %v6369
        %9212 = vmatprep.subr.bf16.mxu0 %v6362
        %9213 = vmatpush1.bf16.msra.mxu0 %v6361
        %9214 = vmatprep.subr.bf16.mxu0 %v6354
        %9215 = vmatpush1.bf16.msra.mxu0 %v6353
        %9216 = vmatprep.subr.bf16.mxu0 %v6346
        %9217 = vmatpush1.bf16.msra.mxu0 %v6345
        %9218 = vmatprep.subr.bf16.mxu0 %v6466
        %9219 = vmatpush2.bf16.msra.mxu0 %v6465
        %9220 = vmatprep.subr.bf16.mxu0 %v6458
        %9221 = vmatpush2.bf16.msra.mxu0 %v6457
        %9222 = vmatprep.subr.bf16.mxu0 %v6450
        %9223 = vmatpush2.bf16.msra.mxu0 %v6449
        %9224 = vmatprep.subr.bf16.mxu0 %v6442
        %9225 = vmatpush2.bf16.msra.mxu0 %v6441
        %9226 = vmatprep.subr.bf16.mxu0 %v6434
        %9227 = vmatpush2.bf16.msra.mxu0 %v6433
        %9228 = vmatprep.subr.bf16.mxu0 %v6426
        %9229 = vmatpush2.bf16.msra.mxu0 %v6425
        %9230 = vmatprep.subr.bf16.mxu0 %v6418
        %9231 = vmatpush2.bf16.msra.mxu0 %v6417
        %9232 = vmatprep.subr.bf16.mxu0 %v6410
        %9233 = vmatpush2.bf16.msra.mxu0 %v6409
        %9234 = vmatprep.mubr.bf16.mxu0 %v309
        %9235 = vmatmul.mubr.bf16.gmra.mxu0 %v308
        %v9236 = vpop.f32.mrf.mxu0
        %v9237 = vadd.f32 %v9196, %v9236
        %v9238 = vpop.f32.mrf.mxu0
        %v9239 = vadd.f32 %v9198, %v9238
        %v9240 = vpop.f32.mrf.mxu0
        %v9241 = vpop.f32.mrf.mxu0
        %9242 = vdwg.mxu0
        %9243 = vmatprep.subr.bf16.mxu0 %v6530
        %9244 = vmatpush1.bf16.msra.mxu0 %v6529
        %9245 = vmatprep.subr.bf16.mxu0 %v6522
        %9246 = vmatpush1.bf16.msra.mxu0 %v6521
        %9247 = vmatprep.subr.bf16.mxu0 %v6514
        %9248 = vmatpush1.bf16.msra.mxu0 %v6513
        %9249 = vmatprep.subr.bf16.mxu0 %v6506
        %9250 = vmatpush1.bf16.msra.mxu0 %v6505
        %9251 = vmatprep.subr.bf16.mxu0 %v6498
        %9252 = vmatpush1.bf16.msra.mxu0 %v6497
        %9253 = vmatprep.subr.bf16.mxu0 %v6490
        %9254 = vmatpush1.bf16.msra.mxu0 %v6489
        %9255 = vmatprep.subr.bf16.mxu0 %v6482
        %9256 = vmatpush1.bf16.msra.mxu0 %v6481
        %9257 = vmatprep.subr.bf16.mxu0 %v6474
        %9258 = vmatpush1.bf16.msra.mxu0 %v6473
        %9259 = vmatprep.subr.bf16.mxu0 %v6594
        %9260 = vmatpush2.bf16.msra.mxu0 %v6593
        %9261 = vmatprep.subr.bf16.mxu0 %v6586
        %9262 = vmatpush2.bf16.msra.mxu0 %v6585
        %9263 = vmatprep.subr.bf16.mxu0 %v6578
        %9264 = vmatpush2.bf16.msra.mxu0 %v6577
        %9265 = vmatprep.subr.bf16.mxu0 %v6570
        %9266 = vmatpush2.bf16.msra.mxu0 %v6569
        %9267 = vmatprep.subr.bf16.mxu0 %v6562
        %9268 = vmatpush2.bf16.msra.mxu0 %v6561
        %9269 = vmatprep.subr.bf16.mxu0 %v6554
        %9270 = vmatpush2.bf16.msra.mxu0 %v6553
        %9271 = vmatprep.subr.bf16.mxu0 %v6546
        %9272 = vmatpush2.bf16.msra.mxu0 %v6545
        %9273 = vmatprep.subr.bf16.mxu0 %v6538
        %9274 = vmatpush2.bf16.msra.mxu0 %v6537
        %9275 = vmatprep.mubr.bf16.mxu0 %v311
        %9276 = vmatmul.mubr.bf16.gmra.mxu0 %v310
        %v9277 = vpop.f32.mrf.mxu0
        %v9278 = vadd.f32 %v9237, %v9277
        %v9279 = vpop.f32.mrf.mxu0
        %v9280 = vadd.f32 %v9239, %v9279
        %v9281 = vpop.f32.mrf.mxu0
        %v9282 = vpop.f32.mrf.mxu0
        %9283 = vdwg.mxu0
        %9284 = vmatprep.subr.bf16.mxu0 %v6658
        %9285 = vmatpush1.bf16.msra.mxu0 %v6657
        %9286 = vmatprep.subr.bf16.mxu0 %v6650
        %9287 = vmatpush1.bf16.msra.mxu0 %v6649
        %9288 = vmatprep.subr.bf16.mxu0 %v6642
        %9289 = vmatpush1.bf16.msra.mxu0 %v6641
        %9290 = vmatprep.subr.bf16.mxu0 %v6634
        %9291 = vmatpush1.bf16.msra.mxu0 %v6633
        %9292 = vmatprep.subr.bf16.mxu0 %v6626
        %9293 = vmatpush1.bf16.msra.mxu0 %v6625
        %9294 = vmatprep.subr.bf16.mxu0 %v6618
        %9295 = vmatpush1.bf16.msra.mxu0 %v6617
        %9296 = vmatprep.subr.bf16.mxu0 %v6610
        %9297 = vmatpush1.bf16.msra.mxu0 %v6609
        %9298 = vmatprep.subr.bf16.mxu0 %v6602
        %9299 = vmatpush1.bf16.msra.mxu0 %v6601
        %9300 = vmatprep.subr.bf16.mxu0 %v6722
        %9301 = vmatpush2.bf16.msra.mxu0 %v6721
        %9302 = vmatprep.subr.bf16.mxu0 %v6714
        %9303 = vmatpush2.bf16.msra.mxu0 %v6713
        %9304 = vmatprep.subr.bf16.mxu0 %v6706
        %9305 = vmatpush2.bf16.msra.mxu0 %v6705
        %9306 = vmatprep.subr.bf16.mxu0 %v6698
        %9307 = vmatpush2.bf16.msra.mxu0 %v6697
        %9308 = vmatprep.subr.bf16.mxu0 %v6690
        %9309 = vmatpush2.bf16.msra.mxu0 %v6689
        %9310 = vmatprep.subr.bf16.mxu0 %v6682
        %9311 = vmatpush2.bf16.msra.mxu0 %v6681
        %9312 = vmatprep.subr.bf16.mxu0 %v6674
        %9313 = vmatpush2.bf16.msra.mxu0 %v6673
        %9314 = vmatprep.subr.bf16.mxu0 %v6666
        %9315 = vmatpush2.bf16.msra.mxu0 %v6665
        %9316 = vmatprep.mubr.bf16.mxu0 %v313
        %9317 = vmatmul.mubr.bf16.gmra.mxu0 %v312
        %v9318 = vpop.f32.mrf.mxu0
        %v9319 = vadd.f32 %v9278, %v9318
        %v9320 = vpop.f32.mrf.mxu0
        %v9321 = vadd.f32 %v9280, %v9320
        %v9322 = vpop.f32.mrf.mxu0
        %v9323 = vpop.f32.mrf.mxu0
        %9324 = vdwg.mxu0
        %9325 = vmatprep.subr.bf16.mxu0 %v6786
        %9326 = vmatpush1.bf16.msra.mxu0 %v6785
        %9327 = vmatprep.subr.bf16.mxu0 %v6778
        %9328 = vmatpush1.bf16.msra.mxu0 %v6777
        %9329 = vmatprep.subr.bf16.mxu0 %v6770
        %9330 = vmatpush1.bf16.msra.mxu0 %v6769
        %9331 = vmatprep.subr.bf16.mxu0 %v6762
        %9332 = vmatpush1.bf16.msra.mxu0 %v6761
        %9333 = vmatprep.subr.bf16.mxu0 %v6754
        %9334 = vmatpush1.bf16.msra.mxu0 %v6753
        %9335 = vmatprep.subr.bf16.mxu0 %v6746
        %9336 = vmatpush1.bf16.msra.mxu0 %v6745
        %9337 = vmatprep.subr.bf16.mxu0 %v6738
        %9338 = vmatpush1.bf16.msra.mxu0 %v6737
        %9339 = vmatprep.subr.bf16.mxu0 %v6730
        %9340 = vmatpush1.bf16.msra.mxu0 %v6729
        %9341 = vmatprep.subr.bf16.mxu0 %v6850
        %9342 = vmatpush2.bf16.msra.mxu0 %v6849
        %9343 = vmatprep.subr.bf16.mxu0 %v6842
        %9344 = vmatpush2.bf16.msra.mxu0 %v6841
        %9345 = vmatprep.subr.bf16.mxu0 %v6834
        %9346 = vmatpush2.bf16.msra.mxu0 %v6833
        %9347 = vmatprep.subr.bf16.mxu0 %v6826
        %9348 = vmatpush2.bf16.msra.mxu0 %v6825
        %9349 = vmatprep.subr.bf16.mxu0 %v6818
        %9350 = vmatpush2.bf16.msra.mxu0 %v6817
        %9351 = vmatprep.subr.bf16.mxu0 %v6810
        %9352 = vmatpush2.bf16.msra.mxu0 %v6809
        %9353 = vmatprep.subr.bf16.mxu0 %v6802
        %9354 = vmatpush2.bf16.msra.mxu0 %v6801
        %9355 = vmatprep.subr.bf16.mxu0 %v6794
        %9356 = vmatpush2.bf16.msra.mxu0 %v6793
        %9357 = vmatprep.mubr.bf16.mxu0 %v315
        %9358 = vmatmul.mubr.bf16.gmra.mxu0 %v314
        %v9359 = vpop.f32.mrf.mxu0
        %v9360 = vadd.f32 %v9319, %v9359
        %v9361 = vpop.f32.mrf.mxu0
        %v9362 = vadd.f32 %v9321, %v9361
        %v9363 = vpop.f32.mrf.mxu0
        %v9364 = vpop.f32.mrf.mxu0
        %9365 = vdwg.mxu0
        %9366 = vmatprep.subr.bf16.mxu0 %v6914
        %9367 = vmatpush1.bf16.msra.mxu0 %v6913
        %9368 = vmatprep.subr.bf16.mxu0 %v6906
        %9369 = vmatpush1.bf16.msra.mxu0 %v6905
        %9370 = vmatprep.subr.bf16.mxu0 %v6898
        %9371 = vmatpush1.bf16.msra.mxu0 %v6897
        %9372 = vmatprep.subr.bf16.mxu0 %v6890
        %9373 = vmatpush1.bf16.msra.mxu0 %v6889
        %9374 = vmatprep.subr.bf16.mxu0 %v6882
        %9375 = vmatpush1.bf16.msra.mxu0 %v6881
        %9376 = vmatprep.subr.bf16.mxu0 %v6874
        %9377 = vmatpush1.bf16.msra.mxu0 %v6873
        %9378 = vmatprep.subr.bf16.mxu0 %v6866
        %9379 = vmatpush1.bf16.msra.mxu0 %v6865
        %9380 = vmatprep.subr.bf16.mxu0 %v6858
        %9381 = vmatpush1.bf16.msra.mxu0 %v6857
        %9382 = vmatprep.subr.bf16.mxu0 %v6978
        %9383 = vmatpush2.bf16.msra.mxu0 %v6977
        %9384 = vmatprep.subr.bf16.mxu0 %v6970
        %9385 = vmatpush2.bf16.msra.mxu0 %v6969
        %9386 = vmatprep.subr.bf16.mxu0 %v6962
        %9387 = vmatpush2.bf16.msra.mxu0 %v6961
        %9388 = vmatprep.subr.bf16.mxu0 %v6954
        %9389 = vmatpush2.bf16.msra.mxu0 %v6953
        %9390 = vmatprep.subr.bf16.mxu0 %v6946
        %9391 = vmatpush2.bf16.msra.mxu0 %v6945
        %9392 = vmatprep.subr.bf16.mxu0 %v6938
        %9393 = vmatpush2.bf16.msra.mxu0 %v6937
        %9394 = vmatprep.subr.bf16.mxu0 %v6930
        %9395 = vmatpush2.bf16.msra.mxu0 %v6929
        %9396 = vmatprep.subr.bf16.mxu0 %v6922
        %9397 = vmatpush2.bf16.msra.mxu0 %v6921
        %9398 = vmatprep.mubr.bf16.mxu0 %v317
        %9399 = vmatmul.mubr.bf16.gmra.mxu0 %v316
        %v9400 = vpop.f32.mrf.mxu0
        %v9401 = vadd.f32 %v9360, %v9400
        %v9402 = vpop.f32.mrf.mxu0
        %v9403 = vadd.f32 %v9362, %v9402
        %v9404 = vpop.f32.mrf.mxu0
        %v9405 = vpop.f32.mrf.mxu0
        %9406 = vdwg.mxu0
        %9407 = vmatprep.subr.bf16.mxu0 %v7042
        %9408 = vmatpush1.bf16.msra.mxu0 %v7041
        %9409 = vmatprep.subr.bf16.mxu0 %v7034
        %9410 = vmatpush1.bf16.msra.mxu0 %v7033
        %9411 = vmatprep.subr.bf16.mxu0 %v7026
        %9412 = vmatpush1.bf16.msra.mxu0 %v7025
        %9413 = vmatprep.subr.bf16.mxu0 %v7018
        %9414 = vmatpush1.bf16.msra.mxu0 %v7017
        %9415 = vmatprep.subr.bf16.mxu0 %v7010
        %9416 = vmatpush1.bf16.msra.mxu0 %v7009
        %9417 = vmatprep.subr.bf16.mxu0 %v7002
        %9418 = vmatpush1.bf16.msra.mxu0 %v7001
        %9419 = vmatprep.subr.bf16.mxu0 %v6994
        %9420 = vmatpush1.bf16.msra.mxu0 %v6993
        %9421 = vmatprep.subr.bf16.mxu0 %v6986
        %9422 = vmatpush1.bf16.msra.mxu0 %v6985
        %9423 = vmatprep.subr.bf16.mxu0 %v7106
        %9424 = vmatpush2.bf16.msra.mxu0 %v7105
        %9425 = vmatprep.subr.bf16.mxu0 %v7098
        %9426 = vmatpush2.bf16.msra.mxu0 %v7097
        %9427 = vmatprep.subr.bf16.mxu0 %v7090
        %9428 = vmatpush2.bf16.msra.mxu0 %v7089
        %9429 = vmatprep.subr.bf16.mxu0 %v7082
        %9430 = vmatpush2.bf16.msra.mxu0 %v7081
        %9431 = vmatprep.subr.bf16.mxu0 %v7074
        %9432 = vmatpush2.bf16.msra.mxu0 %v7073
        %9433 = vmatprep.subr.bf16.mxu0 %v7066
        %9434 = vmatpush2.bf16.msra.mxu0 %v7065
        %9435 = vmatprep.subr.bf16.mxu0 %v7058
        %9436 = vmatpush2.bf16.msra.mxu0 %v7057
        %9437 = vmatprep.subr.bf16.mxu0 %v7050
        %9438 = vmatpush2.bf16.msra.mxu0 %v7049
        %9439 = vmatprep.mubr.bf16.mxu0 %v319
        %9440 = vmatmul.mubr.bf16.gmra.mxu0 %v318
        %v9441 = vpop.f32.mrf.mxu0
        %v9442 = vadd.f32 %v9401, %v9441
        %v9443 = vpop.f32.mrf.mxu0
        %v9444 = vadd.f32 %v9403, %v9443
        %v9445 = vpop.f32.mrf.mxu0
        %v9446 = vpop.f32.mrf.mxu0
        %9447 = vdwg.mxu0
        %9448 = vmatprep.subr.bf16.mxu0 %v7170
        %9449 = vmatpush1.bf16.msra.mxu0 %v7169
        %9450 = vmatprep.subr.bf16.mxu0 %v7162
        %9451 = vmatpush1.bf16.msra.mxu0 %v7161
        %9452 = vmatprep.subr.bf16.mxu0 %v7154
        %9453 = vmatpush1.bf16.msra.mxu0 %v7153
        %9454 = vmatprep.subr.bf16.mxu0 %v7146
        %9455 = vmatpush1.bf16.msra.mxu0 %v7145
        %9456 = vmatprep.subr.bf16.mxu0 %v7138
        %9457 = vmatpush1.bf16.msra.mxu0 %v7137
        %9458 = vmatprep.subr.bf16.mxu0 %v7130
        %9459 = vmatpush1.bf16.msra.mxu0 %v7129
        %9460 = vmatprep.subr.bf16.mxu0 %v7122
        %9461 = vmatpush1.bf16.msra.mxu0 %v7121
        %9462 = vmatprep.subr.bf16.mxu0 %v7114
        %9463 = vmatpush1.bf16.msra.mxu0 %v7113
        %9464 = vmatprep.subr.bf16.mxu0 %v7234
        %9465 = vmatpush2.bf16.msra.mxu0 %v7233
        %9466 = vmatprep.subr.bf16.mxu0 %v7226
        %9467 = vmatpush2.bf16.msra.mxu0 %v7225
        %9468 = vmatprep.subr.bf16.mxu0 %v7218
        %9469 = vmatpush2.bf16.msra.mxu0 %v7217
        %9470 = vmatprep.subr.bf16.mxu0 %v7210
        %9471 = vmatpush2.bf16.msra.mxu0 %v7209
        %9472 = vmatprep.subr.bf16.mxu0 %v7202
        %9473 = vmatpush2.bf16.msra.mxu0 %v7201
        %9474 = vmatprep.subr.bf16.mxu0 %v7194
        %9475 = vmatpush2.bf16.msra.mxu0 %v7193
        %9476 = vmatprep.subr.bf16.mxu0 %v7186
        %9477 = vmatpush2.bf16.msra.mxu0 %v7185
        %9478 = vmatprep.subr.bf16.mxu0 %v7178
        %9479 = vmatpush2.bf16.msra.mxu0 %v7177
        %9480 = vmatprep.mubr.bf16.mxu0 %v321
        %9481 = vmatmul.mubr.bf16.gmra.mxu0 %v320
        %v9482 = vpop.f32.mrf.mxu0
        %v9483 = vadd.f32 %v9442, %v9482
        %v9484 = vpop.f32.mrf.mxu0
        %v9485 = vadd.f32 %v9444, %v9484
        %v9486 = vpop.f32.mrf.mxu0
        %v9487 = vpop.f32.mrf.mxu0
        %9488 = vdwg.mxu0
        %9489 = vmatprep.subr.bf16.mxu0 %v7298
        %9490 = vmatpush1.bf16.msra.mxu0 %v7297
        %9491 = vmatprep.subr.bf16.mxu0 %v7290
        %9492 = vmatpush1.bf16.msra.mxu0 %v7289
        %9493 = vmatprep.subr.bf16.mxu0 %v7282
        %9494 = vmatpush1.bf16.msra.mxu0 %v7281
        %9495 = vmatprep.subr.bf16.mxu0 %v7274
        %9496 = vmatpush1.bf16.msra.mxu0 %v7273
        %9497 = vmatprep.subr.bf16.mxu0 %v7266
        %9498 = vmatpush1.bf16.msra.mxu0 %v7265
        %9499 = vmatprep.subr.bf16.mxu0 %v7258
        %9500 = vmatpush1.bf16.msra.mxu0 %v7257
        %9501 = vmatprep.subr.bf16.mxu0 %v7250
        %9502 = vmatpush1.bf16.msra.mxu0 %v7249
        %9503 = vmatprep.subr.bf16.mxu0 %v7242
        %9504 = vmatpush1.bf16.msra.mxu0 %v7241
        %9505 = vmatprep.subr.bf16.mxu0 %v7362
        %9506 = vmatpush2.bf16.msra.mxu0 %v7361
        %9507 = vmatprep.subr.bf16.mxu0 %v7354
        %9508 = vmatpush2.bf16.msra.mxu0 %v7353
        %9509 = vmatprep.subr.bf16.mxu0 %v7346
        %9510 = vmatpush2.bf16.msra.mxu0 %v7345
        %9511 = vmatprep.subr.bf16.mxu0 %v7338
        %9512 = vmatpush2.bf16.msra.mxu0 %v7337
        %9513 = vmatprep.subr.bf16.mxu0 %v7330
        %9514 = vmatpush2.bf16.msra.mxu0 %v7329
        %9515 = vmatprep.subr.bf16.mxu0 %v7322
        %9516 = vmatpush2.bf16.msra.mxu0 %v7321
        %9517 = vmatprep.subr.bf16.mxu0 %v7314
        %9518 = vmatpush2.bf16.msra.mxu0 %v7313
        %9519 = vmatprep.subr.bf16.mxu0 %v7306
        %9520 = vmatpush2.bf16.msra.mxu0 %v7305
        %9521 = vmatprep.mubr.bf16.mxu0 %v323
        %9522 = vmatmul.mubr.bf16.gmra.mxu0 %v322
        %v9523 = vpop.f32.mrf.mxu0
        %v9524 = vadd.f32 %v9483, %v9523
        %v9525 = vpop.f32.mrf.mxu0
        %v9526 = vadd.f32 %v9485, %v9525
        %v9527 = vpop.f32.mrf.mxu0
        %v9528 = vpop.f32.mrf.mxu0
        %9529 = vdwg.mxu0
        %9530 = vmatprep.subr.bf16.mxu0 %v7426
        %9531 = vmatpush1.bf16.msra.mxu0 %v7425
        %9532 = vmatprep.subr.bf16.mxu0 %v7418
        %9533 = vmatpush1.bf16.msra.mxu0 %v7417
        %9534 = vmatprep.subr.bf16.mxu0 %v7410
        %9535 = vmatpush1.bf16.msra.mxu0 %v7409
        %9536 = vmatprep.subr.bf16.mxu0 %v7402
        %9537 = vmatpush1.bf16.msra.mxu0 %v7401
        %9538 = vmatprep.subr.bf16.mxu0 %v7394
        %9539 = vmatpush1.bf16.msra.mxu0 %v7393
        %9540 = vmatprep.subr.bf16.mxu0 %v7386
        %9541 = vmatpush1.bf16.msra.mxu0 %v7385
        %9542 = vmatprep.subr.bf16.mxu0 %v7378
        %9543 = vmatpush1.bf16.msra.mxu0 %v7377
        %9544 = vmatprep.subr.bf16.mxu0 %v7370
        %9545 = vmatpush1.bf16.msra.mxu0 %v7369
        %9546 = vmatprep.subr.bf16.mxu0 %v7490
        %9547 = vmatpush2.bf16.msra.mxu0 %v7489
        %9548 = vmatprep.subr.bf16.mxu0 %v7482
        %9549 = vmatpush2.bf16.msra.mxu0 %v7481
        %9550 = vmatprep.subr.bf16.mxu0 %v7474
        %9551 = vmatpush2.bf16.msra.mxu0 %v7473
        %9552 = vmatprep.subr.bf16.mxu0 %v7466
        %9553 = vmatpush2.bf16.msra.mxu0 %v7465
        %9554 = vmatprep.subr.bf16.mxu0 %v7458
        %9555 = vmatpush2.bf16.msra.mxu0 %v7457
        %9556 = vmatprep.subr.bf16.mxu0 %v7450
        %9557 = vmatpush2.bf16.msra.mxu0 %v7449
        %9558 = vmatprep.subr.bf16.mxu0 %v7442
        %9559 = vmatpush2.bf16.msra.mxu0 %v7441
        %9560 = vmatprep.subr.bf16.mxu0 %v7434
        %9561 = vmatpush2.bf16.msra.mxu0 %v7433
        %9562 = vmatprep.mubr.bf16.mxu0 %v325
        %9563 = vmatmul.mubr.bf16.gmra.mxu0 %v324
        %v9564 = vpop.f32.mrf.mxu0
        %v9565 = vadd.f32 %v9524, %v9564
        %v9566 = vpop.f32.mrf.mxu0
        %v9567 = vadd.f32 %v9526, %v9566
        %v9568 = vpop.f32.mrf.mxu0
        %v9569 = vpop.f32.mrf.mxu0
        %9570 = vdwg.mxu0
        %9571 = vmatprep.subr.bf16.mxu0 %v7554
        %9572 = vmatpush1.bf16.msra.mxu0 %v7553
        %9573 = vmatprep.subr.bf16.mxu0 %v7546
        %9574 = vmatpush1.bf16.msra.mxu0 %v7545
        %9575 = vmatprep.subr.bf16.mxu0 %v7538
        %9576 = vmatpush1.bf16.msra.mxu0 %v7537
        %9577 = vmatprep.subr.bf16.mxu0 %v7530
        %9578 = vmatpush1.bf16.msra.mxu0 %v7529
        %9579 = vmatprep.subr.bf16.mxu0 %v7522
        %9580 = vmatpush1.bf16.msra.mxu0 %v7521
        %9581 = vmatprep.subr.bf16.mxu0 %v7514
        %9582 = vmatpush1.bf16.msra.mxu0 %v7513
        %9583 = vmatprep.subr.bf16.mxu0 %v7506
        %9584 = vmatpush1.bf16.msra.mxu0 %v7505
        %9585 = vmatprep.subr.bf16.mxu0 %v7498
        %9586 = vmatpush1.bf16.msra.mxu0 %v7497
        %9587 = vmatprep.subr.bf16.mxu0 %v7618
        %9588 = vmatpush2.bf16.msra.mxu0 %v7617
        %9589 = vmatprep.subr.bf16.mxu0 %v7610
        %9590 = vmatpush2.bf16.msra.mxu0 %v7609
        %9591 = vmatprep.subr.bf16.mxu0 %v7602
        %9592 = vmatpush2.bf16.msra.mxu0 %v7601
        %9593 = vmatprep.subr.bf16.mxu0 %v7594
        %9594 = vmatpush2.bf16.msra.mxu0 %v7593
        %9595 = vmatprep.subr.bf16.mxu0 %v7586
        %9596 = vmatpush2.bf16.msra.mxu0 %v7585
        %9597 = vmatprep.subr.bf16.mxu0 %v7578
        %9598 = vmatpush2.bf16.msra.mxu0 %v7577
        %9599 = vmatprep.subr.bf16.mxu0 %v7570
        %9600 = vmatpush2.bf16.msra.mxu0 %v7569
        %9601 = vmatprep.subr.bf16.mxu0 %v7562
        %9602 = vmatpush2.bf16.msra.mxu0 %v7561
        %9603 = vmatprep.mubr.bf16.mxu0 %v327
        %9604 = vmatmul.mubr.bf16.gmra.mxu0 %v326
        %v9605 = vpop.f32.mrf.mxu0
        %v9606 = vadd.f32 %v9565, %v9605
        %v9607 = vpop.f32.mrf.mxu0
        %v9608 = vadd.f32 %v9567, %v9607
        %v9609 = vpop.f32.mrf.mxu0
        %v9610 = vpop.f32.mrf.mxu0
        %9611 = vdwg.mxu0
        %9612 = vmatprep.subr.bf16.mxu0 %v7682
        %9613 = vmatpush1.bf16.msra.mxu0 %v7681
        %9614 = vmatprep.subr.bf16.mxu0 %v7674
        %9615 = vmatpush1.bf16.msra.mxu0 %v7673
        %9616 = vmatprep.subr.bf16.mxu0 %v7666
        %9617 = vmatpush1.bf16.msra.mxu0 %v7665
        %9618 = vmatprep.subr.bf16.mxu0 %v7658
        %9619 = vmatpush1.bf16.msra.mxu0 %v7657
        %9620 = vmatprep.subr.bf16.mxu0 %v7650
        %9621 = vmatpush1.bf16.msra.mxu0 %v7649
        %9622 = vmatprep.subr.bf16.mxu0 %v7642
        %9623 = vmatpush1.bf16.msra.mxu0 %v7641
        %9624 = vmatprep.subr.bf16.mxu0 %v7634
        %9625 = vmatpush1.bf16.msra.mxu0 %v7633
        %9626 = vmatprep.subr.bf16.mxu0 %v7626
        %9627 = vmatpush1.bf16.msra.mxu0 %v7625
        %9628 = vmatprep.subr.bf16.mxu0 0
        %9629 = vmatpush2.bf16.msra.mxu0 0
        %9630 = vmatprep.subr.bf16.mxu0 0
        %9631 = vmatpush2.bf16.msra.mxu0 0
        %9632 = vmatprep.subr.bf16.mxu0 0
        %9633 = vmatpush2.bf16.msra.mxu0 0
        %9634 = vmatprep.subr.bf16.mxu0 0
        %9635 = vmatpush2.bf16.msra.mxu0 0
        %9636 = vmatprep.subr.bf16.mxu0 0
        %9637 = vmatpush2.bf16.msra.mxu0 0
        %9638 = vmatprep.subr.bf16.mxu0 0
        %9639 = vmatpush2.bf16.msra.mxu0 0
        %9640 = vmatprep.subr.bf16.mxu0 0
        %9641 = vmatpush2.bf16.msra.mxu0 0
        %9642 = vmatprep.subr.bf16.mxu0 0
        %9643 = vmatpush2.bf16.msra.mxu0 0
        %9644 = vmatprep.mubr.bf16.mxu0 0
        %9645 = vmatmul.mubr.bf16.gmra.mxu0 %v328
        %v9646 = vpop.f32.mrf.mxu0
        %v9647 = vadd.f32 %v9606, %v9646
        %v9648 = vpop.f32.mrf.mxu0
        %v9649 = vadd.f32 %v9608, %v9648
        %v9650 = vpop.f32.mrf.mxu0
        %v9651 = vpop.f32.mrf.mxu0
        %9652 = vdwg.mxu0
        %9653 = vmatprep.subr.bf16.mxu0 %v6276
        %9654 = vmatpush1.bf16.msra.mxu0 %v6275
        %9655 = vmatprep.subr.bf16.mxu0 %v6268
        %9656 = vmatpush1.bf16.msra.mxu0 %v6267
        %9657 = vmatprep.subr.bf16.mxu0 %v6260
        %9658 = vmatpush1.bf16.msra.mxu0 %v6259
        %9659 = vmatprep.subr.bf16.mxu0 %v6252
        %9660 = vmatpush1.bf16.msra.mxu0 %v6251
        %9661 = vmatprep.subr.bf16.mxu0 %v6244
        %9662 = vmatpush1.bf16.msra.mxu0 %v6243
        %9663 = vmatprep.subr.bf16.mxu0 %v6236
        %9664 = vmatpush1.bf16.msra.mxu0 %v6235
        %9665 = vmatprep.subr.bf16.mxu0 %v6228
        %9666 = vmatpush1.bf16.msra.mxu0 %v6227
        %9667 = vmatprep.subr.bf16.mxu0 %v6220
        %9668 = vmatpush1.bf16.msra.mxu0 %v6219
        %9669 = vmatprep.subr.bf16.mxu0 %v6340
        %9670 = vmatpush2.bf16.msra.mxu0 %v6339
        %9671 = vmatprep.subr.bf16.mxu0 %v6332
        %9672 = vmatpush2.bf16.msra.mxu0 %v6331
        %9673 = vmatprep.subr.bf16.mxu0 %v6324
        %9674 = vmatpush2.bf16.msra.mxu0 %v6323
        %9675 = vmatprep.subr.bf16.mxu0 %v6316
        %9676 = vmatpush2.bf16.msra.mxu0 %v6315
        %9677 = vmatprep.subr.bf16.mxu0 %v6308
        %9678 = vmatpush2.bf16.msra.mxu0 %v6307
        %9679 = vmatprep.subr.bf16.mxu0 %v6300
        %9680 = vmatpush2.bf16.msra.mxu0 %v6299
        %9681 = vmatprep.subr.bf16.mxu0 %v6292
        %9682 = vmatpush2.bf16.msra.mxu0 %v6291
        %9683 = vmatprep.subr.bf16.mxu0 %v6284
        %9684 = vmatpush2.bf16.msra.mxu0 %v6283
        %9685 = vmatprep.mubr.bf16.mxu0 %v307
        %9686 = vmatmul.mubr.bf16.gmra.mxu0 %v306
        %v9687 = vpop.f32.mrf.mxu0
        %v9688 = vadd.f32 0.0, %v9687
        %v9689 = vpop.f32.mrf.mxu0
        %v9690 = vadd.f32 0.0, %v9689
        %v9691 = vpop.f32.mrf.mxu0
        %v9692 = vpop.f32.mrf.mxu0
        %9693 = vdwg.mxu0
        %9694 = vmatprep.subr.bf16.mxu0 %v6404
        %9695 = vmatpush1.bf16.msra.mxu0 %v6403
        %9696 = vmatprep.subr.bf16.mxu0 %v6396
        %9697 = vmatpush1.bf16.msra.mxu0 %v6395
        %9698 = vmatprep.subr.bf16.mxu0 %v6388
        %9699 = vmatpush1.bf16.msra.mxu0 %v6387
        %9700 = vmatprep.subr.bf16.mxu0 %v6380
        %9701 = vmatpush1.bf16.msra.mxu0 %v6379
        %9702 = vmatprep.subr.bf16.mxu0 %v6372
        %9703 = vmatpush1.bf16.msra.mxu0 %v6371
        %9704 = vmatprep.subr.bf16.mxu0 %v6364
        %9705 = vmatpush1.bf16.msra.mxu0 %v6363
        %9706 = vmatprep.subr.bf16.mxu0 %v6356
        %9707 = vmatpush1.bf16.msra.mxu0 %v6355
        %9708 = vmatprep.subr.bf16.mxu0 %v6348
        %9709 = vmatpush1.bf16.msra.mxu0 %v6347
        %9710 = vmatprep.subr.bf16.mxu0 %v6468
        %9711 = vmatpush2.bf16.msra.mxu0 %v6467
        %9712 = vmatprep.subr.bf16.mxu0 %v6460
        %9713 = vmatpush2.bf16.msra.mxu0 %v6459
        %9714 = vmatprep.subr.bf16.mxu0 %v6452
        %9715 = vmatpush2.bf16.msra.mxu0 %v6451
        %9716 = vmatprep.subr.bf16.mxu0 %v6444
        %9717 = vmatpush2.bf16.msra.mxu0 %v6443
        %9718 = vmatprep.subr.bf16.mxu0 %v6436
        %9719 = vmatpush2.bf16.msra.mxu0 %v6435
        %9720 = vmatprep.subr.bf16.mxu0 %v6428
        %9721 = vmatpush2.bf16.msra.mxu0 %v6427
        %9722 = vmatprep.subr.bf16.mxu0 %v6420
        %9723 = vmatpush2.bf16.msra.mxu0 %v6419
        %9724 = vmatprep.subr.bf16.mxu0 %v6412
        %9725 = vmatpush2.bf16.msra.mxu0 %v6411
        %9726 = vmatprep.mubr.bf16.mxu0 %v309
        %9727 = vmatmul.mubr.bf16.gmra.mxu0 %v308
        %v9728 = vpop.f32.mrf.mxu0
        %v9729 = vadd.f32 %v9688, %v9728
        %v9730 = vpop.f32.mrf.mxu0
        %v9731 = vadd.f32 %v9690, %v9730
        %v9732 = vpop.f32.mrf.mxu0
        %v9733 = vpop.f32.mrf.mxu0
        %9734 = vdwg.mxu0
        %9735 = vmatprep.subr.bf16.mxu0 %v6532
        %9736 = vmatpush1.bf16.msra.mxu0 %v6531
        %9737 = vmatprep.subr.bf16.mxu0 %v6524
        %9738 = vmatpush1.bf16.msra.mxu0 %v6523
        %9739 = vmatprep.subr.bf16.mxu0 %v6516
        %9740 = vmatpush1.bf16.msra.mxu0 %v6515
        %9741 = vmatprep.subr.bf16.mxu0 %v6508
        %9742 = vmatpush1.bf16.msra.mxu0 %v6507
        %9743 = vmatprep.subr.bf16.mxu0 %v6500
        %9744 = vmatpush1.bf16.msra.mxu0 %v6499
        %9745 = vmatprep.subr.bf16.mxu0 %v6492
        %9746 = vmatpush1.bf16.msra.mxu0 %v6491
        %9747 = vmatprep.subr.bf16.mxu0 %v6484
        %9748 = vmatpush1.bf16.msra.mxu0 %v6483
        %9749 = vmatprep.subr.bf16.mxu0 %v6476
        %9750 = vmatpush1.bf16.msra.mxu0 %v6475
        %9751 = vmatprep.subr.bf16.mxu0 %v6596
        %9752 = vmatpush2.bf16.msra.mxu0 %v6595
        %9753 = vmatprep.subr.bf16.mxu0 %v6588
        %9754 = vmatpush2.bf16.msra.mxu0 %v6587
        %9755 = vmatprep.subr.bf16.mxu0 %v6580
        %9756 = vmatpush2.bf16.msra.mxu0 %v6579
        %9757 = vmatprep.subr.bf16.mxu0 %v6572
        %9758 = vmatpush2.bf16.msra.mxu0 %v6571
        %9759 = vmatprep.subr.bf16.mxu0 %v6564
        %9760 = vmatpush2.bf16.msra.mxu0 %v6563
        %9761 = vmatprep.subr.bf16.mxu0 %v6556
        %9762 = vmatpush2.bf16.msra.mxu0 %v6555
        %9763 = vmatprep.subr.bf16.mxu0 %v6548
        %9764 = vmatpush2.bf16.msra.mxu0 %v6547
        %9765 = vmatprep.subr.bf16.mxu0 %v6540
        %9766 = vmatpush2.bf16.msra.mxu0 %v6539
        %9767 = vmatprep.mubr.bf16.mxu0 %v311
        %9768 = vmatmul.mubr.bf16.gmra.mxu0 %v310
        %v9769 = vpop.f32.mrf.mxu0
        %v9770 = vadd.f32 %v9729, %v9769
        %v9771 = vpop.f32.mrf.mxu0
        %v9772 = vadd.f32 %v9731, %v9771
        %v9773 = vpop.f32.mrf.mxu0
        %v9774 = vpop.f32.mrf.mxu0
        %9775 = vdwg.mxu0
        %9776 = vmatprep.subr.bf16.mxu0 %v6660
        %9777 = vmatpush1.bf16.msra.mxu0 %v6659
        %9778 = vmatprep.subr.bf16.mxu0 %v6652
        %9779 = vmatpush1.bf16.msra.mxu0 %v6651
        %9780 = vmatprep.subr.bf16.mxu0 %v6644
        %9781 = vmatpush1.bf16.msra.mxu0 %v6643
        %9782 = vmatprep.subr.bf16.mxu0 %v6636
        %9783 = vmatpush1.bf16.msra.mxu0 %v6635
        %9784 = vmatprep.subr.bf16.mxu0 %v6628
        %9785 = vmatpush1.bf16.msra.mxu0 %v6627
        %9786 = vmatprep.subr.bf16.mxu0 %v6620
        %9787 = vmatpush1.bf16.msra.mxu0 %v6619
        %9788 = vmatprep.subr.bf16.mxu0 %v6612
        %9789 = vmatpush1.bf16.msra.mxu0 %v6611
        %9790 = vmatprep.subr.bf16.mxu0 %v6604
        %9791 = vmatpush1.bf16.msra.mxu0 %v6603
        %9792 = vmatprep.subr.bf16.mxu0 %v6724
        %9793 = vmatpush2.bf16.msra.mxu0 %v6723
        %9794 = vmatprep.subr.bf16.mxu0 %v6716
        %9795 = vmatpush2.bf16.msra.mxu0 %v6715
        %9796 = vmatprep.subr.bf16.mxu0 %v6708
        %9797 = vmatpush2.bf16.msra.mxu0 %v6707
        %9798 = vmatprep.subr.bf16.mxu0 %v6700
        %9799 = vmatpush2.bf16.msra.mxu0 %v6699
        %9800 = vmatprep.subr.bf16.mxu0 %v6692
        %9801 = vmatpush2.bf16.msra.mxu0 %v6691
        %9802 = vmatprep.subr.bf16.mxu0 %v6684
        %9803 = vmatpush2.bf16.msra.mxu0 %v6683
        %9804 = vmatprep.subr.bf16.mxu0 %v6676
        %9805 = vmatpush2.bf16.msra.mxu0 %v6675
        %9806 = vmatprep.subr.bf16.mxu0 %v6668
        %9807 = vmatpush2.bf16.msra.mxu0 %v6667
        %9808 = vmatprep.mubr.bf16.mxu0 %v313
        %9809 = vmatmul.mubr.bf16.gmra.mxu0 %v312
        %v9810 = vpop.f32.mrf.mxu0
        %v9811 = vadd.f32 %v9770, %v9810
        %v9812 = vpop.f32.mrf.mxu0
        %v9813 = vadd.f32 %v9772, %v9812
        %v9814 = vpop.f32.mrf.mxu0
        %v9815 = vpop.f32.mrf.mxu0
        %9816 = vdwg.mxu0
        %9817 = vmatprep.subr.bf16.mxu0 %v6788
        %9818 = vmatpush1.bf16.msra.mxu0 %v6787
        %9819 = vmatprep.subr.bf16.mxu0 %v6780
        %9820 = vmatpush1.bf16.msra.mxu0 %v6779
        %9821 = vmatprep.subr.bf16.mxu0 %v6772
        %9822 = vmatpush1.bf16.msra.mxu0 %v6771
        %9823 = vmatprep.subr.bf16.mxu0 %v6764
        %9824 = vmatpush1.bf16.msra.mxu0 %v6763
        %9825 = vmatprep.subr.bf16.mxu0 %v6756
        %9826 = vmatpush1.bf16.msra.mxu0 %v6755
        %9827 = vmatprep.subr.bf16.mxu0 %v6748
        %9828 = vmatpush1.bf16.msra.mxu0 %v6747
        %9829 = vmatprep.subr.bf16.mxu0 %v6740
        %9830 = vmatpush1.bf16.msra.mxu0 %v6739
        %9831 = vmatprep.subr.bf16.mxu0 %v6732
        %9832 = vmatpush1.bf16.msra.mxu0 %v6731
        %9833 = vmatprep.subr.bf16.mxu0 %v6852
        %9834 = vmatpush2.bf16.msra.mxu0 %v6851
        %9835 = vmatprep.subr.bf16.mxu0 %v6844
        %9836 = vmatpush2.bf16.msra.mxu0 %v6843
        %9837 = vmatprep.subr.bf16.mxu0 %v6836
        %9838 = vmatpush2.bf16.msra.mxu0 %v6835
        %9839 = vmatprep.subr.bf16.mxu0 %v6828
        %9840 = vmatpush2.bf16.msra.mxu0 %v6827
        %9841 = vmatprep.subr.bf16.mxu0 %v6820
        %9842 = vmatpush2.bf16.msra.mxu0 %v6819
        %9843 = vmatprep.subr.bf16.mxu0 %v6812
        %9844 = vmatpush2.bf16.msra.mxu0 %v6811
        %9845 = vmatprep.subr.bf16.mxu0 %v6804
        %9846 = vmatpush2.bf16.msra.mxu0 %v6803
        %9847 = vmatprep.subr.bf16.mxu0 %v6796
        %9848 = vmatpush2.bf16.msra.mxu0 %v6795
        %9849 = vmatprep.mubr.bf16.mxu0 %v315
        %9850 = vmatmul.mubr.bf16.gmra.mxu0 %v314
        %v9851 = vpop.f32.mrf.mxu0
        %v9852 = vadd.f32 %v9811, %v9851
        %v9853 = vpop.f32.mrf.mxu0
        %v9854 = vadd.f32 %v9813, %v9853
        %v9855 = vpop.f32.mrf.mxu0
        %v9856 = vpop.f32.mrf.mxu0
        %9857 = vdwg.mxu0
        %9858 = vmatprep.subr.bf16.mxu0 %v6916
        %9859 = vmatpush1.bf16.msra.mxu0 %v6915
        %9860 = vmatprep.subr.bf16.mxu0 %v6908
        %9861 = vmatpush1.bf16.msra.mxu0 %v6907
        %9862 = vmatprep.subr.bf16.mxu0 %v6900
        %9863 = vmatpush1.bf16.msra.mxu0 %v6899
        %9864 = vmatprep.subr.bf16.mxu0 %v6892
        %9865 = vmatpush1.bf16.msra.mxu0 %v6891
        %9866 = vmatprep.subr.bf16.mxu0 %v6884
        %9867 = vmatpush1.bf16.msra.mxu0 %v6883
        %9868 = vmatprep.subr.bf16.mxu0 %v6876
        %9869 = vmatpush1.bf16.msra.mxu0 %v6875
        %9870 = vmatprep.subr.bf16.mxu0 %v6868
        %9871 = vmatpush1.bf16.msra.mxu0 %v6867
        %9872 = vmatprep.subr.bf16.mxu0 %v6860
        %9873 = vmatpush1.bf16.msra.mxu0 %v6859
        %9874 = vmatprep.subr.bf16.mxu0 %v6980
        %9875 = vmatpush2.bf16.msra.mxu0 %v6979
        %9876 = vmatprep.subr.bf16.mxu0 %v6972
        %9877 = vmatpush2.bf16.msra.mxu0 %v6971
        %9878 = vmatprep.subr.bf16.mxu0 %v6964
        %9879 = vmatpush2.bf16.msra.mxu0 %v6963
        %9880 = vmatprep.subr.bf16.mxu0 %v6956
        %9881 = vmatpush2.bf16.msra.mxu0 %v6955
        %9882 = vmatprep.subr.bf16.mxu0 %v6948
        %9883 = vmatpush2.bf16.msra.mxu0 %v6947
        %9884 = vmatprep.subr.bf16.mxu0 %v6940
        %9885 = vmatpush2.bf16.msra.mxu0 %v6939
        %9886 = vmatprep.subr.bf16.mxu0 %v6932
        %9887 = vmatpush2.bf16.msra.mxu0 %v6931
        %9888 = vmatprep.subr.bf16.mxu0 %v6924
        %9889 = vmatpush2.bf16.msra.mxu0 %v6923
        %9890 = vmatprep.mubr.bf16.mxu0 %v317
        %9891 = vmatmul.mubr.bf16.gmra.mxu0 %v316
        %v9892 = vpop.f32.mrf.mxu0
        %v9893 = vadd.f32 %v9852, %v9892
        %v9894 = vpop.f32.mrf.mxu0
        %v9895 = vadd.f32 %v9854, %v9894
        %v9896 = vpop.f32.mrf.mxu0
        %v9897 = vpop.f32.mrf.mxu0
        %9898 = vdwg.mxu0
        %9899 = vmatprep.subr.bf16.mxu0 %v7044
        %9900 = vmatpush1.bf16.msra.mxu0 %v7043
        %9901 = vmatprep.subr.bf16.mxu0 %v7036
        %9902 = vmatpush1.bf16.msra.mxu0 %v7035
        %9903 = vmatprep.subr.bf16.mxu0 %v7028
        %9904 = vmatpush1.bf16.msra.mxu0 %v7027
        %9905 = vmatprep.subr.bf16.mxu0 %v7020
        %9906 = vmatpush1.bf16.msra.mxu0 %v7019
        %9907 = vmatprep.subr.bf16.mxu0 %v7012
        %9908 = vmatpush1.bf16.msra.mxu0 %v7011
        %9909 = vmatprep.subr.bf16.mxu0 %v7004
        %9910 = vmatpush1.bf16.msra.mxu0 %v7003
        %9911 = vmatprep.subr.bf16.mxu0 %v6996
        %9912 = vmatpush1.bf16.msra.mxu0 %v6995
        %9913 = vmatprep.subr.bf16.mxu0 %v6988
        %9914 = vmatpush1.bf16.msra.mxu0 %v6987
        %9915 = vmatprep.subr.bf16.mxu0 %v7108
        %9916 = vmatpush2.bf16.msra.mxu0 %v7107
        %9917 = vmatprep.subr.bf16.mxu0 %v7100
        %9918 = vmatpush2.bf16.msra.mxu0 %v7099
        %9919 = vmatprep.subr.bf16.mxu0 %v7092
        %9920 = vmatpush2.bf16.msra.mxu0 %v7091
        %9921 = vmatprep.subr.bf16.mxu0 %v7084
        %9922 = vmatpush2.bf16.msra.mxu0 %v7083
        %9923 = vmatprep.subr.bf16.mxu0 %v7076
        %9924 = vmatpush2.bf16.msra.mxu0 %v7075
        %9925 = vmatprep.subr.bf16.mxu0 %v7068
        %9926 = vmatpush2.bf16.msra.mxu0 %v7067
        %9927 = vmatprep.subr.bf16.mxu0 %v7060
        %9928 = vmatpush2.bf16.msra.mxu0 %v7059
        %9929 = vmatprep.subr.bf16.mxu0 %v7052
        %9930 = vmatpush2.bf16.msra.mxu0 %v7051
        %9931 = vmatprep.mubr.bf16.mxu0 %v319
        %9932 = vmatmul.mubr.bf16.gmra.mxu0 %v318
        %v9933 = vpop.f32.mrf.mxu0
        %v9934 = vadd.f32 %v9893, %v9933
        %v9935 = vpop.f32.mrf.mxu0
        %v9936 = vadd.f32 %v9895, %v9935
        %v9937 = vpop.f32.mrf.mxu0
        %v9938 = vpop.f32.mrf.mxu0
        %9939 = vdwg.mxu0
        %9940 = vmatprep.subr.bf16.mxu0 %v7172
        %9941 = vmatpush1.bf16.msra.mxu0 %v7171
        %9942 = vmatprep.subr.bf16.mxu0 %v7164
        %9943 = vmatpush1.bf16.msra.mxu0 %v7163
        %9944 = vmatprep.subr.bf16.mxu0 %v7156
        %9945 = vmatpush1.bf16.msra.mxu0 %v7155
        %9946 = vmatprep.subr.bf16.mxu0 %v7148
        %9947 = vmatpush1.bf16.msra.mxu0 %v7147
        %9948 = vmatprep.subr.bf16.mxu0 %v7140
        %9949 = vmatpush1.bf16.msra.mxu0 %v7139
        %9950 = vmatprep.subr.bf16.mxu0 %v7132
        %9951 = vmatpush1.bf16.msra.mxu0 %v7131
        %9952 = vmatprep.subr.bf16.mxu0 %v7124
        %9953 = vmatpush1.bf16.msra.mxu0 %v7123
        %9954 = vmatprep.subr.bf16.mxu0 %v7116
        %9955 = vmatpush1.bf16.msra.mxu0 %v7115
        %9956 = vmatprep.subr.bf16.mxu0 %v7236
        %9957 = vmatpush2.bf16.msra.mxu0 %v7235
        %9958 = vmatprep.subr.bf16.mxu0 %v7228
        %9959 = vmatpush2.bf16.msra.mxu0 %v7227
        %9960 = vmatprep.subr.bf16.mxu0 %v7220
        %9961 = vmatpush2.bf16.msra.mxu0 %v7219
        %9962 = vmatprep.subr.bf16.mxu0 %v7212
        %9963 = vmatpush2.bf16.msra.mxu0 %v7211
        %9964 = vmatprep.subr.bf16.mxu0 %v7204
        %9965 = vmatpush2.bf16.msra.mxu0 %v7203
        %9966 = vmatprep.subr.bf16.mxu0 %v7196
        %9967 = vmatpush2.bf16.msra.mxu0 %v7195
        %9968 = vmatprep.subr.bf16.mxu0 %v7188
        %9969 = vmatpush2.bf16.msra.mxu0 %v7187
        %9970 = vmatprep.subr.bf16.mxu0 %v7180
        %9971 = vmatpush2.bf16.msra.mxu0 %v7179
        %9972 = vmatprep.mubr.bf16.mxu0 %v321
        %9973 = vmatmul.mubr.bf16.gmra.mxu0 %v320
        %v9974 = vpop.f32.mrf.mxu0
        %v9975 = vadd.f32 %v9934, %v9974
        %v9976 = vpop.f32.mrf.mxu0
        %v9977 = vadd.f32 %v9936, %v9976
        %v9978 = vpop.f32.mrf.mxu0
        %v9979 = vpop.f32.mrf.mxu0
        %9980 = vdwg.mxu0
        %9981 = vmatprep.subr.bf16.mxu0 %v7300
        %9982 = vmatpush1.bf16.msra.mxu0 %v7299
        %9983 = vmatprep.subr.bf16.mxu0 %v7292
        %9984 = vmatpush1.bf16.msra.mxu0 %v7291
        %9985 = vmatprep.subr.bf16.mxu0 %v7284
        %9986 = vmatpush1.bf16.msra.mxu0 %v7283
        %9987 = vmatprep.subr.bf16.mxu0 %v7276
        %9988 = vmatpush1.bf16.msra.mxu0 %v7275
        %9989 = vmatprep.subr.bf16.mxu0 %v7268
        %9990 = vmatpush1.bf16.msra.mxu0 %v7267
        %9991 = vmatprep.subr.bf16.mxu0 %v7260
        %9992 = vmatpush1.bf16.msra.mxu0 %v7259
        %9993 = vmatprep.subr.bf16.mxu0 %v7252
        %9994 = vmatpush1.bf16.msra.mxu0 %v7251
        %9995 = vmatprep.subr.bf16.mxu0 %v7244
        %9996 = vmatpush1.bf16.msra.mxu0 %v7243
        %9997 = vmatprep.subr.bf16.mxu0 %v7364
        %9998 = vmatpush2.bf16.msra.mxu0 %v7363
        %9999 = vmatprep.subr.bf16.mxu0 %v7356
        %10000 = vmatpush2.bf16.msra.mxu0 %v7355
        %10001 = vmatprep.subr.bf16.mxu0 %v7348
        %10002 = vmatpush2.bf16.msra.mxu0 %v7347
        %10003 = vmatprep.subr.bf16.mxu0 %v7340
        %10004 = vmatpush2.bf16.msra.mxu0 %v7339
        %10005 = vmatprep.subr.bf16.mxu0 %v7332
        %10006 = vmatpush2.bf16.msra.mxu0 %v7331
        %10007 = vmatprep.subr.bf16.mxu0 %v7324
        %10008 = vmatpush2.bf16.msra.mxu0 %v7323
        %10009 = vmatprep.subr.bf16.mxu0 %v7316
        %10010 = vmatpush2.bf16.msra.mxu0 %v7315
        %10011 = vmatprep.subr.bf16.mxu0 %v7308
        %10012 = vmatpush2.bf16.msra.mxu0 %v7307
        %10013 = vmatprep.mubr.bf16.mxu0 %v323
        %10014 = vmatmul.mubr.bf16.gmra.mxu0 %v322
        %v10015 = vpop.f32.mrf.mxu0
        %v10016 = vadd.f32 %v9975, %v10015
        %v10017 = vpop.f32.mrf.mxu0
        %v10018 = vadd.f32 %v9977, %v10017
        %v10019 = vpop.f32.mrf.mxu0
        %v10020 = vpop.f32.mrf.mxu0
        %10021 = vdwg.mxu0
        %10022 = vmatprep.subr.bf16.mxu0 %v7428
        %10023 = vmatpush1.bf16.msra.mxu0 %v7427
        %10024 = vmatprep.subr.bf16.mxu0 %v7420
        %10025 = vmatpush1.bf16.msra.mxu0 %v7419
        %10026 = vmatprep.subr.bf16.mxu0 %v7412
        %10027 = vmatpush1.bf16.msra.mxu0 %v7411
        %10028 = vmatprep.subr.bf16.mxu0 %v7404
        %10029 = vmatpush1.bf16.msra.mxu0 %v7403
        %10030 = vmatprep.subr.bf16.mxu0 %v7396
        %10031 = vmatpush1.bf16.msra.mxu0 %v7395
        %10032 = vmatprep.subr.bf16.mxu0 %v7388
        %10033 = vmatpush1.bf16.msra.mxu0 %v7387
        %10034 = vmatprep.subr.bf16.mxu0 %v7380
        %10035 = vmatpush1.bf16.msra.mxu0 %v7379
        %10036 = vmatprep.subr.bf16.mxu0 %v7372
        %10037 = vmatpush1.bf16.msra.mxu0 %v7371
        %10038 = vmatprep.subr.bf16.mxu0 %v7492
        %10039 = vmatpush2.bf16.msra.mxu0 %v7491
        %10040 = vmatprep.subr.bf16.mxu0 %v7484
        %10041 = vmatpush2.bf16.msra.mxu0 %v7483
        %10042 = vmatprep.subr.bf16.mxu0 %v7476
        %10043 = vmatpush2.bf16.msra.mxu0 %v7475
        %10044 = vmatprep.subr.bf16.mxu0 %v7468
        %10045 = vmatpush2.bf16.msra.mxu0 %v7467
        %10046 = vmatprep.subr.bf16.mxu0 %v7460
        %10047 = vmatpush2.bf16.msra.mxu0 %v7459
        %10048 = vmatprep.subr.bf16.mxu0 %v7452
        %10049 = vmatpush2.bf16.msra.mxu0 %v7451
        %10050 = vmatprep.subr.bf16.mxu0 %v7444
        %10051 = vmatpush2.bf16.msra.mxu0 %v7443
        %10052 = vmatprep.subr.bf16.mxu0 %v7436
        %10053 = vmatpush2.bf16.msra.mxu0 %v7435
        %10054 = vmatprep.mubr.bf16.mxu0 %v325
        %10055 = vmatmul.mubr.bf16.gmra.mxu0 %v324
        %v10056 = vpop.f32.mrf.mxu0
        %v10057 = vadd.f32 %v10016, %v10056
        %v10058 = vpop.f32.mrf.mxu0
        %v10059 = vadd.f32 %v10018, %v10058
        %v10060 = vpop.f32.mrf.mxu0
        %v10061 = vpop.f32.mrf.mxu0
        %10062 = vdwg.mxu0
        %10063 = vmatprep.subr.bf16.mxu0 %v7556
        %10064 = vmatpush1.bf16.msra.mxu0 %v7555
        %10065 = vmatprep.subr.bf16.mxu0 %v7548
        %10066 = vmatpush1.bf16.msra.mxu0 %v7547
        %10067 = vmatprep.subr.bf16.mxu0 %v7540
        %10068 = vmatpush1.bf16.msra.mxu0 %v7539
        %10069 = vmatprep.subr.bf16.mxu0 %v7532
        %10070 = vmatpush1.bf16.msra.mxu0 %v7531
        %10071 = vmatprep.subr.bf16.mxu0 %v7524
        %10072 = vmatpush1.bf16.msra.mxu0 %v7523
        %10073 = vmatprep.subr.bf16.mxu0 %v7516
        %10074 = vmatpush1.bf16.msra.mxu0 %v7515
        %10075 = vmatprep.subr.bf16.mxu0 %v7508
        %10076 = vmatpush1.bf16.msra.mxu0 %v7507
        %10077 = vmatprep.subr.bf16.mxu0 %v7500
        %10078 = vmatpush1.bf16.msra.mxu0 %v7499
        %10079 = vmatprep.subr.bf16.mxu0 %v7620
        %10080 = vmatpush2.bf16.msra.mxu0 %v7619
        %10081 = vmatprep.subr.bf16.mxu0 %v7612
        %10082 = vmatpush2.bf16.msra.mxu0 %v7611
        %10083 = vmatprep.subr.bf16.mxu0 %v7604
        %10084 = vmatpush2.bf16.msra.mxu0 %v7603
        %10085 = vmatprep.subr.bf16.mxu0 %v7596
        %10086 = vmatpush2.bf16.msra.mxu0 %v7595
        %10087 = vmatprep.subr.bf16.mxu0 %v7588
        %10088 = vmatpush2.bf16.msra.mxu0 %v7587
        %10089 = vmatprep.subr.bf16.mxu0 %v7580
        %10090 = vmatpush2.bf16.msra.mxu0 %v7579
        %10091 = vmatprep.subr.bf16.mxu0 %v7572
        %10092 = vmatpush2.bf16.msra.mxu0 %v7571
        %10093 = vmatprep.subr.bf16.mxu0 %v7564
        %10094 = vmatpush2.bf16.msra.mxu0 %v7563
        %10095 = vmatprep.mubr.bf16.mxu0 %v327
        %10096 = vmatmul.mubr.bf16.gmra.mxu0 %v326
        %v10097 = vpop.f32.mrf.mxu0
        %v10098 = vadd.f32 %v10057, %v10097
        %v10099 = vpop.f32.mrf.mxu0
        %v10100 = vadd.f32 %v10059, %v10099
        %v10101 = vpop.f32.mrf.mxu0
        %v10102 = vpop.f32.mrf.mxu0
        %10103 = vdwg.mxu0
        %10104 = vmatprep.subr.bf16.mxu0 %v7684
        %10105 = vmatpush1.bf16.msra.mxu0 %v7683
        %10106 = vmatprep.subr.bf16.mxu0 %v7676
        %10107 = vmatpush1.bf16.msra.mxu0 %v7675
        %10108 = vmatprep.subr.bf16.mxu0 %v7668
        %10109 = vmatpush1.bf16.msra.mxu0 %v7667
        %10110 = vmatprep.subr.bf16.mxu0 %v7660
        %10111 = vmatpush1.bf16.msra.mxu0 %v7659
        %10112 = vmatprep.subr.bf16.mxu0 %v7652
        %10113 = vmatpush1.bf16.msra.mxu0 %v7651
        %10114 = vmatprep.subr.bf16.mxu0 %v7644
        %10115 = vmatpush1.bf16.msra.mxu0 %v7643
        %10116 = vmatprep.subr.bf16.mxu0 %v7636
        %10117 = vmatpush1.bf16.msra.mxu0 %v7635
        %10118 = vmatprep.subr.bf16.mxu0 %v7628
        %10119 = vmatpush1.bf16.msra.mxu0 %v7627
        %10120 = vmatprep.subr.bf16.mxu0 0
        %10121 = vmatpush2.bf16.msra.mxu0 0
        %10122 = vmatprep.subr.bf16.mxu0 0
        %10123 = vmatpush2.bf16.msra.mxu0 0
        %10124 = vmatprep.subr.bf16.mxu0 0
        %10125 = vmatpush2.bf16.msra.mxu0 0
        %10126 = vmatprep.subr.bf16.mxu0 0
        %10127 = vmatpush2.bf16.msra.mxu0 0
        %10128 = vmatprep.subr.bf16.mxu0 0
        %10129 = vmatpush2.bf16.msra.mxu0 0
        %10130 = vmatprep.subr.bf16.mxu0 0
        %10131 = vmatpush2.bf16.msra.mxu0 0
        %10132 = vmatprep.subr.bf16.mxu0 0
        %10133 = vmatpush2.bf16.msra.mxu0 0
        %10134 = vmatprep.subr.bf16.mxu0 0
        %10135 = vmatpush2.bf16.msra.mxu0 0
        %10136 = vmatprep.mubr.bf16.mxu0 0
        %10137 = vmatmul.mubr.bf16.gmra.mxu0 %v328
        %v10138 = vpop.f32.mrf.mxu0
        %v10139 = vadd.f32 %v10098, %v10138
        %v10140 = vpop.f32.mrf.mxu0
        %v10141 = vadd.f32 %v10100, %v10140
        %v10142 = vpop.f32.mrf.mxu0
        %v10143 = vpop.f32.mrf.mxu0
        %10144 = vdwg.mxu0
        %10145 = vmatprep.subr.bf16.mxu0 %v6278
        %10146 = vmatpush1.bf16.msra.mxu0 %v6277
        %10147 = vmatprep.subr.bf16.mxu0 %v6270
        %10148 = vmatpush1.bf16.msra.mxu0 %v6269
        %10149 = vmatprep.subr.bf16.mxu0 %v6262
        %10150 = vmatpush1.bf16.msra.mxu0 %v6261
        %10151 = vmatprep.subr.bf16.mxu0 %v6254
        %10152 = vmatpush1.bf16.msra.mxu0 %v6253
        %10153 = vmatprep.subr.bf16.mxu0 %v6246
        %10154 = vmatpush1.bf16.msra.mxu0 %v6245
        %10155 = vmatprep.subr.bf16.mxu0 %v6238
        %10156 = vmatpush1.bf16.msra.mxu0 %v6237
        %10157 = vmatprep.subr.bf16.mxu0 %v6230
        %10158 = vmatpush1.bf16.msra.mxu0 %v6229
        %10159 = vmatprep.subr.bf16.mxu0 %v6222
        %10160 = vmatpush1.bf16.msra.mxu0 %v6221
        %10161 = vmatprep.subr.bf16.mxu0 %v6342
        %10162 = vmatpush2.bf16.msra.mxu0 %v6341
        %10163 = vmatprep.subr.bf16.mxu0 %v6334
        %10164 = vmatpush2.bf16.msra.mxu0 %v6333
        %10165 = vmatprep.subr.bf16.mxu0 %v6326
        %10166 = vmatpush2.bf16.msra.mxu0 %v6325
        %10167 = vmatprep.subr.bf16.mxu0 %v6318
        %10168 = vmatpush2.bf16.msra.mxu0 %v6317
        %10169 = vmatprep.subr.bf16.mxu0 %v6310
        %10170 = vmatpush2.bf16.msra.mxu0 %v6309
        %10171 = vmatprep.subr.bf16.mxu0 %v6302
        %10172 = vmatpush2.bf16.msra.mxu0 %v6301
        %10173 = vmatprep.subr.bf16.mxu0 %v6294
        %10174 = vmatpush2.bf16.msra.mxu0 %v6293
        %10175 = vmatprep.subr.bf16.mxu0 %v6286
        %10176 = vmatpush2.bf16.msra.mxu0 %v6285
        %10177 = vmatprep.mubr.bf16.mxu0 %v307
        %10178 = vmatmul.mubr.bf16.gmra.mxu0 %v306
        %v10179 = vpop.f32.mrf.mxu0
        %v10180 = vadd.f32 0.0, %v10179
        %v10181 = vpop.f32.mrf.mxu0
        %v10182 = vadd.f32 0.0, %v10181
        %v10183 = vpop.f32.mrf.mxu0
        %v10184 = vpop.f32.mrf.mxu0
        %10185 = vdwg.mxu0
        %10186 = vmatprep.subr.bf16.mxu0 %v6406
        %10187 = vmatpush1.bf16.msra.mxu0 %v6405
        %10188 = vmatprep.subr.bf16.mxu0 %v6398
        %10189 = vmatpush1.bf16.msra.mxu0 %v6397
        %10190 = vmatprep.subr.bf16.mxu0 %v6390
        %10191 = vmatpush1.bf16.msra.mxu0 %v6389
        %10192 = vmatprep.subr.bf16.mxu0 %v6382
        %10193 = vmatpush1.bf16.msra.mxu0 %v6381
        %10194 = vmatprep.subr.bf16.mxu0 %v6374
        %10195 = vmatpush1.bf16.msra.mxu0 %v6373
        %10196 = vmatprep.subr.bf16.mxu0 %v6366
        %10197 = vmatpush1.bf16.msra.mxu0 %v6365
        %10198 = vmatprep.subr.bf16.mxu0 %v6358
        %10199 = vmatpush1.bf16.msra.mxu0 %v6357
        %10200 = vmatprep.subr.bf16.mxu0 %v6350
        %10201 = vmatpush1.bf16.msra.mxu0 %v6349
        %10202 = vmatprep.subr.bf16.mxu0 %v6470
        %10203 = vmatpush2.bf16.msra.mxu0 %v6469
        %10204 = vmatprep.subr.bf16.mxu0 %v6462
        %10205 = vmatpush2.bf16.msra.mxu0 %v6461
        %10206 = vmatprep.subr.bf16.mxu0 %v6454
        %10207 = vmatpush2.bf16.msra.mxu0 %v6453
        %10208 = vmatprep.subr.bf16.mxu0 %v6446
        %10209 = vmatpush2.bf16.msra.mxu0 %v6445
        %10210 = vmatprep.subr.bf16.mxu0 %v6438
        %10211 = vmatpush2.bf16.msra.mxu0 %v6437
        %10212 = vmatprep.subr.bf16.mxu0 %v6430
        %10213 = vmatpush2.bf16.msra.mxu0 %v6429
        %10214 = vmatprep.subr.bf16.mxu0 %v6422
        %10215 = vmatpush2.bf16.msra.mxu0 %v6421
        %10216 = vmatprep.subr.bf16.mxu0 %v6414
        %10217 = vmatpush2.bf16.msra.mxu0 %v6413
        %10218 = vmatprep.mubr.bf16.mxu0 %v309
        %10219 = vmatmul.mubr.bf16.gmra.mxu0 %v308
        %v10220 = vpop.f32.mrf.mxu0
        %v10221 = vadd.f32 %v10180, %v10220
        %v10222 = vpop.f32.mrf.mxu0
        %v10223 = vadd.f32 %v10182, %v10222
        %v10224 = vpop.f32.mrf.mxu0
        %v10225 = vpop.f32.mrf.mxu0
        %10226 = vdwg.mxu0
        %10227 = vmatprep.subr.bf16.mxu0 %v6534
        %10228 = vmatpush1.bf16.msra.mxu0 %v6533
        %10229 = vmatprep.subr.bf16.mxu0 %v6526
        %10230 = vmatpush1.bf16.msra.mxu0 %v6525
        %10231 = vmatprep.subr.bf16.mxu0 %v6518
        %10232 = vmatpush1.bf16.msra.mxu0 %v6517
        %10233 = vmatprep.subr.bf16.mxu0 %v6510
        %10234 = vmatpush1.bf16.msra.mxu0 %v6509
        %10235 = vmatprep.subr.bf16.mxu0 %v6502
        %10236 = vmatpush1.bf16.msra.mxu0 %v6501
        %10237 = vmatprep.subr.bf16.mxu0 %v6494
        %10238 = vmatpush1.bf16.msra.mxu0 %v6493
        %10239 = vmatprep.subr.bf16.mxu0 %v6486
        %10240 = vmatpush1.bf16.msra.mxu0 %v6485
        %10241 = vmatprep.subr.bf16.mxu0 %v6478
        %10242 = vmatpush1.bf16.msra.mxu0 %v6477
        %10243 = vmatprep.subr.bf16.mxu0 %v6598
        %10244 = vmatpush2.bf16.msra.mxu0 %v6597
        %10245 = vmatprep.subr.bf16.mxu0 %v6590
        %10246 = vmatpush2.bf16.msra.mxu0 %v6589
        %10247 = vmatprep.subr.bf16.mxu0 %v6582
        %10248 = vmatpush2.bf16.msra.mxu0 %v6581
        %10249 = vmatprep.subr.bf16.mxu0 %v6574
        %10250 = vmatpush2.bf16.msra.mxu0 %v6573
        %10251 = vmatprep.subr.bf16.mxu0 %v6566
        %10252 = vmatpush2.bf16.msra.mxu0 %v6565
        %10253 = vmatprep.subr.bf16.mxu0 %v6558
        %10254 = vmatpush2.bf16.msra.mxu0 %v6557
        %10255 = vmatprep.subr.bf16.mxu0 %v6550
        %10256 = vmatpush2.bf16.msra.mxu0 %v6549
        %10257 = vmatprep.subr.bf16.mxu0 %v6542
        %10258 = vmatpush2.bf16.msra.mxu0 %v6541
        %10259 = vmatprep.mubr.bf16.mxu0 %v311
        %10260 = vmatmul.mubr.bf16.gmra.mxu0 %v310
        %v10261 = vpop.f32.mrf.mxu0
        %v10262 = vadd.f32 %v10221, %v10261
        %v10263 = vpop.f32.mrf.mxu0
        %v10264 = vadd.f32 %v10223, %v10263
        %v10265 = vpop.f32.mrf.mxu0
        %v10266 = vpop.f32.mrf.mxu0
        %10267 = vdwg.mxu0
        %10268 = vmatprep.subr.bf16.mxu0 %v6662
        %10269 = vmatpush1.bf16.msra.mxu0 %v6661
        %10270 = vmatprep.subr.bf16.mxu0 %v6654
        %10271 = vmatpush1.bf16.msra.mxu0 %v6653
        %10272 = vmatprep.subr.bf16.mxu0 %v6646
        %10273 = vmatpush1.bf16.msra.mxu0 %v6645
        %10274 = vmatprep.subr.bf16.mxu0 %v6638
        %10275 = vmatpush1.bf16.msra.mxu0 %v6637
        %10276 = vmatprep.subr.bf16.mxu0 %v6630
        %10277 = vmatpush1.bf16.msra.mxu0 %v6629
        %10278 = vmatprep.subr.bf16.mxu0 %v6622
        %10279 = vmatpush1.bf16.msra.mxu0 %v6621
        %10280 = vmatprep.subr.bf16.mxu0 %v6614
        %10281 = vmatpush1.bf16.msra.mxu0 %v6613
        %10282 = vmatprep.subr.bf16.mxu0 %v6606
        %10283 = vmatpush1.bf16.msra.mxu0 %v6605
        %10284 = vmatprep.subr.bf16.mxu0 %v6726
        %10285 = vmatpush2.bf16.msra.mxu0 %v6725
        %10286 = vmatprep.subr.bf16.mxu0 %v6718
        %10287 = vmatpush2.bf16.msra.mxu0 %v6717
        %10288 = vmatprep.subr.bf16.mxu0 %v6710
        %10289 = vmatpush2.bf16.msra.mxu0 %v6709
        %10290 = vmatprep.subr.bf16.mxu0 %v6702
        %10291 = vmatpush2.bf16.msra.mxu0 %v6701
        %10292 = vmatprep.subr.bf16.mxu0 %v6694
        %10293 = vmatpush2.bf16.msra.mxu0 %v6693
        %10294 = vmatprep.subr.bf16.mxu0 %v6686
        %10295 = vmatpush2.bf16.msra.mxu0 %v6685
        %10296 = vmatprep.subr.bf16.mxu0 %v6678
        %10297 = vmatpush2.bf16.msra.mxu0 %v6677
        %10298 = vmatprep.subr.bf16.mxu0 %v6670
        %10299 = vmatpush2.bf16.msra.mxu0 %v6669
        %10300 = vmatprep.mubr.bf16.mxu0 %v313
        %10301 = vmatmul.mubr.bf16.gmra.mxu0 %v312
        %v10302 = vpop.f32.mrf.mxu0
        %v10303 = vadd.f32 %v10262, %v10302
        %v10304 = vpop.f32.mrf.mxu0
        %v10305 = vadd.f32 %v10264, %v10304
        %v10306 = vpop.f32.mrf.mxu0
        %v10307 = vpop.f32.mrf.mxu0
        %10308 = vdwg.mxu0
        %10309 = vmatprep.subr.bf16.mxu0 %v6790
        %10310 = vmatpush1.bf16.msra.mxu0 %v6789
        %10311 = vmatprep.subr.bf16.mxu0 %v6782
        %10312 = vmatpush1.bf16.msra.mxu0 %v6781
        %10313 = vmatprep.subr.bf16.mxu0 %v6774
        %10314 = vmatpush1.bf16.msra.mxu0 %v6773
        %10315 = vmatprep.subr.bf16.mxu0 %v6766
        %10316 = vmatpush1.bf16.msra.mxu0 %v6765
        %10317 = vmatprep.subr.bf16.mxu0 %v6758
        %10318 = vmatpush1.bf16.msra.mxu0 %v6757
        %10319 = vmatprep.subr.bf16.mxu0 %v6750
        %10320 = vmatpush1.bf16.msra.mxu0 %v6749
        %10321 = vmatprep.subr.bf16.mxu0 %v6742
        %10322 = vmatpush1.bf16.msra.mxu0 %v6741
        %10323 = vmatprep.subr.bf16.mxu0 %v6734
        %10324 = vmatpush1.bf16.msra.mxu0 %v6733
        %10325 = vmatprep.subr.bf16.mxu0 %v6854
        %10326 = vmatpush2.bf16.msra.mxu0 %v6853
        %10327 = vmatprep.subr.bf16.mxu0 %v6846
        %10328 = vmatpush2.bf16.msra.mxu0 %v6845
        %10329 = vmatprep.subr.bf16.mxu0 %v6838
        %10330 = vmatpush2.bf16.msra.mxu0 %v6837
        %10331 = vmatprep.subr.bf16.mxu0 %v6830
        %10332 = vmatpush2.bf16.msra.mxu0 %v6829
        %10333 = vmatprep.subr.bf16.mxu0 %v6822
        %10334 = vmatpush2.bf16.msra.mxu0 %v6821
        %10335 = vmatprep.subr.bf16.mxu0 %v6814
        %10336 = vmatpush2.bf16.msra.mxu0 %v6813
        %10337 = vmatprep.subr.bf16.mxu0 %v6806
        %10338 = vmatpush2.bf16.msra.mxu0 %v6805
        %10339 = vmatprep.subr.bf16.mxu0 %v6798
        %10340 = vmatpush2.bf16.msra.mxu0 %v6797
        %10341 = vmatprep.mubr.bf16.mxu0 %v315
        %10342 = vmatmul.mubr.bf16.gmra.mxu0 %v314
        %v10343 = vpop.f32.mrf.mxu0
        %v10344 = vadd.f32 %v10303, %v10343
        %v10345 = vpop.f32.mrf.mxu0
        %v10346 = vadd.f32 %v10305, %v10345
        %v10347 = vpop.f32.mrf.mxu0
        %v10348 = vpop.f32.mrf.mxu0
        %10349 = vdwg.mxu0
        %10350 = vmatprep.subr.bf16.mxu0 %v6918
        %10351 = vmatpush1.bf16.msra.mxu0 %v6917
        %10352 = vmatprep.subr.bf16.mxu0 %v6910
        %10353 = vmatpush1.bf16.msra.mxu0 %v6909
        %10354 = vmatprep.subr.bf16.mxu0 %v6902
        %10355 = vmatpush1.bf16.msra.mxu0 %v6901
        %10356 = vmatprep.subr.bf16.mxu0 %v6894
        %10357 = vmatpush1.bf16.msra.mxu0 %v6893
        %10358 = vmatprep.subr.bf16.mxu0 %v6886
        %10359 = vmatpush1.bf16.msra.mxu0 %v6885
        %10360 = vmatprep.subr.bf16.mxu0 %v6878
        %10361 = vmatpush1.bf16.msra.mxu0 %v6877
        %10362 = vmatprep.subr.bf16.mxu0 %v6870
        %10363 = vmatpush1.bf16.msra.mxu0 %v6869
        %10364 = vmatprep.subr.bf16.mxu0 %v6862
        %10365 = vmatpush1.bf16.msra.mxu0 %v6861
        %10366 = vmatprep.subr.bf16.mxu0 %v6982
        %10367 = vmatpush2.bf16.msra.mxu0 %v6981
        %10368 = vmatprep.subr.bf16.mxu0 %v6974
        %10369 = vmatpush2.bf16.msra.mxu0 %v6973
        %10370 = vmatprep.subr.bf16.mxu0 %v6966
        %10371 = vmatpush2.bf16.msra.mxu0 %v6965
        %10372 = vmatprep.subr.bf16.mxu0 %v6958
        %10373 = vmatpush2.bf16.msra.mxu0 %v6957
        %10374 = vmatprep.subr.bf16.mxu0 %v6950
        %10375 = vmatpush2.bf16.msra.mxu0 %v6949
        %10376 = vmatprep.subr.bf16.mxu0 %v6942
        %10377 = vmatpush2.bf16.msra.mxu0 %v6941
        %10378 = vmatprep.subr.bf16.mxu0 %v6934
        %10379 = vmatpush2.bf16.msra.mxu0 %v6933
        %10380 = vmatprep.subr.bf16.mxu0 %v6926
        %10381 = vmatpush2.bf16.msra.mxu0 %v6925
        %10382 = vmatprep.mubr.bf16.mxu0 %v317
        %10383 = vmatmul.mubr.bf16.gmra.mxu0 %v316
        %v10384 = vpop.f32.mrf.mxu0
        %v10385 = vadd.f32 %v10344, %v10384
        %v10386 = vpop.f32.mrf.mxu0
        %v10387 = vadd.f32 %v10346, %v10386
        %v10388 = vpop.f32.mrf.mxu0
        %v10389 = vpop.f32.mrf.mxu0
        %10390 = vdwg.mxu0
        %10391 = vmatprep.subr.bf16.mxu0 %v7046
        %10392 = vmatpush1.bf16.msra.mxu0 %v7045
        %10393 = vmatprep.subr.bf16.mxu0 %v7038
        %10394 = vmatpush1.bf16.msra.mxu0 %v7037
        %10395 = vmatprep.subr.bf16.mxu0 %v7030
        %10396 = vmatpush1.bf16.msra.mxu0 %v7029
        %10397 = vmatprep.subr.bf16.mxu0 %v7022
        %10398 = vmatpush1.bf16.msra.mxu0 %v7021
        %10399 = vmatprep.subr.bf16.mxu0 %v7014
        %10400 = vmatpush1.bf16.msra.mxu0 %v7013
        %10401 = vmatprep.subr.bf16.mxu0 %v7006
        %10402 = vmatpush1.bf16.msra.mxu0 %v7005
        %10403 = vmatprep.subr.bf16.mxu0 %v6998
        %10404 = vmatpush1.bf16.msra.mxu0 %v6997
        %10405 = vmatprep.subr.bf16.mxu0 %v6990
        %10406 = vmatpush1.bf16.msra.mxu0 %v6989
        %10407 = vmatprep.subr.bf16.mxu0 %v7110
        %10408 = vmatpush2.bf16.msra.mxu0 %v7109
        %10409 = vmatprep.subr.bf16.mxu0 %v7102
        %10410 = vmatpush2.bf16.msra.mxu0 %v7101
        %10411 = vmatprep.subr.bf16.mxu0 %v7094
        %10412 = vmatpush2.bf16.msra.mxu0 %v7093
        %10413 = vmatprep.subr.bf16.mxu0 %v7086
        %10414 = vmatpush2.bf16.msra.mxu0 %v7085
        %10415 = vmatprep.subr.bf16.mxu0 %v7078
        %10416 = vmatpush2.bf16.msra.mxu0 %v7077
        %10417 = vmatprep.subr.bf16.mxu0 %v7070
        %10418 = vmatpush2.bf16.msra.mxu0 %v7069
        %10419 = vmatprep.subr.bf16.mxu0 %v7062
        %10420 = vmatpush2.bf16.msra.mxu0 %v7061
        %10421 = vmatprep.subr.bf16.mxu0 %v7054
        %10422 = vmatpush2.bf16.msra.mxu0 %v7053
        %10423 = vmatprep.mubr.bf16.mxu0 %v319
        %10424 = vmatmul.mubr.bf16.gmra.mxu0 %v318
        %v10425 = vpop.f32.mrf.mxu0
        %v10426 = vadd.f32 %v10385, %v10425
        %v10427 = vpop.f32.mrf.mxu0
        %v10428 = vadd.f32 %v10387, %v10427
        %v10429 = vpop.f32.mrf.mxu0
        %v10430 = vpop.f32.mrf.mxu0
        %10431 = vdwg.mxu0
        %10432 = vmatprep.subr.bf16.mxu0 %v7174
        %10433 = vmatpush1.bf16.msra.mxu0 %v7173
        %10434 = vmatprep.subr.bf16.mxu0 %v7166
        %10435 = vmatpush1.bf16.msra.mxu0 %v7165
        %10436 = vmatprep.subr.bf16.mxu0 %v7158
        %10437 = vmatpush1.bf16.msra.mxu0 %v7157
        %10438 = vmatprep.subr.bf16.mxu0 %v7150
        %10439 = vmatpush1.bf16.msra.mxu0 %v7149
        %10440 = vmatprep.subr.bf16.mxu0 %v7142
        %10441 = vmatpush1.bf16.msra.mxu0 %v7141
        %10442 = vmatprep.subr.bf16.mxu0 %v7134
        %10443 = vmatpush1.bf16.msra.mxu0 %v7133
        %10444 = vmatprep.subr.bf16.mxu0 %v7126
        %10445 = vmatpush1.bf16.msra.mxu0 %v7125
        %10446 = vmatprep.subr.bf16.mxu0 %v7118
        %10447 = vmatpush1.bf16.msra.mxu0 %v7117
        %10448 = vmatprep.subr.bf16.mxu0 %v7238
        %10449 = vmatpush2.bf16.msra.mxu0 %v7237
        %10450 = vmatprep.subr.bf16.mxu0 %v7230
        %10451 = vmatpush2.bf16.msra.mxu0 %v7229
        %10452 = vmatprep.subr.bf16.mxu0 %v7222
        %10453 = vmatpush2.bf16.msra.mxu0 %v7221
        %10454 = vmatprep.subr.bf16.mxu0 %v7214
        %10455 = vmatpush2.bf16.msra.mxu0 %v7213
        %10456 = vmatprep.subr.bf16.mxu0 %v7206
        %10457 = vmatpush2.bf16.msra.mxu0 %v7205
        %10458 = vmatprep.subr.bf16.mxu0 %v7198
        %10459 = vmatpush2.bf16.msra.mxu0 %v7197
        %10460 = vmatprep.subr.bf16.mxu0 %v7190
        %10461 = vmatpush2.bf16.msra.mxu0 %v7189
        %10462 = vmatprep.subr.bf16.mxu0 %v7182
        %10463 = vmatpush2.bf16.msra.mxu0 %v7181
        %10464 = vmatprep.mubr.bf16.mxu0 %v321
        %10465 = vmatmul.mubr.bf16.gmra.mxu0 %v320
        %v10466 = vpop.f32.mrf.mxu0
        %v10467 = vadd.f32 %v10426, %v10466
        %v10468 = vpop.f32.mrf.mxu0
        %v10469 = vadd.f32 %v10428, %v10468
        %v10470 = vpop.f32.mrf.mxu0
        %v10471 = vpop.f32.mrf.mxu0
        %10472 = vdwg.mxu0
        %10473 = vmatprep.subr.bf16.mxu0 %v7302
        %10474 = vmatpush1.bf16.msra.mxu0 %v7301
        %10475 = vmatprep.subr.bf16.mxu0 %v7294
        %10476 = vmatpush1.bf16.msra.mxu0 %v7293
        %10477 = vmatprep.subr.bf16.mxu0 %v7286
        %10478 = vmatpush1.bf16.msra.mxu0 %v7285
        %10479 = vmatprep.subr.bf16.mxu0 %v7278
        %10480 = vmatpush1.bf16.msra.mxu0 %v7277
        %10481 = vmatprep.subr.bf16.mxu0 %v7270
        %10482 = vmatpush1.bf16.msra.mxu0 %v7269
        %10483 = vmatprep.subr.bf16.mxu0 %v7262
        %10484 = vmatpush1.bf16.msra.mxu0 %v7261
        %10485 = vmatprep.subr.bf16.mxu0 %v7254
        %10486 = vmatpush1.bf16.msra.mxu0 %v7253
        %10487 = vmatprep.subr.bf16.mxu0 %v7246
        %10488 = vmatpush1.bf16.msra.mxu0 %v7245
        %10489 = vmatprep.subr.bf16.mxu0 %v7366
        %10490 = vmatpush2.bf16.msra.mxu0 %v7365
        %10491 = vmatprep.subr.bf16.mxu0 %v7358
        %10492 = vmatpush2.bf16.msra.mxu0 %v7357
        %10493 = vmatprep.subr.bf16.mxu0 %v7350
        %10494 = vmatpush2.bf16.msra.mxu0 %v7349
        %10495 = vmatprep.subr.bf16.mxu0 %v7342
        %10496 = vmatpush2.bf16.msra.mxu0 %v7341
        %10497 = vmatprep.subr.bf16.mxu0 %v7334
        %10498 = vmatpush2.bf16.msra.mxu0 %v7333
        %10499 = vmatprep.subr.bf16.mxu0 %v7326
        %10500 = vmatpush2.bf16.msra.mxu0 %v7325
        %10501 = vmatprep.subr.bf16.mxu0 %v7318
        %10502 = vmatpush2.bf16.msra.mxu0 %v7317
        %10503 = vmatprep.subr.bf16.mxu0 %v7310
        %10504 = vmatpush2.bf16.msra.mxu0 %v7309
        %10505 = vmatprep.mubr.bf16.mxu0 %v323
        %10506 = vmatmul.mubr.bf16.gmra.mxu0 %v322
        %v10507 = vpop.f32.mrf.mxu0
        %v10508 = vadd.f32 %v10467, %v10507
        %v10509 = vpop.f32.mrf.mxu0
        %v10510 = vadd.f32 %v10469, %v10509
        %v10511 = vpop.f32.mrf.mxu0
        %v10512 = vpop.f32.mrf.mxu0
        %10513 = vdwg.mxu0
        %10514 = vmatprep.subr.bf16.mxu0 %v7430
        %10515 = vmatpush1.bf16.msra.mxu0 %v7429
        %10516 = vmatprep.subr.bf16.mxu0 %v7422
        %10517 = vmatpush1.bf16.msra.mxu0 %v7421
        %10518 = vmatprep.subr.bf16.mxu0 %v7414
        %10519 = vmatpush1.bf16.msra.mxu0 %v7413
        %10520 = vmatprep.subr.bf16.mxu0 %v7406
        %10521 = vmatpush1.bf16.msra.mxu0 %v7405
        %10522 = vmatprep.subr.bf16.mxu0 %v7398
        %10523 = vmatpush1.bf16.msra.mxu0 %v7397
        %10524 = vmatprep.subr.bf16.mxu0 %v7390
        %10525 = vmatpush1.bf16.msra.mxu0 %v7389
        %10526 = vmatprep.subr.bf16.mxu0 %v7382
        %10527 = vmatpush1.bf16.msra.mxu0 %v7381
        %10528 = vmatprep.subr.bf16.mxu0 %v7374
        %10529 = vmatpush1.bf16.msra.mxu0 %v7373
        %10530 = vmatprep.subr.bf16.mxu0 %v7494
        %10531 = vmatpush2.bf16.msra.mxu0 %v7493
        %10532 = vmatprep.subr.bf16.mxu0 %v7486
        %10533 = vmatpush2.bf16.msra.mxu0 %v7485
        %10534 = vmatprep.subr.bf16.mxu0 %v7478
        %10535 = vmatpush2.bf16.msra.mxu0 %v7477
        %10536 = vmatprep.subr.bf16.mxu0 %v7470
        %10537 = vmatpush2.bf16.msra.mxu0 %v7469
        %10538 = vmatprep.subr.bf16.mxu0 %v7462
        %10539 = vmatpush2.bf16.msra.mxu0 %v7461
        %10540 = vmatprep.subr.bf16.mxu0 %v7454
        %10541 = vmatpush2.bf16.msra.mxu0 %v7453
        %10542 = vmatprep.subr.bf16.mxu0 %v7446
        %10543 = vmatpush2.bf16.msra.mxu0 %v7445
        %10544 = vmatprep.subr.bf16.mxu0 %v7438
        %10545 = vmatpush2.bf16.msra.mxu0 %v7437
        %10546 = vmatprep.mubr.bf16.mxu0 %v325
        %10547 = vmatmul.mubr.bf16.gmra.mxu0 %v324
        %v10548 = vpop.f32.mrf.mxu0
        %v10549 = vadd.f32 %v10508, %v10548
        %v10550 = vpop.f32.mrf.mxu0
        %v10551 = vadd.f32 %v10510, %v10550
        %v10552 = vpop.f32.mrf.mxu0
        %v10553 = vpop.f32.mrf.mxu0
        %10554 = vdwg.mxu0
        %10555 = vmatprep.subr.bf16.mxu0 %v7558
        %10556 = vmatpush1.bf16.msra.mxu0 %v7557
        %10557 = vmatprep.subr.bf16.mxu0 %v7550
        %10558 = vmatpush1.bf16.msra.mxu0 %v7549
        %10559 = vmatprep.subr.bf16.mxu0 %v7542
        %10560 = vmatpush1.bf16.msra.mxu0 %v7541
        %10561 = vmatprep.subr.bf16.mxu0 %v7534
        %10562 = vmatpush1.bf16.msra.mxu0 %v7533
        %10563 = vmatprep.subr.bf16.mxu0 %v7526
        %10564 = vmatpush1.bf16.msra.mxu0 %v7525
        %10565 = vmatprep.subr.bf16.mxu0 %v7518
        %10566 = vmatpush1.bf16.msra.mxu0 %v7517
        %10567 = vmatprep.subr.bf16.mxu0 %v7510
        %10568 = vmatpush1.bf16.msra.mxu0 %v7509
        %10569 = vmatprep.subr.bf16.mxu0 %v7502
        %10570 = vmatpush1.bf16.msra.mxu0 %v7501
        %10571 = vmatprep.subr.bf16.mxu0 %v7622
        %10572 = vmatpush2.bf16.msra.mxu0 %v7621
        %10573 = vmatprep.subr.bf16.mxu0 %v7614
        %10574 = vmatpush2.bf16.msra.mxu0 %v7613
        %10575 = vmatprep.subr.bf16.mxu0 %v7606
        %10576 = vmatpush2.bf16.msra.mxu0 %v7605
        %10577 = vmatprep.subr.bf16.mxu0 %v7598
        %10578 = vmatpush2.bf16.msra.mxu0 %v7597
        %10579 = vmatprep.subr.bf16.mxu0 %v7590
        %10580 = vmatpush2.bf16.msra.mxu0 %v7589
        %10581 = vmatprep.subr.bf16.mxu0 %v7582
        %10582 = vmatpush2.bf16.msra.mxu0 %v7581
        %10583 = vmatprep.subr.bf16.mxu0 %v7574
        %10584 = vmatpush2.bf16.msra.mxu0 %v7573
        %10585 = vmatprep.subr.bf16.mxu0 %v7566
        %10586 = vmatpush2.bf16.msra.mxu0 %v7565
        %10587 = vmatprep.mubr.bf16.mxu0 %v327
        %10588 = vmatmul.mubr.bf16.gmra.mxu0 %v326
        %v10589 = vpop.f32.mrf.mxu0
        %v10590 = vadd.f32 %v10549, %v10589
        %v10591 = vpop.f32.mrf.mxu0
        %v10592 = vadd.f32 %v10551, %v10591
        %v10593 = vpop.f32.mrf.mxu0
        %v10594 = vpop.f32.mrf.mxu0
        %10595 = vdwg.mxu0
        %10596 = vmatprep.subr.bf16.mxu0 %v7686
        %10597 = vmatpush1.bf16.msra.mxu0 %v7685
        %10598 = vmatprep.subr.bf16.mxu0 %v7678
        %10599 = vmatpush1.bf16.msra.mxu0 %v7677
        %10600 = vmatprep.subr.bf16.mxu0 %v7670
        %10601 = vmatpush1.bf16.msra.mxu0 %v7669
        %10602 = vmatprep.subr.bf16.mxu0 %v7662
        %10603 = vmatpush1.bf16.msra.mxu0 %v7661
        %10604 = vmatprep.subr.bf16.mxu0 %v7654
        %10605 = vmatpush1.bf16.msra.mxu0 %v7653
        %10606 = vmatprep.subr.bf16.mxu0 %v7646
        %10607 = vmatpush1.bf16.msra.mxu0 %v7645
        %10608 = vmatprep.subr.bf16.mxu0 %v7638
        %10609 = vmatpush1.bf16.msra.mxu0 %v7637
        %10610 = vmatprep.subr.bf16.mxu0 %v7630
        %10611 = vmatpush1.bf16.msra.mxu0 %v7629
        %10612 = vmatprep.subr.bf16.mxu0 0
        %10613 = vmatpush2.bf16.msra.mxu0 0
        %10614 = vmatprep.subr.bf16.mxu0 0
        %10615 = vmatpush2.bf16.msra.mxu0 0
        %10616 = vmatprep.subr.bf16.mxu0 0
        %10617 = vmatpush2.bf16.msra.mxu0 0
        %10618 = vmatprep.subr.bf16.mxu0 0
        %10619 = vmatpush2.bf16.msra.mxu0 0
        %10620 = vmatprep.subr.bf16.mxu0 0
        %10621 = vmatpush2.bf16.msra.mxu0 0
        %10622 = vmatprep.subr.bf16.mxu0 0
        %10623 = vmatpush2.bf16.msra.mxu0 0
        %10624 = vmatprep.subr.bf16.mxu0 0
        %10625 = vmatpush2.bf16.msra.mxu0 0
        %10626 = vmatprep.subr.bf16.mxu0 0
        %10627 = vmatpush2.bf16.msra.mxu0 0
        %10628 = vmatprep.mubr.bf16.mxu0 0
        %10629 = vmatmul.mubr.bf16.gmra.mxu0 %v328
        %v10630 = vpop.f32.mrf.mxu0
        %v10631 = vadd.f32 %v10590, %v10630
        %v10632 = vpop.f32.mrf.mxu0
        %v10633 = vadd.f32 %v10592, %v10632
        %v10634 = vpop.f32.mrf.mxu0
        %v10635 = vpop.f32.mrf.mxu0
        %10636 = vdwg.mxu0
        %10637 = vmatprep.subr.bf16.mxu0 %v6280
        %10638 = vmatpush1.bf16.msra.mxu0 %v6279
        %10639 = vmatprep.subr.bf16.mxu0 %v6272
        %10640 = vmatpush1.bf16.msra.mxu0 %v6271
        %10641 = vmatprep.subr.bf16.mxu0 %v6264
        %10642 = vmatpush1.bf16.msra.mxu0 %v6263
        %10643 = vmatprep.subr.bf16.mxu0 %v6256
        %10644 = vmatpush1.bf16.msra.mxu0 %v6255
        %10645 = vmatprep.subr.bf16.mxu0 %v6248
        %10646 = vmatpush1.bf16.msra.mxu0 %v6247
        %10647 = vmatprep.subr.bf16.mxu0 %v6240
        %10648 = vmatpush1.bf16.msra.mxu0 %v6239
        %10649 = vmatprep.subr.bf16.mxu0 %v6232
        %10650 = vmatpush1.bf16.msra.mxu0 %v6231
        %10651 = vmatprep.subr.bf16.mxu0 %v6224
        %10652 = vmatpush1.bf16.msra.mxu0 %v6223
        %10653 = vmatprep.subr.bf16.mxu0 %v6344
        %10654 = vmatpush2.bf16.msra.mxu0 %v6343
        %10655 = vmatprep.subr.bf16.mxu0 %v6336
        %10656 = vmatpush2.bf16.msra.mxu0 %v6335
        %10657 = vmatprep.subr.bf16.mxu0 %v6328
        %10658 = vmatpush2.bf16.msra.mxu0 %v6327
        %10659 = vmatprep.subr.bf16.mxu0 %v6320
        %10660 = vmatpush2.bf16.msra.mxu0 %v6319
        %10661 = vmatprep.subr.bf16.mxu0 %v6312
        %10662 = vmatpush2.bf16.msra.mxu0 %v6311
        %10663 = vmatprep.subr.bf16.mxu0 %v6304
        %10664 = vmatpush2.bf16.msra.mxu0 %v6303
        %10665 = vmatprep.subr.bf16.mxu0 %v6296
        %10666 = vmatpush2.bf16.msra.mxu0 %v6295
        %10667 = vmatprep.subr.bf16.mxu0 %v6288
        %10668 = vmatpush2.bf16.msra.mxu0 %v6287
        %10669 = vmatprep.mubr.bf16.mxu0 %v307
        %10670 = vmatmul.mubr.bf16.gmra.mxu0 %v306
        %v10671 = vpop.f32.mrf.mxu0
        %v10672 = vadd.f32 0.0, %v10671
        %v10673 = vpop.f32.mrf.mxu0
        %v10674 = vadd.f32 0.0, %v10673
        %v10675 = vpop.f32.mrf.mxu0
        %v10676 = vpop.f32.mrf.mxu0
        %10677 = vdwg.mxu0
        %10678 = vmatprep.subr.bf16.mxu0 %v6408
        %10679 = vmatpush1.bf16.msra.mxu0 %v6407
        %10680 = vmatprep.subr.bf16.mxu0 %v6400
        %10681 = vmatpush1.bf16.msra.mxu0 %v6399
        %10682 = vmatprep.subr.bf16.mxu0 %v6392
        %10683 = vmatpush1.bf16.msra.mxu0 %v6391
        %10684 = vmatprep.subr.bf16.mxu0 %v6384
        %10685 = vmatpush1.bf16.msra.mxu0 %v6383
        %10686 = vmatprep.subr.bf16.mxu0 %v6376
        %10687 = vmatpush1.bf16.msra.mxu0 %v6375
        %10688 = vmatprep.subr.bf16.mxu0 %v6368
        %10689 = vmatpush1.bf16.msra.mxu0 %v6367
        %10690 = vmatprep.subr.bf16.mxu0 %v6360
        %10691 = vmatpush1.bf16.msra.mxu0 %v6359
        %10692 = vmatprep.subr.bf16.mxu0 %v6352
        %10693 = vmatpush1.bf16.msra.mxu0 %v6351
        %10694 = vmatprep.subr.bf16.mxu0 %v6472
        %10695 = vmatpush2.bf16.msra.mxu0 %v6471
        %10696 = vmatprep.subr.bf16.mxu0 %v6464
        %10697 = vmatpush2.bf16.msra.mxu0 %v6463
        %10698 = vmatprep.subr.bf16.mxu0 %v6456
        %10699 = vmatpush2.bf16.msra.mxu0 %v6455
        %10700 = vmatprep.subr.bf16.mxu0 %v6448
        %10701 = vmatpush2.bf16.msra.mxu0 %v6447
        %10702 = vmatprep.subr.bf16.mxu0 %v6440
        %10703 = vmatpush2.bf16.msra.mxu0 %v6439
        %10704 = vmatprep.subr.bf16.mxu0 %v6432
        %10705 = vmatpush2.bf16.msra.mxu0 %v6431
        %10706 = vmatprep.subr.bf16.mxu0 %v6424
        %10707 = vmatpush2.bf16.msra.mxu0 %v6423
        %10708 = vmatprep.subr.bf16.mxu0 %v6416
        %10709 = vmatpush2.bf16.msra.mxu0 %v6415
        %10710 = vmatprep.mubr.bf16.mxu0 %v309
        %10711 = vmatmul.mubr.bf16.gmra.mxu0 %v308
        %v10712 = vpop.f32.mrf.mxu0
        %v10713 = vadd.f32 %v10672, %v10712
        %v10714 = vpop.f32.mrf.mxu0
        %v10715 = vadd.f32 %v10674, %v10714
        %v10716 = vpop.f32.mrf.mxu0
        %v10717 = vpop.f32.mrf.mxu0
        %10718 = vdwg.mxu0
        %10719 = vmatprep.subr.bf16.mxu0 %v6536
        %10720 = vmatpush1.bf16.msra.mxu0 %v6535
        %10721 = vmatprep.subr.bf16.mxu0 %v6528
        %10722 = vmatpush1.bf16.msra.mxu0 %v6527
        %10723 = vmatprep.subr.bf16.mxu0 %v6520
        %10724 = vmatpush1.bf16.msra.mxu0 %v6519
        %10725 = vmatprep.subr.bf16.mxu0 %v6512
        %10726 = vmatpush1.bf16.msra.mxu0 %v6511
        %10727 = vmatprep.subr.bf16.mxu0 %v6504
        %10728 = vmatpush1.bf16.msra.mxu0 %v6503
        %10729 = vmatprep.subr.bf16.mxu0 %v6496
        %10730 = vmatpush1.bf16.msra.mxu0 %v6495
        %10731 = vmatprep.subr.bf16.mxu0 %v6488
        %10732 = vmatpush1.bf16.msra.mxu0 %v6487
        %10733 = vmatprep.subr.bf16.mxu0 %v6480
        %10734 = vmatpush1.bf16.msra.mxu0 %v6479
        %10735 = vmatprep.subr.bf16.mxu0 %v6600
        %10736 = vmatpush2.bf16.msra.mxu0 %v6599
        %10737 = vmatprep.subr.bf16.mxu0 %v6592
        %10738 = vmatpush2.bf16.msra.mxu0 %v6591
        %10739 = vmatprep.subr.bf16.mxu0 %v6584
        %10740 = vmatpush2.bf16.msra.mxu0 %v6583
        %10741 = vmatprep.subr.bf16.mxu0 %v6576
        %10742 = vmatpush2.bf16.msra.mxu0 %v6575
        %10743 = vmatprep.subr.bf16.mxu0 %v6568
        %10744 = vmatpush2.bf16.msra.mxu0 %v6567
        %10745 = vmatprep.subr.bf16.mxu0 %v6560
        %10746 = vmatpush2.bf16.msra.mxu0 %v6559
        %10747 = vmatprep.subr.bf16.mxu0 %v6552
        %10748 = vmatpush2.bf16.msra.mxu0 %v6551
        %10749 = vmatprep.subr.bf16.mxu0 %v6544
        %10750 = vmatpush2.bf16.msra.mxu0 %v6543
        %10751 = vmatprep.mubr.bf16.mxu0 %v311
        %10752 = vmatmul.mubr.bf16.gmra.mxu0 %v310
        %v10753 = vpop.f32.mrf.mxu0
        %v10754 = vadd.f32 %v10713, %v10753
        %v10755 = vpop.f32.mrf.mxu0
        %v10756 = vadd.f32 %v10715, %v10755
        %v10757 = vpop.f32.mrf.mxu0
        %v10758 = vpop.f32.mrf.mxu0
        %10759 = vdwg.mxu0
        %10760 = vmatprep.subr.bf16.mxu0 %v6664
        %10761 = vmatpush1.bf16.msra.mxu0 %v6663
        %10762 = vmatprep.subr.bf16.mxu0 %v6656
        %10763 = vmatpush1.bf16.msra.mxu0 %v6655
        %10764 = vmatprep.subr.bf16.mxu0 %v6648
        %10765 = vmatpush1.bf16.msra.mxu0 %v6647
        %10766 = vmatprep.subr.bf16.mxu0 %v6640
        %10767 = vmatpush1.bf16.msra.mxu0 %v6639
        %10768 = vmatprep.subr.bf16.mxu0 %v6632
        %10769 = vmatpush1.bf16.msra.mxu0 %v6631
        %10770 = vmatprep.subr.bf16.mxu0 %v6624
        %10771 = vmatpush1.bf16.msra.mxu0 %v6623
        %10772 = vmatprep.subr.bf16.mxu0 %v6616
        %10773 = vmatpush1.bf16.msra.mxu0 %v6615
        %10774 = vmatprep.subr.bf16.mxu0 %v6608
        %10775 = vmatpush1.bf16.msra.mxu0 %v6607
        %10776 = vmatprep.subr.bf16.mxu0 %v6728
        %10777 = vmatpush2.bf16.msra.mxu0 %v6727
        %10778 = vmatprep.subr.bf16.mxu0 %v6720
        %10779 = vmatpush2.bf16.msra.mxu0 %v6719
        %10780 = vmatprep.subr.bf16.mxu0 %v6712
        %10781 = vmatpush2.bf16.msra.mxu0 %v6711
        %10782 = vmatprep.subr.bf16.mxu0 %v6704
        %10783 = vmatpush2.bf16.msra.mxu0 %v6703
        %10784 = vmatprep.subr.bf16.mxu0 %v6696
        %10785 = vmatpush2.bf16.msra.mxu0 %v6695
        %10786 = vmatprep.subr.bf16.mxu0 %v6688
        %10787 = vmatpush2.bf16.msra.mxu0 %v6687
        %10788 = vmatprep.subr.bf16.mxu0 %v6680
        %10789 = vmatpush2.bf16.msra.mxu0 %v6679
        %10790 = vmatprep.subr.bf16.mxu0 %v6672
        %10791 = vmatpush2.bf16.msra.mxu0 %v6671
        %10792 = vmatprep.mubr.bf16.mxu0 %v313
        %10793 = vmatmul.mubr.bf16.gmra.mxu0 %v312
        %v10794 = vpop.f32.mrf.mxu0
        %v10795 = vadd.f32 %v10754, %v10794
        %v10796 = vpop.f32.mrf.mxu0
        %v10797 = vadd.f32 %v10756, %v10796
        %v10798 = vpop.f32.mrf.mxu0
        %v10799 = vpop.f32.mrf.mxu0
        %10800 = vdwg.mxu0
        %10801 = vmatprep.subr.bf16.mxu0 %v6792
        %10802 = vmatpush1.bf16.msra.mxu0 %v6791
        %10803 = vmatprep.subr.bf16.mxu0 %v6784
        %10804 = vmatpush1.bf16.msra.mxu0 %v6783
        %10805 = vmatprep.subr.bf16.mxu0 %v6776
        %10806 = vmatpush1.bf16.msra.mxu0 %v6775
        %10807 = vmatprep.subr.bf16.mxu0 %v6768
        %10808 = vmatpush1.bf16.msra.mxu0 %v6767
        %10809 = vmatprep.subr.bf16.mxu0 %v6760
        %10810 = vmatpush1.bf16.msra.mxu0 %v6759
        %10811 = vmatprep.subr.bf16.mxu0 %v6752
        %10812 = vmatpush1.bf16.msra.mxu0 %v6751
        %10813 = vmatprep.subr.bf16.mxu0 %v6744
        %10814 = vmatpush1.bf16.msra.mxu0 %v6743
        %10815 = vmatprep.subr.bf16.mxu0 %v6736
        %10816 = vmatpush1.bf16.msra.mxu0 %v6735
        %10817 = vmatprep.subr.bf16.mxu0 %v6856
        %10818 = vmatpush2.bf16.msra.mxu0 %v6855
        %10819 = vmatprep.subr.bf16.mxu0 %v6848
        %10820 = vmatpush2.bf16.msra.mxu0 %v6847
        %10821 = vmatprep.subr.bf16.mxu0 %v6840
        %10822 = vmatpush2.bf16.msra.mxu0 %v6839
        %10823 = vmatprep.subr.bf16.mxu0 %v6832
        %10824 = vmatpush2.bf16.msra.mxu0 %v6831
        %10825 = vmatprep.subr.bf16.mxu0 %v6824
        %10826 = vmatpush2.bf16.msra.mxu0 %v6823
        %10827 = vmatprep.subr.bf16.mxu0 %v6816
        %10828 = vmatpush2.bf16.msra.mxu0 %v6815
        %10829 = vmatprep.subr.bf16.mxu0 %v6808
        %10830 = vmatpush2.bf16.msra.mxu0 %v6807
        %10831 = vmatprep.subr.bf16.mxu0 %v6800
        %10832 = vmatpush2.bf16.msra.mxu0 %v6799
        %10833 = vmatprep.mubr.bf16.mxu0 %v315
        %10834 = vmatmul.mubr.bf16.gmra.mxu0 %v314
        %v10835 = vpop.f32.mrf.mxu0
        %v10836 = vadd.f32 %v10795, %v10835
        %v10837 = vpop.f32.mrf.mxu0
        %v10838 = vadd.f32 %v10797, %v10837
        %v10839 = vpop.f32.mrf.mxu0
        %v10840 = vpop.f32.mrf.mxu0
        %10841 = vdwg.mxu0
        %10842 = vmatprep.subr.bf16.mxu0 %v6920
        %10843 = vmatpush1.bf16.msra.mxu0 %v6919
        %10844 = vmatprep.subr.bf16.mxu0 %v6912
        %10845 = vmatpush1.bf16.msra.mxu0 %v6911
        %10846 = vmatprep.subr.bf16.mxu0 %v6904
        %10847 = vmatpush1.bf16.msra.mxu0 %v6903
        %10848 = vmatprep.subr.bf16.mxu0 %v6896
        %10849 = vmatpush1.bf16.msra.mxu0 %v6895
        %10850 = vmatprep.subr.bf16.mxu0 %v6888
        %10851 = vmatpush1.bf16.msra.mxu0 %v6887
        %10852 = vmatprep.subr.bf16.mxu0 %v6880
        %10853 = vmatpush1.bf16.msra.mxu0 %v6879
        %10854 = vmatprep.subr.bf16.mxu0 %v6872
        %10855 = vmatpush1.bf16.msra.mxu0 %v6871
        %10856 = vmatprep.subr.bf16.mxu0 %v6864
        %10857 = vmatpush1.bf16.msra.mxu0 %v6863
        %10858 = vmatprep.subr.bf16.mxu0 %v6984
        %10859 = vmatpush2.bf16.msra.mxu0 %v6983
        %10860 = vmatprep.subr.bf16.mxu0 %v6976
        %10861 = vmatpush2.bf16.msra.mxu0 %v6975
        %10862 = vmatprep.subr.bf16.mxu0 %v6968
        %10863 = vmatpush2.bf16.msra.mxu0 %v6967
        %10864 = vmatprep.subr.bf16.mxu0 %v6960
        %10865 = vmatpush2.bf16.msra.mxu0 %v6959
        %10866 = vmatprep.subr.bf16.mxu0 %v6952
        %10867 = vmatpush2.bf16.msra.mxu0 %v6951
        %10868 = vmatprep.subr.bf16.mxu0 %v6944
        %10869 = vmatpush2.bf16.msra.mxu0 %v6943
        %10870 = vmatprep.subr.bf16.mxu0 %v6936
        %10871 = vmatpush2.bf16.msra.mxu0 %v6935
        %10872 = vmatprep.subr.bf16.mxu0 %v6928
        %10873 = vmatpush2.bf16.msra.mxu0 %v6927
        %10874 = vmatprep.mubr.bf16.mxu0 %v317
        %10875 = vmatmul.mubr.bf16.gmra.mxu0 %v316
        %v10876 = vpop.f32.mrf.mxu0
        %v10877 = vadd.f32 %v10836, %v10876
        %v10878 = vpop.f32.mrf.mxu0
        %v10879 = vadd.f32 %v10838, %v10878
        %v10880 = vpop.f32.mrf.mxu0
        %v10881 = vpop.f32.mrf.mxu0
        %10882 = vdwg.mxu0
        %10883 = vmatprep.subr.bf16.mxu0 %v7048
        %10884 = vmatpush1.bf16.msra.mxu0 %v7047
        %10885 = vmatprep.subr.bf16.mxu0 %v7040
        %10886 = vmatpush1.bf16.msra.mxu0 %v7039
        %10887 = vmatprep.subr.bf16.mxu0 %v7032
        %10888 = vmatpush1.bf16.msra.mxu0 %v7031
        %10889 = vmatprep.subr.bf16.mxu0 %v7024
        %10890 = vmatpush1.bf16.msra.mxu0 %v7023
        %10891 = vmatprep.subr.bf16.mxu0 %v7016
        %10892 = vmatpush1.bf16.msra.mxu0 %v7015
        %10893 = vmatprep.subr.bf16.mxu0 %v7008
        %10894 = vmatpush1.bf16.msra.mxu0 %v7007
        %10895 = vmatprep.subr.bf16.mxu0 %v7000
        %10896 = vmatpush1.bf16.msra.mxu0 %v6999
        %10897 = vmatprep.subr.bf16.mxu0 %v6992
        %10898 = vmatpush1.bf16.msra.mxu0 %v6991
        %10899 = vmatprep.subr.bf16.mxu0 %v7112
        %10900 = vmatpush2.bf16.msra.mxu0 %v7111
        %10901 = vmatprep.subr.bf16.mxu0 %v7104
        %10902 = vmatpush2.bf16.msra.mxu0 %v7103
        %10903 = vmatprep.subr.bf16.mxu0 %v7096
        %10904 = vmatpush2.bf16.msra.mxu0 %v7095
        %10905 = vmatprep.subr.bf16.mxu0 %v7088
        %10906 = vmatpush2.bf16.msra.mxu0 %v7087
        %10907 = vmatprep.subr.bf16.mxu0 %v7080
        %10908 = vmatpush2.bf16.msra.mxu0 %v7079
        %10909 = vmatprep.subr.bf16.mxu0 %v7072
        %10910 = vmatpush2.bf16.msra.mxu0 %v7071
        %10911 = vmatprep.subr.bf16.mxu0 %v7064
        %10912 = vmatpush2.bf16.msra.mxu0 %v7063
        %10913 = vmatprep.subr.bf16.mxu0 %v7056
        %10914 = vmatpush2.bf16.msra.mxu0 %v7055
        %10915 = vmatprep.mubr.bf16.mxu0 %v319
        %10916 = vmatmul.mubr.bf16.gmra.mxu0 %v318
        %v10917 = vpop.f32.mrf.mxu0
        %v10918 = vadd.f32 %v10877, %v10917
        %v10919 = vpop.f32.mrf.mxu0
        %v10920 = vadd.f32 %v10879, %v10919
        %v10921 = vpop.f32.mrf.mxu0
        %v10922 = vpop.f32.mrf.mxu0
        %10923 = vdwg.mxu0
        %10924 = vmatprep.subr.bf16.mxu0 %v7176
        %10925 = vmatpush1.bf16.msra.mxu0 %v7175
        %10926 = vmatprep.subr.bf16.mxu0 %v7168
        %10927 = vmatpush1.bf16.msra.mxu0 %v7167
        %10928 = vmatprep.subr.bf16.mxu0 %v7160
        %10929 = vmatpush1.bf16.msra.mxu0 %v7159
        %10930 = vmatprep.subr.bf16.mxu0 %v7152
        %10931 = vmatpush1.bf16.msra.mxu0 %v7151
        %10932 = vmatprep.subr.bf16.mxu0 %v7144
        %10933 = vmatpush1.bf16.msra.mxu0 %v7143
        %10934 = vmatprep.subr.bf16.mxu0 %v7136
        %10935 = vmatpush1.bf16.msra.mxu0 %v7135
        %10936 = vmatprep.subr.bf16.mxu0 %v7128
        %10937 = vmatpush1.bf16.msra.mxu0 %v7127
        %10938 = vmatprep.subr.bf16.mxu0 %v7120
        %10939 = vmatpush1.bf16.msra.mxu0 %v7119
        %10940 = vmatprep.subr.bf16.mxu0 %v7240
        %10941 = vmatpush2.bf16.msra.mxu0 %v7239
        %10942 = vmatprep.subr.bf16.mxu0 %v7232
        %10943 = vmatpush2.bf16.msra.mxu0 %v7231
        %10944 = vmatprep.subr.bf16.mxu0 %v7224
        %10945 = vmatpush2.bf16.msra.mxu0 %v7223
        %10946 = vmatprep.subr.bf16.mxu0 %v7216
        %10947 = vmatpush2.bf16.msra.mxu0 %v7215
        %10948 = vmatprep.subr.bf16.mxu0 %v7208
        %10949 = vmatpush2.bf16.msra.mxu0 %v7207
        %10950 = vmatprep.subr.bf16.mxu0 %v7200
        %10951 = vmatpush2.bf16.msra.mxu0 %v7199
        %10952 = vmatprep.subr.bf16.mxu0 %v7192
        %10953 = vmatpush2.bf16.msra.mxu0 %v7191
        %10954 = vmatprep.subr.bf16.mxu0 %v7184
        %10955 = vmatpush2.bf16.msra.mxu0 %v7183
        %10956 = vmatprep.mubr.bf16.mxu0 %v321
        %10957 = vmatmul.mubr.bf16.gmra.mxu0 %v320
        %v10958 = vpop.f32.mrf.mxu0
        %v10959 = vadd.f32 %v10918, %v10958
        %v10960 = vpop.f32.mrf.mxu0
        %v10961 = vadd.f32 %v10920, %v10960
        %v10962 = vpop.f32.mrf.mxu0
        %v10963 = vpop.f32.mrf.mxu0
        %10964 = vdwg.mxu0
        %10965 = vmatprep.subr.bf16.mxu0 %v7304
        %10966 = vmatpush1.bf16.msra.mxu0 %v7303
        %10967 = vmatprep.subr.bf16.mxu0 %v7296
        %10968 = vmatpush1.bf16.msra.mxu0 %v7295
        %10969 = vmatprep.subr.bf16.mxu0 %v7288
        %10970 = vmatpush1.bf16.msra.mxu0 %v7287
        %10971 = vmatprep.subr.bf16.mxu0 %v7280
        %10972 = vmatpush1.bf16.msra.mxu0 %v7279
        %10973 = vmatprep.subr.bf16.mxu0 %v7272
        %10974 = vmatpush1.bf16.msra.mxu0 %v7271
        %10975 = vmatprep.subr.bf16.mxu0 %v7264
        %10976 = vmatpush1.bf16.msra.mxu0 %v7263
        %10977 = vmatprep.subr.bf16.mxu0 %v7256
        %10978 = vmatpush1.bf16.msra.mxu0 %v7255
        %10979 = vmatprep.subr.bf16.mxu0 %v7248
        %10980 = vmatpush1.bf16.msra.mxu0 %v7247
        %10981 = vmatprep.subr.bf16.mxu0 %v7368
        %10982 = vmatpush2.bf16.msra.mxu0 %v7367
        %10983 = vmatprep.subr.bf16.mxu0 %v7360
        %10984 = vmatpush2.bf16.msra.mxu0 %v7359
        %10985 = vmatprep.subr.bf16.mxu0 %v7352
        %10986 = vmatpush2.bf16.msra.mxu0 %v7351
        %10987 = vmatprep.subr.bf16.mxu0 %v7344
        %10988 = vmatpush2.bf16.msra.mxu0 %v7343
        %10989 = vmatprep.subr.bf16.mxu0 %v7336
        %10990 = vmatpush2.bf16.msra.mxu0 %v7335
        %10991 = vmatprep.subr.bf16.mxu0 %v7328
        %10992 = vmatpush2.bf16.msra.mxu0 %v7327
        %10993 = vmatprep.subr.bf16.mxu0 %v7320
        %10994 = vmatpush2.bf16.msra.mxu0 %v7319
        %10995 = vmatprep.subr.bf16.mxu0 %v7312
        %10996 = vmatpush2.bf16.msra.mxu0 %v7311
        %10997 = vmatprep.mubr.bf16.mxu0 %v323
        %10998 = vmatmul.mubr.bf16.gmra.mxu0 %v322
        %v10999 = vpop.f32.mrf.mxu0
        %v11000 = vadd.f32 %v10959, %v10999
        %v11001 = vpop.f32.mrf.mxu0
        %v11002 = vadd.f32 %v10961, %v11001
        %v11003 = vpop.f32.mrf.mxu0
        %v11004 = vpop.f32.mrf.mxu0
        %11005 = vdwg.mxu0
        %11006 = vmatprep.subr.bf16.mxu0 %v7432
        %11007 = vmatpush1.bf16.msra.mxu0 %v7431
        %11008 = vmatprep.subr.bf16.mxu0 %v7424
        %11009 = vmatpush1.bf16.msra.mxu0 %v7423
        %11010 = vmatprep.subr.bf16.mxu0 %v7416
        %11011 = vmatpush1.bf16.msra.mxu0 %v7415
        %11012 = vmatprep.subr.bf16.mxu0 %v7408
        %11013 = vmatpush1.bf16.msra.mxu0 %v7407
        %11014 = vmatprep.subr.bf16.mxu0 %v7400
        %11015 = vmatpush1.bf16.msra.mxu0 %v7399
        %11016 = vmatprep.subr.bf16.mxu0 %v7392
        %11017 = vmatpush1.bf16.msra.mxu0 %v7391
        %11018 = vmatprep.subr.bf16.mxu0 %v7384
        %11019 = vmatpush1.bf16.msra.mxu0 %v7383
        %11020 = vmatprep.subr.bf16.mxu0 %v7376
        %11021 = vmatpush1.bf16.msra.mxu0 %v7375
        %11022 = vmatprep.subr.bf16.mxu0 %v7496
        %11023 = vmatpush2.bf16.msra.mxu0 %v7495
        %11024 = vmatprep.subr.bf16.mxu0 %v7488
        %11025 = vmatpush2.bf16.msra.mxu0 %v7487
        %11026 = vmatprep.subr.bf16.mxu0 %v7480
        %11027 = vmatpush2.bf16.msra.mxu0 %v7479
        %11028 = vmatprep.subr.bf16.mxu0 %v7472
        %11029 = vmatpush2.bf16.msra.mxu0 %v7471
        %11030 = vmatprep.subr.bf16.mxu0 %v7464
        %11031 = vmatpush2.bf16.msra.mxu0 %v7463
        %11032 = vmatprep.subr.bf16.mxu0 %v7456
        %11033 = vmatpush2.bf16.msra.mxu0 %v7455
        %11034 = vmatprep.subr.bf16.mxu0 %v7448
        %11035 = vmatpush2.bf16.msra.mxu0 %v7447
        %11036 = vmatprep.subr.bf16.mxu0 %v7440
        %11037 = vmatpush2.bf16.msra.mxu0 %v7439
        %11038 = vmatprep.mubr.bf16.mxu0 %v325
        %11039 = vmatmul.mubr.bf16.gmra.mxu0 %v324
        %v11040 = vpop.f32.mrf.mxu0
        %v11041 = vadd.f32 %v11000, %v11040
        %v11042 = vpop.f32.mrf.mxu0
        %v11043 = vadd.f32 %v11002, %v11042
        %v11044 = vpop.f32.mrf.mxu0
        %v11045 = vpop.f32.mrf.mxu0
        %11046 = vdwg.mxu0
        %11047 = vmatprep.subr.bf16.mxu0 %v7560
        %11048 = vmatpush1.bf16.msra.mxu0 %v7559
        %11049 = vmatprep.subr.bf16.mxu0 %v7552
        %11050 = vmatpush1.bf16.msra.mxu0 %v7551
        %11051 = vmatprep.subr.bf16.mxu0 %v7544
        %11052 = vmatpush1.bf16.msra.mxu0 %v7543
        %11053 = vmatprep.subr.bf16.mxu0 %v7536
        %11054 = vmatpush1.bf16.msra.mxu0 %v7535
        %11055 = vmatprep.subr.bf16.mxu0 %v7528
        %11056 = vmatpush1.bf16.msra.mxu0 %v7527
        %11057 = vmatprep.subr.bf16.mxu0 %v7520
        %11058 = vmatpush1.bf16.msra.mxu0 %v7519
        %11059 = vmatprep.subr.bf16.mxu0 %v7512
        %11060 = vmatpush1.bf16.msra.mxu0 %v7511
        %11061 = vmatprep.subr.bf16.mxu0 %v7504
        %11062 = vmatpush1.bf16.msra.mxu0 %v7503
        %11063 = vmatprep.subr.bf16.mxu0 %v7624
        %11064 = vmatpush2.bf16.msra.mxu0 %v7623
        %11065 = vmatprep.subr.bf16.mxu0 %v7616
        %11066 = vmatpush2.bf16.msra.mxu0 %v7615
        %11067 = vmatprep.subr.bf16.mxu0 %v7608
        %11068 = vmatpush2.bf16.msra.mxu0 %v7607
        %11069 = vmatprep.subr.bf16.mxu0 %v7600
        %11070 = vmatpush2.bf16.msra.mxu0 %v7599
        %11071 = vmatprep.subr.bf16.mxu0 %v7592
        %11072 = vmatpush2.bf16.msra.mxu0 %v7591
        %11073 = vmatprep.subr.bf16.mxu0 %v7584
        %11074 = vmatpush2.bf16.msra.mxu0 %v7583
        %11075 = vmatprep.subr.bf16.mxu0 %v7576
        %11076 = vmatpush2.bf16.msra.mxu0 %v7575
        %11077 = vmatprep.subr.bf16.mxu0 %v7568
        %11078 = vmatpush2.bf16.msra.mxu0 %v7567
        %11079 = vmatprep.mubr.bf16.mxu0 %v327
        %11080 = vmatmul.mubr.bf16.gmra.mxu0 %v326
        %v11081 = vpop.f32.mrf.mxu0
        %v11082 = vadd.f32 %v11041, %v11081
        %v11083 = vpop.f32.mrf.mxu0
        %v11084 = vadd.f32 %v11043, %v11083
        %v11085 = vpop.f32.mrf.mxu0
        %v11086 = vpop.f32.mrf.mxu0
        %11087 = vdwg.mxu0
        %11088 = vmatprep.subr.bf16.mxu0 %v7688
        %11089 = vmatpush1.bf16.msra.mxu0 %v7687
        %11090 = vmatprep.subr.bf16.mxu0 %v7680
        %11091 = vmatpush1.bf16.msra.mxu0 %v7679
        %11092 = vmatprep.subr.bf16.mxu0 %v7672
        %11093 = vmatpush1.bf16.msra.mxu0 %v7671
        %11094 = vmatprep.subr.bf16.mxu0 %v7664
        %11095 = vmatpush1.bf16.msra.mxu0 %v7663
        %11096 = vmatprep.subr.bf16.mxu0 %v7656
        %11097 = vmatpush1.bf16.msra.mxu0 %v7655
        %11098 = vmatprep.subr.bf16.mxu0 %v7648
        %11099 = vmatpush1.bf16.msra.mxu0 %v7647
        %11100 = vmatprep.subr.bf16.mxu0 %v7640
        %11101 = vmatpush1.bf16.msra.mxu0 %v7639
        %11102 = vmatprep.subr.bf16.mxu0 %v7632
        %11103 = vmatpush1.bf16.msra.mxu0 %v7631
        %11104 = vmatprep.subr.bf16.mxu0 0
        %11105 = vmatpush2.bf16.msra.mxu0 0
        %11106 = vmatprep.subr.bf16.mxu0 0
        %11107 = vmatpush2.bf16.msra.mxu0 0
        %11108 = vmatprep.subr.bf16.mxu0 0
        %11109 = vmatpush2.bf16.msra.mxu0 0
        %11110 = vmatprep.subr.bf16.mxu0 0
        %11111 = vmatpush2.bf16.msra.mxu0 0
        %11112 = vmatprep.subr.bf16.mxu0 0
        %11113 = vmatpush2.bf16.msra.mxu0 0
        %11114 = vmatprep.subr.bf16.mxu0 0
        %11115 = vmatpush2.bf16.msra.mxu0 0
        %11116 = vmatprep.subr.bf16.mxu0 0
        %11117 = vmatpush2.bf16.msra.mxu0 0
        %11118 = vmatprep.subr.bf16.mxu0 0
        %11119 = vmatpush2.bf16.msra.mxu0 0
        %11120 = vmatprep.mubr.bf16.mxu0 0
        %11121 = vmatmul.mubr.bf16.gmra.mxu0 %v328
        %v11122 = vpop.f32.mrf.mxu0
        %v11123 = vadd.f32 %v11082, %v11122
        %v11124 = vpop.f32.mrf.mxu0
        %v11125 = vadd.f32 %v11084, %v11124
        %v11126 = vpop.f32.mrf.mxu0
        %v11127 = vpop.f32.mrf.mxu0
        %11128 = vdwg.mxu0
        %v11129 = vadd.f32 %v275, %v9647
        %v11130 = vadd.f32 %v276, %v9649
        %v11131 = vadd.f32 %v277, %v10139
        %v11132 = vadd.f32 %v278, %v10141
        %v11133 = vadd.f32 %v279, %v10631
        %v11134 = vadd.f32 %v280, %v10633
        %v11135 = vadd.f32 %v281, %v11123
        %v11136 = vadd.f32 %v282, %v11125
        %11137 = vst [vmem:[#allocation2] sm:$0xff] %v11129
        %11138 = vst [vmem:[#allocation2 + $0x8] sm:$0xff] %v11130
        %11139 = vst [vmem:[#allocation2 + $0x10] sm:$0xff] %v11131
        %11140 = vst [vmem:[#allocation2 + $0x18] sm:$0xff] %v11132
        %11141 = vst [vmem:[#allocation2 + $0x20] sm:$0xff] %v11133
        %11142 = vst [vmem:[#allocation2 + $0x28] sm:$0xff] %v11134
        %11143 = vst [vmem:[#allocation2 + $0x30] sm:$0xff] %v11135
        %11144 = vst [vmem:[#allocation2 + $0x38] sm:$0xff] %v11136
        %p11145 = scmp.eq.s32.totalorder %s26, 2
        // Predicated region
        $region49: #{tpu_custom_call.1} parent=31 // pred_check
          %p11146 = pneg %p11145
        $region50: #{tpu_custom_call.1} parent=31 // pred_check_branch
          %11148 = sbr.rel (%p11146) target = $region52
        $region51: #{tpu_custom_call.1} parent=31 // pred_region
          %v11149 = vld [vmem:[#allocation2] sm:$0xff]
          %v11150 = vld [vmem:[#allocation2 + $0x8] sm:$0xff]
          %v11151 = vld [vmem:[#allocation2 + $0x10] sm:$0xff]
          %v11152 = vld [vmem:[#allocation2 + $0x18] sm:$0xff]
          %v11153 = vld [vmem:[#allocation2 + $0x20] sm:$0xff]
          %v11154 = vld [vmem:[#allocation2 + $0x28] sm:$0xff]
          %v11155 = vld [vmem:[#allocation2 + $0x30] sm:$0xff]
          %v11156 = vld [vmem:[#allocation2 + $0x38] sm:$0xff]
          %v11157 = vld [vmem:[#allocation8] sm:$0xff]
          %v11159 = vlaneseq
          %v11160 = vshrl.u32 %v11159, 7
          %v11161 = vsub.s32 0, %v11160
          %v11162 = vrot.slane %v11157, %v11161
          %v11163 = vlaneseq
          %v11164 = vshrl.u32 %v11163, 7
          %v11165 = vsub.s32 1, %v11164
          %v11166 = vrot.slane %v11157, %v11165
          %v11167 = vlaneseq
          %v11168 = vshrl.u32 %v11167, 7
          %v11169 = vsub.s32 2, %v11168
          %v11170 = vrot.slane %v11157, %v11169
          %v11171 = vlaneseq
          %v11172 = vshrl.u32 %v11171, 7
          %v11173 = vsub.s32 3, %v11172
          %v11174 = vrot.slane %v11157, %v11173
          %v11175 = vlaneseq
          %v11176 = vshrl.u32 %v11175, 7
          %v11177 = vsub.s32 4, %v11176
          %v11178 = vrot.slane %v11157, %v11177
          %v11179 = vlaneseq
          %v11180 = vshrl.u32 %v11179, 7
          %v11181 = vsub.s32 5, %v11180
          %v11182 = vrot.slane %v11157, %v11181
          %v11183 = vlaneseq
          %v11184 = vshrl.u32 %v11183, 7
          %v11185 = vsub.s32 6, %v11184
          %v11186 = vrot.slane %v11157, %v11185
          %v11187 = vlaneseq
          %v11188 = vshrl.u32 %v11187, 7
          %v11189 = vsub.s32 7, %v11188
          %v11190 = vrot.slane %v11157, %v11189
          %v11199 = vadd.f32 %v11149, %v11162
          %v11200 = vadd.f32 %v11150, %v11166
          %v11201 = vadd.f32 %v11151, %v11170
          %v11202 = vadd.f32 %v11152, %v11174
          %v11203 = vadd.f32 %v11153, %v11178
          %v11204 = vadd.f32 %v11154, %v11182
          %v11205 = vadd.f32 %v11155, %v11186
          %v11206 = vadd.f32 %v11156, %v11190
          %vm11207 = vcmp.ge.f32.partialorder %v11199, 0.0
          %vm11208 = vcmp.ge.f32.partialorder %v11200, 0.0
          %vm11209 = vcmp.ge.f32.partialorder %v11201, 0.0
          %vm11210 = vcmp.ge.f32.partialorder %v11202, 0.0
          %vm11211 = vcmp.ge.f32.partialorder %v11203, 0.0
          %vm11212 = vcmp.ge.f32.partialorder %v11204, 0.0
          %vm11213 = vcmp.ge.f32.partialorder %v11205, 0.0
          %vm11214 = vcmp.ge.f32.partialorder %v11206, 0.0
          %v11215 = vmul.f32 %v11199, 0.2
          %v11216 = vmul.f32 %v11200, 0.2
          %v11217 = vmul.f32 %v11201, 0.2
          %v11218 = vmul.f32 %v11202, 0.2
          %v11219 = vmul.f32 %v11203, 0.2
          %v11220 = vmul.f32 %v11204, 0.2
          %v11221 = vmul.f32 %v11205, 0.2
          %v11222 = vmul.f32 %v11206, 0.2
          %v11223 = vsel %vm11207, %v11199, %v11215
          %v11224 = vsel %vm11208, %v11200, %v11216
          %v11225 = vsel %vm11209, %v11201, %v11217
          %v11226 = vsel %vm11210, %v11202, %v11218
          %v11227 = vsel %vm11211, %v11203, %v11219
          %v11228 = vsel %vm11212, %v11204, %v11220
          %v11229 = vsel %vm11213, %v11205, %v11221
          %v11230 = vsel %vm11214, %v11206, %v11222
          %11231 = vst [vmem:[#allocation9] sm:$0xff] %v11223
          %11232 = vst [vmem:[#allocation9 + $0x8] sm:$0xff] %v11224
          %11233 = vst [vmem:[#allocation9 + $0x10] sm:$0xff] %v11225
          %11234 = vst [vmem:[#allocation9 + $0x18] sm:$0xff] %v11226
          %11235 = vst [vmem:[#allocation9 + $0x20] sm:$0xff] %v11227
          %11236 = vst [vmem:[#allocation9 + $0x28] sm:$0xff] %v11228
          %11237 = vst [vmem:[#allocation9 + $0x30] sm:$0xff] %v11229
          %11238 = vst [vmem:[#allocation9 + $0x38] sm:$0xff] %v11230
        $region52: #{tpu_custom_call.1} parent=31 // pred_fallthru
          _
        // Predicated region
        $region53: #{tpu_custom_call.1} parent=31 // pred_check
          %p11239 = pneg %p131
        $region54: #{tpu_custom_call.1} parent=31 // pred_check_branch
          %11241 = sbr.rel (%p11239) target = $region56
        $region55: #{tpu_custom_call.1} parent=31 // pred_region
          %s11242 = smul.u32 8, %s25
          %s11244 = ssub.s32 1024, 1024
          %11245 = vsyncadd [#allocation5], %s11244
          %s11246 = smul.addr %s11242, 128
          %s11247 = scalar_lea.hbm %s3, %s11246
          %s11249 = sshll.u32 [#allocation9], 4
          %s11250 = int_to_ptr.vmem [resolvable:$true] %s11249
          %11252 = dma.vmem_to_hbm [thread:$0]  %s11250, 1024, %s11247, [#allocation5]
        $region56: #{tpu_custom_call.1} parent=31 // pred_fallthru
          _
        // Predicated region
        $region57: #{tpu_custom_call.1} parent=31 // pred_check
          %p11253 = pneg %p131
        $region58: #{tpu_custom_call.1} parent=31 // pred_check_branch
          %11255 = sbr.rel (%p11253) target = $region60
        $region59: #{tpu_custom_call.1} parent=31 // pred_region
          %11256 = dma.done [#allocation5], 1024
        $region60: #{tpu_custom_call.1} parent=31 // pred_fallthru
          _
      $region32: #{tpu_custom_call.1} parent=5 // pred_fallthru
        _
      %p11257 = scmp.le.s32.totalorder 2, %s16
      // Predicated region
      $region61: #{tpu_custom_call.1} parent=5 // pred_check
        %p11258 = pneg %p11257
      $region62: #{tpu_custom_call.1} parent=5 // pred_check_branch
        %11260 = sbr.rel (%p11258) target = $region64
      $region63: #{tpu_custom_call.1} parent=5 // pred_region
        %s11261 = ssub.s32 %s16, 2
      $region64: #{tpu_custom_call.1} parent=5 // pred_fallthru
        _
    $region6: #{tpu_custom_call.1} parent=1 // loop_footer
      %s20 = sadd.s32 1, %s16
    $region7: #{tpu_custom_call.1} parent=1 // loop_footer_branch
      %15 = sbr.rel target = $region3
    $region8: #{tpu_custom_call.1} parent=1 // loop_exit
      _
    %11262 = vsyncpa [#allocation4], 1
    %s11263 = scalar_lea.sflag [#allocation4], 1
    %11264 = vsyncpa %s11263, 1
    %11265 = vsyncpa [#allocation7], 1
    %s11266 = scalar_lea.sflag [#allocation7], 1
    %11267 = vsyncpa %s11266, 1
    %11268 = vsyncpa [#allocation5], 1
    %s11269 = scalar_lea.sflag [#allocation5], 1
    %11270 = vsyncpa %s11269, 1

</llo_original>
